<compile_context>
chip_gen: v5e
topology: v5e:2x2
jax: 0.10.0
libtpu: 0.0.40
codegen_flags: <defaults>
</compile_context>

<pallas_src>
import functools

import jax
import jax.numpy as jnp
from jax.experimental import pallas as pl
from jax.experimental.pallas import tpu as pltpu

C_MID = 128          # 96 real channels zero-padded to a full lane width
K1_PAD = 32          # layer-1 im2col K: 3*3*3 = 27, padded to 32
OUT_PAD = 8          # final Cout = 3, padded to one sublane group
ACT_DTYPE = jnp.bfloat16


def _round_up(x, m):
    return (x + m - 1) // m * m


def _act_layout(H, W):
    """Flat padded-activation layout shared by wrapper and kernel."""
    Wp = W + 2
    M = H * Wp                           # rows: (h, w) with w in [0, W+2)
    flat = (H + 2) * Wp                  # full zero-padded image, flattened
    lpad = (-(Wp + 1)) % 16              # so the interior store start is 16-row aligned (bf16 tile)
    top = lpad + Wp + 1                  # first interior row (maps to pixel (0, 0))
    rows = _round_up(lpad + flat + 2, 16)  # +2: last tap read of the last junk row
    return Wp, M, lpad, top, rows


def dec_img_kernel(x1_ref, mask_ref, w1_ref, b1_ref, w2_ref, b2_ref,
                   w3_ref, b3_ref, o_ref, act1_ref, act2_ref, *, H, W):
    """Fused Conv->LReLU->IN -> Conv->LReLU->IN -> Conv->Sigmoid for one sample."""
    Wp, M, lpad, top, rows = _act_layout(H, W)
    HW = H * W
    C = C_MID
    inv_hw = jnp.float32(1.0 / HW)
    maskb = mask_ref[...] > 0.5                     # (M, 1) bool: True on real pixels

    def lrelu(y):
        return jnp.where(y >= 0, y, 0.01 * y)

    def inorm(y):                                   # (M, C) f32; stats over the HW valid rows only
        ym = jnp.where(maskb, y, 0.0)
        mean = jnp.sum(ym, axis=0, keepdims=True) * inv_hw
        meansq = jnp.sum(ym * ym, axis=0, keepdims=True) * inv_hw
        var = jnp.maximum(meansq - mean * mean, 0.0)
        return (y - mean) * jax.lax.rsqrt(var + 1e-5)

    def store_act(act_ref, y):
        # Zero ONLY the halo slabs (alignment pad + top border row, and the
        # bottom border row + scratch tail).  The single contiguous interior
        # store below covers the left/right halo cells too: junk rows are
        # zeroed by the mask and land exactly on those border positions.
        act_ref[0:top, :] = jnp.zeros((top, C), act_ref.dtype)
        act_ref[top + M:rows, :] = jnp.zeros((rows - top - M, C), act_ref.dtype)
        act_ref[top:top + M, :] = jnp.where(maskb, y, 0.0).astype(act_ref.dtype)

    def conv9(act_ref, w_ref):
        # 9 shift-and-accumulate matmuls; each tap is a contiguous (M, C) slab
        # of the flat padded activation at a static row offset (no im2col).
        acc = None
        for kh in range(3):
            for kw in range(3):
                off = lpad + kh * Wp + kw
                a = act_ref[off:off + M, :]
                p = jnp.dot(a, w_ref[kh * 3 + kw],
                            preferred_element_type=jnp.float32)
                acc = p if acc is None else acc + p
        return acc

    # ---- layer 1: Conv(3->96) as one im2col matmul (patches from the wrapper) ----
    y1 = jnp.dot(x1_ref[0], w1_ref[...], preferred_element_type=jnp.float32)
    y1 = inorm(lrelu(y1 + b1_ref[...]))
    store_act(act1_ref, y1)

    # ---- layer 2: Conv(96->96) straight from act1 ----
    y2 = inorm(lrelu(conv9(act1_ref, w2_ref) + b2_ref[...]))
    store_act(act2_ref, y2)

    # ---- layer 3: Conv(96->3) + sigmoid; slice lanes BEFORE the transpose ----
    y3 = conv9(act2_ref, w3_ref) + b3_ref[...]      # (M, C) f32
    o_ref[0] = jax.nn.sigmoid(
        jnp.transpose(y3[:, :OUT_PAD], (1, 0))).astype(o_ref.dtype)


def _im2col_layer1(x_nhwc):
    """(B, H, W, Cin) -> (B, H*(W+2), K1_PAD) bf16 patches in the flat-row layout."""
    B, H, W, Cin = x_nhwc.shape
    Wp = W + 2
    M = H * Wp
    xp = jnp.pad(x_nhwc, ((0, 0), (1, 1), (1, 3), (0, 0)))   # width W+4 so junk rows are defined
    cols = [xp[:, kh:kh + H, kw:kw + Wp, :].reshape(B, M, Cin)
            for kh in range(3) for kw in range(3)]
    p = jnp.concatenate(cols, axis=2)                         # (B, M, 27)
    p = jnp.pad(p, ((0, 0), (0, 0), (0, K1_PAD - 9 * Cin)))
    return p.astype(jnp.bfloat16)


def _prep_weights(params):
    """HWIO conv params -> channel-padded bf16 matmul weights + f32 row biases."""
    (w1, b1), (w2, b2), (w3, b3) = params
    c1 = w1.shape[2]                                          # 3
    cm = w2.shape[2]                                          # 96
    co = w3.shape[3]                                          # 3

    w1m = w1.reshape(9 * c1, w1.shape[3])                     # rows = (kh, kw, cin)
    w1p = jnp.zeros((K1_PAD, C_MID), jnp.float32).at[:9 * c1, :w1.shape[3]].set(w1m)
    b1p = jnp.zeros((1, C_MID), jnp.float32).at[0, :b1.shape[0]].set(b1)

    w2p = jnp.zeros((3, 3, C_MID, C_MID), jnp.float32).at[:, :, :cm, :w2.shape[3]].set(w2)
    w2p = w2p.reshape(9, C_MID, C_MID)
    b2p = jnp.zeros((1, C_MID), jnp.float32).at[0, :b2.shape[0]].set(b2)

    w3p = jnp.zeros((3, 3, C_MID, C_MID), jnp.float32).at[:, :, :cm, :co].set(w3)
    w3p = w3p.reshape(9, C_MID, C_MID)
    b3p = jnp.zeros((1, C_MID), jnp.float32).at[0, :b3.shape[0]].set(b3)

    return (w1p.astype(jnp.bfloat16), b1p,
            w2p.astype(jnp.bfloat16), b2p,
            w3p.astype(jnp.bfloat16), b3p)


def dec_img_forward(x_nchw, params):
    """params: [(w, b)] * 3, w in HWIO (3, 3, Cin, Cout), b (Cout,). x: NCHW."""
    B, _, H, W = x_nchw.shape
    n_out = params[-1][0].shape[3]
    Wp, M, lpad, top, rows = _act_layout(H, W)

    x_nhwc = jnp.transpose(x_nchw, (0, 2, 3, 1))
    x1 = _im2col_layer1(x_nhwc)                               # (B, M, 32) bf16
    mask = (jnp.arange(M, dtype=jnp.int32) % Wp < W).astype(jnp.float32)
    mask = mask.reshape(M, 1)                                 # 1.0 on real pixels
    w1p, b1p, w2p, b2p, w3p, b3p = _prep_weights(params)

    kernel = functools.partial(dec_img_kernel, H=H, W=W)

    # TODO(synk): for v7x with B == 1, add a second "parallel" grid axis over row
    # tiles (1-row halo + cross-core InstanceNorm reduction) so both TensorCores
    # are used; with grid=(B,) one TC idles for single-image inference.
    # TODO(synk): for large H*W add spatial row tiling with a two-pass
    # InstanceNorm; on v5e/v6e simply raising vmem_limit_bytes is enough, on v7x
    # (64 MiB VMEM) tile first.
    out = pl.pallas_call(
        kernel,
        out_shape=jax.ShapeDtypeStruct((B, OUT_PAD, M), jnp.float32),
        grid=(B,),
        in_specs=[
            pl.BlockSpec((1, M, K1_PAD), lambda b: (b, 0, 0)),
            pl.BlockSpec((M, 1), lambda b: (0, 0)),
            pl.BlockSpec(w1p.shape, lambda b: (0, 0)),
            pl.BlockSpec(b1p.shape, lambda b: (0, 0)),
            pl.BlockSpec(w2p.shape, lambda b: (0, 0, 0)),
            pl.BlockSpec(b2p.shape, lambda b: (0, 0)),
            pl.BlockSpec(w3p.shape, lambda b: (0, 0, 0)),
            pl.BlockSpec(b3p.shape, lambda b: (0, 0)),
        ],
        out_specs=pl.BlockSpec((1, OUT_PAD, M), lambda b: (b, 0, 0)),
        scratch_shapes=[
            pltpu.VMEM((rows, C_MID), ACT_DTYPE),   # act1, flat padded, bf16
            pltpu.VMEM((rows, C_MID), ACT_DTYPE),   # act2, flat padded, bf16
        ],
        compiler_params=pltpu.CompilerParams(
            dimension_semantics=("parallel",),      # batch axis -> both TCs when B >= 2
        ),
    )(x1, mask, w1p, b1p, w2p, b2p, w3p, b3p)

    # Rows are (h, w) with w in [0, W+2): drop the 2 junk columns; already NCHW.
    return out[:, :n_out, :].reshape(B, n_out, H, Wp)[:, :, :, :W]


def _ref_forward(x_nchw, params):
    """Pure-JAX reference for a sanity check."""
    x = jnp.transpose(x_nchw, (0, 2, 3, 1))
    n_layers = len(params)
    for i, (w, b) in enumerate(params):
        y = jax.lax.conv_general_dilated(
            x, w, (1, 1), "SAME",
            dimension_numbers=("NHWC", "HWIO", "NHWC"),
            precision=jax.lax.Precision.HIGHEST) + b
        if i < n_layers - 1:
            y = jnp.where(y >= 0, y, 0.01 * y)
            m = jnp.mean(y, axis=(1, 2), keepdims=True)
            v = jnp.mean((y - m) ** 2, axis=(1, 2), keepdims=True)
            y = (y - m) * jax.lax.rsqrt(v + 1e-5)
        else:
            y = jax.nn.sigmoid(y)
        x = y
    return jnp.transpose(x, (0, 3, 1, 2))


def _init_params(key, layer_dims):
    """Deterministic synthetic weights, HWIO layout (3, 3, Cin, Cout)."""
    params = []
    for cin, cout in layer_dims:
        key, kw_, kb_ = jax.random.split(key, 3)
        w = 0.1 * jax.random.normal(kw_, (3, 3, cin, cout), jnp.float32)
        b = 0.05 * jax.random.normal(kb_, (cout,), jnp.float32)
        params.append((w, b))
    return params


if __name__ == "__main__":
    key = jax.random.PRNGKey(0)
    k_x, k_p = jax.random.split(key)

    B, Cin, H, W = 2, 3, 16, 16
    x = jax.random.normal(k_x, (B, Cin, H, W), jnp.float32)

    params = _init_params(k_p, [(3, 96), (96, 96), (96, 3)])

    fwd = jax.jit(functools.partial(dec_img_forward, params=params))
    out = jax.block_until_ready(fwd(x))

    assert out.shape == (B, 3, H, W), out.shape

    ref = _ref_forward(x, params)
    err = float(jnp.max(jnp.abs(out - ref)))
    assert err < 5e-2, err

    print("KERNEL_OK")
</pallas_src>

<mosaic_0001>
module attributes {stable_mosaic.version = 11 : i64} {
  func.func @dec_img_kernel(%arg0: i32, %arg1: memref<1x288x32xbf16, #tpu.memory_space<vmem>>, %arg2: memref<288x1xf32, #tpu.memory_space<vmem>>, %arg3: memref<32x128xbf16, #tpu.memory_space<vmem>>, %arg4: memref<1x128xf32, #tpu.memory_space<vmem>>, %arg5: memref<9x128x128xbf16, #tpu.memory_space<vmem>>, %arg6: memref<1x128xf32, #tpu.memory_space<vmem>>, %arg7: memref<9x128x128xbf16, #tpu.memory_space<vmem>>, %arg8: memref<1x128xf32, #tpu.memory_space<vmem>>, %arg9: memref<1x8x288xf32, #tpu.memory_space<vmem>>, %arg10: memref<352x128xbf16, #tpu.memory_space<vmem>>, %arg11: memref<352x128xbf16, #tpu.memory_space<vmem>>) attributes {dimension_semantics = [#tpu.dimension_semantics<parallel>], iteration_bounds = array<i64: 2>, scalar_prefetch = 0 : i64, scratch_operands = 2 : i64, tpu.core_type = #tpu.core_type<tc>, window_params = [{transform_indices = @transform_0, window_bounds = array<i64: 1, 288, 32>}, {pipeline_mode = #tpu.pipeline_mode<synchronous>, transform_indices = @transform_1, window_bounds = array<i64: 288, 1>}, {pipeline_mode = #tpu.pipeline_mode<synchronous>, transform_indices = @transform_2, window_bounds = array<i64: 32, 128>}, {pipeline_mode = #tpu.pipeline_mode<synchronous>, transform_indices = @transform_3, window_bounds = array<i64: 1, 128>}, {pipeline_mode = #tpu.pipeline_mode<synchronous>, transform_indices = @transform_4, window_bounds = array<i64: 9, 128, 128>}, {pipeline_mode = #tpu.pipeline_mode<synchronous>, transform_indices = @transform_5, window_bounds = array<i64: 1, 128>}, {pipeline_mode = #tpu.pipeline_mode<synchronous>, transform_indices = @transform_6, window_bounds = array<i64: 9, 128, 128>}, {pipeline_mode = #tpu.pipeline_mode<synchronous>, transform_indices = @transform_7, window_bounds = array<i64: 1, 128>}, {transform_indices = @transform_8, window_bounds = array<i64: 1, 8, 288>}]} {
    %c0 = arith.constant 0 : index
    %c0_0 = arith.constant 0 : index
    %0 = vector.load %arg2[%c0, %c0_0] : memref<288x1xf32, #tpu.memory_space<vmem>>, vector<288x1xf32>
    %cst = arith.constant 5.000000e-01 : f32
    %1 = vector.broadcast %cst : f32 to vector<288x1xf32>
    %2 = arith.cmpf ogt, %0, %1 : vector<288x1xf32>
    %c0_1 = arith.constant 0 : index
    %c0_2 = arith.constant 0 : index
    %c0_3 = arith.constant 0 : index
    %3 = vector.load %arg1[%c0_1, %c0_2, %c0_3] : memref<1x288x32xbf16, #tpu.memory_space<vmem>>, vector<1x288x32xbf16>
    %4 = vector.shape_cast %3 : vector<1x288x32xbf16> to vector<288x32xbf16>
    %c0_4 = arith.constant 0 : index
    %c0_5 = arith.constant 0 : index
    %5 = vector.load %arg3[%c0_4, %c0_5] : memref<32x128xbf16, #tpu.memory_space<vmem>>, vector<32x128xbf16>
    %cst_6 = arith.constant dense<0.000000e+00> : vector<288x128xf32>
    %6 = tpu.matmul %4, %5, %cst_6 {dimension_numbers = #tpu.dot_dimension_numbers<[1], [0], [0], [1], [0, 0, 1, 1], [], []>} : vector<288x32xbf16>, vector<32x128xbf16>, vector<288x128xf32> -> vector<288x128xf32>
    %c0_7 = arith.constant 0 : index
    %c0_8 = arith.constant 0 : index
    %7 = vector.load %arg4[%c0_7, %c0_8] : memref<1x128xf32, #tpu.memory_space<vmem>>, vector<1x128xf32>
    %8 = vector.broadcast %7 : vector<1x128xf32> to vector<288x128xf32>
    %9 = arith.addf %6, %8 : vector<288x128xf32>
    %cst_9 = arith.constant 0.000000e+00 : f32
    %10 = vector.broadcast %cst_9 : f32 to vector<288x128xf32>
    %11 = arith.cmpf oge, %9, %10 : vector<288x128xf32>
    %cst_10 = arith.constant 0.00999999977 : f32
    %12 = vector.broadcast %cst_10 : f32 to vector<288x128xf32>
    %13 = arith.mulf %12, %9 : vector<288x128xf32>
    %14 = arith.select %11, %9, %13 : vector<288x128xi1>, vector<288x128xf32>
    %cst_11 = arith.constant 0.000000e+00 : f32
    %15 = vector.shape_cast %2 : vector<288x1xi1> to vector<288x1xi1>
    %16 = vector.broadcast %15 : vector<288x1xi1> to vector<288x128xi1>
    %17 = vector.broadcast %cst_11 : f32 to vector<288x128xf32>
    %18 = arith.select %16, %14, %17 : vector<288x128xi1>, vector<288x128xf32>
    %cst_12 = arith.constant dense<0.000000e+00> : vector<128xf32>
    %19 = vector.multi_reduction <add>, %18, %cst_12 [0] : vector<288x128xf32> to vector<128xf32>
    %20 = vector.shape_cast %19 : vector<128xf32> to vector<1x128xf32>
    %cst_13 = arith.constant 3.906250e-03 : f32
    %21 = vector.broadcast %cst_13 : f32 to vector<1x128xf32>
    %22 = arith.mulf %20, %21 : vector<1x128xf32>
    %23 = arith.mulf %18, %18 : vector<288x128xf32>
    %cst_14 = arith.constant dense<0.000000e+00> : vector<128xf32>
    %24 = vector.multi_reduction <add>, %23, %cst_14 [0] : vector<288x128xf32> to vector<128xf32>
    %25 = vector.shape_cast %24 : vector<128xf32> to vector<1x128xf32>
    %cst_15 = arith.constant 3.906250e-03 : f32
    %26 = vector.broadcast %cst_15 : f32 to vector<1x128xf32>
    %27 = arith.mulf %25, %26 : vector<1x128xf32>
    %28 = arith.mulf %22, %22 : vector<1x128xf32>
    %29 = arith.subf %27, %28 : vector<1x128xf32>
    %cst_16 = arith.constant 0.000000e+00 : f32
    %30 = vector.broadcast %cst_16 : f32 to vector<1x128xf32>
    %31 = arith.maximumf %29, %30 : vector<1x128xf32>
    %32 = vector.broadcast %22 : vector<1x128xf32> to vector<288x128xf32>
    %33 = arith.subf %14, %32 : vector<288x128xf32>
    %cst_17 = arith.constant 9.99999974E-6 : f32
    %34 = vector.broadcast %cst_17 : f32 to vector<1x128xf32>
    %35 = arith.addf %31, %34 : vector<1x128xf32>
    %36 = math.rsqrt %35 : vector<1x128xf32>
    %37 = vector.broadcast %36 : vector<1x128xf32> to vector<288x128xf32>
    %38 = arith.mulf %33, %37 : vector<288x128xf32>
    %cst_18 = arith.constant 0.000000e+00 : bf16
    %39 = vector.broadcast %cst_18 : bf16 to vector<32x128xbf16>
    %c0_19 = arith.constant 0 : index
    %c0_20 = arith.constant 0 : index
    %40 = vector.load %arg10[%c0_19, %c0_20] : memref<352x128xbf16, #tpu.memory_space<vmem>>, vector<32x128xbf16>
    tpu.vector_store %arg10[%c0_19, %c0_20], %39 {strides = array<i32>} : memref<352x128xbf16, #tpu.memory_space<vmem>>, vector<32x128xbf16>,
    %cst_21 = arith.constant 0.000000e+00 : bf16
    %41 = vector.broadcast %cst_21 : bf16 to vector<32x128xbf16>
    %c320 = arith.constant 320 : index
    %c0_22 = arith.constant 0 : index
    %42 = vector.load %arg10[%c320, %c0_22] : memref<352x128xbf16, #tpu.memory_space<vmem>>, vector<32x128xbf16>
    tpu.vector_store %arg10[%c320, %c0_22], %41 {strides = array<i32>} : memref<352x128xbf16, #tpu.memory_space<vmem>>, vector<32x128xbf16>,
    %cst_23 = arith.constant 0.000000e+00 : f32
    %43 = vector.shape_cast %2 : vector<288x1xi1> to vector<288x1xi1>
    %44 = vector.broadcast %43 : vector<288x1xi1> to vector<288x128xi1>
    %45 = vector.broadcast %cst_23 : f32 to vector<288x128xf32>
    %46 = arith.select %44, %38, %45 : vector<288x128xi1>, vector<288x128xf32>
    %47 = arith.truncf %46 : vector<288x128xf32> to vector<288x128xbf16>
    %c32 = arith.constant 32 : index
    %c0_24 = arith.constant 0 : index
    %48 = vector.load %arg10[%c32, %c0_24] : memref<352x128xbf16, #tpu.memory_space<vmem>>, vector<288x128xbf16>
    tpu.vector_store %arg10[%c32, %c0_24], %47 {strides = array<i32>} : memref<352x128xbf16, #tpu.memory_space<vmem>>, vector<288x128xbf16>,
    %c13 = arith.constant 13 : index
    %c0_25 = arith.constant 0 : index
    %49 = vector.load %arg10[%c13, %c0_25] : memref<352x128xbf16, #tpu.memory_space<vmem>>, vector<288x128xbf16>
    %c0_26 = arith.constant 0 : index
    %c0_27 = arith.constant 0 : index
    %c0_28 = arith.constant 0 : index
    %50 = vector.load %arg5[%c0_26, %c0_27, %c0_28] : memref<9x128x128xbf16, #tpu.memory_space<vmem>>, vector<1x128x128xbf16>
    %51 = vector.shape_cast %50 : vector<1x128x128xbf16> to vector<128x128xbf16>
    %cst_29 = arith.constant dense<0.000000e+00> : vector<288x128xf32>
    %52 = tpu.matmul %49, %51, %cst_29 {dimension_numbers = #tpu.dot_dimension_numbers<[1], [0], [0], [1], [0, 0, 1, 1], [], []>} : vector<288x128xbf16>, vector<128x128xbf16>, vector<288x128xf32> -> vector<288x128xf32>
    %c14 = arith.constant 14 : index
    %c0_30 = arith.constant 0 : index
    %53 = vector.load %arg10[%c14, %c0_30] : memref<352x128xbf16, #tpu.memory_space<vmem>>, vector<288x128xbf16>
    %c1 = arith.constant 1 : index
    %c0_31 = arith.constant 0 : index
    %c0_32 = arith.constant 0 : index
    %54 = vector.load %arg5[%c1, %c0_31, %c0_32] : memref<9x128x128xbf16, #tpu.memory_space<vmem>>, vector<1x128x128xbf16>
    %55 = vector.shape_cast %54 : vector<1x128x128xbf16> to vector<128x128xbf16>
    %cst_33 = arith.constant dense<0.000000e+00> : vector<288x128xf32>
    %56 = tpu.matmul %53, %55, %cst_33 {dimension_numbers = #tpu.dot_dimension_numbers<[1], [0], [0], [1], [0, 0, 1, 1], [], []>} : vector<288x128xbf16>, vector<128x128xbf16>, vector<288x128xf32> -> vector<288x128xf32>
    %57 = arith.addf %52, %56 : vector<288x128xf32>
    %c15 = arith.constant 15 : index
    %c0_34 = arith.constant 0 : index
    %58 = vector.load %arg10[%c15, %c0_34] : memref<352x128xbf16, #tpu.memory_space<vmem>>, vector<288x128xbf16>
    %c2 = arith.constant 2 : index
    %c0_35 = arith.constant 0 : index
    %c0_36 = arith.constant 0 : index
    %59 = vector.load %arg5[%c2, %c0_35, %c0_36] : memref<9x128x128xbf16, #tpu.memory_space<vmem>>, vector<1x128x128xbf16>
    %60 = vector.shape_cast %59 : vector<1x128x128xbf16> to vector<128x128xbf16>
    %cst_37 = arith.constant dense<0.000000e+00> : vector<288x128xf32>
    %61 = tpu.matmul %58, %60, %cst_37 {dimension_numbers = #tpu.dot_dimension_numbers<[1], [0], [0], [1], [0, 0, 1, 1], [], []>} : vector<288x128xbf16>, vector<128x128xbf16>, vector<288x128xf32> -> vector<288x128xf32>
    %62 = arith.addf %57, %61 : vector<288x128xf32>
    %c31 = arith.constant 31 : index
    %c0_38 = arith.constant 0 : index
    %63 = vector.load %arg10[%c31, %c0_38] : memref<352x128xbf16, #tpu.memory_space<vmem>>, vector<288x128xbf16>
    %c3 = arith.constant 3 : index
    %c0_39 = arith.constant 0 : index
    %c0_40 = arith.constant 0 : index
    %64 = vector.load %arg5[%c3, %c0_39, %c0_40] : memref<9x128x128xbf16, #tpu.memory_space<vmem>>, vector<1x128x128xbf16>
    %65 = vector.shape_cast %64 : vector<1x128x128xbf16> to vector<128x128xbf16>
    %cst_41 = arith.constant dense<0.000000e+00> : vector<288x128xf32>
    %66 = tpu.matmul %63, %65, %cst_41 {dimension_numbers = #tpu.dot_dimension_numbers<[1], [0], [0], [1], [0, 0, 1, 1], [], []>} : vector<288x128xbf16>, vector<128x128xbf16>, vector<288x128xf32> -> vector<288x128xf32>
    %67 = arith.addf %62, %66 : vector<288x128xf32>
    %c32_42 = arith.constant 32 : index
    %c0_43 = arith.constant 0 : index
    %68 = vector.load %arg10[%c32_42, %c0_43] : memref<352x128xbf16, #tpu.memory_space<vmem>>, vector<288x128xbf16>
    %c4 = arith.constant 4 : index
    %c0_44 = arith.constant 0 : index
    %c0_45 = arith.constant 0 : index
    %69 = vector.load %arg5[%c4, %c0_44, %c0_45] : memref<9x128x128xbf16, #tpu.memory_space<vmem>>, vector<1x128x128xbf16>
    %70 = vector.shape_cast %69 : vector<1x128x128xbf16> to vector<128x128xbf16>
    %cst_46 = arith.constant dense<0.000000e+00> : vector<288x128xf32>
    %71 = tpu.matmul %68, %70, %cst_46 {dimension_numbers = #tpu.dot_dimension_numbers<[1], [0], [0], [1], [0, 0, 1, 1], [], []>} : vector<288x128xbf16>, vector<128x128xbf16>, vector<288x128xf32> -> vector<288x128xf32>
    %72 = arith.addf %67, %71 : vector<288x128xf32>
    %c33 = arith.constant 33 : index
    %c0_47 = arith.constant 0 : index
    %73 = vector.load %arg10[%c33, %c0_47] : memref<352x128xbf16, #tpu.memory_space<vmem>>, vector<288x128xbf16>
    %c5 = arith.constant 5 : index
    %c0_48 = arith.constant 0 : index
    %c0_49 = arith.constant 0 : index
    %74 = vector.load %arg5[%c5, %c0_48, %c0_49] : memref<9x128x128xbf16, #tpu.memory_space<vmem>>, vector<1x128x128xbf16>
    %75 = vector.shape_cast %74 : vector<1x128x128xbf16> to vector<128x128xbf16>
    %cst_50 = arith.constant dense<0.000000e+00> : vector<288x128xf32>
    %76 = tpu.matmul %73, %75, %cst_50 {dimension_numbers = #tpu.dot_dimension_numbers<[1], [0], [0], [1], [0, 0, 1, 1], [], []>} : vector<288x128xbf16>, vector<128x128xbf16>, vector<288x128xf32> -> vector<288x128xf32>
    %77 = arith.addf %72, %76 : vector<288x128xf32>
    %c49 = arith.constant 49 : index
    %c0_51 = arith.constant 0 : index
    %78 = vector.load %arg10[%c49, %c0_51] : memref<352x128xbf16, #tpu.memory_space<vmem>>, vector<288x128xbf16>
    %c6 = arith.constant 6 : index
    %c0_52 = arith.constant 0 : index
    %c0_53 = arith.constant 0 : index
    %79 = vector.load %arg5[%c6, %c0_52, %c0_53] : memref<9x128x128xbf16, #tpu.memory_space<vmem>>, vector<1x128x128xbf16>
    %80 = vector.shape_cast %79 : vector<1x128x128xbf16> to vector<128x128xbf16>
    %cst_54 = arith.constant dense<0.000000e+00> : vector<288x128xf32>
    %81 = tpu.matmul %78, %80, %cst_54 {dimension_numbers = #tpu.dot_dimension_numbers<[1], [0], [0], [1], [0, 0, 1, 1], [], []>} : vector<288x128xbf16>, vector<128x128xbf16>, vector<288x128xf32> -> vector<288x128xf32>
    %82 = arith.addf %77, %81 : vector<288x128xf32>
    %c50 = arith.constant 50 : index
    %c0_55 = arith.constant 0 : index
    %83 = vector.load %arg10[%c50, %c0_55] : memref<352x128xbf16, #tpu.memory_space<vmem>>, vector<288x128xbf16>
    %c7 = arith.constant 7 : index
    %c0_56 = arith.constant 0 : index
    %c0_57 = arith.constant 0 : index
    %84 = vector.load %arg5[%c7, %c0_56, %c0_57] : memref<9x128x128xbf16, #tpu.memory_space<vmem>>, vector<1x128x128xbf16>
    %85 = vector.shape_cast %84 : vector<1x128x128xbf16> to vector<128x128xbf16>
    %cst_58 = arith.constant dense<0.000000e+00> : vector<288x128xf32>
    %86 = tpu.matmul %83, %85, %cst_58 {dimension_numbers = #tpu.dot_dimension_numbers<[1], [0], [0], [1], [0, 0, 1, 1], [], []>} : vector<288x128xbf16>, vector<128x128xbf16>, vector<288x128xf32> -> vector<288x128xf32>
    %87 = arith.addf %82, %86 : vector<288x128xf32>
    %c51 = arith.constant 51 : index
    %c0_59 = arith.constant 0 : index
    %88 = vector.load %arg10[%c51, %c0_59] : memref<352x128xbf16, #tpu.memory_space<vmem>>, vector<288x128xbf16>
    %c8 = arith.constant 8 : index
    %c0_60 = arith.constant 0 : index
    %c0_61 = arith.constant 0 : index
    %89 = vector.load %arg5[%c8, %c0_60, %c0_61] : memref<9x128x128xbf16, #tpu.memory_space<vmem>>, vector<1x128x128xbf16>
    %90 = vector.shape_cast %89 : vector<1x128x128xbf16> to vector<128x128xbf16>
    %cst_62 = arith.constant dense<0.000000e+00> : vector<288x128xf32>
    %91 = tpu.matmul %88, %90, %cst_62 {dimension_numbers = #tpu.dot_dimension_numbers<[1], [0], [0], [1], [0, 0, 1, 1], [], []>} : vector<288x128xbf16>, vector<128x128xbf16>, vector<288x128xf32> -> vector<288x128xf32>
    %92 = arith.addf %87, %91 : vector<288x128xf32>
    %c0_63 = arith.constant 0 : index
    %c0_64 = arith.constant 0 : index
    %93 = vector.load %arg6[%c0_63, %c0_64] : memref<1x128xf32, #tpu.memory_space<vmem>>, vector<1x128xf32>
    %94 = vector.broadcast %93 : vector<1x128xf32> to vector<288x128xf32>
    %95 = arith.addf %92, %94 : vector<288x128xf32>
    %cst_65 = arith.constant 0.000000e+00 : f32
    %96 = vector.broadcast %cst_65 : f32 to vector<288x128xf32>
    %97 = arith.cmpf oge, %95, %96 : vector<288x128xf32>
    %cst_66 = arith.constant 0.00999999977 : f32
    %98 = vector.broadcast %cst_66 : f32 to vector<288x128xf32>
    %99 = arith.mulf %98, %95 : vector<288x128xf32>
    %100 = arith.select %97, %95, %99 : vector<288x128xi1>, vector<288x128xf32>
    %cst_67 = arith.constant 0.000000e+00 : f32
    %101 = vector.shape_cast %2 : vector<288x1xi1> to vector<288x1xi1>
    %102 = vector.broadcast %101 : vector<288x1xi1> to vector<288x128xi1>
    %103 = vector.broadcast %cst_67 : f32 to vector<288x128xf32>
    %104 = arith.select %102, %100, %103 : vector<288x128xi1>, vector<288x128xf32>
    %cst_68 = arith.constant dense<0.000000e+00> : vector<128xf32>
    %105 = vector.multi_reduction <add>, %104, %cst_68 [0] : vector<288x128xf32> to vector<128xf32>
    %106 = vector.shape_cast %105 : vector<128xf32> to vector<1x128xf32>
    %cst_69 = arith.constant 3.906250e-03 : f32
    %107 = vector.broadcast %cst_69 : f32 to vector<1x128xf32>
    %108 = arith.mulf %106, %107 : vector<1x128xf32>
    %109 = arith.mulf %104, %104 : vector<288x128xf32>
    %cst_70 = arith.constant dense<0.000000e+00> : vector<128xf32>
    %110 = vector.multi_reduction <add>, %109, %cst_70 [0] : vector<288x128xf32> to vector<128xf32>
    %111 = vector.shape_cast %110 : vector<128xf32> to vector<1x128xf32>
    %cst_71 = arith.constant 3.906250e-03 : f32
    %112 = vector.broadcast %cst_71 : f32 to vector<1x128xf32>
    %113 = arith.mulf %111, %112 : vector<1x128xf32>
    %114 = arith.mulf %108, %108 : vector<1x128xf32>
    %115 = arith.subf %113, %114 : vector<1x128xf32>
    %cst_72 = arith.constant 0.000000e+00 : f32
    %116 = vector.broadcast %cst_72 : f32 to vector<1x128xf32>
    %117 = arith.maximumf %115, %116 : vector<1x128xf32>
    %118 = vector.broadcast %108 : vector<1x128xf32> to vector<288x128xf32>
    %119 = arith.subf %100, %118 : vector<288x128xf32>
    %cst_73 = arith.constant 9.99999974E-6 : f32
    %120 = vector.broadcast %cst_73 : f32 to vector<1x128xf32>
    %121 = arith.addf %117, %120 : vector<1x128xf32>
    %122 = math.rsqrt %121 : vector<1x128xf32>
    %123 = vector.broadcast %122 : vector<1x128xf32> to vector<288x128xf32>
    %124 = arith.mulf %119, %123 : vector<288x128xf32>
    %cst_74 = arith.constant 0.000000e+00 : bf16
    %125 = vector.broadcast %cst_74 : bf16 to vector<32x128xbf16>
    %c0_75 = arith.constant 0 : index
    %c0_76 = arith.constant 0 : index
    %126 = vector.load %arg11[%c0_75, %c0_76] : memref<352x128xbf16, #tpu.memory_space<vmem>>, vector<32x128xbf16>
    tpu.vector_store %arg11[%c0_75, %c0_76], %125 {strides = array<i32>} : memref<352x128xbf16, #tpu.memory_space<vmem>>, vector<32x128xbf16>,
    %cst_77 = arith.constant 0.000000e+00 : bf16
    %127 = vector.broadcast %cst_77 : bf16 to vector<32x128xbf16>
    %c320_78 = arith.constant 320 : index
    %c0_79 = arith.constant 0 : index
    %128 = vector.load %arg11[%c320_78, %c0_79] : memref<352x128xbf16, #tpu.memory_space<vmem>>, vector<32x128xbf16>
    tpu.vector_store %arg11[%c320_78, %c0_79], %127 {strides = array<i32>} : memref<352x128xbf16, #tpu.memory_space<vmem>>, vector<32x128xbf16>,
    %cst_80 = arith.constant 0.000000e+00 : f32
    %129 = vector.shape_cast %2 : vector<288x1xi1> to vector<288x1xi1>
    %130 = vector.broadcast %129 : vector<288x1xi1> to vector<288x128xi1>
    %131 = vector.broadcast %cst_80 : f32 to vector<288x128xf32>
    %132 = arith.select %130, %124, %131 : vector<288x128xi1>, vector<288x128xf32>
    %133 = arith.truncf %132 : vector<288x128xf32> to vector<288x128xbf16>
    %c32_81 = arith.constant 32 : index
    %c0_82 = arith.constant 0 : index
    %134 = vector.load %arg11[%c32_81, %c0_82] : memref<352x128xbf16, #tpu.memory_space<vmem>>, vector<288x128xbf16>
    tpu.vector_store %arg11[%c32_81, %c0_82], %133 {strides = array<i32>} : memref<352x128xbf16, #tpu.memory_space<vmem>>, vector<288x128xbf16>,
    %c13_83 = arith.constant 13 : index
    %c0_84 = arith.constant 0 : index
    %135 = vector.load %arg11[%c13_83, %c0_84] : memref<352x128xbf16, #tpu.memory_space<vmem>>, vector<288x128xbf16>
    %c0_85 = arith.constant 0 : index
    %c0_86 = arith.constant 0 : index
    %c0_87 = arith.constant 0 : index
    %136 = vector.load %arg7[%c0_85, %c0_86, %c0_87] : memref<9x128x128xbf16, #tpu.memory_space<vmem>>, vector<1x128x128xbf16>
    %137 = vector.shape_cast %136 : vector<1x128x128xbf16> to vector<128x128xbf16>
    %cst_88 = arith.constant dense<0.000000e+00> : vector<288x128xf32>
    %138 = tpu.matmul %135, %137, %cst_88 {dimension_numbers = #tpu.dot_dimension_numbers<[1], [0], [0], [1], [0, 0, 1, 1], [], []>} : vector<288x128xbf16>, vector<128x128xbf16>, vector<288x128xf32> -> vector<288x128xf32>
    %c14_89 = arith.constant 14 : index
    %c0_90 = arith.constant 0 : index
    %139 = vector.load %arg11[%c14_89, %c0_90] : memref<352x128xbf16, #tpu.memory_space<vmem>>, vector<288x128xbf16>
    %c1_91 = arith.constant 1 : index
    %c0_92 = arith.constant 0 : index
    %c0_93 = arith.constant 0 : index
    %140 = vector.load %arg7[%c1_91, %c0_92, %c0_93] : memref<9x128x128xbf16, #tpu.memory_space<vmem>>, vector<1x128x128xbf16>
    %141 = vector.shape_cast %140 : vector<1x128x128xbf16> to vector<128x128xbf16>
    %cst_94 = arith.constant dense<0.000000e+00> : vector<288x128xf32>
    %142 = tpu.matmul %139, %141, %cst_94 {dimension_numbers = #tpu.dot_dimension_numbers<[1], [0], [0], [1], [0, 0, 1, 1], [], []>} : vector<288x128xbf16>, vector<128x128xbf16>, vector<288x128xf32> -> vector<288x128xf32>
    %143 = arith.addf %138, %142 : vector<288x128xf32>
    %c15_95 = arith.constant 15 : index
    %c0_96 = arith.constant 0 : index
    %144 = vector.load %arg11[%c15_95, %c0_96] : memref<352x128xbf16, #tpu.memory_space<vmem>>, vector<288x128xbf16>
    %c2_97 = arith.constant 2 : index
    %c0_98 = arith.constant 0 : index
    %c0_99 = arith.constant 0 : index
    %145 = vector.load %arg7[%c2_97, %c0_98, %c0_99] : memref<9x128x128xbf16, #tpu.memory_space<vmem>>, vector<1x128x128xbf16>
    %146 = vector.shape_cast %145 : vector<1x128x128xbf16> to vector<128x128xbf16>
    %cst_100 = arith.constant dense<0.000000e+00> : vector<288x128xf32>
    %147 = tpu.matmul %144, %146, %cst_100 {dimension_numbers = #tpu.dot_dimension_numbers<[1], [0], [0], [1], [0, 0, 1, 1], [], []>} : vector<288x128xbf16>, vector<128x128xbf16>, vector<288x128xf32> -> vector<288x128xf32>
    %148 = arith.addf %143, %147 : vector<288x128xf32>
    %c31_101 = arith.constant 31 : index
    %c0_102 = arith.constant 0 : index
    %149 = vector.load %arg11[%c31_101, %c0_102] : memref<352x128xbf16, #tpu.memory_space<vmem>>, vector<288x128xbf16>
    %c3_103 = arith.constant 3 : index
    %c0_104 = arith.constant 0 : index
    %c0_105 = arith.constant 0 : index
    %150 = vector.load %arg7[%c3_103, %c0_104, %c0_105] : memref<9x128x128xbf16, #tpu.memory_space<vmem>>, vector<1x128x128xbf16>
    %151 = vector.shape_cast %150 : vector<1x128x128xbf16> to vector<128x128xbf16>
    %cst_106 = arith.constant dense<0.000000e+00> : vector<288x128xf32>
    %152 = tpu.matmul %149, %151, %cst_106 {dimension_numbers = #tpu.dot_dimension_numbers<[1], [0], [0], [1], [0, 0, 1, 1], [], []>} : vector<288x128xbf16>, vector<128x128xbf16>, vector<288x128xf32> -> vector<288x128xf32>
    %153 = arith.addf %148, %152 : vector<288x128xf32>
    %c32_107 = arith.constant 32 : index
    %c0_108 = arith.constant 0 : index
    %154 = vector.load %arg11[%c32_107, %c0_108] : memref<352x128xbf16, #tpu.memory_space<vmem>>, vector<288x128xbf16>
    %c4_109 = arith.constant 4 : index
    %c0_110 = arith.constant 0 : index
    %c0_111 = arith.constant 0 : index
    %155 = vector.load %arg7[%c4_109, %c0_110, %c0_111] : memref<9x128x128xbf16, #tpu.memory_space<vmem>>, vector<1x128x128xbf16>
    %156 = vector.shape_cast %155 : vector<1x128x128xbf16> to vector<128x128xbf16>
    %cst_112 = arith.constant dense<0.000000e+00> : vector<288x128xf32>
    %157 = tpu.matmul %154, %156, %cst_112 {dimension_numbers = #tpu.dot_dimension_numbers<[1], [0], [0], [1], [0, 0, 1, 1], [], []>} : vector<288x128xbf16>, vector<128x128xbf16>, vector<288x128xf32> -> vector<288x128xf32>
    %158 = arith.addf %153, %157 : vector<288x128xf32>
    %c33_113 = arith.constant 33 : index
    %c0_114 = arith.constant 0 : index
    %159 = vector.load %arg11[%c33_113, %c0_114] : memref<352x128xbf16, #tpu.memory_space<vmem>>, vector<288x128xbf16>
    %c5_115 = arith.constant 5 : index
    %c0_116 = arith.constant 0 : index
    %c0_117 = arith.constant 0 : index
    %160 = vector.load %arg7[%c5_115, %c0_116, %c0_117] : memref<9x128x128xbf16, #tpu.memory_space<vmem>>, vector<1x128x128xbf16>
    %161 = vector.shape_cast %160 : vector<1x128x128xbf16> to vector<128x128xbf16>
    %cst_118 = arith.constant dense<0.000000e+00> : vector<288x128xf32>
    %162 = tpu.matmul %159, %161, %cst_118 {dimension_numbers = #tpu.dot_dimension_numbers<[1], [0], [0], [1], [0, 0, 1, 1], [], []>} : vector<288x128xbf16>, vector<128x128xbf16>, vector<288x128xf32> -> vector<288x128xf32>
    %163 = arith.addf %158, %162 : vector<288x128xf32>
    %c49_119 = arith.constant 49 : index
    %c0_120 = arith.constant 0 : index
    %164 = vector.load %arg11[%c49_119, %c0_120] : memref<352x128xbf16, #tpu.memory_space<vmem>>, vector<288x128xbf16>
    %c6_121 = arith.constant 6 : index
    %c0_122 = arith.constant 0 : index
    %c0_123 = arith.constant 0 : index
    %165 = vector.load %arg7[%c6_121, %c0_122, %c0_123] : memref<9x128x128xbf16, #tpu.memory_space<vmem>>, vector<1x128x128xbf16>
    %166 = vector.shape_cast %165 : vector<1x128x128xbf16> to vector<128x128xbf16>
    %cst_124 = arith.constant dense<0.000000e+00> : vector<288x128xf32>
    %167 = tpu.matmul %164, %166, %cst_124 {dimension_numbers = #tpu.dot_dimension_numbers<[1], [0], [0], [1], [0, 0, 1, 1], [], []>} : vector<288x128xbf16>, vector<128x128xbf16>, vector<288x128xf32> -> vector<288x128xf32>
    %168 = arith.addf %163, %167 : vector<288x128xf32>
    %c50_125 = arith.constant 50 : index
    %c0_126 = arith.constant 0 : index
    %169 = vector.load %arg11[%c50_125, %c0_126] : memref<352x128xbf16, #tpu.memory_space<vmem>>, vector<288x128xbf16>
    %c7_127 = arith.constant 7 : index
    %c0_128 = arith.constant 0 : index
    %c0_129 = arith.constant 0 : index
    %170 = vector.load %arg7[%c7_127, %c0_128, %c0_129] : memref<9x128x128xbf16, #tpu.memory_space<vmem>>, vector<1x128x128xbf16>
    %171 = vector.shape_cast %170 : vector<1x128x128xbf16> to vector<128x128xbf16>
    %cst_130 = arith.constant dense<0.000000e+00> : vector<288x128xf32>
    %172 = tpu.matmul %169, %171, %cst_130 {dimension_numbers = #tpu.dot_dimension_numbers<[1], [0], [0], [1], [0, 0, 1, 1], [], []>} : vector<288x128xbf16>, vector<128x128xbf16>, vector<288x128xf32> -> vector<288x128xf32>
    %173 = arith.addf %168, %172 : vector<288x128xf32>
    %c51_131 = arith.constant 51 : index
    %c0_132 = arith.constant 0 : index
    %174 = vector.load %arg11[%c51_131, %c0_132] : memref<352x128xbf16, #tpu.memory_space<vmem>>, vector<288x128xbf16>
    %c8_133 = arith.constant 8 : index
    %c0_134 = arith.constant 0 : index
    %c0_135 = arith.constant 0 : index
    %175 = vector.load %arg7[%c8_133, %c0_134, %c0_135] : memref<9x128x128xbf16, #tpu.memory_space<vmem>>, vector<1x128x128xbf16>
    %176 = vector.shape_cast %175 : vector<1x128x128xbf16> to vector<128x128xbf16>
    %cst_136 = arith.constant dense<0.000000e+00> : vector<288x128xf32>
    %177 = tpu.matmul %174, %176, %cst_136 {dimension_numbers = #tpu.dot_dimension_numbers<[1], [0], [0], [1], [0, 0, 1, 1], [], []>} : vector<288x128xbf16>, vector<128x128xbf16>, vector<288x128xf32> -> vector<288x128xf32>
    %178 = arith.addf %173, %177 : vector<288x128xf32>
    %c0_137 = arith.constant 0 : index
    %c0_138 = arith.constant 0 : index
    %179 = vector.load %arg8[%c0_137, %c0_138] : memref<1x128xf32, #tpu.memory_space<vmem>>, vector<1x128xf32>
    %180 = vector.broadcast %179 : vector<1x128xf32> to vector<288x128xf32>
    %181 = arith.addf %178, %180 : vector<288x128xf32>
    %182 = vector.extract_strided_slice %181 {offsets = [0, 0], sizes = [288, 8], strides = [1, 1]} : vector<288x128xf32> to vector<288x8xf32>
    %183 = tpu.transpose %182, [1, 0] : vector<288x8xf32> -> vector<8x288xf32>
    %184 = arith.negf %183 : vector<8x288xf32>
    %185 = math.exp %184 : vector<8x288xf32>
    %cst_139 = arith.constant 1.000000e+00 : f32
    %186 = vector.broadcast %cst_139 : f32 to vector<8x288xf32>
    %187 = arith.addf %186, %185 : vector<8x288xf32>
    %188 = arith.divf %186, %187 : vector<8x288xf32>
    %c0_140 = arith.constant 0 : index
    %c0_141 = arith.constant 0 : index
    %c0_142 = arith.constant 0 : index
    %189 = vector.load %arg9[%c0_140, %c0_141, %c0_142] : memref<1x8x288xf32, #tpu.memory_space<vmem>>, vector<1x8x288xf32>
    %190 = vector.shape_cast %189 : vector<1x8x288xf32> to vector<8x288xf32>
    %191 = vector.shape_cast %188 : vector<8x288xf32> to vector<1x8x288xf32>
    tpu.vector_store %arg9[%c0_140, %c0_141, %c0_142], %191 {strides = array<i32>} : memref<1x8x288xf32, #tpu.memory_space<vmem>>, vector<1x8x288xf32>,
    return
  }
  func.func @transform_0(%arg0: i32) -> (i32, i32, i32) {
    %c0_i32 = arith.constant 0 : i32
    %c0_i32_0 = arith.constant 0 : i32
    %c0_i32_1 = arith.constant 0 : i32
    return %arg0, %c0_i32, %c0_i32_0 : i32, i32, i32
  }
  func.func @transform_1(%arg0: i32) -> (i32, i32) {
    %c0_i32 = arith.constant 0 : i32
    %c0_i32_0 = arith.constant 0 : i32
    %c0_i32_1 = arith.constant 0 : i32
    return %c0_i32, %c0_i32_0 : i32, i32
  }
  func.func @transform_2(%arg0: i32) -> (i32, i32) {
    %c0_i32 = arith.constant 0 : i32
    %c0_i32_0 = arith.constant 0 : i32
    %c0_i32_1 = arith.constant 0 : i32
    return %c0_i32, %c0_i32_0 : i32, i32
  }
  func.func @transform_3(%arg0: i32) -> (i32, i32) {
    %c0_i32 = arith.constant 0 : i32
    %c0_i32_0 = arith.constant 0 : i32
    %c0_i32_1 = arith.constant 0 : i32
    return %c0_i32, %c0_i32_0 : i32, i32
  }
  func.func @transform_4(%arg0: i32) -> (i32, i32, i32) {
    %c0_i32 = arith.constant 0 : i32
    %c0_i32_0 = arith.constant 0 : i32
    %c0_i32_1 = arith.constant 0 : i32
    %c0_i32_2 = arith.constant 0 : i32
    return %c0_i32, %c0_i32_0, %c0_i32_1 : i32, i32, i32
  }
  func.func @transform_5(%arg0: i32) -> (i32, i32) {
    %c0_i32 = arith.constant 0 : i32
    %c0_i32_0 = arith.constant 0 : i32
    %c0_i32_1 = arith.constant 0 : i32
    return %c0_i32, %c0_i32_0 : i32, i32
  }
  func.func @transform_6(%arg0: i32) -> (i32, i32, i32) {
    %c0_i32 = arith.constant 0 : i32
    %c0_i32_0 = arith.constant 0 : i32
    %c0_i32_1 = arith.constant 0 : i32
    %c0_i32_2 = arith.constant 0 : i32
    return %c0_i32, %c0_i32_0, %c0_i32_1 : i32, i32, i32
  }
  func.func @transform_7(%arg0: i32) -> (i32, i32) {
    %c0_i32 = arith.constant 0 : i32
    %c0_i32_0 = arith.constant 0 : i32
    %c0_i32_1 = arith.constant 0 : i32
    return %c0_i32, %c0_i32_0 : i32, i32
  }
  func.func @transform_8(%arg0: i32) -> (i32, i32, i32) {
    %c0_i32 = arith.constant 0 : i32
    %c0_i32_0 = arith.constant 0 : i32
    %c0_i32_1 = arith.constant 0 : i32
    return %arg0, %c0_i32, %c0_i32_0 : i32, i32, i32
  }
}

</mosaic_0001>

<llo_original>
// kernel: dec_img_forward.1
$region0: #{dec_img_forward.1}
  #allocation0 [shape = 'u32[]', space=smem, size = 0x4, offset = 0x4, fixed_abs, tag = 'smem constant byte address 0x4 - core index']
  #allocation1 [shape = 'u32[72,128]{1,0:T(1,128)}', space=vmem, size = 0x9000, scoped, tag = 'internal scratch']
  #allocation2 [shape = 'bf16[352,128]{1,0:T(8,128)(2,1)}', space=vmem, size = 0x16000, scoped, tag = 'scratch operand']
  #allocation3 [shape = 'bf16[352,128]{1,0:T(8,128)(2,1)}', space=vmem, size = 0x16000, scoped, tag = 'scratch operand']
  %s0 = inlined_call_operand.vmem [shape: bf16[2,288,32], index: 0, kind: input, shape index: {}]
  %s1 = inlined_call_operand.vmem [shape: f32[288,1], index: 1, kind: input, shape index: {}]
  %s2 = inlined_call_operand.vmem [shape: bf16[32,128], index: 2, kind: input, shape index: {}]
  %s3 = inlined_call_operand.vmem [shape: f32[1,128], index: 3, kind: input, shape index: {}]
  %s4 = inlined_call_operand.vmem [shape: bf16[9,128,128], index: 4, kind: input, shape index: {}]
  %s5 = inlined_call_operand.vmem [shape: f32[1,128], index: 5, kind: input, shape index: {}]
  %s6 = inlined_call_operand.vmem [shape: bf16[9,128,128], index: 6, kind: input, shape index: {}]
  %s7 = inlined_call_operand.vmem [shape: f32[1,128], index: 7, kind: input, shape index: {}]
  %s8 = inlined_call_operand.vmem [shape: f32[2,8,288], index: 8, kind: output, shape index: {}]
  %s9 = sld [smem:[#allocation0]]
  $region65: #{dec_img_forward.1} parent=0
    _
  %s11 = ssub.s32 1, %s9
  %s12 = scalar_select 0, %s11, %s9
  loop: start=0, step=1, limit=4
  $region2: #{dec_img_forward.1} parent=0 // loop_pre_header
    _
  $region3: #{dec_img_forward.1} parent=0 // loop_header
    %s14 = sphi 0, %s18
    %p15 = scmp.ge.s32.totalorder %s14, 4
    %s24 = sphi 0, %s26
    %s27 = sphi 0, %s24
    %s28 = sphi 0, %s27
    %s44 = sphi 0, %s28
    %s48 = sphi 0, %s48
    %s50 = sphi 0, %s48
    %s51 = sphi 0, %s50
    %s65 = sphi 0, %s51
    %s69 = sphi 0, %s69
    %s71 = sphi 0, %s69
    %s72 = sphi 0, %s71
    %s86 = sphi 0, %s72
    %s90 = sphi 0, %s90
    %s92 = sphi 0, %s90
    %s93 = sphi 0, %s92
    %s107 = sphi 0, %s93
    %s111 = sphi 0, %s111
    %s113 = sphi 0, %s111
    %s114 = sphi 0, %s113
    %s128 = sphi 0, %s114
    %s132 = sphi 0, %s132
    %s134 = sphi 0, %s132
    %s135 = sphi 0, %s134
    %s149 = sphi 0, %s135
    %s153 = sphi 0, %s153
    %s155 = sphi 0, %s153
    %s156 = sphi 0, %s155
    %s170 = sphi 0, %s156
    %s174 = sphi 0, %s174
    %s176 = sphi 0, %s174
    %s177 = sphi 0, %s176
    %s191 = sphi 0, %s177
    %s197 = sphi 0, %s199
    %s200 = sphi 0, %s197
    %s201 = sphi 0, %s200
    %s217 = sphi 0, %s201
  $region4: #{dec_img_forward.1} parent=0 // loop_header_branch
    %17 = sbr.rel (%p15) target = $region8
  $region5: #{dec_img_forward.1} parent=0 // loop_body
    %s19 = ssub.s32 %s14, 1
    %s20 = ssub.s32 %s14, 2
    %s21 = sadd.s32 %s14, 1
    %s22 = ssub.s32 %s14, %s21
    %p23 = scmp.eq.s32.totalorder %s22, 0
    %s25 = sadd.s32 %s24, 1
    %s26 = scalar_select %p23, %s24, %s25
    %p29 = pneg %p23
    %p30 = scmp.eq.s32.totalorder %s14, 1
    %p31 = por %p29, %p30
    %p32 = scmp.ne.s32.totalorder %s24, %s27
    %p33 = scmp.eq.s32.totalorder %s14, 0
    %p34 = por %p32, %p33
    %p35 = scmp.ne.s32.totalorder %s24, %s27
    %p36 = scmp.eq.s32.totalorder %s19, 1
    %p37 = por %p35, %p36
    %p38 = scmp.ne.s32.totalorder %s27, %s28
    %p39 = scmp.eq.s32.totalorder %s19, 0
    %p40 = por %p38, %p39
    %p41 = scmp.ne.s32.totalorder %s27, %s28
    %p42 = scmp.eq.s32.totalorder %s20, 1
    %p43 = por %p41, %p42
    %p45 = scmp.ne.s32.totalorder %s28, %s44
    %p46 = scmp.eq.s32.totalorder %s20, 0
    %p47 = por %p45, %p46
    %s49 = sadd.s32 %s48, 1
    %p52 = scmp.eq.s32.totalorder %s14, 1
    %p53 = scmp.ne.s32.totalorder %s48, %s50
    %p54 = scmp.eq.s32.totalorder %s14, 0
    %p55 = por %p53, %p54
    %p56 = scmp.ne.s32.totalorder %s48, %s50
    %p57 = scmp.eq.s32.totalorder %s19, 1
    %p58 = por %p56, %p57
    %p59 = scmp.ne.s32.totalorder %s50, %s51
    %p60 = scmp.eq.s32.totalorder %s19, 0
    %p61 = por %p59, %p60
    %p62 = scmp.ne.s32.totalorder %s50, %s51
    %p63 = scmp.eq.s32.totalorder %s20, 1
    %p64 = por %p62, %p63
    %p66 = scmp.ne.s32.totalorder %s51, %s65
    %p67 = scmp.eq.s32.totalorder %s20, 0
    %p68 = por %p66, %p67
    %s70 = sadd.s32 %s69, 1
    %p73 = scmp.eq.s32.totalorder %s14, 1
    %p74 = scmp.ne.s32.totalorder %s69, %s71
    %p75 = scmp.eq.s32.totalorder %s14, 0
    %p76 = por %p74, %p75
    %p77 = scmp.ne.s32.totalorder %s69, %s71
    %p78 = scmp.eq.s32.totalorder %s19, 1
    %p79 = por %p77, %p78
    %p80 = scmp.ne.s32.totalorder %s71, %s72
    %p81 = scmp.eq.s32.totalorder %s19, 0
    %p82 = por %p80, %p81
    %p83 = scmp.ne.s32.totalorder %s71, %s72
    %p84 = scmp.eq.s32.totalorder %s20, 1
    %p85 = por %p83, %p84
    %p87 = scmp.ne.s32.totalorder %s72, %s86
    %p88 = scmp.eq.s32.totalorder %s20, 0
    %p89 = por %p87, %p88
    %s91 = sadd.s32 %s90, 1
    %p94 = scmp.eq.s32.totalorder %s14, 1
    %p95 = scmp.ne.s32.totalorder %s90, %s92
    %p96 = scmp.eq.s32.totalorder %s14, 0
    %p97 = por %p95, %p96
    %p98 = scmp.ne.s32.totalorder %s90, %s92
    %p99 = scmp.eq.s32.totalorder %s19, 1
    %p100 = por %p98, %p99
    %p101 = scmp.ne.s32.totalorder %s92, %s93
    %p102 = scmp.eq.s32.totalorder %s19, 0
    %p103 = por %p101, %p102
    %p104 = scmp.ne.s32.totalorder %s92, %s93
    %p105 = scmp.eq.s32.totalorder %s20, 1
    %p106 = por %p104, %p105
    %p108 = scmp.ne.s32.totalorder %s93, %s107
    %p109 = scmp.eq.s32.totalorder %s20, 0
    %p110 = por %p108, %p109
    %s112 = sadd.s32 %s111, 1
    %p115 = scmp.eq.s32.totalorder %s14, 1
    %p116 = scmp.ne.s32.totalorder %s111, %s113
    %p117 = scmp.eq.s32.totalorder %s14, 0
    %p118 = por %p116, %p117
    %p119 = scmp.ne.s32.totalorder %s111, %s113
    %p120 = scmp.eq.s32.totalorder %s19, 1
    %p121 = por %p119, %p120
    %p122 = scmp.ne.s32.totalorder %s113, %s114
    %p123 = scmp.eq.s32.totalorder %s19, 0
    %p124 = por %p122, %p123
    %p125 = scmp.ne.s32.totalorder %s113, %s114
    %p126 = scmp.eq.s32.totalorder %s20, 1
    %p127 = por %p125, %p126
    %p129 = scmp.ne.s32.totalorder %s114, %s128
    %p130 = scmp.eq.s32.totalorder %s20, 0
    %p131 = por %p129, %p130
    %s133 = sadd.s32 %s132, 1
    %p136 = scmp.eq.s32.totalorder %s14, 1
    %p137 = scmp.ne.s32.totalorder %s132, %s134
    %p138 = scmp.eq.s32.totalorder %s14, 0
    %p139 = por %p137, %p138
    %p140 = scmp.ne.s32.totalorder %s132, %s134
    %p141 = scmp.eq.s32.totalorder %s19, 1
    %p142 = por %p140, %p141
    %p143 = scmp.ne.s32.totalorder %s134, %s135
    %p144 = scmp.eq.s32.totalorder %s19, 0
    %p145 = por %p143, %p144
    %p146 = scmp.ne.s32.totalorder %s134, %s135
    %p147 = scmp.eq.s32.totalorder %s20, 1
    %p148 = por %p146, %p147
    %p150 = scmp.ne.s32.totalorder %s135, %s149
    %p151 = scmp.eq.s32.totalorder %s20, 0
    %p152 = por %p150, %p151
    %s154 = sadd.s32 %s153, 1
    %p157 = scmp.eq.s32.totalorder %s14, 1
    %p158 = scmp.ne.s32.totalorder %s153, %s155
    %p159 = scmp.eq.s32.totalorder %s14, 0
    %p160 = por %p158, %p159
    %p161 = scmp.ne.s32.totalorder %s153, %s155
    %p162 = scmp.eq.s32.totalorder %s19, 1
    %p163 = por %p161, %p162
    %p164 = scmp.ne.s32.totalorder %s155, %s156
    %p165 = scmp.eq.s32.totalorder %s19, 0
    %p166 = por %p164, %p165
    %p167 = scmp.ne.s32.totalorder %s155, %s156
    %p168 = scmp.eq.s32.totalorder %s20, 1
    %p169 = por %p167, %p168
    %p171 = scmp.ne.s32.totalorder %s156, %s170
    %p172 = scmp.eq.s32.totalorder %s20, 0
    %p173 = por %p171, %p172
    %s175 = sadd.s32 %s174, 1
    %p178 = scmp.eq.s32.totalorder %s14, 1
    %p179 = scmp.ne.s32.totalorder %s174, %s176
    %p180 = scmp.eq.s32.totalorder %s14, 0
    %p181 = por %p179, %p180
    %p182 = scmp.ne.s32.totalorder %s174, %s176
    %p183 = scmp.eq.s32.totalorder %s19, 1
    %p184 = por %p182, %p183
    %p185 = scmp.ne.s32.totalorder %s176, %s177
    %p186 = scmp.eq.s32.totalorder %s19, 0
    %p187 = por %p185, %p186
    %p188 = scmp.ne.s32.totalorder %s176, %s177
    %p189 = scmp.eq.s32.totalorder %s20, 1
    %p190 = por %p188, %p189
    %p192 = scmp.ne.s32.totalorder %s177, %s191
    %p193 = scmp.eq.s32.totalorder %s20, 0
    %p194 = por %p192, %p193
    %s195 = ssub.s32 %s14, %s21
    %p196 = scmp.eq.s32.totalorder %s195, 0
    %s198 = sadd.s32 %s197, 1
    %s199 = scalar_select %p196, %s197, %s198
    %p202 = pneg %p196
    %p203 = scmp.eq.s32.totalorder %s14, 1
    %p204 = por %p202, %p203
    %p205 = scmp.ne.s32.totalorder %s197, %s200
    %p206 = scmp.eq.s32.totalorder %s14, 0
    %p207 = por %p205, %p206
    %p208 = scmp.ne.s32.totalorder %s197, %s200
    %p209 = scmp.eq.s32.totalorder %s19, 1
    %p210 = por %p208, %p209
    %p211 = scmp.ne.s32.totalorder %s200, %s201
    %p212 = scmp.eq.s32.totalorder %s19, 0
    %p213 = por %p211, %p212
    %p214 = scmp.ne.s32.totalorder %s200, %s201
    %p215 = scmp.eq.s32.totalorder %s20, 1
    %p216 = por %p214, %p215
    %p218 = scmp.ne.s32.totalorder %s201, %s217
    %p219 = scmp.eq.s32.totalorder %s20, 0
    %p220 = por %p218, %p219
    %p221 = scmp.le.s32.totalorder 1, %s14
    %p222 = scmp.lt.s32.totalorder %s14, 3
    %p223 = pnand %p221, %p222
    %p224 = pneg %p223
    // Predicated region
    $region9: #{dec_img_forward.1} parent=5 // pred_check
      _
    $region10: #{dec_img_forward.1} parent=5 // pred_check_branch
      %226 = sbr.rel (%p223) target = $region12
    $region11: #{dec_img_forward.1} parent=5 // pred_region
      %s227 = ssub.s32 %s14, 1
      // Predicated region
      $region13: #{dec_img_forward.1} parent=11 // pred_check
        %p228 = pneg %p61
      $region14: #{dec_img_forward.1} parent=11 // pred_check_branch
        %230 = sbr.rel (%p228) target = $region16
      $region15: #{dec_img_forward.1} parent=11 // pred_region
        _
      $region16: #{dec_img_forward.1} parent=11 // pred_fallthru
        _
      // Predicated region
      $region17: #{dec_img_forward.1} parent=11 // pred_check
        %p231 = pneg %p82
      $region18: #{dec_img_forward.1} parent=11 // pred_check_branch
        %233 = sbr.rel (%p231) target = $region20
      $region19: #{dec_img_forward.1} parent=11 // pred_region
        _
      $region20: #{dec_img_forward.1} parent=11 // pred_fallthru
        _
      // Predicated region
      $region21: #{dec_img_forward.1} parent=11 // pred_check
        %p234 = pneg %p103
      $region22: #{dec_img_forward.1} parent=11 // pred_check_branch
        %236 = sbr.rel (%p234) target = $region24
      $region23: #{dec_img_forward.1} parent=11 // pred_region
        _
      $region24: #{dec_img_forward.1} parent=11 // pred_fallthru
        _
      // Predicated region
      $region25: #{dec_img_forward.1} parent=11 // pred_check
        %p237 = pneg %p124
      $region26: #{dec_img_forward.1} parent=11 // pred_check_branch
        %239 = sbr.rel (%p237) target = $region28
      $region27: #{dec_img_forward.1} parent=11 // pred_region
        _
      $region28: #{dec_img_forward.1} parent=11 // pred_fallthru
        _
      // Predicated region
      $region29: #{dec_img_forward.1} parent=11 // pred_check
        %p240 = pneg %p145
      $region30: #{dec_img_forward.1} parent=11 // pred_check_branch
        %242 = sbr.rel (%p240) target = $region32
      $region31: #{dec_img_forward.1} parent=11 // pred_region
        _
      $region32: #{dec_img_forward.1} parent=11 // pred_fallthru
        _
      // Predicated region
      $region33: #{dec_img_forward.1} parent=11 // pred_check
        %p243 = pneg %p166
      $region34: #{dec_img_forward.1} parent=11 // pred_check_branch
        %245 = sbr.rel (%p243) target = $region36
      $region35: #{dec_img_forward.1} parent=11 // pred_region
        _
      $region36: #{dec_img_forward.1} parent=11 // pred_fallthru
        _
      // Predicated region
      $region37: #{dec_img_forward.1} parent=11 // pred_check
        %p246 = pneg %p187
      $region38: #{dec_img_forward.1} parent=11 // pred_check_branch
        %248 = sbr.rel (%p246) target = $region40
      $region39: #{dec_img_forward.1} parent=11 // pred_region
        _
      $region40: #{dec_img_forward.1} parent=11 // pred_fallthru
        _
    $region12: #{dec_img_forward.1} parent=5 // pred_fallthru
      _
    %p249 = scmp.lt.s32.totalorder %s14, 2
    // Predicated region
    $region41: #{dec_img_forward.1} parent=5 // pred_check
      %p250 = pneg %p249
    $region42: #{dec_img_forward.1} parent=5 // pred_check_branch
      %252 = sbr.rel (%p250) target = $region44
    $region43: #{dec_img_forward.1} parent=5 // pred_region
      // Predicated region
      $region45: #{dec_img_forward.1} parent=43 // pred_check
        %p253 = pneg %p34
      $region46: #{dec_img_forward.1} parent=43 // pred_check_branch
        %255 = sbr.rel (%p253) target = $region48
      $region47: #{dec_img_forward.1} parent=43 // pred_region
        %p256 = scmp.lt.s32.totalorder %s14, 1
        %s257 = scalar_select %p256, %s14, 1
        %s258 = smul.addr %s257, 36
        %s259 = smul.addr %s258, 4
        %s260 = scalar_lea.vmem %s0, %s259
      $region48: #{dec_img_forward.1} parent=43 // pred_fallthru
        _
    $region44: #{dec_img_forward.1} parent=5 // pred_fallthru
      _
    %p261 = scmp.le.s32.totalorder 1, %s14
    %p262 = scmp.lt.s32.totalorder %s14, 3
    %p263 = pnand %p261, %p262
    %p264 = pneg %p263
    // Predicated region
    $region49: #{dec_img_forward.1} parent=5 // pred_check
      _
    $region50: #{dec_img_forward.1} parent=5 // pred_check_branch
      %266 = sbr.rel (%p263) target = $region52
    $region51: #{dec_img_forward.1} parent=5 // pred_region
      %s267 = ssub.s32 %s14, 1
      %p268 = scmp.lt.s32.totalorder %s19, 1
      %s269 = scalar_select %p268, %s19, 1
      %s270 = smul.addr %s269, 36
      %s271 = smul.addr %s270, 4
      %s272 = scalar_lea.vmem %s0, %s271
      %p273 = pneg %p40
      %p274 = pneg %p37
      %p275 = pneg %p61
      %p276 = pneg %p58
      %p277 = pneg %p82
      %p278 = pneg %p79
      %p279 = pneg %p103
      %p280 = pneg %p100
      %p281 = pneg %p124
      %p282 = pneg %p121
      %p283 = pneg %p145
      %p284 = pneg %p142
      %p285 = pneg %p166
      %p286 = pneg %p163
      %p287 = pneg %p187
      %p288 = pneg %p184
      %p289 = pneg %p213
      %p290 = pneg %p210
      %p291 = scmp.lt.s32.totalorder %s19, 1
      %s292 = scalar_select %p291, %s19, 1
      %s293 = smul.addr %s292, 3
      %s294 = smul.addr %s293, 8
      %s295 = scalar_lea.vmem %s8, %s294
      %p296 = scmp.lt.s32.totalorder %s19, 1
      %s297 = scalar_select %p296, %s19, 1
      %s298 = smul.addr %s297, 36
      %s299 = smul.addr %s298, 4
      %s300 = scalar_lea.vmem %s0, %s299
      %p301 = scmp.lt.s32.totalorder %s19, 1
      %s302 = scalar_select %p301, %s19, 1
      %s303 = smul.addr %s302, 3
      %s304 = smul.addr %s303, 8
      %s305 = scalar_lea.vmem %s8, %s304
      %v307 = vld [vmem:[%s1] sm:$0xff]
      %v308 = vld [vmem:[%s1 + $0x8] sm:$0xff]
      %v309 = vld [vmem:[%s1 + $0x10] sm:$0xff]
      %v310 = vld [vmem:[%s1 + $0x18] sm:$0xff]
      %v311 = vld [vmem:[%s1 + $0x20] sm:$0xff]
      %v312 = vld [vmem:[%s1 + $0x28] sm:$0xff]
      %v313 = vld [vmem:[%s1 + $0x30] sm:$0xff]
      %v314 = vld [vmem:[%s1 + $0x38] sm:$0xff]
      %v315 = vld [vmem:[%s1 + $0x40] sm:$0xff]
      %v316 = vld [vmem:[%s1 + $0x48] sm:$0xff]
      %v317 = vld [vmem:[%s1 + $0x50] sm:$0xff]
      %v318 = vld [vmem:[%s1 + $0x58] sm:$0xff]
      %v319 = vld [vmem:[%s1 + $0x60] sm:$0xff]
      %v320 = vld [vmem:[%s1 + $0x68] sm:$0xff]
      %v321 = vld [vmem:[%s1 + $0x70] sm:$0xff]
      %v322 = vld [vmem:[%s1 + $0x78] sm:$0xff]
      %v323 = vld [vmem:[%s1 + $0x80] sm:$0xff]
      %v324 = vld [vmem:[%s1 + $0x88] sm:$0xff]
      %v325 = vld [vmem:[%s1 + $0x90] sm:$0xff]
      %v326 = vld [vmem:[%s1 + $0x98] sm:$0xff]
      %v327 = vld [vmem:[%s1 + $0xa0] sm:$0xff]
      %v328 = vld [vmem:[%s1 + $0xa8] sm:$0xff]
      %v329 = vld [vmem:[%s1 + $0xb0] sm:$0xff]
      %v330 = vld [vmem:[%s1 + $0xb8] sm:$0xff]
      %v331 = vld [vmem:[%s1 + $0xc0] sm:$0xff]
      %v332 = vld [vmem:[%s1 + $0xc8] sm:$0xff]
      %v333 = vld [vmem:[%s1 + $0xd0] sm:$0xff]
      %v334 = vld [vmem:[%s1 + $0xd8] sm:$0xff]
      %v335 = vld [vmem:[%s1 + $0xe0] sm:$0xff]
      %v336 = vld [vmem:[%s1 + $0xe8] sm:$0xff]
      %v337 = vld [vmem:[%s1 + $0xf0] sm:$0xff]
      %v338 = vld [vmem:[%s1 + $0xf8] sm:$0xff]
      %v339 = vld [vmem:[%s1 + $0x100] sm:$0xff]
      %v340 = vld [vmem:[%s1 + $0x108] sm:$0xff]
      %v341 = vld [vmem:[%s1 + $0x110] sm:$0xff]
      %v342 = vld [vmem:[%s1 + $0x118] sm:$0xff]
      %vm343 = vcmp.gt.f32.partialorder %v307, 0.5
      %vm344 = vcmp.gt.f32.partialorder %v308, 0.5
      %vm345 = vcmp.gt.f32.partialorder %v309, 0.5
      %vm346 = vcmp.gt.f32.partialorder %v310, 0.5
      %vm347 = vcmp.gt.f32.partialorder %v311, 0.5
      %vm348 = vcmp.gt.f32.partialorder %v312, 0.5
      %vm349 = vcmp.gt.f32.partialorder %v313, 0.5
      %vm350 = vcmp.gt.f32.partialorder %v314, 0.5
      %vm351 = vcmp.gt.f32.partialorder %v315, 0.5
      %vm352 = vcmp.gt.f32.partialorder %v316, 0.5
      %vm353 = vcmp.gt.f32.partialorder %v317, 0.5
      %vm354 = vcmp.gt.f32.partialorder %v318, 0.5
      %vm355 = vcmp.gt.f32.partialorder %v319, 0.5
      %vm356 = vcmp.gt.f32.partialorder %v320, 0.5
      %vm357 = vcmp.gt.f32.partialorder %v321, 0.5
      %vm358 = vcmp.gt.f32.partialorder %v322, 0.5
      %vm359 = vcmp.gt.f32.partialorder %v323, 0.5
      %vm360 = vcmp.gt.f32.partialorder %v324, 0.5
      %vm361 = vcmp.gt.f32.partialorder %v325, 0.5
      %vm362 = vcmp.gt.f32.partialorder %v326, 0.5
      %vm363 = vcmp.gt.f32.partialorder %v327, 0.5
      %vm364 = vcmp.gt.f32.partialorder %v328, 0.5
      %vm365 = vcmp.gt.f32.partialorder %v329, 0.5
      %vm366 = vcmp.gt.f32.partialorder %v330, 0.5
      %vm367 = vcmp.gt.f32.partialorder %v331, 0.5
      %vm368 = vcmp.gt.f32.partialorder %v332, 0.5
      %vm369 = vcmp.gt.f32.partialorder %v333, 0.5
      %vm370 = vcmp.gt.f32.partialorder %v334, 0.5
      %vm371 = vcmp.gt.f32.partialorder %v335, 0.5
      %vm372 = vcmp.gt.f32.partialorder %v336, 0.5
      %vm373 = vcmp.gt.f32.partialorder %v337, 0.5
      %vm374 = vcmp.gt.f32.partialorder %v338, 0.5
      %vm375 = vcmp.gt.f32.partialorder %v339, 0.5
      %vm376 = vcmp.gt.f32.partialorder %v340, 0.5
      %vm377 = vcmp.gt.f32.partialorder %v341, 0.5
      %vm378 = vcmp.gt.f32.partialorder %v342, 0.5
      %v379 = vld [vmem:[%s300] sm:$0xf]
      %v380 = vld [vmem:[%s300 + $0x4] sm:$0xf]
      %v381 = vld [vmem:[%s300 + $0x8] sm:$0xf]
      %v382 = vld [vmem:[%s300 + $0xc] sm:$0xf]
      %v383 = vld [vmem:[%s300 + $0x10] sm:$0xf]
      %v384 = vld [vmem:[%s300 + $0x14] sm:$0xf]
      %v385 = vld [vmem:[%s300 + $0x18] sm:$0xf]
      %v386 = vld [vmem:[%s300 + $0x1c] sm:$0xf]
      %v387 = vld [vmem:[%s300 + $0x20] sm:$0xf]
      %v388 = vld [vmem:[%s300 + $0x24] sm:$0xf]
      %v389 = vld [vmem:[%s300 + $0x28] sm:$0xf]
      %v390 = vld [vmem:[%s300 + $0x2c] sm:$0xf]
      %v391 = vld [vmem:[%s300 + $0x30] sm:$0xf]
      %v392 = vld [vmem:[%s300 + $0x34] sm:$0xf]
      %v393 = vld [vmem:[%s300 + $0x38] sm:$0xf]
      %v394 = vld [vmem:[%s300 + $0x3c] sm:$0xf]
      %v395 = vld [vmem:[%s300 + $0x40] sm:$0xf]
      %v396 = vld [vmem:[%s300 + $0x44] sm:$0xf]
      %v397 = vld [vmem:[%s300 + $0x48] sm:$0xf]
      %v398 = vld [vmem:[%s300 + $0x4c] sm:$0xf]
      %v399 = vld [vmem:[%s300 + $0x50] sm:$0xf]
      %v400 = vld [vmem:[%s300 + $0x54] sm:$0xf]
      %v401 = vld [vmem:[%s300 + $0x58] sm:$0xf]
      %v402 = vld [vmem:[%s300 + $0x5c] sm:$0xf]
      %v403 = vld [vmem:[%s300 + $0x60] sm:$0xf]
      %v404 = vld [vmem:[%s300 + $0x64] sm:$0xf]
      %v405 = vld [vmem:[%s300 + $0x68] sm:$0xf]
      %v406 = vld [vmem:[%s300 + $0x6c] sm:$0xf]
      %v407 = vld [vmem:[%s300 + $0x70] sm:$0xf]
      %v408 = vld [vmem:[%s300 + $0x74] sm:$0xf]
      %v409 = vld [vmem:[%s300 + $0x78] sm:$0xf]
      %v410 = vld [vmem:[%s300 + $0x7c] sm:$0xf]
      %v411 = vld [vmem:[%s300 + $0x80] sm:$0xf]
      %v412 = vld [vmem:[%s300 + $0x84] sm:$0xf]
      %v413 = vld [vmem:[%s300 + $0x88] sm:$0xf]
      %v414 = vld [vmem:[%s300 + $0x8c] sm:$0xf]
      %v415 = vld [vmem:[%s2] sm:$0xf]
      %v416 = vld [vmem:[%s2 + $0x4] sm:$0xf]
      %v417 = vld [vmem:[%s2 + $0x8] sm:$0xf]
      %v418 = vld [vmem:[%s2 + $0xc] sm:$0xf]
      %v419 = vld [vmem:[%s3] sm:$0x1]
      %v421 = vperm.slane %v419, 0
      %v459 = vunpack.c.l.b16 %v379
      %v460 = vunpack.c.l.b16 %v380
      %v461 = vunpack.c.l.b16 %v381
      %v462 = vunpack.c.l.b16 %v382
      %v463 = vunpack.c.l.b16 %v383
      %v464 = vunpack.c.l.b16 %v384
      %v465 = vunpack.c.l.b16 %v385
      %v466 = vunpack.c.l.b16 %v386
      %v467 = vunpack.c.l.b16 %v387
      %v468 = vunpack.c.l.b16 %v388
      %v469 = vunpack.c.l.b16 %v389
      %v470 = vunpack.c.l.b16 %v390
      %v471 = vunpack.c.l.b16 %v391
      %v472 = vunpack.c.l.b16 %v392
      %v473 = vunpack.c.l.b16 %v393
      %v474 = vunpack.c.l.b16 %v394
      %v475 = vunpack.c.l.b16 %v395
      %v476 = vunpack.c.l.b16 %v396
      %v477 = vunpack.c.l.b16 %v397
      %v478 = vunpack.c.l.b16 %v398
      %v479 = vunpack.c.l.b16 %v399
      %v480 = vunpack.c.l.b16 %v400
      %v481 = vunpack.c.l.b16 %v401
      %v482 = vunpack.c.l.b16 %v402
      %v483 = vunpack.c.l.b16 %v403
      %v484 = vunpack.c.l.b16 %v404
      %v485 = vunpack.c.l.b16 %v405
      %v486 = vunpack.c.l.b16 %v406
      %v487 = vunpack.c.l.b16 %v407
      %v488 = vunpack.c.l.b16 %v408
      %v489 = vunpack.c.l.b16 %v409
      %v490 = vunpack.c.l.b16 %v410
      %v491 = vunpack.c.l.b16 %v411
      %v492 = vunpack.c.l.b16 %v412
      %v493 = vunpack.c.l.b16 %v413
      %v494 = vunpack.c.l.b16 %v414
      %v495 = vpack.c.b16 %v460, %v459
      %v496 = vpack.c.b16 %v462, %v461
      %v497 = vpack.c.b16 %v464, %v463
      %v498 = vpack.c.b16 %v466, %v465
      %v499 = vpack.c.b16 %v468, %v467
      %v500 = vpack.c.b16 %v470, %v469
      %v501 = vpack.c.b16 %v472, %v471
      %v502 = vpack.c.b16 %v474, %v473
      %v503 = vpack.c.b16 %v476, %v475
      %v504 = vpack.c.b16 %v478, %v477
      %v505 = vpack.c.b16 %v480, %v479
      %v506 = vpack.c.b16 %v482, %v481
      %v507 = vpack.c.b16 %v484, %v483
      %v508 = vpack.c.b16 %v486, %v485
      %v509 = vpack.c.b16 %v488, %v487
      %v510 = vpack.c.b16 %v490, %v489
      %v511 = vpack.c.b16 %v492, %v491
      %v512 = vpack.c.b16 %v494, %v493
      %v517 = vunpack.c.l.b16 %v415
      %v518 = vunpack.c.l.b16 %v416
      %v519 = vunpack.c.l.b16 %v417
      %v520 = vunpack.c.l.b16 %v418
      %v521 = vpack.c.b16 %v518, %v517
      %v522 = vpack.c.b16 %v520, %v519
      %vm525 = vcmask 261120
      %v527 = vsel %vm525, %v495, 0
      %v530 = vsel %vm525, %v496, 0
      %v533 = vsel %vm525, %v497, 0
      %v536 = vsel %vm525, %v498, 0
      %v539 = vsel %vm525, %v499, 0
      %v542 = vsel %vm525, %v500, 0
      %v545 = vsel %vm525, %v501, 0
      %v548 = vsel %vm525, %v502, 0
      %v551 = vsel %vm525, %v503, 0
      %v554 = vsel %vm525, %v504, 0
      %v557 = vsel %vm525, %v505, 0
      %v560 = vsel %vm525, %v506, 0
      %v563 = vsel %vm525, %v507, 0
      %v566 = vsel %vm525, %v508, 0
      %v569 = vsel %vm525, %v509, 0
      %v572 = vsel %vm525, %v510, 0
      %v575 = vsel %vm525, %v511, 0
      %v578 = vsel %vm525, %v512, 0
      %580 = vmatpush.bf16.msra.mxu0 0
      %581 = vmatpush.bf16.msra.mxu0 0
      %582 = vmatpush.bf16.msra.mxu0 0
      %583 = vmatpush.bf16.msra.mxu0 0
      %584 = vmatpush.bf16.msra.mxu0 0
      %585 = vmatpush.bf16.msra.mxu0 0
      %586 = vmatpush.bf16.msra.mxu0 %v522
      %587 = vmatpush.bf16.msra.mxu0 %v521
      %588 = vmatmul.bf16.gmra.mxu0 %v527
      %v589 = vpop.f32.mrf.mxu0
      %v590 = vadd.f32 %v421, %v589
      %v591 = vpop.f32.mrf.mxu0
      %v592 = vadd.f32 %v421, %v591
      %593 = vmatmul.bf16.gmra.mxu0 %v530
      %v594 = vpop.f32.mrf.mxu0
      %v595 = vadd.f32 %v421, %v594
      %v596 = vpop.f32.mrf.mxu0
      %v597 = vadd.f32 %v421, %v596
      %598 = vmatmul.bf16.gmra.mxu0 %v533
      %v599 = vpop.f32.mrf.mxu0
      %v600 = vadd.f32 %v421, %v599
      %v601 = vpop.f32.mrf.mxu0
      %v602 = vadd.f32 %v421, %v601
      %603 = vmatmul.bf16.gmra.mxu0 %v536
      %v604 = vpop.f32.mrf.mxu0
      %v605 = vadd.f32 %v421, %v604
      %v606 = vpop.f32.mrf.mxu0
      %v607 = vadd.f32 %v421, %v606
      %608 = vmatmul.bf16.gmra.mxu0 %v539
      %v609 = vpop.f32.mrf.mxu0
      %v610 = vadd.f32 %v421, %v609
      %v611 = vpop.f32.mrf.mxu0
      %v612 = vadd.f32 %v421, %v611
      %613 = vmatmul.bf16.gmra.mxu0 %v542
      %v614 = vpop.f32.mrf.mxu0
      %v615 = vadd.f32 %v421, %v614
      %v616 = vpop.f32.mrf.mxu0
      %v617 = vadd.f32 %v421, %v616
      %618 = vmatmul.bf16.gmra.mxu0 %v545
      %v619 = vpop.f32.mrf.mxu0
      %v620 = vadd.f32 %v421, %v619
      %v621 = vpop.f32.mrf.mxu0
      %v622 = vadd.f32 %v421, %v621
      %623 = vmatmul.bf16.gmra.mxu0 %v548
      %v624 = vpop.f32.mrf.mxu0
      %v625 = vadd.f32 %v421, %v624
      %v626 = vpop.f32.mrf.mxu0
      %v627 = vadd.f32 %v421, %v626
      %628 = vmatmul.bf16.gmra.mxu0 %v551
      %v629 = vpop.f32.mrf.mxu0
      %v630 = vadd.f32 %v421, %v629
      %v631 = vpop.f32.mrf.mxu0
      %v632 = vadd.f32 %v421, %v631
      %633 = vmatmul.bf16.gmra.mxu0 %v554
      %v634 = vpop.f32.mrf.mxu0
      %v635 = vadd.f32 %v421, %v634
      %v636 = vpop.f32.mrf.mxu0
      %v637 = vadd.f32 %v421, %v636
      %638 = vmatmul.bf16.gmra.mxu0 %v557
      %v639 = vpop.f32.mrf.mxu0
      %v640 = vadd.f32 %v421, %v639
      %v641 = vpop.f32.mrf.mxu0
      %v642 = vadd.f32 %v421, %v641
      %643 = vmatmul.bf16.gmra.mxu0 %v560
      %v644 = vpop.f32.mrf.mxu0
      %v645 = vadd.f32 %v421, %v644
      %v646 = vpop.f32.mrf.mxu0
      %v647 = vadd.f32 %v421, %v646
      %648 = vmatmul.bf16.gmra.mxu0 %v563
      %v649 = vpop.f32.mrf.mxu0
      %v650 = vadd.f32 %v421, %v649
      %v651 = vpop.f32.mrf.mxu0
      %v652 = vadd.f32 %v421, %v651
      %653 = vmatmul.bf16.gmra.mxu0 %v566
      %v654 = vpop.f32.mrf.mxu0
      %v655 = vadd.f32 %v421, %v654
      %v656 = vpop.f32.mrf.mxu0
      %v657 = vadd.f32 %v421, %v656
      %658 = vmatmul.bf16.gmra.mxu0 %v569
      %v659 = vpop.f32.mrf.mxu0
      %v660 = vadd.f32 %v421, %v659
      %v661 = vpop.f32.mrf.mxu0
      %v662 = vadd.f32 %v421, %v661
      %663 = vmatmul.bf16.gmra.mxu0 %v572
      %v664 = vpop.f32.mrf.mxu0
      %v665 = vadd.f32 %v421, %v664
      %v666 = vpop.f32.mrf.mxu0
      %v667 = vadd.f32 %v421, %v666
      %668 = vmatmul.bf16.gmra.mxu0 %v575
      %v669 = vpop.f32.mrf.mxu0
      %v670 = vadd.f32 %v421, %v669
      %v671 = vpop.f32.mrf.mxu0
      %v672 = vadd.f32 %v421, %v671
      %673 = vmatmul.bf16.gmra.mxu0 %v578
      %v674 = vpop.f32.mrf.mxu0
      %v675 = vadd.f32 %v421, %v674
      %v676 = vpop.f32.mrf.mxu0
      %v677 = vadd.f32 %v421, %v676
      %678 = vdwg.mxu0
      %vm679 = vcmp.ge.f32.partialorder %v590, 0.0
      %vm680 = vcmp.ge.f32.partialorder %v592, 0.0
      %vm681 = vcmp.ge.f32.partialorder %v595, 0.0
      %vm682 = vcmp.ge.f32.partialorder %v597, 0.0
      %vm683 = vcmp.ge.f32.partialorder %v600, 0.0
      %vm684 = vcmp.ge.f32.partialorder %v602, 0.0
      %vm685 = vcmp.ge.f32.partialorder %v605, 0.0
      %vm686 = vcmp.ge.f32.partialorder %v607, 0.0
      %vm687 = vcmp.ge.f32.partialorder %v610, 0.0
      %vm688 = vcmp.ge.f32.partialorder %v612, 0.0
      %vm689 = vcmp.ge.f32.partialorder %v615, 0.0
      %vm690 = vcmp.ge.f32.partialorder %v617, 0.0
      %vm691 = vcmp.ge.f32.partialorder %v620, 0.0
      %vm692 = vcmp.ge.f32.partialorder %v622, 0.0
      %vm693 = vcmp.ge.f32.partialorder %v625, 0.0
      %vm694 = vcmp.ge.f32.partialorder %v627, 0.0
      %vm695 = vcmp.ge.f32.partialorder %v630, 0.0
      %vm696 = vcmp.ge.f32.partialorder %v632, 0.0
      %vm697 = vcmp.ge.f32.partialorder %v635, 0.0
      %vm698 = vcmp.ge.f32.partialorder %v637, 0.0
      %vm699 = vcmp.ge.f32.partialorder %v640, 0.0
      %vm700 = vcmp.ge.f32.partialorder %v642, 0.0
      %vm701 = vcmp.ge.f32.partialorder %v645, 0.0
      %vm702 = vcmp.ge.f32.partialorder %v647, 0.0
      %vm703 = vcmp.ge.f32.partialorder %v650, 0.0
      %vm704 = vcmp.ge.f32.partialorder %v652, 0.0
      %vm705 = vcmp.ge.f32.partialorder %v655, 0.0
      %vm706 = vcmp.ge.f32.partialorder %v657, 0.0
      %vm707 = vcmp.ge.f32.partialorder %v660, 0.0
      %vm708 = vcmp.ge.f32.partialorder %v662, 0.0
      %vm709 = vcmp.ge.f32.partialorder %v665, 0.0
      %vm710 = vcmp.ge.f32.partialorder %v667, 0.0
      %vm711 = vcmp.ge.f32.partialorder %v670, 0.0
      %vm712 = vcmp.ge.f32.partialorder %v672, 0.0
      %vm713 = vcmp.ge.f32.partialorder %v675, 0.0
      %vm714 = vcmp.ge.f32.partialorder %v677, 0.0
      %v715 = vmul.f32 %v590, 0.01
      %v716 = vmul.f32 %v592, 0.01
      %v717 = vmul.f32 %v595, 0.01
      %v718 = vmul.f32 %v597, 0.01
      %v719 = vmul.f32 %v600, 0.01
      %v720 = vmul.f32 %v602, 0.01
      %v721 = vmul.f32 %v605, 0.01
      %v722 = vmul.f32 %v607, 0.01
      %v723 = vmul.f32 %v610, 0.01
      %v724 = vmul.f32 %v612, 0.01
      %v725 = vmul.f32 %v615, 0.01
      %v726 = vmul.f32 %v617, 0.01
      %v727 = vmul.f32 %v620, 0.01
      %v728 = vmul.f32 %v622, 0.01
      %v729 = vmul.f32 %v625, 0.01
      %v730 = vmul.f32 %v627, 0.01
      %v731 = vmul.f32 %v630, 0.01
      %v732 = vmul.f32 %v632, 0.01
      %v733 = vmul.f32 %v635, 0.01
      %v734 = vmul.f32 %v637, 0.01
      %v735 = vmul.f32 %v640, 0.01
      %v736 = vmul.f32 %v642, 0.01
      %v737 = vmul.f32 %v645, 0.01
      %v738 = vmul.f32 %v647, 0.01
      %v739 = vmul.f32 %v650, 0.01
      %v740 = vmul.f32 %v652, 0.01
      %v741 = vmul.f32 %v655, 0.01
      %v742 = vmul.f32 %v657, 0.01
      %v743 = vmul.f32 %v660, 0.01
      %v744 = vmul.f32 %v662, 0.01
      %v745 = vmul.f32 %v665, 0.01
      %v746 = vmul.f32 %v667, 0.01
      %v747 = vmul.f32 %v670, 0.01
      %v748 = vmul.f32 %v672, 0.01
      %v749 = vmul.f32 %v675, 0.01
      %v750 = vmul.f32 %v677, 0.01
      %v751 = vsel %vm679, %v590, %v715
      %v752 = vsel %vm680, %v592, %v716
      %v753 = vsel %vm681, %v595, %v717
      %v754 = vsel %vm682, %v597, %v718
      %v755 = vsel %vm683, %v600, %v719
      %v756 = vsel %vm684, %v602, %v720
      %v757 = vsel %vm685, %v605, %v721
      %v758 = vsel %vm686, %v607, %v722
      %v759 = vsel %vm687, %v610, %v723
      %v760 = vsel %vm688, %v612, %v724
      %v761 = vsel %vm689, %v615, %v725
      %v762 = vsel %vm690, %v617, %v726
      %v763 = vsel %vm691, %v620, %v727
      %v764 = vsel %vm692, %v622, %v728
      %v765 = vsel %vm693, %v625, %v729
      %v766 = vsel %vm694, %v627, %v730
      %v767 = vsel %vm695, %v630, %v731
      %v768 = vsel %vm696, %v632, %v732
      %v769 = vsel %vm697, %v635, %v733
      %v770 = vsel %vm698, %v637, %v734
      %v771 = vsel %vm699, %v640, %v735
      %v772 = vsel %vm700, %v642, %v736
      %v773 = vsel %vm701, %v645, %v737
      %v774 = vsel %vm702, %v647, %v738
      %v775 = vsel %vm703, %v650, %v739
      %v776 = vsel %vm704, %v652, %v740
      %v777 = vsel %vm705, %v655, %v741
      %v778 = vsel %vm706, %v657, %v742
      %v779 = vsel %vm707, %v660, %v743
      %v780 = vsel %vm708, %v662, %v744
      %v781 = vsel %vm709, %v665, %v745
      %v782 = vsel %vm710, %v667, %v746
      %v783 = vsel %vm711, %v670, %v747
      %v784 = vsel %vm712, %v672, %v748
      %v785 = vsel %vm713, %v675, %v749
      %v786 = vsel %vm714, %v677, %v750
      %v787 = vsel %vm343, 1, 0
      %v788 = vsel %vm344, 1, 0
      %v789 = vsel %vm345, 1, 0
      %v790 = vsel %vm346, 1, 0
      %v791 = vsel %vm347, 1, 0
      %v792 = vsel %vm348, 1, 0
      %v793 = vsel %vm349, 1, 0
      %v794 = vsel %vm350, 1, 0
      %v795 = vsel %vm351, 1, 0
      %v796 = vsel %vm352, 1, 0
      %v797 = vsel %vm353, 1, 0
      %v798 = vsel %vm354, 1, 0
      %v799 = vsel %vm355, 1, 0
      %v800 = vsel %vm356, 1, 0
      %v801 = vsel %vm357, 1, 0
      %v802 = vsel %vm358, 1, 0
      %v803 = vsel %vm359, 1, 0
      %v804 = vsel %vm360, 1, 0
      %v805 = vsel %vm361, 1, 0
      %v806 = vsel %vm362, 1, 0
      %v807 = vsel %vm363, 1, 0
      %v808 = vsel %vm364, 1, 0
      %v809 = vsel %vm365, 1, 0
      %v810 = vsel %vm366, 1, 0
      %v811 = vsel %vm367, 1, 0
      %v812 = vsel %vm368, 1, 0
      %v813 = vsel %vm369, 1, 0
      %v814 = vsel %vm370, 1, 0
      %v815 = vsel %vm371, 1, 0
      %v816 = vsel %vm372, 1, 0
      %v817 = vsel %vm373, 1, 0
      %v818 = vsel %vm374, 1, 0
      %v819 = vsel %vm375, 1, 0
      %v820 = vsel %vm376, 1, 0
      %v821 = vsel %vm377, 1, 0
      %v822 = vsel %vm378, 1, 0
      %823 = vset.pattern.permute.xlu0 0
      %824 = vperm.xlu0 %823, %v787
      %v825 = vpop.permute.xlu0 %824
      %826 = vset.pattern.permute.xlu0 0
      %827 = vperm.xlu0 %826, %v788
      %v828 = vpop.permute.xlu0 %827
      %829 = vset.pattern.permute.xlu0 0
      %830 = vperm.xlu0 %829, %v789
      %v831 = vpop.permute.xlu0 %830
      %832 = vset.pattern.permute.xlu0 0
      %833 = vperm.xlu0 %832, %v790
      %v834 = vpop.permute.xlu0 %833
      %835 = vset.pattern.permute.xlu0 0
      %836 = vperm.xlu0 %835, %v791
      %v837 = vpop.permute.xlu0 %836
      %838 = vset.pattern.permute.xlu0 0
      %839 = vperm.xlu0 %838, %v792
      %v840 = vpop.permute.xlu0 %839
      %841 = vset.pattern.permute.xlu0 0
      %842 = vperm.xlu0 %841, %v793
      %v843 = vpop.permute.xlu0 %842
      %844 = vset.pattern.permute.xlu0 0
      %845 = vperm.xlu0 %844, %v794
      %v846 = vpop.permute.xlu0 %845
      %847 = vset.pattern.permute.xlu0 0
      %848 = vperm.xlu0 %847, %v795
      %v849 = vpop.permute.xlu0 %848
      %850 = vset.pattern.permute.xlu0 0
      %851 = vperm.xlu0 %850, %v796
      %v852 = vpop.permute.xlu0 %851
      %853 = vset.pattern.permute.xlu0 0
      %854 = vperm.xlu0 %853, %v797
      %v855 = vpop.permute.xlu0 %854
      %856 = vset.pattern.permute.xlu0 0
      %857 = vperm.xlu0 %856, %v798
      %v858 = vpop.permute.xlu0 %857
      %859 = vset.pattern.permute.xlu0 0
      %860 = vperm.xlu0 %859, %v799
      %v861 = vpop.permute.xlu0 %860
      %862 = vset.pattern.permute.xlu0 0
      %863 = vperm.xlu0 %862, %v800
      %v864 = vpop.permute.xlu0 %863
      %865 = vset.pattern.permute.xlu0 0
      %866 = vperm.xlu0 %865, %v801
      %v867 = vpop.permute.xlu0 %866
      %868 = vset.pattern.permute.xlu0 0
      %869 = vperm.xlu0 %868, %v802
      %v870 = vpop.permute.xlu0 %869
      %871 = vset.pattern.permute.xlu0 0
      %872 = vperm.xlu0 %871, %v803
      %v873 = vpop.permute.xlu0 %872
      %874 = vset.pattern.permute.xlu0 0
      %875 = vperm.xlu0 %874, %v804
      %v876 = vpop.permute.xlu0 %875
      %877 = vset.pattern.permute.xlu0 0
      %878 = vperm.xlu0 %877, %v805
      %v879 = vpop.permute.xlu0 %878
      %880 = vset.pattern.permute.xlu0 0
      %881 = vperm.xlu0 %880, %v806
      %v882 = vpop.permute.xlu0 %881
      %883 = vset.pattern.permute.xlu0 0
      %884 = vperm.xlu0 %883, %v807
      %v885 = vpop.permute.xlu0 %884
      %886 = vset.pattern.permute.xlu0 0
      %887 = vperm.xlu0 %886, %v808
      %v888 = vpop.permute.xlu0 %887
      %889 = vset.pattern.permute.xlu0 0
      %890 = vperm.xlu0 %889, %v809
      %v891 = vpop.permute.xlu0 %890
      %892 = vset.pattern.permute.xlu0 0
      %893 = vperm.xlu0 %892, %v810
      %v894 = vpop.permute.xlu0 %893
      %895 = vset.pattern.permute.xlu0 0
      %896 = vperm.xlu0 %895, %v811
      %v897 = vpop.permute.xlu0 %896
      %898 = vset.pattern.permute.xlu0 0
      %899 = vperm.xlu0 %898, %v812
      %v900 = vpop.permute.xlu0 %899
      %901 = vset.pattern.permute.xlu0 0
      %902 = vperm.xlu0 %901, %v813
      %v903 = vpop.permute.xlu0 %902
      %904 = vset.pattern.permute.xlu0 0
      %905 = vperm.xlu0 %904, %v814
      %v906 = vpop.permute.xlu0 %905
      %907 = vset.pattern.permute.xlu0 0
      %908 = vperm.xlu0 %907, %v815
      %v909 = vpop.permute.xlu0 %908
      %910 = vset.pattern.permute.xlu0 0
      %911 = vperm.xlu0 %910, %v816
      %v912 = vpop.permute.xlu0 %911
      %913 = vset.pattern.permute.xlu0 0
      %914 = vperm.xlu0 %913, %v817
      %v915 = vpop.permute.xlu0 %914
      %916 = vset.pattern.permute.xlu0 0
      %917 = vperm.xlu0 %916, %v818
      %v918 = vpop.permute.xlu0 %917
      %919 = vset.pattern.permute.xlu0 0
      %920 = vperm.xlu0 %919, %v819
      %v921 = vpop.permute.xlu0 %920
      %922 = vset.pattern.permute.xlu0 0
      %923 = vperm.xlu0 %922, %v820
      %v924 = vpop.permute.xlu0 %923
      %925 = vset.pattern.permute.xlu0 0
      %926 = vperm.xlu0 %925, %v821
      %v927 = vpop.permute.xlu0 %926
      %928 = vset.pattern.permute.xlu0 0
      %929 = vperm.xlu0 %928, %v822
      %v930 = vpop.permute.xlu0 %929
      %vm931 = vcmp.eq.s32.totalorder %v825, 1
      %vm932 = vcmp.eq.s32.totalorder %v828, 1
      %vm933 = vcmp.eq.s32.totalorder %v831, 1
      %vm934 = vcmp.eq.s32.totalorder %v834, 1
      %vm935 = vcmp.eq.s32.totalorder %v837, 1
      %vm936 = vcmp.eq.s32.totalorder %v840, 1
      %vm937 = vcmp.eq.s32.totalorder %v843, 1
      %vm938 = vcmp.eq.s32.totalorder %v846, 1
      %vm939 = vcmp.eq.s32.totalorder %v849, 1
      %vm940 = vcmp.eq.s32.totalorder %v852, 1
      %vm941 = vcmp.eq.s32.totalorder %v855, 1
      %vm942 = vcmp.eq.s32.totalorder %v858, 1
      %vm943 = vcmp.eq.s32.totalorder %v861, 1
      %vm944 = vcmp.eq.s32.totalorder %v864, 1
      %vm945 = vcmp.eq.s32.totalorder %v867, 1
      %vm946 = vcmp.eq.s32.totalorder %v870, 1
      %vm947 = vcmp.eq.s32.totalorder %v873, 1
      %vm948 = vcmp.eq.s32.totalorder %v876, 1
      %vm949 = vcmp.eq.s32.totalorder %v879, 1
      %vm950 = vcmp.eq.s32.totalorder %v882, 1
      %vm951 = vcmp.eq.s32.totalorder %v885, 1
      %vm952 = vcmp.eq.s32.totalorder %v888, 1
      %vm953 = vcmp.eq.s32.totalorder %v891, 1
      %vm954 = vcmp.eq.s32.totalorder %v894, 1
      %vm955 = vcmp.eq.s32.totalorder %v897, 1
      %vm956 = vcmp.eq.s32.totalorder %v900, 1
      %vm957 = vcmp.eq.s32.totalorder %v903, 1
      %vm958 = vcmp.eq.s32.totalorder %v906, 1
      %vm959 = vcmp.eq.s32.totalorder %v909, 1
      %vm960 = vcmp.eq.s32.totalorder %v912, 1
      %vm961 = vcmp.eq.s32.totalorder %v915, 1
      %vm962 = vcmp.eq.s32.totalorder %v918, 1
      %vm963 = vcmp.eq.s32.totalorder %v921, 1
      %vm964 = vcmp.eq.s32.totalorder %v924, 1
      %vm965 = vcmp.eq.s32.totalorder %v927, 1
      %vm966 = vcmp.eq.s32.totalorder %v930, 1
      %v967 = vsel %vm931, %v751, 0.0
      %v968 = vsel %vm932, %v752, 0.0
      %v969 = vsel %vm933, %v753, 0.0
      %v970 = vsel %vm934, %v754, 0.0
      %v971 = vsel %vm935, %v755, 0.0
      %v972 = vsel %vm936, %v756, 0.0
      %v973 = vsel %vm937, %v757, 0.0
      %v974 = vsel %vm938, %v758, 0.0
      %v975 = vsel %vm939, %v759, 0.0
      %v976 = vsel %vm940, %v760, 0.0
      %v977 = vsel %vm941, %v761, 0.0
      %v978 = vsel %vm942, %v762, 0.0
      %v979 = vsel %vm943, %v763, 0.0
      %v980 = vsel %vm944, %v764, 0.0
      %v981 = vsel %vm945, %v765, 0.0
      %v982 = vsel %vm946, %v766, 0.0
      %v983 = vsel %vm947, %v767, 0.0
      %v984 = vsel %vm948, %v768, 0.0
      %v985 = vsel %vm949, %v769, 0.0
      %v986 = vsel %vm950, %v770, 0.0
      %v987 = vsel %vm951, %v771, 0.0
      %v988 = vsel %vm952, %v772, 0.0
      %v989 = vsel %vm953, %v773, 0.0
      %v990 = vsel %vm954, %v774, 0.0
      %v991 = vsel %vm955, %v775, 0.0
      %v992 = vsel %vm956, %v776, 0.0
      %v993 = vsel %vm957, %v777, 0.0
      %v994 = vsel %vm958, %v778, 0.0
      %v995 = vsel %vm959, %v779, 0.0
      %v996 = vsel %vm960, %v780, 0.0
      %v997 = vsel %vm961, %v781, 0.0
      %v998 = vsel %vm962, %v782, 0.0
      %v999 = vsel %vm963, %v783, 0.0
      %v1000 = vsel %vm964, %v784, 0.0
      %v1001 = vsel %vm965, %v785, 0.0
      %v1002 = vsel %vm966, %v786, 0.0
      %v1003 = vadd.f32 %v967, %v968
      %v1004 = vadd.f32 %v1003, %v969
      %v1005 = vadd.f32 %v1004, %v970
      %v1006 = vadd.f32 %v1005, %v971
      %v1007 = vadd.f32 %v1006, %v972
      %v1008 = vadd.f32 %v1007, %v973
      %v1009 = vadd.f32 %v1008, %v974
      %v1010 = vadd.f32 %v1009, %v975
      %v1011 = vadd.f32 %v1010, %v976
      %v1012 = vadd.f32 %v1011, %v977
      %v1013 = vadd.f32 %v1012, %v978
      %v1014 = vadd.f32 %v1013, %v979
      %v1015 = vadd.f32 %v1014, %v980
      %v1016 = vadd.f32 %v1015, %v981
      %v1017 = vadd.f32 %v1016, %v982
      %v1018 = vadd.f32 %v1017, %v983
      %v1019 = vadd.f32 %v1018, %v984
      %v1020 = vadd.f32 %v1019, %v985
      %v1021 = vadd.f32 %v1020, %v986
      %v1022 = vadd.f32 %v1021, %v987
      %v1023 = vadd.f32 %v1022, %v988
      %v1024 = vadd.f32 %v1023, %v989
      %v1025 = vadd.f32 %v1024, %v990
      %v1026 = vadd.f32 %v1025, %v991
      %v1027 = vadd.f32 %v1026, %v992
      %v1028 = vadd.f32 %v1027, %v993
      %v1029 = vadd.f32 %v1028, %v994
      %v1030 = vadd.f32 %v1029, %v995
      %v1031 = vadd.f32 %v1030, %v996
      %v1032 = vadd.f32 %v1031, %v997
      %v1033 = vadd.f32 %v1032, %v998
      %v1034 = vadd.f32 %v1033, %v999
      %v1035 = vadd.f32 %v1034, %v1000
      %v1036 = vadd.f32 %v1035, %v1001
      %v1037 = vadd.f32 %v1036, %v1002
      %v1038 = vrot.slane %v1037, 4
      %v1039 = vadd.f32 %v1037, %v1038
      %v1040 = vrot.slane %v1039, 2
      %v1041 = vadd.f32 %v1039, %v1040
      %v1042 = vrot.slane %v1041, 1
      %v1043 = vadd.f32 %v1041, %v1042
      %v1044 = vmul.f32 %v1043, 0.00390625
      %v1045 = vmul.f32 %v967, %v967
      %v1046 = vmul.f32 %v968, %v968
      %v1047 = vmul.f32 %v969, %v969
      %v1048 = vmul.f32 %v970, %v970
      %v1049 = vmul.f32 %v971, %v971
      %v1050 = vmul.f32 %v972, %v972
      %v1051 = vmul.f32 %v973, %v973
      %v1052 = vmul.f32 %v974, %v974
      %v1053 = vmul.f32 %v975, %v975
      %v1054 = vmul.f32 %v976, %v976
      %v1055 = vmul.f32 %v977, %v977
      %v1056 = vmul.f32 %v978, %v978
      %v1057 = vmul.f32 %v979, %v979
      %v1058 = vmul.f32 %v980, %v980
      %v1059 = vmul.f32 %v981, %v981
      %v1060 = vmul.f32 %v982, %v982
      %v1061 = vmul.f32 %v983, %v983
      %v1062 = vmul.f32 %v984, %v984
      %v1063 = vmul.f32 %v985, %v985
      %v1064 = vmul.f32 %v986, %v986
      %v1065 = vmul.f32 %v987, %v987
      %v1066 = vmul.f32 %v988, %v988
      %v1067 = vmul.f32 %v989, %v989
      %v1068 = vmul.f32 %v990, %v990
      %v1069 = vmul.f32 %v991, %v991
      %v1070 = vmul.f32 %v992, %v992
      %v1071 = vmul.f32 %v993, %v993
      %v1072 = vmul.f32 %v994, %v994
      %v1073 = vmul.f32 %v995, %v995
      %v1074 = vmul.f32 %v996, %v996
      %v1075 = vmul.f32 %v997, %v997
      %v1076 = vmul.f32 %v998, %v998
      %v1077 = vmul.f32 %v999, %v999
      %v1078 = vmul.f32 %v1000, %v1000
      %v1079 = vmul.f32 %v1001, %v1001
      %v1080 = vmul.f32 %v1002, %v1002
      %v1081 = vadd.f32 %v1045, %v1046
      %v1082 = vadd.f32 %v1081, %v1047
      %v1083 = vadd.f32 %v1082, %v1048
      %v1084 = vadd.f32 %v1083, %v1049
      %v1085 = vadd.f32 %v1084, %v1050
      %v1086 = vadd.f32 %v1085, %v1051
      %v1087 = vadd.f32 %v1086, %v1052
      %v1088 = vadd.f32 %v1087, %v1053
      %v1089 = vadd.f32 %v1088, %v1054
      %v1090 = vadd.f32 %v1089, %v1055
      %v1091 = vadd.f32 %v1090, %v1056
      %v1092 = vadd.f32 %v1091, %v1057
      %v1093 = vadd.f32 %v1092, %v1058
      %v1094 = vadd.f32 %v1093, %v1059
      %v1095 = vadd.f32 %v1094, %v1060
      %v1096 = vadd.f32 %v1095, %v1061
      %v1097 = vadd.f32 %v1096, %v1062
      %v1098 = vadd.f32 %v1097, %v1063
      %v1099 = vadd.f32 %v1098, %v1064
      %v1100 = vadd.f32 %v1099, %v1065
      %v1101 = vadd.f32 %v1100, %v1066
      %v1102 = vadd.f32 %v1101, %v1067
      %v1103 = vadd.f32 %v1102, %v1068
      %v1104 = vadd.f32 %v1103, %v1069
      %v1105 = vadd.f32 %v1104, %v1070
      %v1106 = vadd.f32 %v1105, %v1071
      %v1107 = vadd.f32 %v1106, %v1072
      %v1108 = vadd.f32 %v1107, %v1073
      %v1109 = vadd.f32 %v1108, %v1074
      %v1110 = vadd.f32 %v1109, %v1075
      %v1111 = vadd.f32 %v1110, %v1076
      %v1112 = vadd.f32 %v1111, %v1077
      %v1113 = vadd.f32 %v1112, %v1078
      %v1114 = vadd.f32 %v1113, %v1079
      %v1115 = vadd.f32 %v1114, %v1080
      %v1116 = vrot.slane %v1115, 4
      %v1117 = vadd.f32 %v1115, %v1116
      %v1118 = vrot.slane %v1117, 2
      %v1119 = vadd.f32 %v1117, %v1118
      %v1120 = vrot.slane %v1119, 1
      %v1121 = vadd.f32 %v1119, %v1120
      %v1122 = vmul.f32 %v1121, 0.00390625
      %v1123 = vmul.f32 %v1044, %v1044
      %v1124 = vsub.f32 %v1122, %v1123
      %v1125 = vmax.f32 %v1124, 0.0
      %v1126 = vsub.f32 %v751, %v1044
      %v1127 = vsub.f32 %v752, %v1044
      %v1128 = vsub.f32 %v753, %v1044
      %v1129 = vsub.f32 %v754, %v1044
      %v1130 = vsub.f32 %v755, %v1044
      %v1131 = vsub.f32 %v756, %v1044
      %v1132 = vsub.f32 %v757, %v1044
      %v1133 = vsub.f32 %v758, %v1044
      %v1134 = vsub.f32 %v759, %v1044
      %v1135 = vsub.f32 %v760, %v1044
      %v1136 = vsub.f32 %v761, %v1044
      %v1137 = vsub.f32 %v762, %v1044
      %v1138 = vsub.f32 %v763, %v1044
      %v1139 = vsub.f32 %v764, %v1044
      %v1140 = vsub.f32 %v765, %v1044
      %v1141 = vsub.f32 %v766, %v1044
      %v1142 = vsub.f32 %v767, %v1044
      %v1143 = vsub.f32 %v768, %v1044
      %v1144 = vsub.f32 %v769, %v1044
      %v1145 = vsub.f32 %v770, %v1044
      %v1146 = vsub.f32 %v771, %v1044
      %v1147 = vsub.f32 %v772, %v1044
      %v1148 = vsub.f32 %v773, %v1044
      %v1149 = vsub.f32 %v774, %v1044
      %v1150 = vsub.f32 %v775, %v1044
      %v1151 = vsub.f32 %v776, %v1044
      %v1152 = vsub.f32 %v777, %v1044
      %v1153 = vsub.f32 %v778, %v1044
      %v1154 = vsub.f32 %v779, %v1044
      %v1155 = vsub.f32 %v780, %v1044
      %v1156 = vsub.f32 %v781, %v1044
      %v1157 = vsub.f32 %v782, %v1044
      %v1158 = vsub.f32 %v783, %v1044
      %v1159 = vsub.f32 %v784, %v1044
      %v1160 = vsub.f32 %v785, %v1044
      %v1161 = vsub.f32 %v786, %v1044
      %v1162 = vadd.f32 %v1125, 1e-05
      %v1163 = vrsqrt.pop %v1162
      %v1164 = vmul.f32 %v1163, %v1162
      %v1165 = vmul.f32 %v1164, %v1163
      %v1166 = vmul.f32 0.5, %v1165
      %v1167 = vsub.f32 1.5, %v1166
      %v1168 = vmul.f32 %v1163, %v1167
      %vm1169 = vweird.f32 %v1162
      %vm1170 = vweird.f32 %v1163
      %vm1171 = vmor %vm1169, %vm1170
      %v1172 = vsel %vm1171, %v1163, %v1168
      %v1173 = vmul.f32 %v1126, %v1172
      %v1174 = vmul.f32 %v1127, %v1172
      %v1175 = vmul.f32 %v1128, %v1172
      %v1176 = vmul.f32 %v1129, %v1172
      %v1177 = vmul.f32 %v1130, %v1172
      %v1178 = vmul.f32 %v1131, %v1172
      %v1179 = vmul.f32 %v1132, %v1172
      %v1180 = vmul.f32 %v1133, %v1172
      %v1181 = vmul.f32 %v1134, %v1172
      %v1182 = vmul.f32 %v1135, %v1172
      %v1183 = vmul.f32 %v1136, %v1172
      %v1184 = vmul.f32 %v1137, %v1172
      %v1185 = vmul.f32 %v1138, %v1172
      %v1186 = vmul.f32 %v1139, %v1172
      %v1187 = vmul.f32 %v1140, %v1172
      %v1188 = vmul.f32 %v1141, %v1172
      %v1189 = vmul.f32 %v1142, %v1172
      %v1190 = vmul.f32 %v1143, %v1172
      %v1191 = vmul.f32 %v1144, %v1172
      %v1192 = vmul.f32 %v1145, %v1172
      %v1193 = vmul.f32 %v1146, %v1172
      %v1194 = vmul.f32 %v1147, %v1172
      %v1195 = vmul.f32 %v1148, %v1172
      %v1196 = vmul.f32 %v1149, %v1172
      %v1197 = vmul.f32 %v1150, %v1172
      %v1198 = vmul.f32 %v1151, %v1172
      %v1199 = vmul.f32 %v1152, %v1172
      %v1200 = vmul.f32 %v1153, %v1172
      %v1201 = vmul.f32 %v1154, %v1172
      %v1202 = vmul.f32 %v1155, %v1172
      %v1203 = vmul.f32 %v1156, %v1172
      %v1204 = vmul.f32 %v1157, %v1172
      %v1205 = vmul.f32 %v1158, %v1172
      %v1206 = vmul.f32 %v1159, %v1172
      %v1207 = vmul.f32 %v1160, %v1172
      %v1208 = vmul.f32 %v1161, %v1172
      %1209 = vst [vmem:[#allocation2] sm:$0xf] 0
      %1210 = vst [vmem:[#allocation2 + $0x4] sm:$0xf] 0
      %1211 = vst [vmem:[#allocation2 + $0x8] sm:$0xf] 0
      %1212 = vst [vmem:[#allocation2 + $0xc] sm:$0xf] 0
      %1213 = vst [vmem:[#allocation2 + $0xa0] sm:$0xf] 0
      %1214 = vst [vmem:[#allocation2 + $0xa4] sm:$0xf] 0
      %1215 = vst [vmem:[#allocation2 + $0xa8] sm:$0xf] 0
      %1216 = vst [vmem:[#allocation2 + $0xac] sm:$0xf] 0
      %v1217 = vsel %vm931, %v1173, 0.0
      %v1218 = vsel %vm932, %v1174, 0.0
      %v1219 = vsel %vm933, %v1175, 0.0
      %v1220 = vsel %vm934, %v1176, 0.0
      %v1221 = vsel %vm935, %v1177, 0.0
      %v1222 = vsel %vm936, %v1178, 0.0
      %v1223 = vsel %vm937, %v1179, 0.0
      %v1224 = vsel %vm938, %v1180, 0.0
      %v1225 = vsel %vm939, %v1181, 0.0
      %v1226 = vsel %vm940, %v1182, 0.0
      %v1227 = vsel %vm941, %v1183, 0.0
      %v1228 = vsel %vm942, %v1184, 0.0
      %v1229 = vsel %vm943, %v1185, 0.0
      %v1230 = vsel %vm944, %v1186, 0.0
      %v1231 = vsel %vm945, %v1187, 0.0
      %v1232 = vsel %vm946, %v1188, 0.0
      %v1233 = vsel %vm947, %v1189, 0.0
      %v1234 = vsel %vm948, %v1190, 0.0
      %v1235 = vsel %vm949, %v1191, 0.0
      %v1236 = vsel %vm950, %v1192, 0.0
      %v1237 = vsel %vm951, %v1193, 0.0
      %v1238 = vsel %vm952, %v1194, 0.0
      %v1239 = vsel %vm953, %v1195, 0.0
      %v1240 = vsel %vm954, %v1196, 0.0
      %v1241 = vsel %vm955, %v1197, 0.0
      %v1242 = vsel %vm956, %v1198, 0.0
      %v1243 = vsel %vm957, %v1199, 0.0
      %v1244 = vsel %vm958, %v1200, 0.0
      %v1245 = vsel %vm959, %v1201, 0.0
      %v1246 = vsel %vm960, %v1202, 0.0
      %v1247 = vsel %vm961, %v1203, 0.0
      %v1248 = vsel %vm962, %v1204, 0.0
      %v1249 = vsel %vm963, %v1205, 0.0
      %v1250 = vsel %vm964, %v1206, 0.0
      %v1251 = vsel %vm965, %v1207, 0.0
      %v1252 = vsel %vm966, %v1208, 0.0
      %v1253 = vpack.c.bf16 %v1217, %v1217
      %v1254 = vpack.c.bf16 %v1218, %v1218
      %v1255 = vpack.c.bf16 %v1219, %v1219
      %v1256 = vpack.c.bf16 %v1220, %v1220
      %v1257 = vpack.c.bf16 %v1221, %v1221
      %v1258 = vpack.c.bf16 %v1222, %v1222
      %v1259 = vpack.c.bf16 %v1223, %v1223
      %v1260 = vpack.c.bf16 %v1224, %v1224
      %v1261 = vpack.c.bf16 %v1225, %v1225
      %v1262 = vpack.c.bf16 %v1226, %v1226
      %v1263 = vpack.c.bf16 %v1227, %v1227
      %v1264 = vpack.c.bf16 %v1228, %v1228
      %v1265 = vpack.c.bf16 %v1229, %v1229
      %v1266 = vpack.c.bf16 %v1230, %v1230
      %v1267 = vpack.c.bf16 %v1231, %v1231
      %v1268 = vpack.c.bf16 %v1232, %v1232
      %v1269 = vpack.c.bf16 %v1233, %v1233
      %v1270 = vpack.c.bf16 %v1234, %v1234
      %v1271 = vpack.c.bf16 %v1235, %v1235
      %v1272 = vpack.c.bf16 %v1236, %v1236
      %v1273 = vpack.c.bf16 %v1237, %v1237
      %v1274 = vpack.c.bf16 %v1238, %v1238
      %v1275 = vpack.c.bf16 %v1239, %v1239
      %v1276 = vpack.c.bf16 %v1240, %v1240
      %v1277 = vpack.c.bf16 %v1241, %v1241
      %v1278 = vpack.c.bf16 %v1242, %v1242
      %v1279 = vpack.c.bf16 %v1243, %v1243
      %v1280 = vpack.c.bf16 %v1244, %v1244
      %v1281 = vpack.c.bf16 %v1245, %v1245
      %v1282 = vpack.c.bf16 %v1246, %v1246
      %v1283 = vpack.c.bf16 %v1247, %v1247
      %v1284 = vpack.c.bf16 %v1248, %v1248
      %v1285 = vpack.c.bf16 %v1249, %v1249
      %v1286 = vpack.c.bf16 %v1250, %v1250
      %v1287 = vpack.c.bf16 %v1251, %v1251
      %v1288 = vpack.c.bf16 %v1252, %v1252
      %1289 = vst [vmem:[#allocation2 + $0x10] sm:$0xf] %v1253
      %1290 = vst [vmem:[#allocation2 + $0x14] sm:$0xf] %v1254
      %1291 = vst [vmem:[#allocation2 + $0x18] sm:$0xf] %v1255
      %1292 = vst [vmem:[#allocation2 + $0x1c] sm:$0xf] %v1256
      %1293 = vst [vmem:[#allocation2 + $0x20] sm:$0xf] %v1257
      %1294 = vst [vmem:[#allocation2 + $0x24] sm:$0xf] %v1258
      %1295 = vst [vmem:[#allocation2 + $0x28] sm:$0xf] %v1259
      %1296 = vst [vmem:[#allocation2 + $0x2c] sm:$0xf] %v1260
      %1297 = vst [vmem:[#allocation2 + $0x30] sm:$0xf] %v1261
      %1298 = vst [vmem:[#allocation2 + $0x34] sm:$0xf] %v1262
      %1299 = vst [vmem:[#allocation2 + $0x38] sm:$0xf] %v1263
      %1300 = vst [vmem:[#allocation2 + $0x3c] sm:$0xf] %v1264
      %1301 = vst [vmem:[#allocation2 + $0x40] sm:$0xf] %v1265
      %1302 = vst [vmem:[#allocation2 + $0x44] sm:$0xf] %v1266
      %1303 = vst [vmem:[#allocation2 + $0x48] sm:$0xf] %v1267
      %1304 = vst [vmem:[#allocation2 + $0x4c] sm:$0xf] %v1268
      %1305 = vst [vmem:[#allocation2 + $0x50] sm:$0xf] %v1269
      %1306 = vst [vmem:[#allocation2 + $0x54] sm:$0xf] %v1270
      %1307 = vst [vmem:[#allocation2 + $0x58] sm:$0xf] %v1271
      %1308 = vst [vmem:[#allocation2 + $0x5c] sm:$0xf] %v1272
      %1309 = vst [vmem:[#allocation2 + $0x60] sm:$0xf] %v1273
      %1310 = vst [vmem:[#allocation2 + $0x64] sm:$0xf] %v1274
      %1311 = vst [vmem:[#allocation2 + $0x68] sm:$0xf] %v1275
      %1312 = vst [vmem:[#allocation2 + $0x6c] sm:$0xf] %v1276
      %1313 = vst [vmem:[#allocation2 + $0x70] sm:$0xf] %v1277
      %1314 = vst [vmem:[#allocation2 + $0x74] sm:$0xf] %v1278
      %1315 = vst [vmem:[#allocation2 + $0x78] sm:$0xf] %v1279
      %1316 = vst [vmem:[#allocation2 + $0x7c] sm:$0xf] %v1280
      %1317 = vst [vmem:[#allocation2 + $0x80] sm:$0xf] %v1281
      %1318 = vst [vmem:[#allocation2 + $0x84] sm:$0xf] %v1282
      %1319 = vst [vmem:[#allocation2 + $0x88] sm:$0xf] %v1283
      %1320 = vst [vmem:[#allocation2 + $0x8c] sm:$0xf] %v1284
      %1321 = vst [vmem:[#allocation2 + $0x90] sm:$0xf] %v1285
      %1322 = vst [vmem:[#allocation2 + $0x94] sm:$0xf] %v1286
      %1323 = vst [vmem:[#allocation2 + $0x98] sm:$0xf] %v1287
      %1324 = vst [vmem:[#allocation2 + $0x9c] sm:$0xf] %v1288
      %v1325 = vld [vmem:[#allocation2 + $0x4] sm:$0xc]
      %v1326 = vld [vmem:[#allocation2 + $0x8] sm:$0xf]
      %v1327 = vld [vmem:[#allocation2 + $0xc] sm:$0xf]
      %v1328 = vld [vmem:[#allocation2 + $0x10] sm:$0xf]
      %v1329 = vld [vmem:[#allocation2 + $0x14] sm:$0xf]
      %v1330 = vld [vmem:[#allocation2 + $0x18] sm:$0xf]
      %v1331 = vld [vmem:[#allocation2 + $0x1c] sm:$0xf]
      %v1332 = vld [vmem:[#allocation2 + $0x20] sm:$0xf]
      %v1333 = vld [vmem:[#allocation2 + $0x24] sm:$0xf]
      %v1334 = vld [vmem:[#allocation2 + $0x28] sm:$0xf]
      %v1335 = vld [vmem:[#allocation2 + $0x2c] sm:$0xf]
      %v1336 = vld [vmem:[#allocation2 + $0x30] sm:$0xf]
      %v1337 = vld [vmem:[#allocation2 + $0x34] sm:$0xf]
      %v1338 = vld [vmem:[#allocation2 + $0x38] sm:$0xf]
      %v1339 = vld [vmem:[#allocation2 + $0x3c] sm:$0xf]
      %v1340 = vld [vmem:[#allocation2 + $0x40] sm:$0xf]
      %v1341 = vld [vmem:[#allocation2 + $0x44] sm:$0xf]
      %v1342 = vld [vmem:[#allocation2 + $0x48] sm:$0xf]
      %v1343 = vld [vmem:[#allocation2 + $0x4c] sm:$0xf]
      %v1344 = vld [vmem:[#allocation2 + $0x50] sm:$0xf]
      %v1345 = vld [vmem:[#allocation2 + $0x54] sm:$0xf]
      %v1346 = vld [vmem:[#allocation2 + $0x58] sm:$0xf]
      %v1347 = vld [vmem:[#allocation2 + $0x5c] sm:$0xf]
      %v1348 = vld [vmem:[#allocation2 + $0x60] sm:$0xf]
      %v1349 = vld [vmem:[#allocation2 + $0x64] sm:$0xf]
      %v1350 = vld [vmem:[#allocation2 + $0x68] sm:$0xf]
      %v1351 = vld [vmem:[#allocation2 + $0x6c] sm:$0xf]
      %v1352 = vld [vmem:[#allocation2 + $0x70] sm:$0xf]
      %v1353 = vld [vmem:[#allocation2 + $0x74] sm:$0xf]
      %v1354 = vld [vmem:[#allocation2 + $0x78] sm:$0xf]
      %v1355 = vld [vmem:[#allocation2 + $0x7c] sm:$0xf]
      %v1356 = vld [vmem:[#allocation2 + $0x80] sm:$0xf]
      %v1357 = vld [vmem:[#allocation2 + $0x84] sm:$0xf]
      %v1358 = vld [vmem:[#allocation2 + $0x88] sm:$0xf]
      %v1359 = vld [vmem:[#allocation2 + $0x8c] sm:$0xf]
      %v1360 = vld [vmem:[#allocation2 + $0x90] sm:$0xf]
      %v1361 = vld [vmem:[#allocation2 + $0x94] sm:$0x7]
      %v1362 = vld [vmem:[%s4] sm:$0xf]
      %v1363 = vld [vmem:[%s4 + $0x4] sm:$0xf]
      %v1364 = vld [vmem:[%s4 + $0x8] sm:$0xf]
      %v1365 = vld [vmem:[%s4 + $0xc] sm:$0xf]
      %v1366 = vld [vmem:[%s4 + $0x10] sm:$0xf]
      %v1367 = vld [vmem:[%s4 + $0x14] sm:$0xf]
      %v1368 = vld [vmem:[%s4 + $0x18] sm:$0xf]
      %v1369 = vld [vmem:[%s4 + $0x1c] sm:$0xf]
      %v1370 = vld [vmem:[%s4 + $0x20] sm:$0xf]
      %v1371 = vld [vmem:[%s4 + $0x24] sm:$0xf]
      %v1372 = vld [vmem:[%s4 + $0x28] sm:$0xf]
      %v1373 = vld [vmem:[%s4 + $0x2c] sm:$0xf]
      %v1374 = vld [vmem:[%s4 + $0x30] sm:$0xf]
      %v1375 = vld [vmem:[%s4 + $0x34] sm:$0xf]
      %v1376 = vld [vmem:[%s4 + $0x38] sm:$0xf]
      %v1377 = vld [vmem:[%s4 + $0x3c] sm:$0xf]
      %v1378 = vld [vmem:[#allocation2 + $0x4] sm:$0x8]
      %s1379 = scalar_lea.vmem %s4, 64
      %v1380 = vld [vmem:[%s1379] sm:$0xf]
      %v1381 = vld [vmem:[%s1379 + $0x4] sm:$0xf]
      %v1382 = vld [vmem:[%s1379 + $0x8] sm:$0xf]
      %v1383 = vld [vmem:[%s1379 + $0xc] sm:$0xf]
      %v1384 = vld [vmem:[%s1379 + $0x10] sm:$0xf]
      %v1385 = vld [vmem:[%s1379 + $0x14] sm:$0xf]
      %v1386 = vld [vmem:[%s1379 + $0x18] sm:$0xf]
      %v1387 = vld [vmem:[%s1379 + $0x1c] sm:$0xf]
      %v1388 = vld [vmem:[%s1379 + $0x20] sm:$0xf]
      %v1389 = vld [vmem:[%s1379 + $0x24] sm:$0xf]
      %v1390 = vld [vmem:[%s1379 + $0x28] sm:$0xf]
      %v1391 = vld [vmem:[%s1379 + $0x2c] sm:$0xf]
      %v1392 = vld [vmem:[%s1379 + $0x30] sm:$0xf]
      %v1393 = vld [vmem:[%s1379 + $0x34] sm:$0xf]
      %v1394 = vld [vmem:[%s1379 + $0x38] sm:$0xf]
      %v1395 = vld [vmem:[%s1379 + $0x3c] sm:$0xf]
      %v1433 = vunpack.c.l.b16 %v1378
      %v1434 = vunpack.c.l.b16 %v1326
      %v1435 = vunpack.c.l.b16 %v1327
      %v1436 = vunpack.c.l.b16 %v1328
      %v1437 = vunpack.c.l.b16 %v1329
      %v1438 = vunpack.c.l.b16 %v1330
      %v1439 = vunpack.c.l.b16 %v1331
      %v1440 = vunpack.c.l.b16 %v1332
      %v1441 = vunpack.c.l.b16 %v1333
      %v1442 = vunpack.c.l.b16 %v1334
      %v1443 = vunpack.c.l.b16 %v1335
      %v1444 = vunpack.c.l.b16 %v1336
      %v1445 = vunpack.c.l.b16 %v1337
      %v1446 = vunpack.c.l.b16 %v1338
      %v1447 = vunpack.c.l.b16 %v1339
      %v1448 = vunpack.c.l.b16 %v1340
      %v1449 = vunpack.c.l.b16 %v1341
      %v1450 = vunpack.c.l.b16 %v1342
      %v1451 = vunpack.c.l.b16 %v1343
      %v1452 = vunpack.c.l.b16 %v1344
      %v1453 = vunpack.c.l.b16 %v1345
      %v1454 = vunpack.c.l.b16 %v1346
      %v1455 = vunpack.c.l.b16 %v1347
      %v1456 = vunpack.c.l.b16 %v1348
      %v1457 = vunpack.c.l.b16 %v1349
      %v1458 = vunpack.c.l.b16 %v1350
      %v1459 = vunpack.c.l.b16 %v1351
      %v1460 = vunpack.c.l.b16 %v1352
      %v1461 = vunpack.c.l.b16 %v1353
      %v1462 = vunpack.c.l.b16 %v1354
      %v1463 = vunpack.c.l.b16 %v1355
      %v1464 = vunpack.c.l.b16 %v1356
      %v1465 = vunpack.c.l.b16 %v1357
      %v1466 = vunpack.c.l.b16 %v1358
      %v1467 = vunpack.c.l.b16 %v1359
      %v1468 = vunpack.c.l.b16 %v1360
      %v1469 = vunpack.c.l.b16 %v1361
      %v1470 = vpack.c.b16 %v1434, %v1433
      %v1471 = vpack.c.b16 %v1436, %v1435
      %v1472 = vpack.c.b16 %v1438, %v1437
      %v1473 = vpack.c.b16 %v1440, %v1439
      %v1474 = vpack.c.b16 %v1442, %v1441
      %v1475 = vpack.c.b16 %v1444, %v1443
      %v1476 = vpack.c.b16 %v1446, %v1445
      %v1477 = vpack.c.b16 %v1448, %v1447
      %v1478 = vpack.c.b16 %v1450, %v1449
      %v1479 = vpack.c.b16 %v1452, %v1451
      %v1480 = vpack.c.b16 %v1454, %v1453
      %v1481 = vpack.c.b16 %v1456, %v1455
      %v1482 = vpack.c.b16 %v1458, %v1457
      %v1483 = vpack.c.b16 %v1460, %v1459
      %v1484 = vpack.c.b16 %v1462, %v1461
      %v1485 = vpack.c.b16 %v1464, %v1463
      %v1486 = vpack.c.b16 %v1466, %v1465
      %v1487 = vpack.c.b16 %v1468, %v1467
      %v1488 = vpack.c.b16 %v1469, %v1469
      %vm1489 = vcmask 1044480
      %v1490 = vrot.slane %v1470, 3
      %v1491 = vrot.slane %v1471, 3
      %v1492 = vsel %vm1489, %v1490, %v1491
      %v1493 = vrot.slane %v1472, 3
      %v1494 = vsel %vm1489, %v1491, %v1493
      %v1495 = vrot.slane %v1473, 3
      %v1496 = vsel %vm1489, %v1493, %v1495
      %v1497 = vrot.slane %v1474, 3
      %v1498 = vsel %vm1489, %v1495, %v1497
      %v1499 = vrot.slane %v1475, 3
      %v1500 = vsel %vm1489, %v1497, %v1499
      %v1501 = vrot.slane %v1476, 3
      %v1502 = vsel %vm1489, %v1499, %v1501
      %v1503 = vrot.slane %v1477, 3
      %v1504 = vsel %vm1489, %v1501, %v1503
      %v1505 = vrot.slane %v1478, 3
      %v1506 = vsel %vm1489, %v1503, %v1505
      %v1507 = vrot.slane %v1479, 3
      %v1508 = vsel %vm1489, %v1505, %v1507
      %v1509 = vrot.slane %v1480, 3
      %v1510 = vsel %vm1489, %v1507, %v1509
      %v1511 = vrot.slane %v1481, 3
      %v1512 = vsel %vm1489, %v1509, %v1511
      %v1513 = vrot.slane %v1482, 3
      %v1514 = vsel %vm1489, %v1511, %v1513
      %v1515 = vrot.slane %v1483, 3
      %v1516 = vsel %vm1489, %v1513, %v1515
      %v1517 = vrot.slane %v1484, 3
      %v1518 = vsel %vm1489, %v1515, %v1517
      %v1519 = vrot.slane %v1485, 3
      %v1520 = vsel %vm1489, %v1517, %v1519
      %v1521 = vrot.slane %v1486, 3
      %v1522 = vsel %vm1489, %v1519, %v1521
      %v1523 = vrot.slane %v1487, 3
      %v1524 = vsel %vm1489, %v1521, %v1523
      %v1525 = vrot.slane %v1488, 3
      %v1526 = vsel %vm1489, %v1523, %v1525
      %v1561 = vunpack.c.l.b16 %v1380
      %v1562 = vunpack.c.l.b16 %v1381
      %v1563 = vunpack.c.l.b16 %v1382
      %v1564 = vunpack.c.l.b16 %v1383
      %v1565 = vunpack.c.l.b16 %v1384
      %v1566 = vunpack.c.l.b16 %v1385
      %v1567 = vunpack.c.l.b16 %v1386
      %v1568 = vunpack.c.l.b16 %v1387
      %v1569 = vunpack.c.l.b16 %v1388
      %v1570 = vunpack.c.l.b16 %v1389
      %v1571 = vunpack.c.l.b16 %v1390
      %v1572 = vunpack.c.l.b16 %v1391
      %v1573 = vunpack.c.l.b16 %v1392
      %v1574 = vunpack.c.l.b16 %v1393
      %v1575 = vunpack.c.l.b16 %v1394
      %v1576 = vunpack.c.l.b16 %v1395
      %v1577 = vpack.c.b16 %v1562, %v1561
      %v1578 = vpack.c.b16 %v1564, %v1563
      %v1579 = vpack.c.b16 %v1566, %v1565
      %v1580 = vpack.c.b16 %v1568, %v1567
      %v1581 = vpack.c.b16 %v1570, %v1569
      %v1582 = vpack.c.b16 %v1572, %v1571
      %v1583 = vpack.c.b16 %v1574, %v1573
      %v1584 = vpack.c.b16 %v1576, %v1575
      %1593 = vmatpush.bf16.msra.mxu0 %v1584
      %1594 = vmatpush.bf16.msra.mxu0 %v1583
      %1595 = vmatpush.bf16.msra.mxu0 %v1582
      %1596 = vmatpush.bf16.msra.mxu0 %v1581
      %1597 = vmatpush.bf16.msra.mxu0 %v1580
      %1598 = vmatpush.bf16.msra.mxu0 %v1579
      %1599 = vmatpush.bf16.msra.mxu0 %v1578
      %1600 = vmatpush.bf16.msra.mxu0 %v1577
      %1601 = vmatmul.bf16.gmra.mxu0 %v1492
      %v1602 = vpop.f32.mrf.mxu0
      %v1603 = vadd.f32 0.0, %v1602
      %v1604 = vpop.f32.mrf.mxu0
      %v1605 = vadd.f32 0.0, %v1604
      %1606 = vmatmul.bf16.gmra.mxu0 %v1494
      %v1607 = vpop.f32.mrf.mxu0
      %v1608 = vadd.f32 0.0, %v1607
      %v1609 = vpop.f32.mrf.mxu0
      %v1610 = vadd.f32 0.0, %v1609
      %1611 = vmatmul.bf16.gmra.mxu0 %v1496
      %v1612 = vpop.f32.mrf.mxu0
      %v1613 = vadd.f32 0.0, %v1612
      %v1614 = vpop.f32.mrf.mxu0
      %v1615 = vadd.f32 0.0, %v1614
      %1616 = vmatmul.bf16.gmra.mxu0 %v1498
      %v1617 = vpop.f32.mrf.mxu0
      %v1618 = vadd.f32 0.0, %v1617
      %v1619 = vpop.f32.mrf.mxu0
      %v1620 = vadd.f32 0.0, %v1619
      %1621 = vmatmul.bf16.gmra.mxu0 %v1500
      %v1622 = vpop.f32.mrf.mxu0
      %v1623 = vadd.f32 0.0, %v1622
      %v1624 = vpop.f32.mrf.mxu0
      %v1625 = vadd.f32 0.0, %v1624
      %1626 = vmatmul.bf16.gmra.mxu0 %v1502
      %v1627 = vpop.f32.mrf.mxu0
      %v1628 = vadd.f32 0.0, %v1627
      %v1629 = vpop.f32.mrf.mxu0
      %v1630 = vadd.f32 0.0, %v1629
      %1631 = vmatmul.bf16.gmra.mxu0 %v1504
      %v1632 = vpop.f32.mrf.mxu0
      %v1633 = vadd.f32 0.0, %v1632
      %v1634 = vpop.f32.mrf.mxu0
      %v1635 = vadd.f32 0.0, %v1634
      %1636 = vmatmul.bf16.gmra.mxu0 %v1506
      %v1637 = vpop.f32.mrf.mxu0
      %v1638 = vadd.f32 0.0, %v1637
      %v1639 = vpop.f32.mrf.mxu0
      %v1640 = vadd.f32 0.0, %v1639
      %1641 = vmatmul.bf16.gmra.mxu0 %v1508
      %v1642 = vpop.f32.mrf.mxu0
      %v1643 = vadd.f32 0.0, %v1642
      %v1644 = vpop.f32.mrf.mxu0
      %v1645 = vadd.f32 0.0, %v1644
      %1646 = vmatmul.bf16.gmra.mxu0 %v1510
      %v1647 = vpop.f32.mrf.mxu0
      %v1648 = vadd.f32 0.0, %v1647
      %v1649 = vpop.f32.mrf.mxu0
      %v1650 = vadd.f32 0.0, %v1649
      %1651 = vmatmul.bf16.gmra.mxu0 %v1512
      %v1652 = vpop.f32.mrf.mxu0
      %v1653 = vadd.f32 0.0, %v1652
      %v1654 = vpop.f32.mrf.mxu0
      %v1655 = vadd.f32 0.0, %v1654
      %1656 = vmatmul.bf16.gmra.mxu0 %v1514
      %v1657 = vpop.f32.mrf.mxu0
      %v1658 = vadd.f32 0.0, %v1657
      %v1659 = vpop.f32.mrf.mxu0
      %v1660 = vadd.f32 0.0, %v1659
      %1661 = vmatmul.bf16.gmra.mxu0 %v1516
      %v1662 = vpop.f32.mrf.mxu0
      %v1663 = vadd.f32 0.0, %v1662
      %v1664 = vpop.f32.mrf.mxu0
      %v1665 = vadd.f32 0.0, %v1664
      %1666 = vmatmul.bf16.gmra.mxu0 %v1518
      %v1667 = vpop.f32.mrf.mxu0
      %v1668 = vadd.f32 0.0, %v1667
      %v1669 = vpop.f32.mrf.mxu0
      %v1670 = vadd.f32 0.0, %v1669
      %1671 = vmatmul.bf16.gmra.mxu0 %v1520
      %v1672 = vpop.f32.mrf.mxu0
      %v1673 = vadd.f32 0.0, %v1672
      %v1674 = vpop.f32.mrf.mxu0
      %v1675 = vadd.f32 0.0, %v1674
      %1676 = vmatmul.bf16.gmra.mxu0 %v1522
      %v1677 = vpop.f32.mrf.mxu0
      %v1678 = vadd.f32 0.0, %v1677
      %v1679 = vpop.f32.mrf.mxu0
      %v1680 = vadd.f32 0.0, %v1679
      %1681 = vmatmul.bf16.gmra.mxu0 %v1524
      %v1682 = vpop.f32.mrf.mxu0
      %v1683 = vadd.f32 0.0, %v1682
      %v1684 = vpop.f32.mrf.mxu0
      %v1685 = vadd.f32 0.0, %v1684
      %1686 = vmatmul.bf16.gmra.mxu0 %v1526
      %v1687 = vpop.f32.mrf.mxu0
      %v1688 = vadd.f32 0.0, %v1687
      %v1689 = vpop.f32.mrf.mxu0
      %v1690 = vadd.f32 0.0, %v1689
      %1691 = vdwg.mxu0
      %v1693 = vunpack.c.l.b16 %v1325
      %v1694 = vpack.c.b16 %v1434, %v1693
      %vm1695 = vsmask.f32 5376
      %v1697 = vshrl.u32 %v1694, 16
      %v1699 = vrot.slane %v1697, 2
      %v1700 = vshll.u32 %v1694, 16
      %v1702 = vrot.slane %v1700, 3
      %v1703 = vor.u32 %v1699, %v1702
      %v1705 = vshrl.u32 %v1471, 16
      %v1707 = vrot.slane %v1705, 2
      %v1708 = vshll.u32 %v1471, 16
      %v1710 = vrot.slane %v1708, 3
      %v1711 = vor.u32 %v1707, %v1710
      %v1712 = vsel %vm1695, %v1703, %v1711
      %v1714 = vshrl.u32 %v1472, 16
      %v1716 = vrot.slane %v1714, 2
      %v1717 = vshll.u32 %v1472, 16
      %v1719 = vrot.slane %v1717, 3
      %v1720 = vor.u32 %v1716, %v1719
      %v1721 = vsel %vm1695, %v1711, %v1720
      %v1723 = vshrl.u32 %v1473, 16
      %v1725 = vrot.slane %v1723, 2
      %v1726 = vshll.u32 %v1473, 16
      %v1728 = vrot.slane %v1726, 3
      %v1729 = vor.u32 %v1725, %v1728
      %v1730 = vsel %vm1695, %v1720, %v1729
      %v1732 = vshrl.u32 %v1474, 16
      %v1734 = vrot.slane %v1732, 2
      %v1735 = vshll.u32 %v1474, 16
      %v1737 = vrot.slane %v1735, 3
      %v1738 = vor.u32 %v1734, %v1737
      %v1739 = vsel %vm1695, %v1729, %v1738
      %v1741 = vshrl.u32 %v1475, 16
      %v1743 = vrot.slane %v1741, 2
      %v1744 = vshll.u32 %v1475, 16
      %v1746 = vrot.slane %v1744, 3
      %v1747 = vor.u32 %v1743, %v1746
      %v1748 = vsel %vm1695, %v1738, %v1747
      %v1750 = vshrl.u32 %v1476, 16
      %v1752 = vrot.slane %v1750, 2
      %v1753 = vshll.u32 %v1476, 16
      %v1755 = vrot.slane %v1753, 3
      %v1756 = vor.u32 %v1752, %v1755
      %v1757 = vsel %vm1695, %v1747, %v1756
      %v1759 = vshrl.u32 %v1477, 16
      %v1761 = vrot.slane %v1759, 2
      %v1762 = vshll.u32 %v1477, 16
      %v1764 = vrot.slane %v1762, 3
      %v1765 = vor.u32 %v1761, %v1764
      %v1766 = vsel %vm1695, %v1756, %v1765
      %v1768 = vshrl.u32 %v1478, 16
      %v1770 = vrot.slane %v1768, 2
      %v1771 = vshll.u32 %v1478, 16
      %v1773 = vrot.slane %v1771, 3
      %v1774 = vor.u32 %v1770, %v1773
      %v1775 = vsel %vm1695, %v1765, %v1774
      %v1777 = vshrl.u32 %v1479, 16
      %v1779 = vrot.slane %v1777, 2
      %v1780 = vshll.u32 %v1479, 16
      %v1782 = vrot.slane %v1780, 3
      %v1783 = vor.u32 %v1779, %v1782
      %v1784 = vsel %vm1695, %v1774, %v1783
      %v1786 = vshrl.u32 %v1480, 16
      %v1788 = vrot.slane %v1786, 2
      %v1789 = vshll.u32 %v1480, 16
      %v1791 = vrot.slane %v1789, 3
      %v1792 = vor.u32 %v1788, %v1791
      %v1793 = vsel %vm1695, %v1783, %v1792
      %v1795 = vshrl.u32 %v1481, 16
      %v1797 = vrot.slane %v1795, 2
      %v1798 = vshll.u32 %v1481, 16
      %v1800 = vrot.slane %v1798, 3
      %v1801 = vor.u32 %v1797, %v1800
      %v1802 = vsel %vm1695, %v1792, %v1801
      %v1804 = vshrl.u32 %v1482, 16
      %v1806 = vrot.slane %v1804, 2
      %v1807 = vshll.u32 %v1482, 16
      %v1809 = vrot.slane %v1807, 3
      %v1810 = vor.u32 %v1806, %v1809
      %v1811 = vsel %vm1695, %v1801, %v1810
      %v1813 = vshrl.u32 %v1483, 16
      %v1815 = vrot.slane %v1813, 2
      %v1816 = vshll.u32 %v1483, 16
      %v1818 = vrot.slane %v1816, 3
      %v1819 = vor.u32 %v1815, %v1818
      %v1820 = vsel %vm1695, %v1810, %v1819
      %v1822 = vshrl.u32 %v1484, 16
      %v1824 = vrot.slane %v1822, 2
      %v1825 = vshll.u32 %v1484, 16
      %v1827 = vrot.slane %v1825, 3
      %v1828 = vor.u32 %v1824, %v1827
      %v1829 = vsel %vm1695, %v1819, %v1828
      %v1831 = vshrl.u32 %v1485, 16
      %v1833 = vrot.slane %v1831, 2
      %v1834 = vshll.u32 %v1485, 16
      %v1836 = vrot.slane %v1834, 3
      %v1837 = vor.u32 %v1833, %v1836
      %v1838 = vsel %vm1695, %v1828, %v1837
      %v1840 = vshrl.u32 %v1486, 16
      %v1842 = vrot.slane %v1840, 2
      %v1843 = vshll.u32 %v1486, 16
      %v1845 = vrot.slane %v1843, 3
      %v1846 = vor.u32 %v1842, %v1845
      %v1847 = vsel %vm1695, %v1837, %v1846
      %v1849 = vshrl.u32 %v1487, 16
      %v1851 = vrot.slane %v1849, 2
      %v1852 = vshll.u32 %v1487, 16
      %v1854 = vrot.slane %v1852, 3
      %v1855 = vor.u32 %v1851, %v1854
      %v1856 = vsel %vm1695, %v1846, %v1855
      %v1858 = vshrl.u32 %v1488, 16
      %v1860 = vrot.slane %v1858, 2
      %v1861 = vshll.u32 %v1488, 16
      %v1863 = vrot.slane %v1861, 3
      %v1864 = vor.u32 %v1860, %v1863
      %v1865 = vsel %vm1695, %v1855, %v1864
      %v1900 = vunpack.c.l.b16 %v1362
      %v1901 = vunpack.c.l.b16 %v1363
      %v1902 = vunpack.c.l.b16 %v1364
      %v1903 = vunpack.c.l.b16 %v1365
      %v1904 = vunpack.c.l.b16 %v1366
      %v1905 = vunpack.c.l.b16 %v1367
      %v1906 = vunpack.c.l.b16 %v1368
      %v1907 = vunpack.c.l.b16 %v1369
      %v1908 = vunpack.c.l.b16 %v1370
      %v1909 = vunpack.c.l.b16 %v1371
      %v1910 = vunpack.c.l.b16 %v1372
      %v1911 = vunpack.c.l.b16 %v1373
      %v1912 = vunpack.c.l.b16 %v1374
      %v1913 = vunpack.c.l.b16 %v1375
      %v1914 = vunpack.c.l.b16 %v1376
      %v1915 = vunpack.c.l.b16 %v1377
      %v1916 = vpack.c.b16 %v1901, %v1900
      %v1917 = vpack.c.b16 %v1903, %v1902
      %v1918 = vpack.c.b16 %v1905, %v1904
      %v1919 = vpack.c.b16 %v1907, %v1906
      %v1920 = vpack.c.b16 %v1909, %v1908
      %v1921 = vpack.c.b16 %v1911, %v1910
      %v1922 = vpack.c.b16 %v1913, %v1912
      %v1923 = vpack.c.b16 %v1915, %v1914
      %1932 = vmatpush.bf16.msra.mxu0 %v1923
      %1933 = vmatpush.bf16.msra.mxu0 %v1922
      %1934 = vmatpush.bf16.msra.mxu0 %v1921
      %1935 = vmatpush.bf16.msra.mxu0 %v1920
      %1936 = vmatpush.bf16.msra.mxu0 %v1919
      %1937 = vmatpush.bf16.msra.mxu0 %v1918
      %1938 = vmatpush.bf16.msra.mxu0 %v1917
      %1939 = vmatpush.bf16.msra.mxu0 %v1916
      %1940 = vmatmul.bf16.gmra.mxu0 %v1712
      %v1941 = vpop.f32.mrf.mxu0
      %v1942 = vadd.f32 %v1603, %v1941
      %v1943 = vpop.f32.mrf.mxu0
      %v1944 = vadd.f32 %v1605, %v1943
      %1945 = vmatmul.bf16.gmra.mxu0 %v1721
      %v1946 = vpop.f32.mrf.mxu0
      %v1947 = vadd.f32 %v1608, %v1946
      %v1948 = vpop.f32.mrf.mxu0
      %v1949 = vadd.f32 %v1610, %v1948
      %1950 = vmatmul.bf16.gmra.mxu0 %v1730
      %v1951 = vpop.f32.mrf.mxu0
      %v1952 = vadd.f32 %v1613, %v1951
      %v1953 = vpop.f32.mrf.mxu0
      %v1954 = vadd.f32 %v1615, %v1953
      %1955 = vmatmul.bf16.gmra.mxu0 %v1739
      %v1956 = vpop.f32.mrf.mxu0
      %v1957 = vadd.f32 %v1618, %v1956
      %v1958 = vpop.f32.mrf.mxu0
      %v1959 = vadd.f32 %v1620, %v1958
      %1960 = vmatmul.bf16.gmra.mxu0 %v1748
      %v1961 = vpop.f32.mrf.mxu0
      %v1962 = vadd.f32 %v1623, %v1961
      %v1963 = vpop.f32.mrf.mxu0
      %v1964 = vadd.f32 %v1625, %v1963
      %1965 = vmatmul.bf16.gmra.mxu0 %v1757
      %v1966 = vpop.f32.mrf.mxu0
      %v1967 = vadd.f32 %v1628, %v1966
      %v1968 = vpop.f32.mrf.mxu0
      %v1969 = vadd.f32 %v1630, %v1968
      %1970 = vmatmul.bf16.gmra.mxu0 %v1766
      %v1971 = vpop.f32.mrf.mxu0
      %v1972 = vadd.f32 %v1633, %v1971
      %v1973 = vpop.f32.mrf.mxu0
      %v1974 = vadd.f32 %v1635, %v1973
      %1975 = vmatmul.bf16.gmra.mxu0 %v1775
      %v1976 = vpop.f32.mrf.mxu0
      %v1977 = vadd.f32 %v1638, %v1976
      %v1978 = vpop.f32.mrf.mxu0
      %v1979 = vadd.f32 %v1640, %v1978
      %1980 = vmatmul.bf16.gmra.mxu0 %v1784
      %v1981 = vpop.f32.mrf.mxu0
      %v1982 = vadd.f32 %v1643, %v1981
      %v1983 = vpop.f32.mrf.mxu0
      %v1984 = vadd.f32 %v1645, %v1983
      %1985 = vmatmul.bf16.gmra.mxu0 %v1793
      %v1986 = vpop.f32.mrf.mxu0
      %v1987 = vadd.f32 %v1648, %v1986
      %v1988 = vpop.f32.mrf.mxu0
      %v1989 = vadd.f32 %v1650, %v1988
      %1990 = vmatmul.bf16.gmra.mxu0 %v1802
      %v1991 = vpop.f32.mrf.mxu0
      %v1992 = vadd.f32 %v1653, %v1991
      %v1993 = vpop.f32.mrf.mxu0
      %v1994 = vadd.f32 %v1655, %v1993
      %1995 = vmatmul.bf16.gmra.mxu0 %v1811
      %v1996 = vpop.f32.mrf.mxu0
      %v1997 = vadd.f32 %v1658, %v1996
      %v1998 = vpop.f32.mrf.mxu0
      %v1999 = vadd.f32 %v1660, %v1998
      %2000 = vmatmul.bf16.gmra.mxu0 %v1820
      %v2001 = vpop.f32.mrf.mxu0
      %v2002 = vadd.f32 %v1663, %v2001
      %v2003 = vpop.f32.mrf.mxu0
      %v2004 = vadd.f32 %v1665, %v2003
      %2005 = vmatmul.bf16.gmra.mxu0 %v1829
      %v2006 = vpop.f32.mrf.mxu0
      %v2007 = vadd.f32 %v1668, %v2006
      %v2008 = vpop.f32.mrf.mxu0
      %v2009 = vadd.f32 %v1670, %v2008
      %2010 = vmatmul.bf16.gmra.mxu0 %v1838
      %v2011 = vpop.f32.mrf.mxu0
      %v2012 = vadd.f32 %v1673, %v2011
      %v2013 = vpop.f32.mrf.mxu0
      %v2014 = vadd.f32 %v1675, %v2013
      %2015 = vmatmul.bf16.gmra.mxu0 %v1847
      %v2016 = vpop.f32.mrf.mxu0
      %v2017 = vadd.f32 %v1678, %v2016
      %v2018 = vpop.f32.mrf.mxu0
      %v2019 = vadd.f32 %v1680, %v2018
      %2020 = vmatmul.bf16.gmra.mxu0 %v1856
      %v2021 = vpop.f32.mrf.mxu0
      %v2022 = vadd.f32 %v1683, %v2021
      %v2023 = vpop.f32.mrf.mxu0
      %v2024 = vadd.f32 %v1685, %v2023
      %2025 = vmatmul.bf16.gmra.mxu0 %v1865
      %v2026 = vpop.f32.mrf.mxu0
      %v2027 = vadd.f32 %v1688, %v2026
      %v2028 = vpop.f32.mrf.mxu0
      %v2029 = vadd.f32 %v1690, %v2028
      %2030 = vdwg.mxu0
      %v2031 = vld [vmem:[#allocation2 + $0x94] sm:$0xf]
      %s2032 = scalar_lea.vmem %s4, 128
      %v2033 = vld [vmem:[%s2032] sm:$0xf]
      %v2034 = vld [vmem:[%s2032 + $0x4] sm:$0xf]
      %v2035 = vld [vmem:[%s2032 + $0x8] sm:$0xf]
      %v2036 = vld [vmem:[%s2032 + $0xc] sm:$0xf]
      %v2037 = vld [vmem:[%s2032 + $0x10] sm:$0xf]
      %v2038 = vld [vmem:[%s2032 + $0x14] sm:$0xf]
      %v2039 = vld [vmem:[%s2032 + $0x18] sm:$0xf]
      %v2040 = vld [vmem:[%s2032 + $0x1c] sm:$0xf]
      %v2041 = vld [vmem:[%s2032 + $0x20] sm:$0xf]
      %v2042 = vld [vmem:[%s2032 + $0x24] sm:$0xf]
      %v2043 = vld [vmem:[%s2032 + $0x28] sm:$0xf]
      %v2044 = vld [vmem:[%s2032 + $0x2c] sm:$0xf]
      %v2045 = vld [vmem:[%s2032 + $0x30] sm:$0xf]
      %v2046 = vld [vmem:[%s2032 + $0x34] sm:$0xf]
      %v2047 = vld [vmem:[%s2032 + $0x38] sm:$0xf]
      %v2048 = vld [vmem:[%s2032 + $0x3c] sm:$0xf]
      %v2050 = vunpack.c.l.b16 %v2031
      %v2051 = vpack.c.b16 %v2050, %v2050
      %vm2052 = vsmask.f32 4352
      %v2054 = vshrl.u32 %v1470, 16
      %v2056 = vrot.slane %v2054, 3
      %v2057 = vshll.u32 %v1470, 16
      %v2059 = vrot.slane %v2057, 4
      %v2060 = vor.u32 %v2056, %v2059
      %v2061 = vrot.slane %v1705, 3
      %v2062 = vrot.slane %v1708, 4
      %v2063 = vor.u32 %v2061, %v2062
      %v2064 = vsel %vm2052, %v2060, %v2063
      %v2065 = vrot.slane %v1714, 3
      %v2066 = vrot.slane %v1717, 4
      %v2067 = vor.u32 %v2065, %v2066
      %v2068 = vsel %vm2052, %v2063, %v2067
      %v2069 = vrot.slane %v1723, 3
      %v2070 = vrot.slane %v1726, 4
      %v2071 = vor.u32 %v2069, %v2070
      %v2072 = vsel %vm2052, %v2067, %v2071
      %v2073 = vrot.slane %v1732, 3
      %v2074 = vrot.slane %v1735, 4
      %v2075 = vor.u32 %v2073, %v2074
      %v2076 = vsel %vm2052, %v2071, %v2075
      %v2077 = vrot.slane %v1741, 3
      %v2078 = vrot.slane %v1744, 4
      %v2079 = vor.u32 %v2077, %v2078
      %v2080 = vsel %vm2052, %v2075, %v2079
      %v2081 = vrot.slane %v1750, 3
      %v2082 = vrot.slane %v1753, 4
      %v2083 = vor.u32 %v2081, %v2082
      %v2084 = vsel %vm2052, %v2079, %v2083
      %v2085 = vrot.slane %v1759, 3
      %v2086 = vrot.slane %v1762, 4
      %v2087 = vor.u32 %v2085, %v2086
      %v2088 = vsel %vm2052, %v2083, %v2087
      %v2089 = vrot.slane %v1768, 3
      %v2090 = vrot.slane %v1771, 4
      %v2091 = vor.u32 %v2089, %v2090
      %v2092 = vsel %vm2052, %v2087, %v2091
      %v2093 = vrot.slane %v1777, 3
      %v2094 = vrot.slane %v1780, 4
      %v2095 = vor.u32 %v2093, %v2094
      %v2096 = vsel %vm2052, %v2091, %v2095
      %v2097 = vrot.slane %v1786, 3
      %v2098 = vrot.slane %v1789, 4
      %v2099 = vor.u32 %v2097, %v2098
      %v2100 = vsel %vm2052, %v2095, %v2099
      %v2101 = vrot.slane %v1795, 3
      %v2102 = vrot.slane %v1798, 4
      %v2103 = vor.u32 %v2101, %v2102
      %v2104 = vsel %vm2052, %v2099, %v2103
      %v2105 = vrot.slane %v1804, 3
      %v2106 = vrot.slane %v1807, 4
      %v2107 = vor.u32 %v2105, %v2106
      %v2108 = vsel %vm2052, %v2103, %v2107
      %v2109 = vrot.slane %v1813, 3
      %v2110 = vrot.slane %v1816, 4
      %v2111 = vor.u32 %v2109, %v2110
      %v2112 = vsel %vm2052, %v2107, %v2111
      %v2113 = vrot.slane %v1822, 3
      %v2114 = vrot.slane %v1825, 4
      %v2115 = vor.u32 %v2113, %v2114
      %v2116 = vsel %vm2052, %v2111, %v2115
      %v2117 = vrot.slane %v1831, 3
      %v2118 = vrot.slane %v1834, 4
      %v2119 = vor.u32 %v2117, %v2118
      %v2120 = vsel %vm2052, %v2115, %v2119
      %v2121 = vrot.slane %v1840, 3
      %v2122 = vrot.slane %v1843, 4
      %v2123 = vor.u32 %v2121, %v2122
      %v2124 = vsel %vm2052, %v2119, %v2123
      %v2125 = vrot.slane %v1849, 3
      %v2126 = vrot.slane %v1852, 4
      %v2127 = vor.u32 %v2125, %v2126
      %v2128 = vsel %vm2052, %v2123, %v2127
      %v2130 = vshrl.u32 %v2051, 16
      %v2132 = vrot.slane %v2130, 3
      %v2133 = vshll.u32 %v2051, 16
      %v2135 = vrot.slane %v2133, 4
      %v2136 = vor.u32 %v2132, %v2135
      %v2137 = vsel %vm2052, %v2127, %v2136
      %v2172 = vunpack.c.l.b16 %v2033
      %v2173 = vunpack.c.l.b16 %v2034
      %v2174 = vunpack.c.l.b16 %v2035
      %v2175 = vunpack.c.l.b16 %v2036
      %v2176 = vunpack.c.l.b16 %v2037
      %v2177 = vunpack.c.l.b16 %v2038
      %v2178 = vunpack.c.l.b16 %v2039
      %v2179 = vunpack.c.l.b16 %v2040
      %v2180 = vunpack.c.l.b16 %v2041
      %v2181 = vunpack.c.l.b16 %v2042
      %v2182 = vunpack.c.l.b16 %v2043
      %v2183 = vunpack.c.l.b16 %v2044
      %v2184 = vunpack.c.l.b16 %v2045
      %v2185 = vunpack.c.l.b16 %v2046
      %v2186 = vunpack.c.l.b16 %v2047
      %v2187 = vunpack.c.l.b16 %v2048
      %v2188 = vpack.c.b16 %v2173, %v2172
      %v2189 = vpack.c.b16 %v2175, %v2174
      %v2190 = vpack.c.b16 %v2177, %v2176
      %v2191 = vpack.c.b16 %v2179, %v2178
      %v2192 = vpack.c.b16 %v2181, %v2180
      %v2193 = vpack.c.b16 %v2183, %v2182
      %v2194 = vpack.c.b16 %v2185, %v2184
      %v2195 = vpack.c.b16 %v2187, %v2186
      %2204 = vmatpush.bf16.msra.mxu0 %v2195
      %2205 = vmatpush.bf16.msra.mxu0 %v2194
      %2206 = vmatpush.bf16.msra.mxu0 %v2193
      %2207 = vmatpush.bf16.msra.mxu0 %v2192
      %2208 = vmatpush.bf16.msra.mxu0 %v2191
      %2209 = vmatpush.bf16.msra.mxu0 %v2190
      %2210 = vmatpush.bf16.msra.mxu0 %v2189
      %2211 = vmatpush.bf16.msra.mxu0 %v2188
      %2212 = vmatmul.bf16.gmra.mxu0 %v2064
      %v2213 = vpop.f32.mrf.mxu0
      %v2214 = vadd.f32 0.0, %v2213
      %v2215 = vpop.f32.mrf.mxu0
      %v2216 = vadd.f32 0.0, %v2215
      %2217 = vmatmul.bf16.gmra.mxu0 %v2068
      %v2218 = vpop.f32.mrf.mxu0
      %v2219 = vadd.f32 0.0, %v2218
      %v2220 = vpop.f32.mrf.mxu0
      %v2221 = vadd.f32 0.0, %v2220
      %2222 = vmatmul.bf16.gmra.mxu0 %v2072
      %v2223 = vpop.f32.mrf.mxu0
      %v2224 = vadd.f32 0.0, %v2223
      %v2225 = vpop.f32.mrf.mxu0
      %v2226 = vadd.f32 0.0, %v2225
      %2227 = vmatmul.bf16.gmra.mxu0 %v2076
      %v2228 = vpop.f32.mrf.mxu0
      %v2229 = vadd.f32 0.0, %v2228
      %v2230 = vpop.f32.mrf.mxu0
      %v2231 = vadd.f32 0.0, %v2230
      %2232 = vmatmul.bf16.gmra.mxu0 %v2080
      %v2233 = vpop.f32.mrf.mxu0
      %v2234 = vadd.f32 0.0, %v2233
      %v2235 = vpop.f32.mrf.mxu0
      %v2236 = vadd.f32 0.0, %v2235
      %2237 = vmatmul.bf16.gmra.mxu0 %v2084
      %v2238 = vpop.f32.mrf.mxu0
      %v2239 = vadd.f32 0.0, %v2238
      %v2240 = vpop.f32.mrf.mxu0
      %v2241 = vadd.f32 0.0, %v2240
      %2242 = vmatmul.bf16.gmra.mxu0 %v2088
      %v2243 = vpop.f32.mrf.mxu0
      %v2244 = vadd.f32 0.0, %v2243
      %v2245 = vpop.f32.mrf.mxu0
      %v2246 = vadd.f32 0.0, %v2245
      %2247 = vmatmul.bf16.gmra.mxu0 %v2092
      %v2248 = vpop.f32.mrf.mxu0
      %v2249 = vadd.f32 0.0, %v2248
      %v2250 = vpop.f32.mrf.mxu0
      %v2251 = vadd.f32 0.0, %v2250
      %2252 = vmatmul.bf16.gmra.mxu0 %v2096
      %v2253 = vpop.f32.mrf.mxu0
      %v2254 = vadd.f32 0.0, %v2253
      %v2255 = vpop.f32.mrf.mxu0
      %v2256 = vadd.f32 0.0, %v2255
      %2257 = vmatmul.bf16.gmra.mxu0 %v2100
      %v2258 = vpop.f32.mrf.mxu0
      %v2259 = vadd.f32 0.0, %v2258
      %v2260 = vpop.f32.mrf.mxu0
      %v2261 = vadd.f32 0.0, %v2260
      %2262 = vmatmul.bf16.gmra.mxu0 %v2104
      %v2263 = vpop.f32.mrf.mxu0
      %v2264 = vadd.f32 0.0, %v2263
      %v2265 = vpop.f32.mrf.mxu0
      %v2266 = vadd.f32 0.0, %v2265
      %2267 = vmatmul.bf16.gmra.mxu0 %v2108
      %v2268 = vpop.f32.mrf.mxu0
      %v2269 = vadd.f32 0.0, %v2268
      %v2270 = vpop.f32.mrf.mxu0
      %v2271 = vadd.f32 0.0, %v2270
      %2272 = vmatmul.bf16.gmra.mxu0 %v2112
      %v2273 = vpop.f32.mrf.mxu0
      %v2274 = vadd.f32 0.0, %v2273
      %v2275 = vpop.f32.mrf.mxu0
      %v2276 = vadd.f32 0.0, %v2275
      %2277 = vmatmul.bf16.gmra.mxu0 %v2116
      %v2278 = vpop.f32.mrf.mxu0
      %v2279 = vadd.f32 0.0, %v2278
      %v2280 = vpop.f32.mrf.mxu0
      %v2281 = vadd.f32 0.0, %v2280
      %2282 = vmatmul.bf16.gmra.mxu0 %v2120
      %v2283 = vpop.f32.mrf.mxu0
      %v2284 = vadd.f32 0.0, %v2283
      %v2285 = vpop.f32.mrf.mxu0
      %v2286 = vadd.f32 0.0, %v2285
      %2287 = vmatmul.bf16.gmra.mxu0 %v2124
      %v2288 = vpop.f32.mrf.mxu0
      %v2289 = vadd.f32 0.0, %v2288
      %v2290 = vpop.f32.mrf.mxu0
      %v2291 = vadd.f32 0.0, %v2290
      %2292 = vmatmul.bf16.gmra.mxu0 %v2128
      %v2293 = vpop.f32.mrf.mxu0
      %v2294 = vadd.f32 0.0, %v2293
      %v2295 = vpop.f32.mrf.mxu0
      %v2296 = vadd.f32 0.0, %v2295
      %2297 = vmatmul.bf16.gmra.mxu0 %v2137
      %v2298 = vpop.f32.mrf.mxu0
      %v2299 = vadd.f32 0.0, %v2298
      %v2300 = vpop.f32.mrf.mxu0
      %v2301 = vadd.f32 0.0, %v2300
      %2302 = vdwg.mxu0
      %v2303 = vadd.f32 %v1942, %v2214
      %v2304 = vadd.f32 %v1944, %v2216
      %v2305 = vadd.f32 %v1947, %v2219
      %v2306 = vadd.f32 %v1949, %v2221
      %v2307 = vadd.f32 %v1952, %v2224
      %v2308 = vadd.f32 %v1954, %v2226
      %v2309 = vadd.f32 %v1957, %v2229
      %v2310 = vadd.f32 %v1959, %v2231
      %v2311 = vadd.f32 %v1962, %v2234
      %v2312 = vadd.f32 %v1964, %v2236
      %v2313 = vadd.f32 %v1967, %v2239
      %v2314 = vadd.f32 %v1969, %v2241
      %v2315 = vadd.f32 %v1972, %v2244
      %v2316 = vadd.f32 %v1974, %v2246
      %v2317 = vadd.f32 %v1977, %v2249
      %v2318 = vadd.f32 %v1979, %v2251
      %v2319 = vadd.f32 %v1982, %v2254
      %v2320 = vadd.f32 %v1984, %v2256
      %v2321 = vadd.f32 %v1987, %v2259
      %v2322 = vadd.f32 %v1989, %v2261
      %v2323 = vadd.f32 %v1992, %v2264
      %v2324 = vadd.f32 %v1994, %v2266
      %v2325 = vadd.f32 %v1997, %v2269
      %v2326 = vadd.f32 %v1999, %v2271
      %v2327 = vadd.f32 %v2002, %v2274
      %v2328 = vadd.f32 %v2004, %v2276
      %v2329 = vadd.f32 %v2007, %v2279
      %v2330 = vadd.f32 %v2009, %v2281
      %v2331 = vadd.f32 %v2012, %v2284
      %v2332 = vadd.f32 %v2014, %v2286
      %v2333 = vadd.f32 %v2017, %v2289
      %v2334 = vadd.f32 %v2019, %v2291
      %v2335 = vadd.f32 %v2022, %v2294
      %v2336 = vadd.f32 %v2024, %v2296
      %v2337 = vadd.f32 %v2027, %v2299
      %v2338 = vadd.f32 %v2029, %v2301
      %v2339 = vld [vmem:[#allocation2 + $0xc] sm:$0x8]
      %v2340 = vld [vmem:[#allocation2 + $0x10] sm:$0xf]
      %v2341 = vld [vmem:[#allocation2 + $0x14] sm:$0xf]
      %v2342 = vld [vmem:[#allocation2 + $0x18] sm:$0xf]
      %v2343 = vld [vmem:[#allocation2 + $0x1c] sm:$0xf]
      %v2344 = vld [vmem:[#allocation2 + $0x20] sm:$0xf]
      %v2345 = vld [vmem:[#allocation2 + $0x24] sm:$0xf]
      %v2346 = vld [vmem:[#allocation2 + $0x28] sm:$0xf]
      %v2347 = vld [vmem:[#allocation2 + $0x2c] sm:$0xf]
      %v2348 = vld [vmem:[#allocation2 + $0x30] sm:$0xf]
      %v2349 = vld [vmem:[#allocation2 + $0x34] sm:$0xf]
      %v2350 = vld [vmem:[#allocation2 + $0x38] sm:$0xf]
      %v2351 = vld [vmem:[#allocation2 + $0x3c] sm:$0xf]
      %v2352 = vld [vmem:[#allocation2 + $0x40] sm:$0xf]
      %v2353 = vld [vmem:[#allocation2 + $0x44] sm:$0xf]
      %v2354 = vld [vmem:[#allocation2 + $0x48] sm:$0xf]
      %v2355 = vld [vmem:[#allocation2 + $0x4c] sm:$0xf]
      %v2356 = vld [vmem:[#allocation2 + $0x50] sm:$0xf]
      %v2357 = vld [vmem:[#allocation2 + $0x54] sm:$0xf]
      %v2358 = vld [vmem:[#allocation2 + $0x58] sm:$0xf]
      %v2359 = vld [vmem:[#allocation2 + $0x5c] sm:$0xf]
      %v2360 = vld [vmem:[#allocation2 + $0x60] sm:$0xf]
      %v2361 = vld [vmem:[#allocation2 + $0x64] sm:$0xf]
      %v2362 = vld [vmem:[#allocation2 + $0x68] sm:$0xf]
      %v2363 = vld [vmem:[#allocation2 + $0x6c] sm:$0xf]
      %v2364 = vld [vmem:[#allocation2 + $0x70] sm:$0xf]
      %v2365 = vld [vmem:[#allocation2 + $0x74] sm:$0xf]
      %v2366 = vld [vmem:[#allocation2 + $0x78] sm:$0xf]
      %v2367 = vld [vmem:[#allocation2 + $0x7c] sm:$0xf]
      %v2368 = vld [vmem:[#allocation2 + $0x80] sm:$0xf]
      %v2369 = vld [vmem:[#allocation2 + $0x84] sm:$0xf]
      %v2370 = vld [vmem:[#allocation2 + $0x88] sm:$0xf]
      %v2371 = vld [vmem:[#allocation2 + $0x8c] sm:$0xf]
      %v2372 = vld [vmem:[#allocation2 + $0x90] sm:$0xf]
      %v2373 = vld [vmem:[#allocation2 + $0x94] sm:$0xf]
      %v2374 = vld [vmem:[#allocation2 + $0x98] sm:$0xf]
      %v2375 = vld [vmem:[#allocation2 + $0x9c] sm:$0xf]
      %s2376 = scalar_lea.vmem %s4, 192
      %v2377 = vld [vmem:[%s2376] sm:$0xf]
      %v2378 = vld [vmem:[%s2376 + $0x4] sm:$0xf]
      %v2379 = vld [vmem:[%s2376 + $0x8] sm:$0xf]
      %v2380 = vld [vmem:[%s2376 + $0xc] sm:$0xf]
      %v2381 = vld [vmem:[%s2376 + $0x10] sm:$0xf]
      %v2382 = vld [vmem:[%s2376 + $0x14] sm:$0xf]
      %v2383 = vld [vmem:[%s2376 + $0x18] sm:$0xf]
      %v2384 = vld [vmem:[%s2376 + $0x1c] sm:$0xf]
      %v2385 = vld [vmem:[%s2376 + $0x20] sm:$0xf]
      %v2386 = vld [vmem:[%s2376 + $0x24] sm:$0xf]
      %v2387 = vld [vmem:[%s2376 + $0x28] sm:$0xf]
      %v2388 = vld [vmem:[%s2376 + $0x2c] sm:$0xf]
      %v2389 = vld [vmem:[%s2376 + $0x30] sm:$0xf]
      %v2390 = vld [vmem:[%s2376 + $0x34] sm:$0xf]
      %v2391 = vld [vmem:[%s2376 + $0x38] sm:$0xf]
      %v2392 = vld [vmem:[%s2376 + $0x3c] sm:$0xf]
      %v2430 = vunpack.c.l.b16 %v2339
      %v2431 = vunpack.c.l.b16 %v2340
      %v2432 = vunpack.c.l.b16 %v2341
      %v2433 = vunpack.c.l.b16 %v2342
      %v2434 = vunpack.c.l.b16 %v2343
      %v2435 = vunpack.c.l.b16 %v2344
      %v2436 = vunpack.c.l.b16 %v2345
      %v2437 = vunpack.c.l.b16 %v2346
      %v2438 = vunpack.c.l.b16 %v2347
      %v2439 = vunpack.c.l.b16 %v2348
      %v2440 = vunpack.c.l.b16 %v2349
      %v2441 = vunpack.c.l.b16 %v2350
      %v2442 = vunpack.c.l.b16 %v2351
      %v2443 = vunpack.c.l.b16 %v2352
      %v2444 = vunpack.c.l.b16 %v2353
      %v2445 = vunpack.c.l.b16 %v2354
      %v2446 = vunpack.c.l.b16 %v2355
      %v2447 = vunpack.c.l.b16 %v2356
      %v2448 = vunpack.c.l.b16 %v2357
      %v2449 = vunpack.c.l.b16 %v2358
      %v2450 = vunpack.c.l.b16 %v2359
      %v2451 = vunpack.c.l.b16 %v2360
      %v2452 = vunpack.c.l.b16 %v2361
      %v2453 = vunpack.c.l.b16 %v2362
      %v2454 = vunpack.c.l.b16 %v2363
      %v2455 = vunpack.c.l.b16 %v2364
      %v2456 = vunpack.c.l.b16 %v2365
      %v2457 = vunpack.c.l.b16 %v2366
      %v2458 = vunpack.c.l.b16 %v2367
      %v2459 = vunpack.c.l.b16 %v2368
      %v2460 = vunpack.c.l.b16 %v2369
      %v2461 = vunpack.c.l.b16 %v2370
      %v2462 = vunpack.c.l.b16 %v2371
      %v2463 = vunpack.c.l.b16 %v2372
      %v2464 = vunpack.c.l.b16 %v2373
      %v2465 = vunpack.c.l.b16 %v2374
      %v2466 = vunpack.c.l.b16 %v2375
      %v2467 = vpack.c.b16 %v2431, %v2430
      %v2468 = vpack.c.b16 %v2433, %v2432
      %v2469 = vpack.c.b16 %v2435, %v2434
      %v2470 = vpack.c.b16 %v2437, %v2436
      %v2471 = vpack.c.b16 %v2439, %v2438
      %v2472 = vpack.c.b16 %v2441, %v2440
      %v2473 = vpack.c.b16 %v2443, %v2442
      %v2474 = vpack.c.b16 %v2445, %v2444
      %v2475 = vpack.c.b16 %v2447, %v2446
      %v2476 = vpack.c.b16 %v2449, %v2448
      %v2477 = vpack.c.b16 %v2451, %v2450
      %v2478 = vpack.c.b16 %v2453, %v2452
      %v2479 = vpack.c.b16 %v2455, %v2454
      %v2480 = vpack.c.b16 %v2457, %v2456
      %v2481 = vpack.c.b16 %v2459, %v2458
      %v2482 = vpack.c.b16 %v2461, %v2460
      %v2483 = vpack.c.b16 %v2463, %v2462
      %v2484 = vpack.c.b16 %v2465, %v2464
      %v2485 = vpack.c.b16 %v2466, %v2466
      %v2487 = vshrl.u32 %v2467, 16
      %v2489 = vrot.slane %v2487, 3
      %v2490 = vshll.u32 %v2467, 16
      %v2492 = vrot.slane %v2490, 4
      %v2493 = vor.u32 %v2489, %v2492
      %v2495 = vshrl.u32 %v2468, 16
      %v2497 = vrot.slane %v2495, 3
      %v2498 = vshll.u32 %v2468, 16
      %v2500 = vrot.slane %v2498, 4
      %v2501 = vor.u32 %v2497, %v2500
      %v2502 = vsel %vm2052, %v2493, %v2501
      %v2504 = vshrl.u32 %v2469, 16
      %v2506 = vrot.slane %v2504, 3
      %v2507 = vshll.u32 %v2469, 16
      %v2509 = vrot.slane %v2507, 4
      %v2510 = vor.u32 %v2506, %v2509
      %v2511 = vsel %vm2052, %v2501, %v2510
      %v2513 = vshrl.u32 %v2470, 16
      %v2515 = vrot.slane %v2513, 3
      %v2516 = vshll.u32 %v2470, 16
      %v2518 = vrot.slane %v2516, 4
      %v2519 = vor.u32 %v2515, %v2518
      %v2520 = vsel %vm2052, %v2510, %v2519
      %v2522 = vshrl.u32 %v2471, 16
      %v2524 = vrot.slane %v2522, 3
      %v2525 = vshll.u32 %v2471, 16
      %v2527 = vrot.slane %v2525, 4
      %v2528 = vor.u32 %v2524, %v2527
      %v2529 = vsel %vm2052, %v2519, %v2528
      %v2531 = vshrl.u32 %v2472, 16
      %v2533 = vrot.slane %v2531, 3
      %v2534 = vshll.u32 %v2472, 16
      %v2536 = vrot.slane %v2534, 4
      %v2537 = vor.u32 %v2533, %v2536
      %v2538 = vsel %vm2052, %v2528, %v2537
      %v2540 = vshrl.u32 %v2473, 16
      %v2542 = vrot.slane %v2540, 3
      %v2543 = vshll.u32 %v2473, 16
      %v2545 = vrot.slane %v2543, 4
      %v2546 = vor.u32 %v2542, %v2545
      %v2547 = vsel %vm2052, %v2537, %v2546
      %v2549 = vshrl.u32 %v2474, 16
      %v2551 = vrot.slane %v2549, 3
      %v2552 = vshll.u32 %v2474, 16
      %v2554 = vrot.slane %v2552, 4
      %v2555 = vor.u32 %v2551, %v2554
      %v2556 = vsel %vm2052, %v2546, %v2555
      %v2558 = vshrl.u32 %v2475, 16
      %v2560 = vrot.slane %v2558, 3
      %v2561 = vshll.u32 %v2475, 16
      %v2563 = vrot.slane %v2561, 4
      %v2564 = vor.u32 %v2560, %v2563
      %v2565 = vsel %vm2052, %v2555, %v2564
      %v2567 = vshrl.u32 %v2476, 16
      %v2569 = vrot.slane %v2567, 3
      %v2570 = vshll.u32 %v2476, 16
      %v2572 = vrot.slane %v2570, 4
      %v2573 = vor.u32 %v2569, %v2572
      %v2574 = vsel %vm2052, %v2564, %v2573
      %v2576 = vshrl.u32 %v2477, 16
      %v2578 = vrot.slane %v2576, 3
      %v2579 = vshll.u32 %v2477, 16
      %v2581 = vrot.slane %v2579, 4
      %v2582 = vor.u32 %v2578, %v2581
      %v2583 = vsel %vm2052, %v2573, %v2582
      %v2585 = vshrl.u32 %v2478, 16
      %v2587 = vrot.slane %v2585, 3
      %v2588 = vshll.u32 %v2478, 16
      %v2590 = vrot.slane %v2588, 4
      %v2591 = vor.u32 %v2587, %v2590
      %v2592 = vsel %vm2052, %v2582, %v2591
      %v2594 = vshrl.u32 %v2479, 16
      %v2596 = vrot.slane %v2594, 3
      %v2597 = vshll.u32 %v2479, 16
      %v2599 = vrot.slane %v2597, 4
      %v2600 = vor.u32 %v2596, %v2599
      %v2601 = vsel %vm2052, %v2591, %v2600
      %v2603 = vshrl.u32 %v2480, 16
      %v2605 = vrot.slane %v2603, 3
      %v2606 = vshll.u32 %v2480, 16
      %v2608 = vrot.slane %v2606, 4
      %v2609 = vor.u32 %v2605, %v2608
      %v2610 = vsel %vm2052, %v2600, %v2609
      %v2612 = vshrl.u32 %v2481, 16
      %v2614 = vrot.slane %v2612, 3
      %v2615 = vshll.u32 %v2481, 16
      %v2617 = vrot.slane %v2615, 4
      %v2618 = vor.u32 %v2614, %v2617
      %v2619 = vsel %vm2052, %v2609, %v2618
      %v2621 = vshrl.u32 %v2482, 16
      %v2623 = vrot.slane %v2621, 3
      %v2624 = vshll.u32 %v2482, 16
      %v2626 = vrot.slane %v2624, 4
      %v2627 = vor.u32 %v2623, %v2626
      %v2628 = vsel %vm2052, %v2618, %v2627
      %v2630 = vshrl.u32 %v2483, 16
      %v2632 = vrot.slane %v2630, 3
      %v2633 = vshll.u32 %v2483, 16
      %v2635 = vrot.slane %v2633, 4
      %v2636 = vor.u32 %v2632, %v2635
      %v2637 = vsel %vm2052, %v2627, %v2636
      %v2639 = vshrl.u32 %v2484, 16
      %v2641 = vrot.slane %v2639, 3
      %v2642 = vshll.u32 %v2484, 16
      %v2644 = vrot.slane %v2642, 4
      %v2645 = vor.u32 %v2641, %v2644
      %v2646 = vsel %vm2052, %v2636, %v2645
      %v2648 = vshrl.u32 %v2485, 16
      %v2650 = vrot.slane %v2648, 3
      %v2651 = vshll.u32 %v2485, 16
      %v2653 = vrot.slane %v2651, 4
      %v2654 = vor.u32 %v2650, %v2653
      %v2655 = vsel %vm2052, %v2645, %v2654
      %v2690 = vunpack.c.l.b16 %v2377
      %v2691 = vunpack.c.l.b16 %v2378
      %v2692 = vunpack.c.l.b16 %v2379
      %v2693 = vunpack.c.l.b16 %v2380
      %v2694 = vunpack.c.l.b16 %v2381
      %v2695 = vunpack.c.l.b16 %v2382
      %v2696 = vunpack.c.l.b16 %v2383
      %v2697 = vunpack.c.l.b16 %v2384
      %v2698 = vunpack.c.l.b16 %v2385
      %v2699 = vunpack.c.l.b16 %v2386
      %v2700 = vunpack.c.l.b16 %v2387
      %v2701 = vunpack.c.l.b16 %v2388
      %v2702 = vunpack.c.l.b16 %v2389
      %v2703 = vunpack.c.l.b16 %v2390
      %v2704 = vunpack.c.l.b16 %v2391
      %v2705 = vunpack.c.l.b16 %v2392
      %v2706 = vpack.c.b16 %v2691, %v2690
      %v2707 = vpack.c.b16 %v2693, %v2692
      %v2708 = vpack.c.b16 %v2695, %v2694
      %v2709 = vpack.c.b16 %v2697, %v2696
      %v2710 = vpack.c.b16 %v2699, %v2698
      %v2711 = vpack.c.b16 %v2701, %v2700
      %v2712 = vpack.c.b16 %v2703, %v2702
      %v2713 = vpack.c.b16 %v2705, %v2704
      %2722 = vmatpush.bf16.msra.mxu0 %v2713
      %2723 = vmatpush.bf16.msra.mxu0 %v2712
      %2724 = vmatpush.bf16.msra.mxu0 %v2711
      %2725 = vmatpush.bf16.msra.mxu0 %v2710
      %2726 = vmatpush.bf16.msra.mxu0 %v2709
      %2727 = vmatpush.bf16.msra.mxu0 %v2708
      %2728 = vmatpush.bf16.msra.mxu0 %v2707
      %2729 = vmatpush.bf16.msra.mxu0 %v2706
      %2730 = vmatmul.bf16.gmra.mxu0 %v2502
      %v2731 = vpop.f32.mrf.mxu0
      %v2732 = vadd.f32 0.0, %v2731
      %v2733 = vpop.f32.mrf.mxu0
      %v2734 = vadd.f32 0.0, %v2733
      %2735 = vmatmul.bf16.gmra.mxu0 %v2511
      %v2736 = vpop.f32.mrf.mxu0
      %v2737 = vadd.f32 0.0, %v2736
      %v2738 = vpop.f32.mrf.mxu0
      %v2739 = vadd.f32 0.0, %v2738
      %2740 = vmatmul.bf16.gmra.mxu0 %v2520
      %v2741 = vpop.f32.mrf.mxu0
      %v2742 = vadd.f32 0.0, %v2741
      %v2743 = vpop.f32.mrf.mxu0
      %v2744 = vadd.f32 0.0, %v2743
      %2745 = vmatmul.bf16.gmra.mxu0 %v2529
      %v2746 = vpop.f32.mrf.mxu0
      %v2747 = vadd.f32 0.0, %v2746
      %v2748 = vpop.f32.mrf.mxu0
      %v2749 = vadd.f32 0.0, %v2748
      %2750 = vmatmul.bf16.gmra.mxu0 %v2538
      %v2751 = vpop.f32.mrf.mxu0
      %v2752 = vadd.f32 0.0, %v2751
      %v2753 = vpop.f32.mrf.mxu0
      %v2754 = vadd.f32 0.0, %v2753
      %2755 = vmatmul.bf16.gmra.mxu0 %v2547
      %v2756 = vpop.f32.mrf.mxu0
      %v2757 = vadd.f32 0.0, %v2756
      %v2758 = vpop.f32.mrf.mxu0
      %v2759 = vadd.f32 0.0, %v2758
      %2760 = vmatmul.bf16.gmra.mxu0 %v2556
      %v2761 = vpop.f32.mrf.mxu0
      %v2762 = vadd.f32 0.0, %v2761
      %v2763 = vpop.f32.mrf.mxu0
      %v2764 = vadd.f32 0.0, %v2763
      %2765 = vmatmul.bf16.gmra.mxu0 %v2565
      %v2766 = vpop.f32.mrf.mxu0
      %v2767 = vadd.f32 0.0, %v2766
      %v2768 = vpop.f32.mrf.mxu0
      %v2769 = vadd.f32 0.0, %v2768
      %2770 = vmatmul.bf16.gmra.mxu0 %v2574
      %v2771 = vpop.f32.mrf.mxu0
      %v2772 = vadd.f32 0.0, %v2771
      %v2773 = vpop.f32.mrf.mxu0
      %v2774 = vadd.f32 0.0, %v2773
      %2775 = vmatmul.bf16.gmra.mxu0 %v2583
      %v2776 = vpop.f32.mrf.mxu0
      %v2777 = vadd.f32 0.0, %v2776
      %v2778 = vpop.f32.mrf.mxu0
      %v2779 = vadd.f32 0.0, %v2778
      %2780 = vmatmul.bf16.gmra.mxu0 %v2592
      %v2781 = vpop.f32.mrf.mxu0
      %v2782 = vadd.f32 0.0, %v2781
      %v2783 = vpop.f32.mrf.mxu0
      %v2784 = vadd.f32 0.0, %v2783
      %2785 = vmatmul.bf16.gmra.mxu0 %v2601
      %v2786 = vpop.f32.mrf.mxu0
      %v2787 = vadd.f32 0.0, %v2786
      %v2788 = vpop.f32.mrf.mxu0
      %v2789 = vadd.f32 0.0, %v2788
      %2790 = vmatmul.bf16.gmra.mxu0 %v2610
      %v2791 = vpop.f32.mrf.mxu0
      %v2792 = vadd.f32 0.0, %v2791
      %v2793 = vpop.f32.mrf.mxu0
      %v2794 = vadd.f32 0.0, %v2793
      %2795 = vmatmul.bf16.gmra.mxu0 %v2619
      %v2796 = vpop.f32.mrf.mxu0
      %v2797 = vadd.f32 0.0, %v2796
      %v2798 = vpop.f32.mrf.mxu0
      %v2799 = vadd.f32 0.0, %v2798
      %2800 = vmatmul.bf16.gmra.mxu0 %v2628
      %v2801 = vpop.f32.mrf.mxu0
      %v2802 = vadd.f32 0.0, %v2801
      %v2803 = vpop.f32.mrf.mxu0
      %v2804 = vadd.f32 0.0, %v2803
      %2805 = vmatmul.bf16.gmra.mxu0 %v2637
      %v2806 = vpop.f32.mrf.mxu0
      %v2807 = vadd.f32 0.0, %v2806
      %v2808 = vpop.f32.mrf.mxu0
      %v2809 = vadd.f32 0.0, %v2808
      %2810 = vmatmul.bf16.gmra.mxu0 %v2646
      %v2811 = vpop.f32.mrf.mxu0
      %v2812 = vadd.f32 0.0, %v2811
      %v2813 = vpop.f32.mrf.mxu0
      %v2814 = vadd.f32 0.0, %v2813
      %2815 = vmatmul.bf16.gmra.mxu0 %v2655
      %v2816 = vpop.f32.mrf.mxu0
      %v2817 = vadd.f32 0.0, %v2816
      %v2818 = vpop.f32.mrf.mxu0
      %v2819 = vadd.f32 0.0, %v2818
      %2820 = vdwg.mxu0
      %v2821 = vadd.f32 %v2303, %v2732
      %v2822 = vadd.f32 %v2304, %v2734
      %v2823 = vadd.f32 %v2305, %v2737
      %v2824 = vadd.f32 %v2306, %v2739
      %v2825 = vadd.f32 %v2307, %v2742
      %v2826 = vadd.f32 %v2308, %v2744
      %v2827 = vadd.f32 %v2309, %v2747
      %v2828 = vadd.f32 %v2310, %v2749
      %v2829 = vadd.f32 %v2311, %v2752
      %v2830 = vadd.f32 %v2312, %v2754
      %v2831 = vadd.f32 %v2313, %v2757
      %v2832 = vadd.f32 %v2314, %v2759
      %v2833 = vadd.f32 %v2315, %v2762
      %v2834 = vadd.f32 %v2316, %v2764
      %v2835 = vadd.f32 %v2317, %v2767
      %v2836 = vadd.f32 %v2318, %v2769
      %v2837 = vadd.f32 %v2319, %v2772
      %v2838 = vadd.f32 %v2320, %v2774
      %v2839 = vadd.f32 %v2321, %v2777
      %v2840 = vadd.f32 %v2322, %v2779
      %v2841 = vadd.f32 %v2323, %v2782
      %v2842 = vadd.f32 %v2324, %v2784
      %v2843 = vadd.f32 %v2325, %v2787
      %v2844 = vadd.f32 %v2326, %v2789
      %v2845 = vadd.f32 %v2327, %v2792
      %v2846 = vadd.f32 %v2328, %v2794
      %v2847 = vadd.f32 %v2329, %v2797
      %v2848 = vadd.f32 %v2330, %v2799
      %v2849 = vadd.f32 %v2331, %v2802
      %v2850 = vadd.f32 %v2332, %v2804
      %v2851 = vadd.f32 %v2333, %v2807
      %v2852 = vadd.f32 %v2334, %v2809
      %v2853 = vadd.f32 %v2335, %v2812
      %v2854 = vadd.f32 %v2336, %v2814
      %v2855 = vadd.f32 %v2337, %v2817
      %v2856 = vadd.f32 %v2338, %v2819
      %s2857 = scalar_lea.vmem %s4, 256
      %v2858 = vld [vmem:[%s2857] sm:$0xf]
      %v2859 = vld [vmem:[%s2857 + $0x4] sm:$0xf]
      %v2860 = vld [vmem:[%s2857 + $0x8] sm:$0xf]
      %v2861 = vld [vmem:[%s2857 + $0xc] sm:$0xf]
      %v2862 = vld [vmem:[%s2857 + $0x10] sm:$0xf]
      %v2863 = vld [vmem:[%s2857 + $0x14] sm:$0xf]
      %v2864 = vld [vmem:[%s2857 + $0x18] sm:$0xf]
      %v2865 = vld [vmem:[%s2857 + $0x1c] sm:$0xf]
      %v2866 = vld [vmem:[%s2857 + $0x20] sm:$0xf]
      %v2867 = vld [vmem:[%s2857 + $0x24] sm:$0xf]
      %v2868 = vld [vmem:[%s2857 + $0x28] sm:$0xf]
      %v2869 = vld [vmem:[%s2857 + $0x2c] sm:$0xf]
      %v2870 = vld [vmem:[%s2857 + $0x30] sm:$0xf]
      %v2871 = vld [vmem:[%s2857 + $0x34] sm:$0xf]
      %v2872 = vld [vmem:[%s2857 + $0x38] sm:$0xf]
      %v2873 = vld [vmem:[%s2857 + $0x3c] sm:$0xf]
      %v2874 = vpack.c.b16 %v2432, %v2431
      %v2875 = vpack.c.b16 %v2434, %v2433
      %v2876 = vpack.c.b16 %v2436, %v2435
      %v2877 = vpack.c.b16 %v2438, %v2437
      %v2878 = vpack.c.b16 %v2440, %v2439
      %v2879 = vpack.c.b16 %v2442, %v2441
      %v2880 = vpack.c.b16 %v2444, %v2443
      %v2881 = vpack.c.b16 %v2446, %v2445
      %v2882 = vpack.c.b16 %v2448, %v2447
      %v2883 = vpack.c.b16 %v2450, %v2449
      %v2884 = vpack.c.b16 %v2452, %v2451
      %v2885 = vpack.c.b16 %v2454, %v2453
      %v2886 = vpack.c.b16 %v2456, %v2455
      %v2887 = vpack.c.b16 %v2458, %v2457
      %v2888 = vpack.c.b16 %v2460, %v2459
      %v2889 = vpack.c.b16 %v2462, %v2461
      %v2890 = vpack.c.b16 %v2464, %v2463
      %v2891 = vpack.c.b16 %v2466, %v2465
      %v2926 = vunpack.c.l.b16 %v2858
      %v2927 = vunpack.c.l.b16 %v2859
      %v2928 = vunpack.c.l.b16 %v2860
      %v2929 = vunpack.c.l.b16 %v2861
      %v2930 = vunpack.c.l.b16 %v2862
      %v2931 = vunpack.c.l.b16 %v2863
      %v2932 = vunpack.c.l.b16 %v2864
      %v2933 = vunpack.c.l.b16 %v2865
      %v2934 = vunpack.c.l.b16 %v2866
      %v2935 = vunpack.c.l.b16 %v2867
      %v2936 = vunpack.c.l.b16 %v2868
      %v2937 = vunpack.c.l.b16 %v2869
      %v2938 = vunpack.c.l.b16 %v2870
      %v2939 = vunpack.c.l.b16 %v2871
      %v2940 = vunpack.c.l.b16 %v2872
      %v2941 = vunpack.c.l.b16 %v2873
      %v2942 = vpack.c.b16 %v2927, %v2926
      %v2943 = vpack.c.b16 %v2929, %v2928
      %v2944 = vpack.c.b16 %v2931, %v2930
      %v2945 = vpack.c.b16 %v2933, %v2932
      %v2946 = vpack.c.b16 %v2935, %v2934
      %v2947 = vpack.c.b16 %v2937, %v2936
      %v2948 = vpack.c.b16 %v2939, %v2938
      %v2949 = vpack.c.b16 %v2941, %v2940
      %2958 = vmatpush.bf16.msra.mxu0 %v2949
      %2959 = vmatpush.bf16.msra.mxu0 %v2948
      %2960 = vmatpush.bf16.msra.mxu0 %v2947
      %2961 = vmatpush.bf16.msra.mxu0 %v2946
      %2962 = vmatpush.bf16.msra.mxu0 %v2945
      %2963 = vmatpush.bf16.msra.mxu0 %v2944
      %2964 = vmatpush.bf16.msra.mxu0 %v2943
      %2965 = vmatpush.bf16.msra.mxu0 %v2942
      %2966 = vmatmul.bf16.gmra.mxu0 %v2874
      %v2967 = vpop.f32.mrf.mxu0
      %v2968 = vadd.f32 0.0, %v2967
      %v2969 = vpop.f32.mrf.mxu0
      %v2970 = vadd.f32 0.0, %v2969
      %2971 = vmatmul.bf16.gmra.mxu0 %v2875
      %v2972 = vpop.f32.mrf.mxu0
      %v2973 = vadd.f32 0.0, %v2972
      %v2974 = vpop.f32.mrf.mxu0
      %v2975 = vadd.f32 0.0, %v2974
      %2976 = vmatmul.bf16.gmra.mxu0 %v2876
      %v2977 = vpop.f32.mrf.mxu0
      %v2978 = vadd.f32 0.0, %v2977
      %v2979 = vpop.f32.mrf.mxu0
      %v2980 = vadd.f32 0.0, %v2979
      %2981 = vmatmul.bf16.gmra.mxu0 %v2877
      %v2982 = vpop.f32.mrf.mxu0
      %v2983 = vadd.f32 0.0, %v2982
      %v2984 = vpop.f32.mrf.mxu0
      %v2985 = vadd.f32 0.0, %v2984
      %2986 = vmatmul.bf16.gmra.mxu0 %v2878
      %v2987 = vpop.f32.mrf.mxu0
      %v2988 = vadd.f32 0.0, %v2987
      %v2989 = vpop.f32.mrf.mxu0
      %v2990 = vadd.f32 0.0, %v2989
      %2991 = vmatmul.bf16.gmra.mxu0 %v2879
      %v2992 = vpop.f32.mrf.mxu0
      %v2993 = vadd.f32 0.0, %v2992
      %v2994 = vpop.f32.mrf.mxu0
      %v2995 = vadd.f32 0.0, %v2994
      %2996 = vmatmul.bf16.gmra.mxu0 %v2880
      %v2997 = vpop.f32.mrf.mxu0
      %v2998 = vadd.f32 0.0, %v2997
      %v2999 = vpop.f32.mrf.mxu0
      %v3000 = vadd.f32 0.0, %v2999
      %3001 = vmatmul.bf16.gmra.mxu0 %v2881
      %v3002 = vpop.f32.mrf.mxu0
      %v3003 = vadd.f32 0.0, %v3002
      %v3004 = vpop.f32.mrf.mxu0
      %v3005 = vadd.f32 0.0, %v3004
      %3006 = vmatmul.bf16.gmra.mxu0 %v2882
      %v3007 = vpop.f32.mrf.mxu0
      %v3008 = vadd.f32 0.0, %v3007
      %v3009 = vpop.f32.mrf.mxu0
      %v3010 = vadd.f32 0.0, %v3009
      %3011 = vmatmul.bf16.gmra.mxu0 %v2883
      %v3012 = vpop.f32.mrf.mxu0
      %v3013 = vadd.f32 0.0, %v3012
      %v3014 = vpop.f32.mrf.mxu0
      %v3015 = vadd.f32 0.0, %v3014
      %3016 = vmatmul.bf16.gmra.mxu0 %v2884
      %v3017 = vpop.f32.mrf.mxu0
      %v3018 = vadd.f32 0.0, %v3017
      %v3019 = vpop.f32.mrf.mxu0
      %v3020 = vadd.f32 0.0, %v3019
      %3021 = vmatmul.bf16.gmra.mxu0 %v2885
      %v3022 = vpop.f32.mrf.mxu0
      %v3023 = vadd.f32 0.0, %v3022
      %v3024 = vpop.f32.mrf.mxu0
      %v3025 = vadd.f32 0.0, %v3024
      %3026 = vmatmul.bf16.gmra.mxu0 %v2886
      %v3027 = vpop.f32.mrf.mxu0
      %v3028 = vadd.f32 0.0, %v3027
      %v3029 = vpop.f32.mrf.mxu0
      %v3030 = vadd.f32 0.0, %v3029
      %3031 = vmatmul.bf16.gmra.mxu0 %v2887
      %v3032 = vpop.f32.mrf.mxu0
      %v3033 = vadd.f32 0.0, %v3032
      %v3034 = vpop.f32.mrf.mxu0
      %v3035 = vadd.f32 0.0, %v3034
      %3036 = vmatmul.bf16.gmra.mxu0 %v2888
      %v3037 = vpop.f32.mrf.mxu0
      %v3038 = vadd.f32 0.0, %v3037
      %v3039 = vpop.f32.mrf.mxu0
      %v3040 = vadd.f32 0.0, %v3039
      %3041 = vmatmul.bf16.gmra.mxu0 %v2889
      %v3042 = vpop.f32.mrf.mxu0
      %v3043 = vadd.f32 0.0, %v3042
      %v3044 = vpop.f32.mrf.mxu0
      %v3045 = vadd.f32 0.0, %v3044
      %3046 = vmatmul.bf16.gmra.mxu0 %v2890
      %v3047 = vpop.f32.mrf.mxu0
      %v3048 = vadd.f32 0.0, %v3047
      %v3049 = vpop.f32.mrf.mxu0
      %v3050 = vadd.f32 0.0, %v3049
      %3051 = vmatmul.bf16.gmra.mxu0 %v2891
      %v3052 = vpop.f32.mrf.mxu0
      %v3053 = vadd.f32 0.0, %v3052
      %v3054 = vpop.f32.mrf.mxu0
      %v3055 = vadd.f32 0.0, %v3054
      %3056 = vdwg.mxu0
      %v3057 = vadd.f32 %v2821, %v2968
      %v3058 = vadd.f32 %v2822, %v2970
      %v3059 = vadd.f32 %v2823, %v2973
      %v3060 = vadd.f32 %v2824, %v2975
      %v3061 = vadd.f32 %v2825, %v2978
      %v3062 = vadd.f32 %v2826, %v2980
      %v3063 = vadd.f32 %v2827, %v2983
      %v3064 = vadd.f32 %v2828, %v2985
      %v3065 = vadd.f32 %v2829, %v2988
      %v3066 = vadd.f32 %v2830, %v2990
      %v3067 = vadd.f32 %v2831, %v2993
      %v3068 = vadd.f32 %v2832, %v2995
      %v3069 = vadd.f32 %v2833, %v2998
      %v3070 = vadd.f32 %v2834, %v3000
      %v3071 = vadd.f32 %v2835, %v3003
      %v3072 = vadd.f32 %v2836, %v3005
      %v3073 = vadd.f32 %v2837, %v3008
      %v3074 = vadd.f32 %v2838, %v3010
      %v3075 = vadd.f32 %v2839, %v3013
      %v3076 = vadd.f32 %v2840, %v3015
      %v3077 = vadd.f32 %v2841, %v3018
      %v3078 = vadd.f32 %v2842, %v3020
      %v3079 = vadd.f32 %v2843, %v3023
      %v3080 = vadd.f32 %v2844, %v3025
      %v3081 = vadd.f32 %v2845, %v3028
      %v3082 = vadd.f32 %v2846, %v3030
      %v3083 = vadd.f32 %v2847, %v3033
      %v3084 = vadd.f32 %v2848, %v3035
      %v3085 = vadd.f32 %v2849, %v3038
      %v3086 = vadd.f32 %v2850, %v3040
      %v3087 = vadd.f32 %v2851, %v3043
      %v3088 = vadd.f32 %v2852, %v3045
      %v3089 = vadd.f32 %v2853, %v3048
      %v3090 = vadd.f32 %v2854, %v3050
      %v3091 = vadd.f32 %v2855, %v3053
      %v3092 = vadd.f32 %v2856, %v3055
      %v3093 = vld [vmem:[#allocation2 + $0x10] sm:$0xf]
      %v3094 = vld [vmem:[#allocation2 + $0x14] sm:$0xf]
      %v3095 = vld [vmem:[#allocation2 + $0x18] sm:$0xf]
      %v3096 = vld [vmem:[#allocation2 + $0x1c] sm:$0xf]
      %v3097 = vld [vmem:[#allocation2 + $0x20] sm:$0xf]
      %v3098 = vld [vmem:[#allocation2 + $0x24] sm:$0xf]
      %v3099 = vld [vmem:[#allocation2 + $0x28] sm:$0xf]
      %v3100 = vld [vmem:[#allocation2 + $0x2c] sm:$0xf]
      %v3101 = vld [vmem:[#allocation2 + $0x30] sm:$0xf]
      %v3102 = vld [vmem:[#allocation2 + $0x34] sm:$0xf]
      %v3103 = vld [vmem:[#allocation2 + $0x38] sm:$0xf]
      %v3104 = vld [vmem:[#allocation2 + $0x3c] sm:$0xf]
      %v3105 = vld [vmem:[#allocation2 + $0x40] sm:$0xf]
      %v3106 = vld [vmem:[#allocation2 + $0x44] sm:$0xf]
      %v3107 = vld [vmem:[#allocation2 + $0x48] sm:$0xf]
      %v3108 = vld [vmem:[#allocation2 + $0x4c] sm:$0xf]
      %v3109 = vld [vmem:[#allocation2 + $0x50] sm:$0xf]
      %v3110 = vld [vmem:[#allocation2 + $0x54] sm:$0xf]
      %v3111 = vld [vmem:[#allocation2 + $0x58] sm:$0xf]
      %v3112 = vld [vmem:[#allocation2 + $0x5c] sm:$0xf]
      %v3113 = vld [vmem:[#allocation2 + $0x60] sm:$0xf]
      %v3114 = vld [vmem:[#allocation2 + $0x64] sm:$0xf]
      %v3115 = vld [vmem:[#allocation2 + $0x68] sm:$0xf]
      %v3116 = vld [vmem:[#allocation2 + $0x6c] sm:$0xf]
      %v3117 = vld [vmem:[#allocation2 + $0x70] sm:$0xf]
      %v3118 = vld [vmem:[#allocation2 + $0x74] sm:$0xf]
      %v3119 = vld [vmem:[#allocation2 + $0x78] sm:$0xf]
      %v3120 = vld [vmem:[#allocation2 + $0x7c] sm:$0xf]
      %v3121 = vld [vmem:[#allocation2 + $0x80] sm:$0xf]
      %v3122 = vld [vmem:[#allocation2 + $0x84] sm:$0xf]
      %v3123 = vld [vmem:[#allocation2 + $0x88] sm:$0xf]
      %v3124 = vld [vmem:[#allocation2 + $0x8c] sm:$0xf]
      %v3125 = vld [vmem:[#allocation2 + $0x90] sm:$0xf]
      %v3126 = vld [vmem:[#allocation2 + $0x94] sm:$0xf]
      %v3127 = vld [vmem:[#allocation2 + $0x98] sm:$0xf]
      %v3128 = vld [vmem:[#allocation2 + $0x9c] sm:$0xf]
      %v3129 = vld [vmem:[#allocation2 + $0xa0] sm:$0x1]
      %s3130 = scalar_lea.vmem %s4, 320
      %v3131 = vld [vmem:[%s3130] sm:$0xf]
      %v3132 = vld [vmem:[%s3130 + $0x4] sm:$0xf]
      %v3133 = vld [vmem:[%s3130 + $0x8] sm:$0xf]
      %v3134 = vld [vmem:[%s3130 + $0xc] sm:$0xf]
      %v3135 = vld [vmem:[%s3130 + $0x10] sm:$0xf]
      %v3136 = vld [vmem:[%s3130 + $0x14] sm:$0xf]
      %v3137 = vld [vmem:[%s3130 + $0x18] sm:$0xf]
      %v3138 = vld [vmem:[%s3130 + $0x1c] sm:$0xf]
      %v3139 = vld [vmem:[%s3130 + $0x20] sm:$0xf]
      %v3140 = vld [vmem:[%s3130 + $0x24] sm:$0xf]
      %v3141 = vld [vmem:[%s3130 + $0x28] sm:$0xf]
      %v3142 = vld [vmem:[%s3130 + $0x2c] sm:$0xf]
      %v3143 = vld [vmem:[%s3130 + $0x30] sm:$0xf]
      %v3144 = vld [vmem:[%s3130 + $0x34] sm:$0xf]
      %v3145 = vld [vmem:[%s3130 + $0x38] sm:$0xf]
      %v3146 = vld [vmem:[%s3130 + $0x3c] sm:$0xf]
      %v3184 = vunpack.c.l.b16 %v3093
      %v3185 = vunpack.c.l.b16 %v3094
      %v3186 = vunpack.c.l.b16 %v3095
      %v3187 = vunpack.c.l.b16 %v3096
      %v3188 = vunpack.c.l.b16 %v3097
      %v3189 = vunpack.c.l.b16 %v3098
      %v3190 = vunpack.c.l.b16 %v3099
      %v3191 = vunpack.c.l.b16 %v3100
      %v3192 = vunpack.c.l.b16 %v3101
      %v3193 = vunpack.c.l.b16 %v3102
      %v3194 = vunpack.c.l.b16 %v3103
      %v3195 = vunpack.c.l.b16 %v3104
      %v3196 = vunpack.c.l.b16 %v3105
      %v3197 = vunpack.c.l.b16 %v3106
      %v3198 = vunpack.c.l.b16 %v3107
      %v3199 = vunpack.c.l.b16 %v3108
      %v3200 = vunpack.c.l.b16 %v3109
      %v3201 = vunpack.c.l.b16 %v3110
      %v3202 = vunpack.c.l.b16 %v3111
      %v3203 = vunpack.c.l.b16 %v3112
      %v3204 = vunpack.c.l.b16 %v3113
      %v3205 = vunpack.c.l.b16 %v3114
      %v3206 = vunpack.c.l.b16 %v3115
      %v3207 = vunpack.c.l.b16 %v3116
      %v3208 = vunpack.c.l.b16 %v3117
      %v3209 = vunpack.c.l.b16 %v3118
      %v3210 = vunpack.c.l.b16 %v3119
      %v3211 = vunpack.c.l.b16 %v3120
      %v3212 = vunpack.c.l.b16 %v3121
      %v3213 = vunpack.c.l.b16 %v3122
      %v3214 = vunpack.c.l.b16 %v3123
      %v3215 = vunpack.c.l.b16 %v3124
      %v3216 = vunpack.c.l.b16 %v3125
      %v3217 = vunpack.c.l.b16 %v3126
      %v3218 = vunpack.c.l.b16 %v3127
      %v3219 = vunpack.c.l.b16 %v3128
      %v3220 = vunpack.c.l.b16 %v3129
      %v3221 = vpack.c.b16 %v3185, %v3184
      %v3222 = vpack.c.b16 %v3187, %v3186
      %v3223 = vpack.c.b16 %v3189, %v3188
      %v3224 = vpack.c.b16 %v3191, %v3190
      %v3225 = vpack.c.b16 %v3193, %v3192
      %v3226 = vpack.c.b16 %v3195, %v3194
      %v3227 = vpack.c.b16 %v3197, %v3196
      %v3228 = vpack.c.b16 %v3199, %v3198
      %v3229 = vpack.c.b16 %v3201, %v3200
      %v3230 = vpack.c.b16 %v3203, %v3202
      %v3231 = vpack.c.b16 %v3205, %v3204
      %v3232 = vpack.c.b16 %v3207, %v3206
      %v3233 = vpack.c.b16 %v3209, %v3208
      %v3234 = vpack.c.b16 %v3211, %v3210
      %v3235 = vpack.c.b16 %v3213, %v3212
      %v3236 = vpack.c.b16 %v3215, %v3214
      %v3237 = vpack.c.b16 %v3217, %v3216
      %v3238 = vpack.c.b16 %v3219, %v3218
      %v3239 = vpack.c.b16 %v3220, %v3220
      %vm3240 = vsmask.f32 7424
      %v3242 = vshrl.u32 %v3221, 16
      %v3244 = vshll.u32 %v3221, 16
      %v3246 = vrot.slane %v3244, 1
      %v3247 = vor.u32 %v3242, %v3246
      %v3249 = vshll.u32 %v3222, 16
      %v3251 = vrot.slane %v3249, 1
      %v3252 = vsel %vm3240, %v3247, %v3251
      %v3253 = vshrl.u32 %v3222, 16
      %v3255 = vor.u32 %v3253, %v3251
      %v3257 = vshll.u32 %v3223, 16
      %v3259 = vrot.slane %v3257, 1
      %v3260 = vsel %vm3240, %v3255, %v3259
      %v3261 = vshrl.u32 %v3223, 16
      %v3263 = vor.u32 %v3261, %v3259
      %v3265 = vshll.u32 %v3224, 16
      %v3267 = vrot.slane %v3265, 1
      %v3268 = vsel %vm3240, %v3263, %v3267
      %v3269 = vshrl.u32 %v3224, 16
      %v3271 = vor.u32 %v3269, %v3267
      %v3273 = vshll.u32 %v3225, 16
      %v3275 = vrot.slane %v3273, 1
      %v3276 = vsel %vm3240, %v3271, %v3275
      %v3277 = vshrl.u32 %v3225, 16
      %v3279 = vor.u32 %v3277, %v3275
      %v3281 = vshll.u32 %v3226, 16
      %v3283 = vrot.slane %v3281, 1
      %v3284 = vsel %vm3240, %v3279, %v3283
      %v3285 = vshrl.u32 %v3226, 16
      %v3287 = vor.u32 %v3285, %v3283
      %v3289 = vshll.u32 %v3227, 16
      %v3291 = vrot.slane %v3289, 1
      %v3292 = vsel %vm3240, %v3287, %v3291
      %v3293 = vshrl.u32 %v3227, 16
      %v3295 = vor.u32 %v3293, %v3291
      %v3297 = vshll.u32 %v3228, 16
      %v3299 = vrot.slane %v3297, 1
      %v3300 = vsel %vm3240, %v3295, %v3299
      %v3301 = vshrl.u32 %v3228, 16
      %v3303 = vor.u32 %v3301, %v3299
      %v3305 = vshll.u32 %v3229, 16
      %v3307 = vrot.slane %v3305, 1
      %v3308 = vsel %vm3240, %v3303, %v3307
      %v3309 = vshrl.u32 %v3229, 16
      %v3311 = vor.u32 %v3309, %v3307
      %v3313 = vshll.u32 %v3230, 16
      %v3315 = vrot.slane %v3313, 1
      %v3316 = vsel %vm3240, %v3311, %v3315
      %v3317 = vshrl.u32 %v3230, 16
      %v3319 = vor.u32 %v3317, %v3315
      %v3321 = vshll.u32 %v3231, 16
      %v3323 = vrot.slane %v3321, 1
      %v3324 = vsel %vm3240, %v3319, %v3323
      %v3325 = vshrl.u32 %v3231, 16
      %v3327 = vor.u32 %v3325, %v3323
      %v3329 = vshll.u32 %v3232, 16
      %v3331 = vrot.slane %v3329, 1
      %v3332 = vsel %vm3240, %v3327, %v3331
      %v3333 = vshrl.u32 %v3232, 16
      %v3335 = vor.u32 %v3333, %v3331
      %v3337 = vshll.u32 %v3233, 16
      %v3339 = vrot.slane %v3337, 1
      %v3340 = vsel %vm3240, %v3335, %v3339
      %v3341 = vshrl.u32 %v3233, 16
      %v3343 = vor.u32 %v3341, %v3339
      %v3345 = vshll.u32 %v3234, 16
      %v3347 = vrot.slane %v3345, 1
      %v3348 = vsel %vm3240, %v3343, %v3347
      %v3349 = vshrl.u32 %v3234, 16
      %v3351 = vor.u32 %v3349, %v3347
      %v3353 = vshll.u32 %v3235, 16
      %v3355 = vrot.slane %v3353, 1
      %v3356 = vsel %vm3240, %v3351, %v3355
      %v3357 = vshrl.u32 %v3235, 16
      %v3359 = vor.u32 %v3357, %v3355
      %v3361 = vshll.u32 %v3236, 16
      %v3363 = vrot.slane %v3361, 1
      %v3364 = vsel %vm3240, %v3359, %v3363
      %v3365 = vshrl.u32 %v3236, 16
      %v3367 = vor.u32 %v3365, %v3363
      %v3369 = vshll.u32 %v3237, 16
      %v3371 = vrot.slane %v3369, 1
      %v3372 = vsel %vm3240, %v3367, %v3371
      %v3373 = vshrl.u32 %v3237, 16
      %v3375 = vor.u32 %v3373, %v3371
      %v3377 = vshll.u32 %v3238, 16
      %v3379 = vrot.slane %v3377, 1
      %v3380 = vsel %vm3240, %v3375, %v3379
      %v3381 = vshrl.u32 %v3238, 16
      %v3383 = vor.u32 %v3381, %v3379
      %v3385 = vshll.u32 %v3239, 16
      %v3387 = vrot.slane %v3385, 1
      %v3388 = vsel %vm3240, %v3383, %v3387
      %v3423 = vunpack.c.l.b16 %v3131
      %v3424 = vunpack.c.l.b16 %v3132
      %v3425 = vunpack.c.l.b16 %v3133
      %v3426 = vunpack.c.l.b16 %v3134
      %v3427 = vunpack.c.l.b16 %v3135
      %v3428 = vunpack.c.l.b16 %v3136
      %v3429 = vunpack.c.l.b16 %v3137
      %v3430 = vunpack.c.l.b16 %v3138
      %v3431 = vunpack.c.l.b16 %v3139
      %v3432 = vunpack.c.l.b16 %v3140
      %v3433 = vunpack.c.l.b16 %v3141
      %v3434 = vunpack.c.l.b16 %v3142
      %v3435 = vunpack.c.l.b16 %v3143
      %v3436 = vunpack.c.l.b16 %v3144
      %v3437 = vunpack.c.l.b16 %v3145
      %v3438 = vunpack.c.l.b16 %v3146
      %v3439 = vpack.c.b16 %v3424, %v3423
      %v3440 = vpack.c.b16 %v3426, %v3425
      %v3441 = vpack.c.b16 %v3428, %v3427
      %v3442 = vpack.c.b16 %v3430, %v3429
      %v3443 = vpack.c.b16 %v3432, %v3431
      %v3444 = vpack.c.b16 %v3434, %v3433
      %v3445 = vpack.c.b16 %v3436, %v3435
      %v3446 = vpack.c.b16 %v3438, %v3437
      %3455 = vmatpush.bf16.msra.mxu0 %v3446
      %3456 = vmatpush.bf16.msra.mxu0 %v3445
      %3457 = vmatpush.bf16.msra.mxu0 %v3444
      %3458 = vmatpush.bf16.msra.mxu0 %v3443
      %3459 = vmatpush.bf16.msra.mxu0 %v3442
      %3460 = vmatpush.bf16.msra.mxu0 %v3441
      %3461 = vmatpush.bf16.msra.mxu0 %v3440
      %3462 = vmatpush.bf16.msra.mxu0 %v3439
      %3463 = vmatmul.bf16.gmra.mxu0 %v3252
      %v3464 = vpop.f32.mrf.mxu0
      %v3465 = vadd.f32 0.0, %v3464
      %v3466 = vpop.f32.mrf.mxu0
      %v3467 = vadd.f32 0.0, %v3466
      %3468 = vmatmul.bf16.gmra.mxu0 %v3260
      %v3469 = vpop.f32.mrf.mxu0
      %v3470 = vadd.f32 0.0, %v3469
      %v3471 = vpop.f32.mrf.mxu0
      %v3472 = vadd.f32 0.0, %v3471
      %3473 = vmatmul.bf16.gmra.mxu0 %v3268
      %v3474 = vpop.f32.mrf.mxu0
      %v3475 = vadd.f32 0.0, %v3474
      %v3476 = vpop.f32.mrf.mxu0
      %v3477 = vadd.f32 0.0, %v3476
      %3478 = vmatmul.bf16.gmra.mxu0 %v3276
      %v3479 = vpop.f32.mrf.mxu0
      %v3480 = vadd.f32 0.0, %v3479
      %v3481 = vpop.f32.mrf.mxu0
      %v3482 = vadd.f32 0.0, %v3481
      %3483 = vmatmul.bf16.gmra.mxu0 %v3284
      %v3484 = vpop.f32.mrf.mxu0
      %v3485 = vadd.f32 0.0, %v3484
      %v3486 = vpop.f32.mrf.mxu0
      %v3487 = vadd.f32 0.0, %v3486
      %3488 = vmatmul.bf16.gmra.mxu0 %v3292
      %v3489 = vpop.f32.mrf.mxu0
      %v3490 = vadd.f32 0.0, %v3489
      %v3491 = vpop.f32.mrf.mxu0
      %v3492 = vadd.f32 0.0, %v3491
      %3493 = vmatmul.bf16.gmra.mxu0 %v3300
      %v3494 = vpop.f32.mrf.mxu0
      %v3495 = vadd.f32 0.0, %v3494
      %v3496 = vpop.f32.mrf.mxu0
      %v3497 = vadd.f32 0.0, %v3496
      %3498 = vmatmul.bf16.gmra.mxu0 %v3308
      %v3499 = vpop.f32.mrf.mxu0
      %v3500 = vadd.f32 0.0, %v3499
      %v3501 = vpop.f32.mrf.mxu0
      %v3502 = vadd.f32 0.0, %v3501
      %3503 = vmatmul.bf16.gmra.mxu0 %v3316
      %v3504 = vpop.f32.mrf.mxu0
      %v3505 = vadd.f32 0.0, %v3504
      %v3506 = vpop.f32.mrf.mxu0
      %v3507 = vadd.f32 0.0, %v3506
      %3508 = vmatmul.bf16.gmra.mxu0 %v3324
      %v3509 = vpop.f32.mrf.mxu0
      %v3510 = vadd.f32 0.0, %v3509
      %v3511 = vpop.f32.mrf.mxu0
      %v3512 = vadd.f32 0.0, %v3511
      %3513 = vmatmul.bf16.gmra.mxu0 %v3332
      %v3514 = vpop.f32.mrf.mxu0
      %v3515 = vadd.f32 0.0, %v3514
      %v3516 = vpop.f32.mrf.mxu0
      %v3517 = vadd.f32 0.0, %v3516
      %3518 = vmatmul.bf16.gmra.mxu0 %v3340
      %v3519 = vpop.f32.mrf.mxu0
      %v3520 = vadd.f32 0.0, %v3519
      %v3521 = vpop.f32.mrf.mxu0
      %v3522 = vadd.f32 0.0, %v3521
      %3523 = vmatmul.bf16.gmra.mxu0 %v3348
      %v3524 = vpop.f32.mrf.mxu0
      %v3525 = vadd.f32 0.0, %v3524
      %v3526 = vpop.f32.mrf.mxu0
      %v3527 = vadd.f32 0.0, %v3526
      %3528 = vmatmul.bf16.gmra.mxu0 %v3356
      %v3529 = vpop.f32.mrf.mxu0
      %v3530 = vadd.f32 0.0, %v3529
      %v3531 = vpop.f32.mrf.mxu0
      %v3532 = vadd.f32 0.0, %v3531
      %3533 = vmatmul.bf16.gmra.mxu0 %v3364
      %v3534 = vpop.f32.mrf.mxu0
      %v3535 = vadd.f32 0.0, %v3534
      %v3536 = vpop.f32.mrf.mxu0
      %v3537 = vadd.f32 0.0, %v3536
      %3538 = vmatmul.bf16.gmra.mxu0 %v3372
      %v3539 = vpop.f32.mrf.mxu0
      %v3540 = vadd.f32 0.0, %v3539
      %v3541 = vpop.f32.mrf.mxu0
      %v3542 = vadd.f32 0.0, %v3541
      %3543 = vmatmul.bf16.gmra.mxu0 %v3380
      %v3544 = vpop.f32.mrf.mxu0
      %v3545 = vadd.f32 0.0, %v3544
      %v3546 = vpop.f32.mrf.mxu0
      %v3547 = vadd.f32 0.0, %v3546
      %3548 = vmatmul.bf16.gmra.mxu0 %v3388
      %v3549 = vpop.f32.mrf.mxu0
      %v3550 = vadd.f32 0.0, %v3549
      %v3551 = vpop.f32.mrf.mxu0
      %v3552 = vadd.f32 0.0, %v3551
      %3553 = vdwg.mxu0
      %v3554 = vadd.f32 %v3057, %v3465
      %v3555 = vadd.f32 %v3058, %v3467
      %v3556 = vadd.f32 %v3059, %v3470
      %v3557 = vadd.f32 %v3060, %v3472
      %v3558 = vadd.f32 %v3061, %v3475
      %v3559 = vadd.f32 %v3062, %v3477
      %v3560 = vadd.f32 %v3063, %v3480
      %v3561 = vadd.f32 %v3064, %v3482
      %v3562 = vadd.f32 %v3065, %v3485
      %v3563 = vadd.f32 %v3066, %v3487
      %v3564 = vadd.f32 %v3067, %v3490
      %v3565 = vadd.f32 %v3068, %v3492
      %v3566 = vadd.f32 %v3069, %v3495
      %v3567 = vadd.f32 %v3070, %v3497
      %v3568 = vadd.f32 %v3071, %v3500
      %v3569 = vadd.f32 %v3072, %v3502
      %v3570 = vadd.f32 %v3073, %v3505
      %v3571 = vadd.f32 %v3074, %v3507
      %v3572 = vadd.f32 %v3075, %v3510
      %v3573 = vadd.f32 %v3076, %v3512
      %v3574 = vadd.f32 %v3077, %v3515
      %v3575 = vadd.f32 %v3078, %v3517
      %v3576 = vadd.f32 %v3079, %v3520
      %v3577 = vadd.f32 %v3080, %v3522
      %v3578 = vadd.f32 %v3081, %v3525
      %v3579 = vadd.f32 %v3082, %v3527
      %v3580 = vadd.f32 %v3083, %v3530
      %v3581 = vadd.f32 %v3084, %v3532
      %v3582 = vadd.f32 %v3085, %v3535
      %v3583 = vadd.f32 %v3086, %v3537
      %v3584 = vadd.f32 %v3087, %v3540
      %v3585 = vadd.f32 %v3088, %v3542
      %v3586 = vadd.f32 %v3089, %v3545
      %v3587 = vadd.f32 %v3090, %v3547
      %v3588 = vadd.f32 %v3091, %v3550
      %v3589 = vadd.f32 %v3092, %v3552
      %v3590 = vld [vmem:[#allocation2 + $0x18] sm:$0xf]
      %v3591 = vld [vmem:[#allocation2 + $0x1c] sm:$0xf]
      %v3592 = vld [vmem:[#allocation2 + $0x20] sm:$0xf]
      %v3593 = vld [vmem:[#allocation2 + $0x24] sm:$0xf]
      %v3594 = vld [vmem:[#allocation2 + $0x28] sm:$0xf]
      %v3595 = vld [vmem:[#allocation2 + $0x2c] sm:$0xf]
      %v3596 = vld [vmem:[#allocation2 + $0x30] sm:$0xf]
      %v3597 = vld [vmem:[#allocation2 + $0x34] sm:$0xf]
      %v3598 = vld [vmem:[#allocation2 + $0x38] sm:$0xf]
      %v3599 = vld [vmem:[#allocation2 + $0x3c] sm:$0xf]
      %v3600 = vld [vmem:[#allocation2 + $0x40] sm:$0xf]
      %v3601 = vld [vmem:[#allocation2 + $0x44] sm:$0xf]
      %v3602 = vld [vmem:[#allocation2 + $0x48] sm:$0xf]
      %v3603 = vld [vmem:[#allocation2 + $0x4c] sm:$0xf]
      %v3604 = vld [vmem:[#allocation2 + $0x50] sm:$0xf]
      %v3605 = vld [vmem:[#allocation2 + $0x54] sm:$0xf]
      %v3606 = vld [vmem:[#allocation2 + $0x58] sm:$0xf]
      %v3607 = vld [vmem:[#allocation2 + $0x5c] sm:$0xf]
      %v3608 = vld [vmem:[#allocation2 + $0x60] sm:$0xf]
      %v3609 = vld [vmem:[#allocation2 + $0x64] sm:$0xf]
      %v3610 = vld [vmem:[#allocation2 + $0x68] sm:$0xf]
      %v3611 = vld [vmem:[#allocation2 + $0x6c] sm:$0xf]
      %v3612 = vld [vmem:[#allocation2 + $0x70] sm:$0xf]
      %v3613 = vld [vmem:[#allocation2 + $0x74] sm:$0xf]
      %v3614 = vld [vmem:[#allocation2 + $0x78] sm:$0xf]
      %v3615 = vld [vmem:[#allocation2 + $0x7c] sm:$0xf]
      %v3616 = vld [vmem:[#allocation2 + $0x80] sm:$0xf]
      %v3617 = vld [vmem:[#allocation2 + $0x84] sm:$0xf]
      %v3618 = vld [vmem:[#allocation2 + $0x88] sm:$0xf]
      %v3619 = vld [vmem:[#allocation2 + $0x8c] sm:$0xf]
      %v3620 = vld [vmem:[#allocation2 + $0x90] sm:$0xf]
      %v3621 = vld [vmem:[#allocation2 + $0x94] sm:$0xf]
      %v3622 = vld [vmem:[#allocation2 + $0x98] sm:$0xf]
      %v3623 = vld [vmem:[#allocation2 + $0x9c] sm:$0xf]
      %v3624 = vld [vmem:[#allocation2 + $0xa0] sm:$0xf]
      %v3625 = vld [vmem:[#allocation2 + $0xa4] sm:$0xf]
      %v3626 = vld [vmem:[#allocation2 + $0xa8] sm:$0x1]
      %s3627 = scalar_lea.vmem %s4, 384
      %v3628 = vld [vmem:[%s3627] sm:$0xf]
      %v3629 = vld [vmem:[%s3627 + $0x4] sm:$0xf]
      %v3630 = vld [vmem:[%s3627 + $0x8] sm:$0xf]
      %v3631 = vld [vmem:[%s3627 + $0xc] sm:$0xf]
      %v3632 = vld [vmem:[%s3627 + $0x10] sm:$0xf]
      %v3633 = vld [vmem:[%s3627 + $0x14] sm:$0xf]
      %v3634 = vld [vmem:[%s3627 + $0x18] sm:$0xf]
      %v3635 = vld [vmem:[%s3627 + $0x1c] sm:$0xf]
      %v3636 = vld [vmem:[%s3627 + $0x20] sm:$0xf]
      %v3637 = vld [vmem:[%s3627 + $0x24] sm:$0xf]
      %v3638 = vld [vmem:[%s3627 + $0x28] sm:$0xf]
      %v3639 = vld [vmem:[%s3627 + $0x2c] sm:$0xf]
      %v3640 = vld [vmem:[%s3627 + $0x30] sm:$0xf]
      %v3641 = vld [vmem:[%s3627 + $0x34] sm:$0xf]
      %v3642 = vld [vmem:[%s3627 + $0x38] sm:$0xf]
      %v3643 = vld [vmem:[%s3627 + $0x3c] sm:$0xf]
      %v3681 = vunpack.c.l.b16 %v3590
      %v3682 = vunpack.c.l.b16 %v3591
      %v3683 = vunpack.c.l.b16 %v3592
      %v3684 = vunpack.c.l.b16 %v3593
      %v3685 = vunpack.c.l.b16 %v3594
      %v3686 = vunpack.c.l.b16 %v3595
      %v3687 = vunpack.c.l.b16 %v3596
      %v3688 = vunpack.c.l.b16 %v3597
      %v3689 = vunpack.c.l.b16 %v3598
      %v3690 = vunpack.c.l.b16 %v3599
      %v3691 = vunpack.c.l.b16 %v3600
      %v3692 = vunpack.c.l.b16 %v3601
      %v3693 = vunpack.c.l.b16 %v3602
      %v3694 = vunpack.c.l.b16 %v3603
      %v3695 = vunpack.c.l.b16 %v3604
      %v3696 = vunpack.c.l.b16 %v3605
      %v3697 = vunpack.c.l.b16 %v3606
      %v3698 = vunpack.c.l.b16 %v3607
      %v3699 = vunpack.c.l.b16 %v3608
      %v3700 = vunpack.c.l.b16 %v3609
      %v3701 = vunpack.c.l.b16 %v3610
      %v3702 = vunpack.c.l.b16 %v3611
      %v3703 = vunpack.c.l.b16 %v3612
      %v3704 = vunpack.c.l.b16 %v3613
      %v3705 = vunpack.c.l.b16 %v3614
      %v3706 = vunpack.c.l.b16 %v3615
      %v3707 = vunpack.c.l.b16 %v3616
      %v3708 = vunpack.c.l.b16 %v3617
      %v3709 = vunpack.c.l.b16 %v3618
      %v3710 = vunpack.c.l.b16 %v3619
      %v3711 = vunpack.c.l.b16 %v3620
      %v3712 = vunpack.c.l.b16 %v3621
      %v3713 = vunpack.c.l.b16 %v3622
      %v3714 = vunpack.c.l.b16 %v3623
      %v3715 = vunpack.c.l.b16 %v3624
      %v3716 = vunpack.c.l.b16 %v3625
      %v3717 = vunpack.c.l.b16 %v3626
      %v3718 = vpack.c.b16 %v3682, %v3681
      %v3719 = vpack.c.b16 %v3684, %v3683
      %v3720 = vpack.c.b16 %v3686, %v3685
      %v3721 = vpack.c.b16 %v3688, %v3687
      %v3722 = vpack.c.b16 %v3690, %v3689
      %v3723 = vpack.c.b16 %v3692, %v3691
      %v3724 = vpack.c.b16 %v3694, %v3693
      %v3725 = vpack.c.b16 %v3696, %v3695
      %v3726 = vpack.c.b16 %v3698, %v3697
      %v3727 = vpack.c.b16 %v3700, %v3699
      %v3728 = vpack.c.b16 %v3702, %v3701
      %v3729 = vpack.c.b16 %v3704, %v3703
      %v3730 = vpack.c.b16 %v3706, %v3705
      %v3731 = vpack.c.b16 %v3708, %v3707
      %v3732 = vpack.c.b16 %v3710, %v3709
      %v3733 = vpack.c.b16 %v3712, %v3711
      %v3734 = vpack.c.b16 %v3714, %v3713
      %v3735 = vpack.c.b16 %v3716, %v3715
      %v3736 = vpack.c.b16 %v3717, %v3717
      %v3738 = vshrl.u32 %v3718, 16
      %v3740 = vshll.u32 %v3718, 16
      %v3742 = vrot.slane %v3740, 1
      %v3743 = vor.u32 %v3738, %v3742
      %v3745 = vshll.u32 %v3719, 16
      %v3747 = vrot.slane %v3745, 1
      %v3748 = vsel %vm3240, %v3743, %v3747
      %v3749 = vshrl.u32 %v3719, 16
      %v3751 = vor.u32 %v3749, %v3747
      %v3753 = vshll.u32 %v3720, 16
      %v3755 = vrot.slane %v3753, 1
      %v3756 = vsel %vm3240, %v3751, %v3755
      %v3757 = vshrl.u32 %v3720, 16
      %v3759 = vor.u32 %v3757, %v3755
      %v3761 = vshll.u32 %v3721, 16
      %v3763 = vrot.slane %v3761, 1
      %v3764 = vsel %vm3240, %v3759, %v3763
      %v3765 = vshrl.u32 %v3721, 16
      %v3767 = vor.u32 %v3765, %v3763
      %v3769 = vshll.u32 %v3722, 16
      %v3771 = vrot.slane %v3769, 1
      %v3772 = vsel %vm3240, %v3767, %v3771
      %v3773 = vshrl.u32 %v3722, 16
      %v3775 = vor.u32 %v3773, %v3771
      %v3777 = vshll.u32 %v3723, 16
      %v3779 = vrot.slane %v3777, 1
      %v3780 = vsel %vm3240, %v3775, %v3779
      %v3781 = vshrl.u32 %v3723, 16
      %v3783 = vor.u32 %v3781, %v3779
      %v3785 = vshll.u32 %v3724, 16
      %v3787 = vrot.slane %v3785, 1
      %v3788 = vsel %vm3240, %v3783, %v3787
      %v3789 = vshrl.u32 %v3724, 16
      %v3791 = vor.u32 %v3789, %v3787
      %v3793 = vshll.u32 %v3725, 16
      %v3795 = vrot.slane %v3793, 1
      %v3796 = vsel %vm3240, %v3791, %v3795
      %v3797 = vshrl.u32 %v3725, 16
      %v3799 = vor.u32 %v3797, %v3795
      %v3801 = vshll.u32 %v3726, 16
      %v3803 = vrot.slane %v3801, 1
      %v3804 = vsel %vm3240, %v3799, %v3803
      %v3805 = vshrl.u32 %v3726, 16
      %v3807 = vor.u32 %v3805, %v3803
      %v3809 = vshll.u32 %v3727, 16
      %v3811 = vrot.slane %v3809, 1
      %v3812 = vsel %vm3240, %v3807, %v3811
      %v3813 = vshrl.u32 %v3727, 16
      %v3815 = vor.u32 %v3813, %v3811
      %v3817 = vshll.u32 %v3728, 16
      %v3819 = vrot.slane %v3817, 1
      %v3820 = vsel %vm3240, %v3815, %v3819
      %v3821 = vshrl.u32 %v3728, 16
      %v3823 = vor.u32 %v3821, %v3819
      %v3825 = vshll.u32 %v3729, 16
      %v3827 = vrot.slane %v3825, 1
      %v3828 = vsel %vm3240, %v3823, %v3827
      %v3829 = vshrl.u32 %v3729, 16
      %v3831 = vor.u32 %v3829, %v3827
      %v3833 = vshll.u32 %v3730, 16
      %v3835 = vrot.slane %v3833, 1
      %v3836 = vsel %vm3240, %v3831, %v3835
      %v3837 = vshrl.u32 %v3730, 16
      %v3839 = vor.u32 %v3837, %v3835
      %v3841 = vshll.u32 %v3731, 16
      %v3843 = vrot.slane %v3841, 1
      %v3844 = vsel %vm3240, %v3839, %v3843
      %v3845 = vshrl.u32 %v3731, 16
      %v3847 = vor.u32 %v3845, %v3843
      %v3849 = vshll.u32 %v3732, 16
      %v3851 = vrot.slane %v3849, 1
      %v3852 = vsel %vm3240, %v3847, %v3851
      %v3853 = vshrl.u32 %v3732, 16
      %v3855 = vor.u32 %v3853, %v3851
      %v3857 = vshll.u32 %v3733, 16
      %v3859 = vrot.slane %v3857, 1
      %v3860 = vsel %vm3240, %v3855, %v3859
      %v3861 = vshrl.u32 %v3733, 16
      %v3863 = vor.u32 %v3861, %v3859
      %v3865 = vshll.u32 %v3734, 16
      %v3867 = vrot.slane %v3865, 1
      %v3868 = vsel %vm3240, %v3863, %v3867
      %v3869 = vshrl.u32 %v3734, 16
      %v3871 = vor.u32 %v3869, %v3867
      %v3873 = vshll.u32 %v3735, 16
      %v3875 = vrot.slane %v3873, 1
      %v3876 = vsel %vm3240, %v3871, %v3875
      %v3877 = vshrl.u32 %v3735, 16
      %v3879 = vor.u32 %v3877, %v3875
      %v3881 = vshll.u32 %v3736, 16
      %v3883 = vrot.slane %v3881, 1
      %v3884 = vsel %vm3240, %v3879, %v3883
      %v3919 = vunpack.c.l.b16 %v3628
      %v3920 = vunpack.c.l.b16 %v3629
      %v3921 = vunpack.c.l.b16 %v3630
      %v3922 = vunpack.c.l.b16 %v3631
      %v3923 = vunpack.c.l.b16 %v3632
      %v3924 = vunpack.c.l.b16 %v3633
      %v3925 = vunpack.c.l.b16 %v3634
      %v3926 = vunpack.c.l.b16 %v3635
      %v3927 = vunpack.c.l.b16 %v3636
      %v3928 = vunpack.c.l.b16 %v3637
      %v3929 = vunpack.c.l.b16 %v3638
      %v3930 = vunpack.c.l.b16 %v3639
      %v3931 = vunpack.c.l.b16 %v3640
      %v3932 = vunpack.c.l.b16 %v3641
      %v3933 = vunpack.c.l.b16 %v3642
      %v3934 = vunpack.c.l.b16 %v3643
      %v3935 = vpack.c.b16 %v3920, %v3919
      %v3936 = vpack.c.b16 %v3922, %v3921
      %v3937 = vpack.c.b16 %v3924, %v3923
      %v3938 = vpack.c.b16 %v3926, %v3925
      %v3939 = vpack.c.b16 %v3928, %v3927
      %v3940 = vpack.c.b16 %v3930, %v3929
      %v3941 = vpack.c.b16 %v3932, %v3931
      %v3942 = vpack.c.b16 %v3934, %v3933
      %3951 = vmatpush.bf16.msra.mxu0 %v3942
      %3952 = vmatpush.bf16.msra.mxu0 %v3941
      %3953 = vmatpush.bf16.msra.mxu0 %v3940
      %3954 = vmatpush.bf16.msra.mxu0 %v3939
      %3955 = vmatpush.bf16.msra.mxu0 %v3938
      %3956 = vmatpush.bf16.msra.mxu0 %v3937
      %3957 = vmatpush.bf16.msra.mxu0 %v3936
      %3958 = vmatpush.bf16.msra.mxu0 %v3935
      %3959 = vmatmul.bf16.gmra.mxu0 %v3748
      %v3960 = vpop.f32.mrf.mxu0
      %v3961 = vadd.f32 0.0, %v3960
      %v3962 = vpop.f32.mrf.mxu0
      %v3963 = vadd.f32 0.0, %v3962
      %3964 = vmatmul.bf16.gmra.mxu0 %v3756
      %v3965 = vpop.f32.mrf.mxu0
      %v3966 = vadd.f32 0.0, %v3965
      %v3967 = vpop.f32.mrf.mxu0
      %v3968 = vadd.f32 0.0, %v3967
      %3969 = vmatmul.bf16.gmra.mxu0 %v3764
      %v3970 = vpop.f32.mrf.mxu0
      %v3971 = vadd.f32 0.0, %v3970
      %v3972 = vpop.f32.mrf.mxu0
      %v3973 = vadd.f32 0.0, %v3972
      %3974 = vmatmul.bf16.gmra.mxu0 %v3772
      %v3975 = vpop.f32.mrf.mxu0
      %v3976 = vadd.f32 0.0, %v3975
      %v3977 = vpop.f32.mrf.mxu0
      %v3978 = vadd.f32 0.0, %v3977
      %3979 = vmatmul.bf16.gmra.mxu0 %v3780
      %v3980 = vpop.f32.mrf.mxu0
      %v3981 = vadd.f32 0.0, %v3980
      %v3982 = vpop.f32.mrf.mxu0
      %v3983 = vadd.f32 0.0, %v3982
      %3984 = vmatmul.bf16.gmra.mxu0 %v3788
      %v3985 = vpop.f32.mrf.mxu0
      %v3986 = vadd.f32 0.0, %v3985
      %v3987 = vpop.f32.mrf.mxu0
      %v3988 = vadd.f32 0.0, %v3987
      %3989 = vmatmul.bf16.gmra.mxu0 %v3796
      %v3990 = vpop.f32.mrf.mxu0
      %v3991 = vadd.f32 0.0, %v3990
      %v3992 = vpop.f32.mrf.mxu0
      %v3993 = vadd.f32 0.0, %v3992
      %3994 = vmatmul.bf16.gmra.mxu0 %v3804
      %v3995 = vpop.f32.mrf.mxu0
      %v3996 = vadd.f32 0.0, %v3995
      %v3997 = vpop.f32.mrf.mxu0
      %v3998 = vadd.f32 0.0, %v3997
      %3999 = vmatmul.bf16.gmra.mxu0 %v3812
      %v4000 = vpop.f32.mrf.mxu0
      %v4001 = vadd.f32 0.0, %v4000
      %v4002 = vpop.f32.mrf.mxu0
      %v4003 = vadd.f32 0.0, %v4002
      %4004 = vmatmul.bf16.gmra.mxu0 %v3820
      %v4005 = vpop.f32.mrf.mxu0
      %v4006 = vadd.f32 0.0, %v4005
      %v4007 = vpop.f32.mrf.mxu0
      %v4008 = vadd.f32 0.0, %v4007
      %4009 = vmatmul.bf16.gmra.mxu0 %v3828
      %v4010 = vpop.f32.mrf.mxu0
      %v4011 = vadd.f32 0.0, %v4010
      %v4012 = vpop.f32.mrf.mxu0
      %v4013 = vadd.f32 0.0, %v4012
      %4014 = vmatmul.bf16.gmra.mxu0 %v3836
      %v4015 = vpop.f32.mrf.mxu0
      %v4016 = vadd.f32 0.0, %v4015
      %v4017 = vpop.f32.mrf.mxu0
      %v4018 = vadd.f32 0.0, %v4017
      %4019 = vmatmul.bf16.gmra.mxu0 %v3844
      %v4020 = vpop.f32.mrf.mxu0
      %v4021 = vadd.f32 0.0, %v4020
      %v4022 = vpop.f32.mrf.mxu0
      %v4023 = vadd.f32 0.0, %v4022
      %4024 = vmatmul.bf16.gmra.mxu0 %v3852
      %v4025 = vpop.f32.mrf.mxu0
      %v4026 = vadd.f32 0.0, %v4025
      %v4027 = vpop.f32.mrf.mxu0
      %v4028 = vadd.f32 0.0, %v4027
      %4029 = vmatmul.bf16.gmra.mxu0 %v3860
      %v4030 = vpop.f32.mrf.mxu0
      %v4031 = vadd.f32 0.0, %v4030
      %v4032 = vpop.f32.mrf.mxu0
      %v4033 = vadd.f32 0.0, %v4032
      %4034 = vmatmul.bf16.gmra.mxu0 %v3868
      %v4035 = vpop.f32.mrf.mxu0
      %v4036 = vadd.f32 0.0, %v4035
      %v4037 = vpop.f32.mrf.mxu0
      %v4038 = vadd.f32 0.0, %v4037
      %4039 = vmatmul.bf16.gmra.mxu0 %v3876
      %v4040 = vpop.f32.mrf.mxu0
      %v4041 = vadd.f32 0.0, %v4040
      %v4042 = vpop.f32.mrf.mxu0
      %v4043 = vadd.f32 0.0, %v4042
      %4044 = vmatmul.bf16.gmra.mxu0 %v3884
      %v4045 = vpop.f32.mrf.mxu0
      %v4046 = vadd.f32 0.0, %v4045
      %v4047 = vpop.f32.mrf.mxu0
      %v4048 = vadd.f32 0.0, %v4047
      %4049 = vdwg.mxu0
      %v4050 = vadd.f32 %v3554, %v3961
      %v4051 = vadd.f32 %v3555, %v3963
      %v4052 = vadd.f32 %v3556, %v3966
      %v4053 = vadd.f32 %v3557, %v3968
      %v4054 = vadd.f32 %v3558, %v3971
      %v4055 = vadd.f32 %v3559, %v3973
      %v4056 = vadd.f32 %v3560, %v3976
      %v4057 = vadd.f32 %v3561, %v3978
      %v4058 = vadd.f32 %v3562, %v3981
      %v4059 = vadd.f32 %v3563, %v3983
      %v4060 = vadd.f32 %v3564, %v3986
      %v4061 = vadd.f32 %v3565, %v3988
      %v4062 = vadd.f32 %v3566, %v3991
      %v4063 = vadd.f32 %v3567, %v3993
      %v4064 = vadd.f32 %v3568, %v3996
      %v4065 = vadd.f32 %v3569, %v3998
      %v4066 = vadd.f32 %v3570, %v4001
      %v4067 = vadd.f32 %v3571, %v4003
      %v4068 = vadd.f32 %v3572, %v4006
      %v4069 = vadd.f32 %v3573, %v4008
      %v4070 = vadd.f32 %v3574, %v4011
      %v4071 = vadd.f32 %v3575, %v4013
      %v4072 = vadd.f32 %v3576, %v4016
      %v4073 = vadd.f32 %v3577, %v4018
      %v4074 = vadd.f32 %v3578, %v4021
      %v4075 = vadd.f32 %v3579, %v4023
      %v4076 = vadd.f32 %v3580, %v4026
      %v4077 = vadd.f32 %v3581, %v4028
      %v4078 = vadd.f32 %v3582, %v4031
      %v4079 = vadd.f32 %v3583, %v4033
      %v4080 = vadd.f32 %v3584, %v4036
      %v4081 = vadd.f32 %v3585, %v4038
      %v4082 = vadd.f32 %v3586, %v4041
      %v4083 = vadd.f32 %v3587, %v4043
      %v4084 = vadd.f32 %v3588, %v4046
      %v4085 = vadd.f32 %v3589, %v4048
      %v4086 = vld [vmem:[#allocation2 + $0x18] sm:$0xe]
      %s4087 = scalar_lea.vmem %s4, 448
      %v4088 = vld [vmem:[%s4087] sm:$0xf]
      %v4089 = vld [vmem:[%s4087 + $0x4] sm:$0xf]
      %v4090 = vld [vmem:[%s4087 + $0x8] sm:$0xf]
      %v4091 = vld [vmem:[%s4087 + $0xc] sm:$0xf]
      %v4092 = vld [vmem:[%s4087 + $0x10] sm:$0xf]
      %v4093 = vld [vmem:[%s4087 + $0x14] sm:$0xf]
      %v4094 = vld [vmem:[%s4087 + $0x18] sm:$0xf]
      %v4095 = vld [vmem:[%s4087 + $0x1c] sm:$0xf]
      %v4096 = vld [vmem:[%s4087 + $0x20] sm:$0xf]
      %v4097 = vld [vmem:[%s4087 + $0x24] sm:$0xf]
      %v4098 = vld [vmem:[%s4087 + $0x28] sm:$0xf]
      %v4099 = vld [vmem:[%s4087 + $0x2c] sm:$0xf]
      %v4100 = vld [vmem:[%s4087 + $0x30] sm:$0xf]
      %v4101 = vld [vmem:[%s4087 + $0x34] sm:$0xf]
      %v4102 = vld [vmem:[%s4087 + $0x38] sm:$0xf]
      %v4103 = vld [vmem:[%s4087 + $0x3c] sm:$0xf]
      %v4105 = vunpack.c.l.b16 %v4086
      %v4106 = vpack.c.b16 %v3682, %v4105
      %vm4107 = vcmask 1046528
      %v4108 = vrot.slane %v4106, 1
      %v4109 = vrot.slane %v3719, 1
      %v4110 = vsel %vm4107, %v4108, %v4109
      %v4111 = vrot.slane %v3720, 1
      %v4112 = vsel %vm4107, %v4109, %v4111
      %v4113 = vrot.slane %v3721, 1
      %v4114 = vsel %vm4107, %v4111, %v4113
      %v4115 = vrot.slane %v3722, 1
      %v4116 = vsel %vm4107, %v4113, %v4115
      %v4117 = vrot.slane %v3723, 1
      %v4118 = vsel %vm4107, %v4115, %v4117
      %v4119 = vrot.slane %v3724, 1
      %v4120 = vsel %vm4107, %v4117, %v4119
      %v4121 = vrot.slane %v3725, 1
      %v4122 = vsel %vm4107, %v4119, %v4121
      %v4123 = vrot.slane %v3726, 1
      %v4124 = vsel %vm4107, %v4121, %v4123
      %v4125 = vrot.slane %v3727, 1
      %v4126 = vsel %vm4107, %v4123, %v4125
      %v4127 = vrot.slane %v3728, 1
      %v4128 = vsel %vm4107, %v4125, %v4127
      %v4129 = vrot.slane %v3729, 1
      %v4130 = vsel %vm4107, %v4127, %v4129
      %v4131 = vrot.slane %v3730, 1
      %v4132 = vsel %vm4107, %v4129, %v4131
      %v4133 = vrot.slane %v3731, 1
      %v4134 = vsel %vm4107, %v4131, %v4133
      %v4135 = vrot.slane %v3732, 1
      %v4136 = vsel %vm4107, %v4133, %v4135
      %v4137 = vrot.slane %v3733, 1
      %v4138 = vsel %vm4107, %v4135, %v4137
      %v4139 = vrot.slane %v3734, 1
      %v4140 = vsel %vm4107, %v4137, %v4139
      %v4141 = vrot.slane %v3735, 1
      %v4142 = vsel %vm4107, %v4139, %v4141
      %v4143 = vrot.slane %v3736, 1
      %v4144 = vsel %vm4107, %v4141, %v4143
      %v4179 = vunpack.c.l.b16 %v4088
      %v4180 = vunpack.c.l.b16 %v4089
      %v4181 = vunpack.c.l.b16 %v4090
      %v4182 = vunpack.c.l.b16 %v4091
      %v4183 = vunpack.c.l.b16 %v4092
      %v4184 = vunpack.c.l.b16 %v4093
      %v4185 = vunpack.c.l.b16 %v4094
      %v4186 = vunpack.c.l.b16 %v4095
      %v4187 = vunpack.c.l.b16 %v4096
      %v4188 = vunpack.c.l.b16 %v4097
      %v4189 = vunpack.c.l.b16 %v4098
      %v4190 = vunpack.c.l.b16 %v4099
      %v4191 = vunpack.c.l.b16 %v4100
      %v4192 = vunpack.c.l.b16 %v4101
      %v4193 = vunpack.c.l.b16 %v4102
      %v4194 = vunpack.c.l.b16 %v4103
      %v4195 = vpack.c.b16 %v4180, %v4179
      %v4196 = vpack.c.b16 %v4182, %v4181
      %v4197 = vpack.c.b16 %v4184, %v4183
      %v4198 = vpack.c.b16 %v4186, %v4185
      %v4199 = vpack.c.b16 %v4188, %v4187
      %v4200 = vpack.c.b16 %v4190, %v4189
      %v4201 = vpack.c.b16 %v4192, %v4191
      %v4202 = vpack.c.b16 %v4194, %v4193
      %4211 = vmatpush.bf16.msra.mxu0 %v4202
      %4212 = vmatpush.bf16.msra.mxu0 %v4201
      %4213 = vmatpush.bf16.msra.mxu0 %v4200
      %4214 = vmatpush.bf16.msra.mxu0 %v4199
      %4215 = vmatpush.bf16.msra.mxu0 %v4198
      %4216 = vmatpush.bf16.msra.mxu0 %v4197
      %4217 = vmatpush.bf16.msra.mxu0 %v4196
      %4218 = vmatpush.bf16.msra.mxu0 %v4195
      %4219 = vmatmul.bf16.gmra.mxu0 %v4110
      %v4220 = vpop.f32.mrf.mxu0
      %v4221 = vadd.f32 0.0, %v4220
      %v4222 = vpop.f32.mrf.mxu0
      %v4223 = vadd.f32 0.0, %v4222
      %4224 = vmatmul.bf16.gmra.mxu0 %v4112
      %v4225 = vpop.f32.mrf.mxu0
      %v4226 = vadd.f32 0.0, %v4225
      %v4227 = vpop.f32.mrf.mxu0
      %v4228 = vadd.f32 0.0, %v4227
      %4229 = vmatmul.bf16.gmra.mxu0 %v4114
      %v4230 = vpop.f32.mrf.mxu0
      %v4231 = vadd.f32 0.0, %v4230
      %v4232 = vpop.f32.mrf.mxu0
      %v4233 = vadd.f32 0.0, %v4232
      %4234 = vmatmul.bf16.gmra.mxu0 %v4116
      %v4235 = vpop.f32.mrf.mxu0
      %v4236 = vadd.f32 0.0, %v4235
      %v4237 = vpop.f32.mrf.mxu0
      %v4238 = vadd.f32 0.0, %v4237
      %4239 = vmatmul.bf16.gmra.mxu0 %v4118
      %v4240 = vpop.f32.mrf.mxu0
      %v4241 = vadd.f32 0.0, %v4240
      %v4242 = vpop.f32.mrf.mxu0
      %v4243 = vadd.f32 0.0, %v4242
      %4244 = vmatmul.bf16.gmra.mxu0 %v4120
      %v4245 = vpop.f32.mrf.mxu0
      %v4246 = vadd.f32 0.0, %v4245
      %v4247 = vpop.f32.mrf.mxu0
      %v4248 = vadd.f32 0.0, %v4247
      %4249 = vmatmul.bf16.gmra.mxu0 %v4122
      %v4250 = vpop.f32.mrf.mxu0
      %v4251 = vadd.f32 0.0, %v4250
      %v4252 = vpop.f32.mrf.mxu0
      %v4253 = vadd.f32 0.0, %v4252
      %4254 = vmatmul.bf16.gmra.mxu0 %v4124
      %v4255 = vpop.f32.mrf.mxu0
      %v4256 = vadd.f32 0.0, %v4255
      %v4257 = vpop.f32.mrf.mxu0
      %v4258 = vadd.f32 0.0, %v4257
      %4259 = vmatmul.bf16.gmra.mxu0 %v4126
      %v4260 = vpop.f32.mrf.mxu0
      %v4261 = vadd.f32 0.0, %v4260
      %v4262 = vpop.f32.mrf.mxu0
      %v4263 = vadd.f32 0.0, %v4262
      %4264 = vmatmul.bf16.gmra.mxu0 %v4128
      %v4265 = vpop.f32.mrf.mxu0
      %v4266 = vadd.f32 0.0, %v4265
      %v4267 = vpop.f32.mrf.mxu0
      %v4268 = vadd.f32 0.0, %v4267
      %4269 = vmatmul.bf16.gmra.mxu0 %v4130
      %v4270 = vpop.f32.mrf.mxu0
      %v4271 = vadd.f32 0.0, %v4270
      %v4272 = vpop.f32.mrf.mxu0
      %v4273 = vadd.f32 0.0, %v4272
      %4274 = vmatmul.bf16.gmra.mxu0 %v4132
      %v4275 = vpop.f32.mrf.mxu0
      %v4276 = vadd.f32 0.0, %v4275
      %v4277 = vpop.f32.mrf.mxu0
      %v4278 = vadd.f32 0.0, %v4277
      %4279 = vmatmul.bf16.gmra.mxu0 %v4134
      %v4280 = vpop.f32.mrf.mxu0
      %v4281 = vadd.f32 0.0, %v4280
      %v4282 = vpop.f32.mrf.mxu0
      %v4283 = vadd.f32 0.0, %v4282
      %4284 = vmatmul.bf16.gmra.mxu0 %v4136
      %v4285 = vpop.f32.mrf.mxu0
      %v4286 = vadd.f32 0.0, %v4285
      %v4287 = vpop.f32.mrf.mxu0
      %v4288 = vadd.f32 0.0, %v4287
      %4289 = vmatmul.bf16.gmra.mxu0 %v4138
      %v4290 = vpop.f32.mrf.mxu0
      %v4291 = vadd.f32 0.0, %v4290
      %v4292 = vpop.f32.mrf.mxu0
      %v4293 = vadd.f32 0.0, %v4292
      %4294 = vmatmul.bf16.gmra.mxu0 %v4140
      %v4295 = vpop.f32.mrf.mxu0
      %v4296 = vadd.f32 0.0, %v4295
      %v4297 = vpop.f32.mrf.mxu0
      %v4298 = vadd.f32 0.0, %v4297
      %4299 = vmatmul.bf16.gmra.mxu0 %v4142
      %v4300 = vpop.f32.mrf.mxu0
      %v4301 = vadd.f32 0.0, %v4300
      %v4302 = vpop.f32.mrf.mxu0
      %v4303 = vadd.f32 0.0, %v4302
      %4304 = vmatmul.bf16.gmra.mxu0 %v4144
      %v4305 = vpop.f32.mrf.mxu0
      %v4306 = vadd.f32 0.0, %v4305
      %v4307 = vpop.f32.mrf.mxu0
      %v4308 = vadd.f32 0.0, %v4307
      %4309 = vdwg.mxu0
      %v4310 = vadd.f32 %v4050, %v4221
      %v4311 = vadd.f32 %v4051, %v4223
      %v4312 = vadd.f32 %v4052, %v4226
      %v4313 = vadd.f32 %v4053, %v4228
      %v4314 = vadd.f32 %v4054, %v4231
      %v4315 = vadd.f32 %v4055, %v4233
      %v4316 = vadd.f32 %v4056, %v4236
      %v4317 = vadd.f32 %v4057, %v4238
      %v4318 = vadd.f32 %v4058, %v4241
      %v4319 = vadd.f32 %v4059, %v4243
      %v4320 = vadd.f32 %v4060, %v4246
      %v4321 = vadd.f32 %v4061, %v4248
      %v4322 = vadd.f32 %v4062, %v4251
      %v4323 = vadd.f32 %v4063, %v4253
      %v4324 = vadd.f32 %v4064, %v4256
      %v4325 = vadd.f32 %v4065, %v4258
      %v4326 = vadd.f32 %v4066, %v4261
      %v4327 = vadd.f32 %v4067, %v4263
      %v4328 = vadd.f32 %v4068, %v4266
      %v4329 = vadd.f32 %v4069, %v4268
      %v4330 = vadd.f32 %v4070, %v4271
      %v4331 = vadd.f32 %v4071, %v4273
      %v4332 = vadd.f32 %v4072, %v4276
      %v4333 = vadd.f32 %v4073, %v4278
      %v4334 = vadd.f32 %v4074, %v4281
      %v4335 = vadd.f32 %v4075, %v4283
      %v4336 = vadd.f32 %v4076, %v4286
      %v4337 = vadd.f32 %v4077, %v4288
      %v4338 = vadd.f32 %v4078, %v4291
      %v4339 = vadd.f32 %v4079, %v4293
      %v4340 = vadd.f32 %v4080, %v4296
      %v4341 = vadd.f32 %v4081, %v4298
      %v4342 = vadd.f32 %v4082, %v4301
      %v4343 = vadd.f32 %v4083, %v4303
      %v4344 = vadd.f32 %v4084, %v4306
      %v4345 = vadd.f32 %v4085, %v4308
      %v4346 = vld [vmem:[#allocation2 + $0xa8] sm:$0x3]
      %s4347 = scalar_lea.vmem %s4, 512
      %v4348 = vld [vmem:[%s4347] sm:$0xf]
      %v4349 = vld [vmem:[%s4347 + $0x4] sm:$0xf]
      %v4350 = vld [vmem:[%s4347 + $0x8] sm:$0xf]
      %v4351 = vld [vmem:[%s4347 + $0xc] sm:$0xf]
      %v4352 = vld [vmem:[%s4347 + $0x10] sm:$0xf]
      %v4353 = vld [vmem:[%s4347 + $0x14] sm:$0xf]
      %v4354 = vld [vmem:[%s4347 + $0x18] sm:$0xf]
      %v4355 = vld [vmem:[%s4347 + $0x1c] sm:$0xf]
      %v4356 = vld [vmem:[%s4347 + $0x20] sm:$0xf]
      %v4357 = vld [vmem:[%s4347 + $0x24] sm:$0xf]
      %v4358 = vld [vmem:[%s4347 + $0x28] sm:$0xf]
      %v4359 = vld [vmem:[%s4347 + $0x2c] sm:$0xf]
      %v4360 = vld [vmem:[%s4347 + $0x30] sm:$0xf]
      %v4361 = vld [vmem:[%s4347 + $0x34] sm:$0xf]
      %v4362 = vld [vmem:[%s4347 + $0x38] sm:$0xf]
      %v4363 = vld [vmem:[%s4347 + $0x3c] sm:$0xf]
      %v4365 = vunpack.c.l.b16 %v4346
      %v4366 = vpack.c.b16 %v4365, %v4365
      %vm4367 = vsmask.f32 6400
      %v4369 = vshrl.u32 %v4106, 16
      %v4371 = vrot.slane %v4369, 1
      %v4372 = vshll.u32 %v4106, 16
      %v4374 = vrot.slane %v4372, 2
      %v4375 = vor.u32 %v4371, %v4374
      %v4376 = vrot.slane %v3749, 1
      %v4377 = vrot.slane %v3745, 2
      %v4378 = vor.u32 %v4376, %v4377
      %v4379 = vsel %vm4367, %v4375, %v4378
      %v4380 = vrot.slane %v3757, 1
      %v4381 = vrot.slane %v3753, 2
      %v4382 = vor.u32 %v4380, %v4381
      %v4383 = vsel %vm4367, %v4378, %v4382
      %v4384 = vrot.slane %v3765, 1
      %v4385 = vrot.slane %v3761, 2
      %v4386 = vor.u32 %v4384, %v4385
      %v4387 = vsel %vm4367, %v4382, %v4386
      %v4388 = vrot.slane %v3773, 1
      %v4389 = vrot.slane %v3769, 2
      %v4390 = vor.u32 %v4388, %v4389
      %v4391 = vsel %vm4367, %v4386, %v4390
      %v4392 = vrot.slane %v3781, 1
      %v4393 = vrot.slane %v3777, 2
      %v4394 = vor.u32 %v4392, %v4393
      %v4395 = vsel %vm4367, %v4390, %v4394
      %v4396 = vrot.slane %v3789, 1
      %v4397 = vrot.slane %v3785, 2
      %v4398 = vor.u32 %v4396, %v4397
      %v4399 = vsel %vm4367, %v4394, %v4398
      %v4400 = vrot.slane %v3797, 1
      %v4401 = vrot.slane %v3793, 2
      %v4402 = vor.u32 %v4400, %v4401
      %v4403 = vsel %vm4367, %v4398, %v4402
      %v4404 = vrot.slane %v3805, 1
      %v4405 = vrot.slane %v3801, 2
      %v4406 = vor.u32 %v4404, %v4405
      %v4407 = vsel %vm4367, %v4402, %v4406
      %v4408 = vrot.slane %v3813, 1
      %v4409 = vrot.slane %v3809, 2
      %v4410 = vor.u32 %v4408, %v4409
      %v4411 = vsel %vm4367, %v4406, %v4410
      %v4412 = vrot.slane %v3821, 1
      %v4413 = vrot.slane %v3817, 2
      %v4414 = vor.u32 %v4412, %v4413
      %v4415 = vsel %vm4367, %v4410, %v4414
      %v4416 = vrot.slane %v3829, 1
      %v4417 = vrot.slane %v3825, 2
      %v4418 = vor.u32 %v4416, %v4417
      %v4419 = vsel %vm4367, %v4414, %v4418
      %v4420 = vrot.slane %v3837, 1
      %v4421 = vrot.slane %v3833, 2
      %v4422 = vor.u32 %v4420, %v4421
      %v4423 = vsel %vm4367, %v4418, %v4422
      %v4424 = vrot.slane %v3845, 1
      %v4425 = vrot.slane %v3841, 2
      %v4426 = vor.u32 %v4424, %v4425
      %v4427 = vsel %vm4367, %v4422, %v4426
      %v4428 = vrot.slane %v3853, 1
      %v4429 = vrot.slane %v3849, 2
      %v4430 = vor.u32 %v4428, %v4429
      %v4431 = vsel %vm4367, %v4426, %v4430
      %v4432 = vrot.slane %v3861, 1
      %v4433 = vrot.slane %v3857, 2
      %v4434 = vor.u32 %v4432, %v4433
      %v4435 = vsel %vm4367, %v4430, %v4434
      %v4436 = vrot.slane %v3869, 1
      %v4437 = vrot.slane %v3865, 2
      %v4438 = vor.u32 %v4436, %v4437
      %v4439 = vsel %vm4367, %v4434, %v4438
      %v4440 = vrot.slane %v3877, 1
      %v4441 = vrot.slane %v3873, 2
      %v4442 = vor.u32 %v4440, %v4441
      %v4443 = vsel %vm4367, %v4438, %v4442
      %v4445 = vshrl.u32 %v4366, 16
      %v4447 = vrot.slane %v4445, 1
      %v4448 = vshll.u32 %v4366, 16
      %v4450 = vrot.slane %v4448, 2
      %v4451 = vor.u32 %v4447, %v4450
      %v4452 = vsel %vm4367, %v4442, %v4451
      %v4487 = vunpack.c.l.b16 %v4348
      %v4488 = vunpack.c.l.b16 %v4349
      %v4489 = vunpack.c.l.b16 %v4350
      %v4490 = vunpack.c.l.b16 %v4351
      %v4491 = vunpack.c.l.b16 %v4352
      %v4492 = vunpack.c.l.b16 %v4353
      %v4493 = vunpack.c.l.b16 %v4354
      %v4494 = vunpack.c.l.b16 %v4355
      %v4495 = vunpack.c.l.b16 %v4356
      %v4496 = vunpack.c.l.b16 %v4357
      %v4497 = vunpack.c.l.b16 %v4358
      %v4498 = vunpack.c.l.b16 %v4359
      %v4499 = vunpack.c.l.b16 %v4360
      %v4500 = vunpack.c.l.b16 %v4361
      %v4501 = vunpack.c.l.b16 %v4362
      %v4502 = vunpack.c.l.b16 %v4363
      %v4503 = vpack.c.b16 %v4488, %v4487
      %v4504 = vpack.c.b16 %v4490, %v4489
      %v4505 = vpack.c.b16 %v4492, %v4491
      %v4506 = vpack.c.b16 %v4494, %v4493
      %v4507 = vpack.c.b16 %v4496, %v4495
      %v4508 = vpack.c.b16 %v4498, %v4497
      %v4509 = vpack.c.b16 %v4500, %v4499
      %v4510 = vpack.c.b16 %v4502, %v4501
      %4519 = vmatpush.bf16.msra.mxu0 %v4510
      %4520 = vmatpush.bf16.msra.mxu0 %v4509
      %4521 = vmatpush.bf16.msra.mxu0 %v4508
      %4522 = vmatpush.bf16.msra.mxu0 %v4507
      %4523 = vmatpush.bf16.msra.mxu0 %v4506
      %4524 = vmatpush.bf16.msra.mxu0 %v4505
      %4525 = vmatpush.bf16.msra.mxu0 %v4504
      %4526 = vmatpush.bf16.msra.mxu0 %v4503
      %4527 = vmatmul.bf16.gmra.mxu0 %v4379
      %v4528 = vpop.f32.mrf.mxu0
      %v4529 = vadd.f32 0.0, %v4528
      %v4530 = vpop.f32.mrf.mxu0
      %v4531 = vadd.f32 0.0, %v4530
      %4532 = vmatmul.bf16.gmra.mxu0 %v4383
      %v4533 = vpop.f32.mrf.mxu0
      %v4534 = vadd.f32 0.0, %v4533
      %v4535 = vpop.f32.mrf.mxu0
      %v4536 = vadd.f32 0.0, %v4535
      %4537 = vmatmul.bf16.gmra.mxu0 %v4387
      %v4538 = vpop.f32.mrf.mxu0
      %v4539 = vadd.f32 0.0, %v4538
      %v4540 = vpop.f32.mrf.mxu0
      %v4541 = vadd.f32 0.0, %v4540
      %4542 = vmatmul.bf16.gmra.mxu0 %v4391
      %v4543 = vpop.f32.mrf.mxu0
      %v4544 = vadd.f32 0.0, %v4543
      %v4545 = vpop.f32.mrf.mxu0
      %v4546 = vadd.f32 0.0, %v4545
      %4547 = vmatmul.bf16.gmra.mxu0 %v4395
      %v4548 = vpop.f32.mrf.mxu0
      %v4549 = vadd.f32 0.0, %v4548
      %v4550 = vpop.f32.mrf.mxu0
      %v4551 = vadd.f32 0.0, %v4550
      %4552 = vmatmul.bf16.gmra.mxu0 %v4399
      %v4553 = vpop.f32.mrf.mxu0
      %v4554 = vadd.f32 0.0, %v4553
      %v4555 = vpop.f32.mrf.mxu0
      %v4556 = vadd.f32 0.0, %v4555
      %4557 = vmatmul.bf16.gmra.mxu0 %v4403
      %v4558 = vpop.f32.mrf.mxu0
      %v4559 = vadd.f32 0.0, %v4558
      %v4560 = vpop.f32.mrf.mxu0
      %v4561 = vadd.f32 0.0, %v4560
      %4562 = vmatmul.bf16.gmra.mxu0 %v4407
      %v4563 = vpop.f32.mrf.mxu0
      %v4564 = vadd.f32 0.0, %v4563
      %v4565 = vpop.f32.mrf.mxu0
      %v4566 = vadd.f32 0.0, %v4565
      %4567 = vmatmul.bf16.gmra.mxu0 %v4411
      %v4568 = vpop.f32.mrf.mxu0
      %v4569 = vadd.f32 0.0, %v4568
      %v4570 = vpop.f32.mrf.mxu0
      %v4571 = vadd.f32 0.0, %v4570
      %4572 = vmatmul.bf16.gmra.mxu0 %v4415
      %v4573 = vpop.f32.mrf.mxu0
      %v4574 = vadd.f32 0.0, %v4573
      %v4575 = vpop.f32.mrf.mxu0
      %v4576 = vadd.f32 0.0, %v4575
      %4577 = vmatmul.bf16.gmra.mxu0 %v4419
      %v4578 = vpop.f32.mrf.mxu0
      %v4579 = vadd.f32 0.0, %v4578
      %v4580 = vpop.f32.mrf.mxu0
      %v4581 = vadd.f32 0.0, %v4580
      %4582 = vmatmul.bf16.gmra.mxu0 %v4423
      %v4583 = vpop.f32.mrf.mxu0
      %v4584 = vadd.f32 0.0, %v4583
      %v4585 = vpop.f32.mrf.mxu0
      %v4586 = vadd.f32 0.0, %v4585
      %4587 = vmatmul.bf16.gmra.mxu0 %v4427
      %v4588 = vpop.f32.mrf.mxu0
      %v4589 = vadd.f32 0.0, %v4588
      %v4590 = vpop.f32.mrf.mxu0
      %v4591 = vadd.f32 0.0, %v4590
      %4592 = vmatmul.bf16.gmra.mxu0 %v4431
      %v4593 = vpop.f32.mrf.mxu0
      %v4594 = vadd.f32 0.0, %v4593
      %v4595 = vpop.f32.mrf.mxu0
      %v4596 = vadd.f32 0.0, %v4595
      %4597 = vmatmul.bf16.gmra.mxu0 %v4435
      %v4598 = vpop.f32.mrf.mxu0
      %v4599 = vadd.f32 0.0, %v4598
      %v4600 = vpop.f32.mrf.mxu0
      %v4601 = vadd.f32 0.0, %v4600
      %4602 = vmatmul.bf16.gmra.mxu0 %v4439
      %v4603 = vpop.f32.mrf.mxu0
      %v4604 = vadd.f32 0.0, %v4603
      %v4605 = vpop.f32.mrf.mxu0
      %v4606 = vadd.f32 0.0, %v4605
      %4607 = vmatmul.bf16.gmra.mxu0 %v4443
      %v4608 = vpop.f32.mrf.mxu0
      %v4609 = vadd.f32 0.0, %v4608
      %v4610 = vpop.f32.mrf.mxu0
      %v4611 = vadd.f32 0.0, %v4610
      %4612 = vmatmul.bf16.gmra.mxu0 %v4452
      %v4613 = vpop.f32.mrf.mxu0
      %v4614 = vadd.f32 0.0, %v4613
      %v4615 = vpop.f32.mrf.mxu0
      %v4616 = vadd.f32 0.0, %v4615
      %4617 = vdwg.mxu0
      %v4618 = vadd.f32 %v4310, %v4529
      %v4619 = vadd.f32 %v4311, %v4531
      %v4620 = vadd.f32 %v4312, %v4534
      %v4621 = vadd.f32 %v4313, %v4536
      %v4622 = vadd.f32 %v4314, %v4539
      %v4623 = vadd.f32 %v4315, %v4541
      %v4624 = vadd.f32 %v4316, %v4544
      %v4625 = vadd.f32 %v4317, %v4546
      %v4626 = vadd.f32 %v4318, %v4549
      %v4627 = vadd.f32 %v4319, %v4551
      %v4628 = vadd.f32 %v4320, %v4554
      %v4629 = vadd.f32 %v4321, %v4556
      %v4630 = vadd.f32 %v4322, %v4559
      %v4631 = vadd.f32 %v4323, %v4561
      %v4632 = vadd.f32 %v4324, %v4564
      %v4633 = vadd.f32 %v4325, %v4566
      %v4634 = vadd.f32 %v4326, %v4569
      %v4635 = vadd.f32 %v4327, %v4571
      %v4636 = vadd.f32 %v4328, %v4574
      %v4637 = vadd.f32 %v4329, %v4576
      %v4638 = vadd.f32 %v4330, %v4579
      %v4639 = vadd.f32 %v4331, %v4581
      %v4640 = vadd.f32 %v4332, %v4584
      %v4641 = vadd.f32 %v4333, %v4586
      %v4642 = vadd.f32 %v4334, %v4589
      %v4643 = vadd.f32 %v4335, %v4591
      %v4644 = vadd.f32 %v4336, %v4594
      %v4645 = vadd.f32 %v4337, %v4596
      %v4646 = vadd.f32 %v4338, %v4599
      %v4647 = vadd.f32 %v4339, %v4601
      %v4648 = vadd.f32 %v4340, %v4604
      %v4649 = vadd.f32 %v4341, %v4606
      %v4650 = vadd.f32 %v4342, %v4609
      %v4651 = vadd.f32 %v4343, %v4611
      %v4652 = vadd.f32 %v4344, %v4614
      %v4653 = vadd.f32 %v4345, %v4616
      %v4654 = vld [vmem:[%s5] sm:$0x1]
      %v4656 = vperm.slane %v4654, 0
      %v4658 = vadd.f32 %v4618, %v4656
      %v4659 = vadd.f32 %v4619, %v4656
      %v4660 = vadd.f32 %v4620, %v4656
      %v4661 = vadd.f32 %v4621, %v4656
      %v4662 = vadd.f32 %v4622, %v4656
      %v4663 = vadd.f32 %v4623, %v4656
      %v4664 = vadd.f32 %v4624, %v4656
      %v4665 = vadd.f32 %v4625, %v4656
      %v4666 = vadd.f32 %v4626, %v4656
      %v4667 = vadd.f32 %v4627, %v4656
      %v4668 = vadd.f32 %v4628, %v4656
      %v4669 = vadd.f32 %v4629, %v4656
      %v4670 = vadd.f32 %v4630, %v4656
      %v4671 = vadd.f32 %v4631, %v4656
      %v4672 = vadd.f32 %v4632, %v4656
      %v4673 = vadd.f32 %v4633, %v4656
      %v4674 = vadd.f32 %v4634, %v4656
      %v4675 = vadd.f32 %v4635, %v4656
      %v4676 = vadd.f32 %v4636, %v4656
      %v4677 = vadd.f32 %v4637, %v4656
      %v4678 = vadd.f32 %v4638, %v4656
      %v4679 = vadd.f32 %v4639, %v4656
      %v4680 = vadd.f32 %v4640, %v4656
      %v4681 = vadd.f32 %v4641, %v4656
      %v4682 = vadd.f32 %v4642, %v4656
      %v4683 = vadd.f32 %v4643, %v4656
      %v4684 = vadd.f32 %v4644, %v4656
      %v4685 = vadd.f32 %v4645, %v4656
      %v4686 = vadd.f32 %v4646, %v4656
      %v4687 = vadd.f32 %v4647, %v4656
      %v4688 = vadd.f32 %v4648, %v4656
      %v4689 = vadd.f32 %v4649, %v4656
      %v4690 = vadd.f32 %v4650, %v4656
      %v4691 = vadd.f32 %v4651, %v4656
      %v4692 = vadd.f32 %v4652, %v4656
      %v4693 = vadd.f32 %v4653, %v4656
      %vm4694 = vcmp.ge.f32.partialorder %v4658, 0.0
      %vm4695 = vcmp.ge.f32.partialorder %v4659, 0.0
      %vm4696 = vcmp.ge.f32.partialorder %v4660, 0.0
      %vm4697 = vcmp.ge.f32.partialorder %v4661, 0.0
      %vm4698 = vcmp.ge.f32.partialorder %v4662, 0.0
      %vm4699 = vcmp.ge.f32.partialorder %v4663, 0.0
      %vm4700 = vcmp.ge.f32.partialorder %v4664, 0.0
      %vm4701 = vcmp.ge.f32.partialorder %v4665, 0.0
      %vm4702 = vcmp.ge.f32.partialorder %v4666, 0.0
      %vm4703 = vcmp.ge.f32.partialorder %v4667, 0.0
      %vm4704 = vcmp.ge.f32.partialorder %v4668, 0.0
      %vm4705 = vcmp.ge.f32.partialorder %v4669, 0.0
      %vm4706 = vcmp.ge.f32.partialorder %v4670, 0.0
      %vm4707 = vcmp.ge.f32.partialorder %v4671, 0.0
      %vm4708 = vcmp.ge.f32.partialorder %v4672, 0.0
      %vm4709 = vcmp.ge.f32.partialorder %v4673, 0.0
      %vm4710 = vcmp.ge.f32.partialorder %v4674, 0.0
      %vm4711 = vcmp.ge.f32.partialorder %v4675, 0.0
      %vm4712 = vcmp.ge.f32.partialorder %v4676, 0.0
      %vm4713 = vcmp.ge.f32.partialorder %v4677, 0.0
      %vm4714 = vcmp.ge.f32.partialorder %v4678, 0.0
      %vm4715 = vcmp.ge.f32.partialorder %v4679, 0.0
      %vm4716 = vcmp.ge.f32.partialorder %v4680, 0.0
      %vm4717 = vcmp.ge.f32.partialorder %v4681, 0.0
      %vm4718 = vcmp.ge.f32.partialorder %v4682, 0.0
      %vm4719 = vcmp.ge.f32.partialorder %v4683, 0.0
      %vm4720 = vcmp.ge.f32.partialorder %v4684, 0.0
      %vm4721 = vcmp.ge.f32.partialorder %v4685, 0.0
      %vm4722 = vcmp.ge.f32.partialorder %v4686, 0.0
      %vm4723 = vcmp.ge.f32.partialorder %v4687, 0.0
      %vm4724 = vcmp.ge.f32.partialorder %v4688, 0.0
      %vm4725 = vcmp.ge.f32.partialorder %v4689, 0.0
      %vm4726 = vcmp.ge.f32.partialorder %v4690, 0.0
      %vm4727 = vcmp.ge.f32.partialorder %v4691, 0.0
      %vm4728 = vcmp.ge.f32.partialorder %v4692, 0.0
      %vm4729 = vcmp.ge.f32.partialorder %v4693, 0.0
      %v4730 = vmul.f32 %v4658, 0.01
      %v4731 = vmul.f32 %v4659, 0.01
      %v4732 = vmul.f32 %v4660, 0.01
      %v4733 = vmul.f32 %v4661, 0.01
      %v4734 = vmul.f32 %v4662, 0.01
      %v4735 = vmul.f32 %v4663, 0.01
      %v4736 = vmul.f32 %v4664, 0.01
      %v4737 = vmul.f32 %v4665, 0.01
      %v4738 = vmul.f32 %v4666, 0.01
      %v4739 = vmul.f32 %v4667, 0.01
      %v4740 = vmul.f32 %v4668, 0.01
      %v4741 = vmul.f32 %v4669, 0.01
      %v4742 = vmul.f32 %v4670, 0.01
      %v4743 = vmul.f32 %v4671, 0.01
      %v4744 = vmul.f32 %v4672, 0.01
      %v4745 = vmul.f32 %v4673, 0.01
      %v4746 = vmul.f32 %v4674, 0.01
      %v4747 = vmul.f32 %v4675, 0.01
      %v4748 = vmul.f32 %v4676, 0.01
      %v4749 = vmul.f32 %v4677, 0.01
      %v4750 = vmul.f32 %v4678, 0.01
      %v4751 = vmul.f32 %v4679, 0.01
      %v4752 = vmul.f32 %v4680, 0.01
      %v4753 = vmul.f32 %v4681, 0.01
      %v4754 = vmul.f32 %v4682, 0.01
      %v4755 = vmul.f32 %v4683, 0.01
      %v4756 = vmul.f32 %v4684, 0.01
      %v4757 = vmul.f32 %v4685, 0.01
      %v4758 = vmul.f32 %v4686, 0.01
      %v4759 = vmul.f32 %v4687, 0.01
      %v4760 = vmul.f32 %v4688, 0.01
      %v4761 = vmul.f32 %v4689, 0.01
      %v4762 = vmul.f32 %v4690, 0.01
      %v4763 = vmul.f32 %v4691, 0.01
      %v4764 = vmul.f32 %v4692, 0.01
      %v4765 = vmul.f32 %v4693, 0.01
      %v4766 = vsel %vm4694, %v4658, %v4730
      %v4767 = vsel %vm4695, %v4659, %v4731
      %v4768 = vsel %vm4696, %v4660, %v4732
      %v4769 = vsel %vm4697, %v4661, %v4733
      %v4770 = vsel %vm4698, %v4662, %v4734
      %v4771 = vsel %vm4699, %v4663, %v4735
      %v4772 = vsel %vm4700, %v4664, %v4736
      %v4773 = vsel %vm4701, %v4665, %v4737
      %v4774 = vsel %vm4702, %v4666, %v4738
      %v4775 = vsel %vm4703, %v4667, %v4739
      %v4776 = vsel %vm4704, %v4668, %v4740
      %v4777 = vsel %vm4705, %v4669, %v4741
      %v4778 = vsel %vm4706, %v4670, %v4742
      %v4779 = vsel %vm4707, %v4671, %v4743
      %v4780 = vsel %vm4708, %v4672, %v4744
      %v4781 = vsel %vm4709, %v4673, %v4745
      %v4782 = vsel %vm4710, %v4674, %v4746
      %v4783 = vsel %vm4711, %v4675, %v4747
      %v4784 = vsel %vm4712, %v4676, %v4748
      %v4785 = vsel %vm4713, %v4677, %v4749
      %v4786 = vsel %vm4714, %v4678, %v4750
      %v4787 = vsel %vm4715, %v4679, %v4751
      %v4788 = vsel %vm4716, %v4680, %v4752
      %v4789 = vsel %vm4717, %v4681, %v4753
      %v4790 = vsel %vm4718, %v4682, %v4754
      %v4791 = vsel %vm4719, %v4683, %v4755
      %v4792 = vsel %vm4720, %v4684, %v4756
      %v4793 = vsel %vm4721, %v4685, %v4757
      %v4794 = vsel %vm4722, %v4686, %v4758
      %v4795 = vsel %vm4723, %v4687, %v4759
      %v4796 = vsel %vm4724, %v4688, %v4760
      %v4797 = vsel %vm4725, %v4689, %v4761
      %v4798 = vsel %vm4726, %v4690, %v4762
      %v4799 = vsel %vm4727, %v4691, %v4763
      %v4800 = vsel %vm4728, %v4692, %v4764
      %v4801 = vsel %vm4729, %v4693, %v4765
      %v4802 = vsel %vm931, %v4766, 0.0
      %v4803 = vsel %vm932, %v4767, 0.0
      %v4804 = vsel %vm933, %v4768, 0.0
      %v4805 = vsel %vm934, %v4769, 0.0
      %v4806 = vsel %vm935, %v4770, 0.0
      %v4807 = vsel %vm936, %v4771, 0.0
      %v4808 = vsel %vm937, %v4772, 0.0
      %v4809 = vsel %vm938, %v4773, 0.0
      %v4810 = vsel %vm939, %v4774, 0.0
      %v4811 = vsel %vm940, %v4775, 0.0
      %v4812 = vsel %vm941, %v4776, 0.0
      %v4813 = vsel %vm942, %v4777, 0.0
      %v4814 = vsel %vm943, %v4778, 0.0
      %v4815 = vsel %vm944, %v4779, 0.0
      %v4816 = vsel %vm945, %v4780, 0.0
      %v4817 = vsel %vm946, %v4781, 0.0
      %v4818 = vsel %vm947, %v4782, 0.0
      %v4819 = vsel %vm948, %v4783, 0.0
      %v4820 = vsel %vm949, %v4784, 0.0
      %v4821 = vsel %vm950, %v4785, 0.0
      %v4822 = vsel %vm951, %v4786, 0.0
      %v4823 = vsel %vm952, %v4787, 0.0
      %v4824 = vsel %vm953, %v4788, 0.0
      %v4825 = vsel %vm954, %v4789, 0.0
      %v4826 = vsel %vm955, %v4790, 0.0
      %v4827 = vsel %vm956, %v4791, 0.0
      %v4828 = vsel %vm957, %v4792, 0.0
      %v4829 = vsel %vm958, %v4793, 0.0
      %v4830 = vsel %vm959, %v4794, 0.0
      %v4831 = vsel %vm960, %v4795, 0.0
      %v4832 = vsel %vm961, %v4796, 0.0
      %v4833 = vsel %vm962, %v4797, 0.0
      %v4834 = vsel %vm963, %v4798, 0.0
      %v4835 = vsel %vm964, %v4799, 0.0
      %v4836 = vsel %vm965, %v4800, 0.0
      %v4837 = vsel %vm966, %v4801, 0.0
      %v4838 = vadd.f32 %v4802, %v4803
      %v4839 = vadd.f32 %v4838, %v4804
      %v4840 = vadd.f32 %v4839, %v4805
      %v4841 = vadd.f32 %v4840, %v4806
      %v4842 = vadd.f32 %v4841, %v4807
      %v4843 = vadd.f32 %v4842, %v4808
      %v4844 = vadd.f32 %v4843, %v4809
      %v4845 = vadd.f32 %v4844, %v4810
      %v4846 = vadd.f32 %v4845, %v4811
      %v4847 = vadd.f32 %v4846, %v4812
      %v4848 = vadd.f32 %v4847, %v4813
      %v4849 = vadd.f32 %v4848, %v4814
      %v4850 = vadd.f32 %v4849, %v4815
      %v4851 = vadd.f32 %v4850, %v4816
      %v4852 = vadd.f32 %v4851, %v4817
      %v4853 = vadd.f32 %v4852, %v4818
      %v4854 = vadd.f32 %v4853, %v4819
      %v4855 = vadd.f32 %v4854, %v4820
      %v4856 = vadd.f32 %v4855, %v4821
      %v4857 = vadd.f32 %v4856, %v4822
      %v4858 = vadd.f32 %v4857, %v4823
      %v4859 = vadd.f32 %v4858, %v4824
      %v4860 = vadd.f32 %v4859, %v4825
      %v4861 = vadd.f32 %v4860, %v4826
      %v4862 = vadd.f32 %v4861, %v4827
      %v4863 = vadd.f32 %v4862, %v4828
      %v4864 = vadd.f32 %v4863, %v4829
      %v4865 = vadd.f32 %v4864, %v4830
      %v4866 = vadd.f32 %v4865, %v4831
      %v4867 = vadd.f32 %v4866, %v4832
      %v4868 = vadd.f32 %v4867, %v4833
      %v4869 = vadd.f32 %v4868, %v4834
      %v4870 = vadd.f32 %v4869, %v4835
      %v4871 = vadd.f32 %v4870, %v4836
      %v4872 = vadd.f32 %v4871, %v4837
      %v4873 = vrot.slane %v4872, 4
      %v4874 = vadd.f32 %v4872, %v4873
      %v4875 = vrot.slane %v4874, 2
      %v4876 = vadd.f32 %v4874, %v4875
      %v4877 = vrot.slane %v4876, 1
      %v4878 = vadd.f32 %v4876, %v4877
      %v4879 = vmul.f32 %v4878, 0.00390625
      %v4880 = vmul.f32 %v4802, %v4802
      %v4881 = vmul.f32 %v4803, %v4803
      %v4882 = vmul.f32 %v4804, %v4804
      %v4883 = vmul.f32 %v4805, %v4805
      %v4884 = vmul.f32 %v4806, %v4806
      %v4885 = vmul.f32 %v4807, %v4807
      %v4886 = vmul.f32 %v4808, %v4808
      %v4887 = vmul.f32 %v4809, %v4809
      %v4888 = vmul.f32 %v4810, %v4810
      %v4889 = vmul.f32 %v4811, %v4811
      %v4890 = vmul.f32 %v4812, %v4812
      %v4891 = vmul.f32 %v4813, %v4813
      %v4892 = vmul.f32 %v4814, %v4814
      %v4893 = vmul.f32 %v4815, %v4815
      %v4894 = vmul.f32 %v4816, %v4816
      %v4895 = vmul.f32 %v4817, %v4817
      %v4896 = vmul.f32 %v4818, %v4818
      %v4897 = vmul.f32 %v4819, %v4819
      %v4898 = vmul.f32 %v4820, %v4820
      %v4899 = vmul.f32 %v4821, %v4821
      %v4900 = vmul.f32 %v4822, %v4822
      %v4901 = vmul.f32 %v4823, %v4823
      %v4902 = vmul.f32 %v4824, %v4824
      %v4903 = vmul.f32 %v4825, %v4825
      %v4904 = vmul.f32 %v4826, %v4826
      %v4905 = vmul.f32 %v4827, %v4827
      %v4906 = vmul.f32 %v4828, %v4828
      %v4907 = vmul.f32 %v4829, %v4829
      %v4908 = vmul.f32 %v4830, %v4830
      %v4909 = vmul.f32 %v4831, %v4831
      %v4910 = vmul.f32 %v4832, %v4832
      %v4911 = vmul.f32 %v4833, %v4833
      %v4912 = vmul.f32 %v4834, %v4834
      %v4913 = vmul.f32 %v4835, %v4835
      %v4914 = vmul.f32 %v4836, %v4836
      %v4915 = vmul.f32 %v4837, %v4837
      %v4916 = vadd.f32 %v4880, %v4881
      %v4917 = vadd.f32 %v4916, %v4882
      %v4918 = vadd.f32 %v4917, %v4883
      %v4919 = vadd.f32 %v4918, %v4884
      %v4920 = vadd.f32 %v4919, %v4885
      %v4921 = vadd.f32 %v4920, %v4886
      %v4922 = vadd.f32 %v4921, %v4887
      %v4923 = vadd.f32 %v4922, %v4888
      %v4924 = vadd.f32 %v4923, %v4889
      %v4925 = vadd.f32 %v4924, %v4890
      %v4926 = vadd.f32 %v4925, %v4891
      %v4927 = vadd.f32 %v4926, %v4892
      %v4928 = vadd.f32 %v4927, %v4893
      %v4929 = vadd.f32 %v4928, %v4894
      %v4930 = vadd.f32 %v4929, %v4895
      %v4931 = vadd.f32 %v4930, %v4896
      %v4932 = vadd.f32 %v4931, %v4897
      %v4933 = vadd.f32 %v4932, %v4898
      %v4934 = vadd.f32 %v4933, %v4899
      %v4935 = vadd.f32 %v4934, %v4900
      %v4936 = vadd.f32 %v4935, %v4901
      %v4937 = vadd.f32 %v4936, %v4902
      %v4938 = vadd.f32 %v4937, %v4903
      %v4939 = vadd.f32 %v4938, %v4904
      %v4940 = vadd.f32 %v4939, %v4905
      %v4941 = vadd.f32 %v4940, %v4906
      %v4942 = vadd.f32 %v4941, %v4907
      %v4943 = vadd.f32 %v4942, %v4908
      %v4944 = vadd.f32 %v4943, %v4909
      %v4945 = vadd.f32 %v4944, %v4910
      %v4946 = vadd.f32 %v4945, %v4911
      %v4947 = vadd.f32 %v4946, %v4912
      %v4948 = vadd.f32 %v4947, %v4913
      %v4949 = vadd.f32 %v4948, %v4914
      %v4950 = vadd.f32 %v4949, %v4915
      %v4951 = vrot.slane %v4950, 4
      %v4952 = vadd.f32 %v4950, %v4951
      %v4953 = vrot.slane %v4952, 2
      %v4954 = vadd.f32 %v4952, %v4953
      %v4955 = vrot.slane %v4954, 1
      %v4956 = vadd.f32 %v4954, %v4955
      %v4957 = vmul.f32 %v4956, 0.00390625
      %v4958 = vmul.f32 %v4879, %v4879
      %v4959 = vsub.f32 %v4957, %v4958
      %v4960 = vmax.f32 %v4959, 0.0
      %v4961 = vsub.f32 %v4766, %v4879
      %v4962 = vsub.f32 %v4767, %v4879
      %v4963 = vsub.f32 %v4768, %v4879
      %v4964 = vsub.f32 %v4769, %v4879
      %v4965 = vsub.f32 %v4770, %v4879
      %v4966 = vsub.f32 %v4771, %v4879
      %v4967 = vsub.f32 %v4772, %v4879
      %v4968 = vsub.f32 %v4773, %v4879
      %v4969 = vsub.f32 %v4774, %v4879
      %v4970 = vsub.f32 %v4775, %v4879
      %v4971 = vsub.f32 %v4776, %v4879
      %v4972 = vsub.f32 %v4777, %v4879
      %v4973 = vsub.f32 %v4778, %v4879
      %v4974 = vsub.f32 %v4779, %v4879
      %v4975 = vsub.f32 %v4780, %v4879
      %v4976 = vsub.f32 %v4781, %v4879
      %v4977 = vsub.f32 %v4782, %v4879
      %v4978 = vsub.f32 %v4783, %v4879
      %v4979 = vsub.f32 %v4784, %v4879
      %v4980 = vsub.f32 %v4785, %v4879
      %v4981 = vsub.f32 %v4786, %v4879
      %v4982 = vsub.f32 %v4787, %v4879
      %v4983 = vsub.f32 %v4788, %v4879
      %v4984 = vsub.f32 %v4789, %v4879
      %v4985 = vsub.f32 %v4790, %v4879
      %v4986 = vsub.f32 %v4791, %v4879
      %v4987 = vsub.f32 %v4792, %v4879
      %v4988 = vsub.f32 %v4793, %v4879
      %v4989 = vsub.f32 %v4794, %v4879
      %v4990 = vsub.f32 %v4795, %v4879
      %v4991 = vsub.f32 %v4796, %v4879
      %v4992 = vsub.f32 %v4797, %v4879
      %v4993 = vsub.f32 %v4798, %v4879
      %v4994 = vsub.f32 %v4799, %v4879
      %v4995 = vsub.f32 %v4800, %v4879
      %v4996 = vsub.f32 %v4801, %v4879
      %v4997 = vadd.f32 %v4960, 1e-05
      %v4998 = vrsqrt.pop %v4997
      %v4999 = vmul.f32 %v4998, %v4997
      %v5000 = vmul.f32 %v4999, %v4998
      %v5001 = vmul.f32 0.5, %v5000
      %v5002 = vsub.f32 1.5, %v5001
      %v5003 = vmul.f32 %v4998, %v5002
      %vm5004 = vweird.f32 %v4997
      %vm5005 = vweird.f32 %v4998
      %vm5006 = vmor %vm5004, %vm5005
      %v5007 = vsel %vm5006, %v4998, %v5003
      %v5008 = vmul.f32 %v4961, %v5007
      %v5009 = vmul.f32 %v4962, %v5007
      %v5010 = vmul.f32 %v4963, %v5007
      %v5011 = vmul.f32 %v4964, %v5007
      %v5012 = vmul.f32 %v4965, %v5007
      %v5013 = vmul.f32 %v4966, %v5007
      %v5014 = vmul.f32 %v4967, %v5007
      %v5015 = vmul.f32 %v4968, %v5007
      %v5016 = vmul.f32 %v4969, %v5007
      %v5017 = vmul.f32 %v4970, %v5007
      %v5018 = vmul.f32 %v4971, %v5007
      %v5019 = vmul.f32 %v4972, %v5007
      %v5020 = vmul.f32 %v4973, %v5007
      %v5021 = vmul.f32 %v4974, %v5007
      %v5022 = vmul.f32 %v4975, %v5007
      %v5023 = vmul.f32 %v4976, %v5007
      %v5024 = vmul.f32 %v4977, %v5007
      %v5025 = vmul.f32 %v4978, %v5007
      %v5026 = vmul.f32 %v4979, %v5007
      %v5027 = vmul.f32 %v4980, %v5007
      %v5028 = vmul.f32 %v4981, %v5007
      %v5029 = vmul.f32 %v4982, %v5007
      %v5030 = vmul.f32 %v4983, %v5007
      %v5031 = vmul.f32 %v4984, %v5007
      %v5032 = vmul.f32 %v4985, %v5007
      %v5033 = vmul.f32 %v4986, %v5007
      %v5034 = vmul.f32 %v4987, %v5007
      %v5035 = vmul.f32 %v4988, %v5007
      %v5036 = vmul.f32 %v4989, %v5007
      %v5037 = vmul.f32 %v4990, %v5007
      %v5038 = vmul.f32 %v4991, %v5007
      %v5039 = vmul.f32 %v4992, %v5007
      %v5040 = vmul.f32 %v4993, %v5007
      %v5041 = vmul.f32 %v4994, %v5007
      %v5042 = vmul.f32 %v4995, %v5007
      %v5043 = vmul.f32 %v4996, %v5007
      %5044 = vst [vmem:[#allocation3] sm:$0xf] 0
      %5045 = vst [vmem:[#allocation3 + $0x4] sm:$0xf] 0
      %5046 = vst [vmem:[#allocation3 + $0x8] sm:$0xf] 0
      %5047 = vst [vmem:[#allocation3 + $0xc] sm:$0xf] 0
      %5048 = vst [vmem:[#allocation3 + $0xa0] sm:$0xf] 0
      %5049 = vst [vmem:[#allocation3 + $0xa4] sm:$0xf] 0
      %5050 = vst [vmem:[#allocation3 + $0xa8] sm:$0xf] 0
      %5051 = vst [vmem:[#allocation3 + $0xac] sm:$0xf] 0
      %v5052 = vsel %vm931, %v5008, 0.0
      %v5053 = vsel %vm932, %v5009, 0.0
      %v5054 = vsel %vm933, %v5010, 0.0
      %v5055 = vsel %vm934, %v5011, 0.0
      %v5056 = vsel %vm935, %v5012, 0.0
      %v5057 = vsel %vm936, %v5013, 0.0
      %v5058 = vsel %vm937, %v5014, 0.0
      %v5059 = vsel %vm938, %v5015, 0.0
      %v5060 = vsel %vm939, %v5016, 0.0
      %v5061 = vsel %vm940, %v5017, 0.0
      %v5062 = vsel %vm941, %v5018, 0.0
      %v5063 = vsel %vm942, %v5019, 0.0
      %v5064 = vsel %vm943, %v5020, 0.0
      %v5065 = vsel %vm944, %v5021, 0.0
      %v5066 = vsel %vm945, %v5022, 0.0
      %v5067 = vsel %vm946, %v5023, 0.0
      %v5068 = vsel %vm947, %v5024, 0.0
      %v5069 = vsel %vm948, %v5025, 0.0
      %v5070 = vsel %vm949, %v5026, 0.0
      %v5071 = vsel %vm950, %v5027, 0.0
      %v5072 = vsel %vm951, %v5028, 0.0
      %v5073 = vsel %vm952, %v5029, 0.0
      %v5074 = vsel %vm953, %v5030, 0.0
      %v5075 = vsel %vm954, %v5031, 0.0
      %v5076 = vsel %vm955, %v5032, 0.0
      %v5077 = vsel %vm956, %v5033, 0.0
      %v5078 = vsel %vm957, %v5034, 0.0
      %v5079 = vsel %vm958, %v5035, 0.0
      %v5080 = vsel %vm959, %v5036, 0.0
      %v5081 = vsel %vm960, %v5037, 0.0
      %v5082 = vsel %vm961, %v5038, 0.0
      %v5083 = vsel %vm962, %v5039, 0.0
      %v5084 = vsel %vm963, %v5040, 0.0
      %v5085 = vsel %vm964, %v5041, 0.0
      %v5086 = vsel %vm965, %v5042, 0.0
      %v5087 = vsel %vm966, %v5043, 0.0
      %v5088 = vpack.c.bf16 %v5052, %v5052
      %v5089 = vpack.c.bf16 %v5053, %v5053
      %v5090 = vpack.c.bf16 %v5054, %v5054
      %v5091 = vpack.c.bf16 %v5055, %v5055
      %v5092 = vpack.c.bf16 %v5056, %v5056
      %v5093 = vpack.c.bf16 %v5057, %v5057
      %v5094 = vpack.c.bf16 %v5058, %v5058
      %v5095 = vpack.c.bf16 %v5059, %v5059
      %v5096 = vpack.c.bf16 %v5060, %v5060
      %v5097 = vpack.c.bf16 %v5061, %v5061
      %v5098 = vpack.c.bf16 %v5062, %v5062
      %v5099 = vpack.c.bf16 %v5063, %v5063
      %v5100 = vpack.c.bf16 %v5064, %v5064
      %v5101 = vpack.c.bf16 %v5065, %v5065
      %v5102 = vpack.c.bf16 %v5066, %v5066
      %v5103 = vpack.c.bf16 %v5067, %v5067
      %v5104 = vpack.c.bf16 %v5068, %v5068
      %v5105 = vpack.c.bf16 %v5069, %v5069
      %v5106 = vpack.c.bf16 %v5070, %v5070
      %v5107 = vpack.c.bf16 %v5071, %v5071
      %v5108 = vpack.c.bf16 %v5072, %v5072
      %v5109 = vpack.c.bf16 %v5073, %v5073
      %v5110 = vpack.c.bf16 %v5074, %v5074
      %v5111 = vpack.c.bf16 %v5075, %v5075
      %v5112 = vpack.c.bf16 %v5076, %v5076
      %v5113 = vpack.c.bf16 %v5077, %v5077
      %v5114 = vpack.c.bf16 %v5078, %v5078
      %v5115 = vpack.c.bf16 %v5079, %v5079
      %v5116 = vpack.c.bf16 %v5080, %v5080
      %v5117 = vpack.c.bf16 %v5081, %v5081
      %v5118 = vpack.c.bf16 %v5082, %v5082
      %v5119 = vpack.c.bf16 %v5083, %v5083
      %v5120 = vpack.c.bf16 %v5084, %v5084
      %v5121 = vpack.c.bf16 %v5085, %v5085
      %v5122 = vpack.c.bf16 %v5086, %v5086
      %v5123 = vpack.c.bf16 %v5087, %v5087
      %5124 = vst [vmem:[#allocation3 + $0x10] sm:$0xf] %v5088
      %5125 = vst [vmem:[#allocation3 + $0x14] sm:$0xf] %v5089
      %5126 = vst [vmem:[#allocation3 + $0x18] sm:$0xf] %v5090
      %5127 = vst [vmem:[#allocation3 + $0x1c] sm:$0xf] %v5091
      %5128 = vst [vmem:[#allocation3 + $0x20] sm:$0xf] %v5092
      %5129 = vst [vmem:[#allocation3 + $0x24] sm:$0xf] %v5093
      %5130 = vst [vmem:[#allocation3 + $0x28] sm:$0xf] %v5094
      %5131 = vst [vmem:[#allocation3 + $0x2c] sm:$0xf] %v5095
      %5132 = vst [vmem:[#allocation3 + $0x30] sm:$0xf] %v5096
      %5133 = vst [vmem:[#allocation3 + $0x34] sm:$0xf] %v5097
      %5134 = vst [vmem:[#allocation3 + $0x38] sm:$0xf] %v5098
      %5135 = vst [vmem:[#allocation3 + $0x3c] sm:$0xf] %v5099
      %5136 = vst [vmem:[#allocation3 + $0x40] sm:$0xf] %v5100
      %5137 = vst [vmem:[#allocation3 + $0x44] sm:$0xf] %v5101
      %5138 = vst [vmem:[#allocation3 + $0x48] sm:$0xf] %v5102
      %5139 = vst [vmem:[#allocation3 + $0x4c] sm:$0xf] %v5103
      %5140 = vst [vmem:[#allocation3 + $0x50] sm:$0xf] %v5104
      %5141 = vst [vmem:[#allocation3 + $0x54] sm:$0xf] %v5105
      %5142 = vst [vmem:[#allocation3 + $0x58] sm:$0xf] %v5106
      %5143 = vst [vmem:[#allocation3 + $0x5c] sm:$0xf] %v5107
      %5144 = vst [vmem:[#allocation3 + $0x60] sm:$0xf] %v5108
      %5145 = vst [vmem:[#allocation3 + $0x64] sm:$0xf] %v5109
      %5146 = vst [vmem:[#allocation3 + $0x68] sm:$0xf] %v5110
      %5147 = vst [vmem:[#allocation3 + $0x6c] sm:$0xf] %v5111
      %5148 = vst [vmem:[#allocation3 + $0x70] sm:$0xf] %v5112
      %5149 = vst [vmem:[#allocation3 + $0x74] sm:$0xf] %v5113
      %5150 = vst [vmem:[#allocation3 + $0x78] sm:$0xf] %v5114
      %5151 = vst [vmem:[#allocation3 + $0x7c] sm:$0xf] %v5115
      %5152 = vst [vmem:[#allocation3 + $0x80] sm:$0xf] %v5116
      %5153 = vst [vmem:[#allocation3 + $0x84] sm:$0xf] %v5117
      %5154 = vst [vmem:[#allocation3 + $0x88] sm:$0xf] %v5118
      %5155 = vst [vmem:[#allocation3 + $0x8c] sm:$0xf] %v5119
      %5156 = vst [vmem:[#allocation3 + $0x90] sm:$0xf] %v5120
      %5157 = vst [vmem:[#allocation3 + $0x94] sm:$0xf] %v5121
      %5158 = vst [vmem:[#allocation3 + $0x98] sm:$0xf] %v5122
      %5159 = vst [vmem:[#allocation3 + $0x9c] sm:$0xf] %v5123
      %v5160 = vld [vmem:[#allocation3 + $0x4] sm:$0xc]
      %v5161 = vld [vmem:[#allocation3 + $0x8] sm:$0xf]
      %v5162 = vld [vmem:[#allocation3 + $0xc] sm:$0xf]
      %v5163 = vld [vmem:[#allocation3 + $0x10] sm:$0xf]
      %v5164 = vld [vmem:[#allocation3 + $0x14] sm:$0xf]
      %v5165 = vld [vmem:[#allocation3 + $0x18] sm:$0xf]
      %v5166 = vld [vmem:[#allocation3 + $0x1c] sm:$0xf]
      %v5167 = vld [vmem:[#allocation3 + $0x20] sm:$0xf]
      %v5168 = vld [vmem:[#allocation3 + $0x24] sm:$0xf]
      %v5169 = vld [vmem:[#allocation3 + $0x28] sm:$0xf]
      %v5170 = vld [vmem:[#allocation3 + $0x2c] sm:$0xf]
      %v5171 = vld [vmem:[#allocation3 + $0x30] sm:$0xf]
      %v5172 = vld [vmem:[#allocation3 + $0x34] sm:$0xf]
      %v5173 = vld [vmem:[#allocation3 + $0x38] sm:$0xf]
      %v5174 = vld [vmem:[#allocation3 + $0x3c] sm:$0xf]
      %v5175 = vld [vmem:[#allocation3 + $0x40] sm:$0xf]
      %v5176 = vld [vmem:[#allocation3 + $0x44] sm:$0xf]
      %v5177 = vld [vmem:[#allocation3 + $0x48] sm:$0xf]
      %v5178 = vld [vmem:[#allocation3 + $0x4c] sm:$0xf]
      %v5179 = vld [vmem:[#allocation3 + $0x50] sm:$0xf]
      %v5180 = vld [vmem:[#allocation3 + $0x54] sm:$0xf]
      %v5181 = vld [vmem:[#allocation3 + $0x58] sm:$0xf]
      %v5182 = vld [vmem:[#allocation3 + $0x5c] sm:$0xf]
      %v5183 = vld [vmem:[#allocation3 + $0x60] sm:$0xf]
      %v5184 = vld [vmem:[#allocation3 + $0x64] sm:$0xf]
      %v5185 = vld [vmem:[#allocation3 + $0x68] sm:$0xf]
      %v5186 = vld [vmem:[#allocation3 + $0x6c] sm:$0xf]
      %v5187 = vld [vmem:[#allocation3 + $0x70] sm:$0xf]
      %v5188 = vld [vmem:[#allocation3 + $0x74] sm:$0xf]
      %v5189 = vld [vmem:[#allocation3 + $0x78] sm:$0xf]
      %v5190 = vld [vmem:[#allocation3 + $0x7c] sm:$0xf]
      %v5191 = vld [vmem:[#allocation3 + $0x80] sm:$0xf]
      %v5192 = vld [vmem:[#allocation3 + $0x84] sm:$0xf]
      %v5193 = vld [vmem:[#allocation3 + $0x88] sm:$0xf]
      %v5194 = vld [vmem:[#allocation3 + $0x8c] sm:$0xf]
      %v5195 = vld [vmem:[#allocation3 + $0x90] sm:$0xf]
      %v5196 = vld [vmem:[#allocation3 + $0x94] sm:$0x7]
      %v5197 = vld [vmem:[%s6] sm:$0xf]
      %v5198 = vld [vmem:[%s6 + $0x4] sm:$0xf]
      %v5199 = vld [vmem:[%s6 + $0x8] sm:$0xf]
      %v5200 = vld [vmem:[%s6 + $0xc] sm:$0xf]
      %v5201 = vld [vmem:[%s6 + $0x10] sm:$0xf]
      %v5202 = vld [vmem:[%s6 + $0x14] sm:$0xf]
      %v5203 = vld [vmem:[%s6 + $0x18] sm:$0xf]
      %v5204 = vld [vmem:[%s6 + $0x1c] sm:$0xf]
      %v5205 = vld [vmem:[%s6 + $0x20] sm:$0xf]
      %v5206 = vld [vmem:[%s6 + $0x24] sm:$0xf]
      %v5207 = vld [vmem:[%s6 + $0x28] sm:$0xf]
      %v5208 = vld [vmem:[%s6 + $0x2c] sm:$0xf]
      %v5209 = vld [vmem:[%s6 + $0x30] sm:$0xf]
      %v5210 = vld [vmem:[%s6 + $0x34] sm:$0xf]
      %v5211 = vld [vmem:[%s6 + $0x38] sm:$0xf]
      %v5212 = vld [vmem:[%s6 + $0x3c] sm:$0xf]
      %v5213 = vld [vmem:[#allocation3 + $0x4] sm:$0x8]
      %s5214 = scalar_lea.vmem %s6, 64
      %v5215 = vld [vmem:[%s5214] sm:$0xf]
      %v5216 = vld [vmem:[%s5214 + $0x4] sm:$0xf]
      %v5217 = vld [vmem:[%s5214 + $0x8] sm:$0xf]
      %v5218 = vld [vmem:[%s5214 + $0xc] sm:$0xf]
      %v5219 = vld [vmem:[%s5214 + $0x10] sm:$0xf]
      %v5220 = vld [vmem:[%s5214 + $0x14] sm:$0xf]
      %v5221 = vld [vmem:[%s5214 + $0x18] sm:$0xf]
      %v5222 = vld [vmem:[%s5214 + $0x1c] sm:$0xf]
      %v5223 = vld [vmem:[%s5214 + $0x20] sm:$0xf]
      %v5224 = vld [vmem:[%s5214 + $0x24] sm:$0xf]
      %v5225 = vld [vmem:[%s5214 + $0x28] sm:$0xf]
      %v5226 = vld [vmem:[%s5214 + $0x2c] sm:$0xf]
      %v5227 = vld [vmem:[%s5214 + $0x30] sm:$0xf]
      %v5228 = vld [vmem:[%s5214 + $0x34] sm:$0xf]
      %v5229 = vld [vmem:[%s5214 + $0x38] sm:$0xf]
      %v5230 = vld [vmem:[%s5214 + $0x3c] sm:$0xf]
      %v5268 = vunpack.c.l.b16 %v5213
      %v5269 = vunpack.c.l.b16 %v5161
      %v5270 = vunpack.c.l.b16 %v5162
      %v5271 = vunpack.c.l.b16 %v5163
      %v5272 = vunpack.c.l.b16 %v5164
      %v5273 = vunpack.c.l.b16 %v5165
      %v5274 = vunpack.c.l.b16 %v5166
      %v5275 = vunpack.c.l.b16 %v5167
      %v5276 = vunpack.c.l.b16 %v5168
      %v5277 = vunpack.c.l.b16 %v5169
      %v5278 = vunpack.c.l.b16 %v5170
      %v5279 = vunpack.c.l.b16 %v5171
      %v5280 = vunpack.c.l.b16 %v5172
      %v5281 = vunpack.c.l.b16 %v5173
      %v5282 = vunpack.c.l.b16 %v5174
      %v5283 = vunpack.c.l.b16 %v5175
      %v5284 = vunpack.c.l.b16 %v5176
      %v5285 = vunpack.c.l.b16 %v5177
      %v5286 = vunpack.c.l.b16 %v5178
      %v5287 = vunpack.c.l.b16 %v5179
      %v5288 = vunpack.c.l.b16 %v5180
      %v5289 = vunpack.c.l.b16 %v5181
      %v5290 = vunpack.c.l.b16 %v5182
      %v5291 = vunpack.c.l.b16 %v5183
      %v5292 = vunpack.c.l.b16 %v5184
      %v5293 = vunpack.c.l.b16 %v5185
      %v5294 = vunpack.c.l.b16 %v5186
      %v5295 = vunpack.c.l.b16 %v5187
      %v5296 = vunpack.c.l.b16 %v5188
      %v5297 = vunpack.c.l.b16 %v5189
      %v5298 = vunpack.c.l.b16 %v5190
      %v5299 = vunpack.c.l.b16 %v5191
      %v5300 = vunpack.c.l.b16 %v5192
      %v5301 = vunpack.c.l.b16 %v5193
      %v5302 = vunpack.c.l.b16 %v5194
      %v5303 = vunpack.c.l.b16 %v5195
      %v5304 = vunpack.c.l.b16 %v5196
      %v5305 = vpack.c.b16 %v5269, %v5268
      %v5306 = vpack.c.b16 %v5271, %v5270
      %v5307 = vpack.c.b16 %v5273, %v5272
      %v5308 = vpack.c.b16 %v5275, %v5274
      %v5309 = vpack.c.b16 %v5277, %v5276
      %v5310 = vpack.c.b16 %v5279, %v5278
      %v5311 = vpack.c.b16 %v5281, %v5280
      %v5312 = vpack.c.b16 %v5283, %v5282
      %v5313 = vpack.c.b16 %v5285, %v5284
      %v5314 = vpack.c.b16 %v5287, %v5286
      %v5315 = vpack.c.b16 %v5289, %v5288
      %v5316 = vpack.c.b16 %v5291, %v5290
      %v5317 = vpack.c.b16 %v5293, %v5292
      %v5318 = vpack.c.b16 %v5295, %v5294
      %v5319 = vpack.c.b16 %v5297, %v5296
      %v5320 = vpack.c.b16 %v5299, %v5298
      %v5321 = vpack.c.b16 %v5301, %v5300
      %v5322 = vpack.c.b16 %v5303, %v5302
      %v5323 = vpack.c.b16 %v5304, %v5304
      %v5324 = vrot.slane %v5305, 3
      %v5325 = vrot.slane %v5306, 3
      %v5326 = vsel %vm1489, %v5324, %v5325
      %v5327 = vrot.slane %v5307, 3
      %v5328 = vsel %vm1489, %v5325, %v5327
      %v5329 = vrot.slane %v5308, 3
      %v5330 = vsel %vm1489, %v5327, %v5329
      %v5331 = vrot.slane %v5309, 3
      %v5332 = vsel %vm1489, %v5329, %v5331
      %v5333 = vrot.slane %v5310, 3
      %v5334 = vsel %vm1489, %v5331, %v5333
      %v5335 = vrot.slane %v5311, 3
      %v5336 = vsel %vm1489, %v5333, %v5335
      %v5337 = vrot.slane %v5312, 3
      %v5338 = vsel %vm1489, %v5335, %v5337
      %v5339 = vrot.slane %v5313, 3
      %v5340 = vsel %vm1489, %v5337, %v5339
      %v5341 = vrot.slane %v5314, 3
      %v5342 = vsel %vm1489, %v5339, %v5341
      %v5343 = vrot.slane %v5315, 3
      %v5344 = vsel %vm1489, %v5341, %v5343
      %v5345 = vrot.slane %v5316, 3
      %v5346 = vsel %vm1489, %v5343, %v5345
      %v5347 = vrot.slane %v5317, 3
      %v5348 = vsel %vm1489, %v5345, %v5347
      %v5349 = vrot.slane %v5318, 3
      %v5350 = vsel %vm1489, %v5347, %v5349
      %v5351 = vrot.slane %v5319, 3
      %v5352 = vsel %vm1489, %v5349, %v5351
      %v5353 = vrot.slane %v5320, 3
      %v5354 = vsel %vm1489, %v5351, %v5353
      %v5355 = vrot.slane %v5321, 3
      %v5356 = vsel %vm1489, %v5353, %v5355
      %v5357 = vrot.slane %v5322, 3
      %v5358 = vsel %vm1489, %v5355, %v5357
      %v5359 = vrot.slane %v5323, 3
      %v5360 = vsel %vm1489, %v5357, %v5359
      %v5395 = vunpack.c.l.b16 %v5215
      %v5396 = vunpack.c.l.b16 %v5216
      %v5397 = vunpack.c.l.b16 %v5217
      %v5398 = vunpack.c.l.b16 %v5218
      %v5399 = vunpack.c.l.b16 %v5219
      %v5400 = vunpack.c.l.b16 %v5220
      %v5401 = vunpack.c.l.b16 %v5221
      %v5402 = vunpack.c.l.b16 %v5222
      %v5403 = vunpack.c.l.b16 %v5223
      %v5404 = vunpack.c.l.b16 %v5224
      %v5405 = vunpack.c.l.b16 %v5225
      %v5406 = vunpack.c.l.b16 %v5226
      %v5407 = vunpack.c.l.b16 %v5227
      %v5408 = vunpack.c.l.b16 %v5228
      %v5409 = vunpack.c.l.b16 %v5229
      %v5410 = vunpack.c.l.b16 %v5230
      %v5411 = vpack.c.b16 %v5396, %v5395
      %v5412 = vpack.c.b16 %v5398, %v5397
      %v5413 = vpack.c.b16 %v5400, %v5399
      %v5414 = vpack.c.b16 %v5402, %v5401
      %v5415 = vpack.c.b16 %v5404, %v5403
      %v5416 = vpack.c.b16 %v5406, %v5405
      %v5417 = vpack.c.b16 %v5408, %v5407
      %v5418 = vpack.c.b16 %v5410, %v5409
      %5427 = vmatpush.bf16.msra.mxu0 %v5418
      %5428 = vmatpush.bf16.msra.mxu0 %v5417
      %5429 = vmatpush.bf16.msra.mxu0 %v5416
      %5430 = vmatpush.bf16.msra.mxu0 %v5415
      %5431 = vmatpush.bf16.msra.mxu0 %v5414
      %5432 = vmatpush.bf16.msra.mxu0 %v5413
      %5433 = vmatpush.bf16.msra.mxu0 %v5412
      %5434 = vmatpush.bf16.msra.mxu0 %v5411
      %5435 = vmatmul.bf16.gmra.mxu0 %v5326
      %v5436 = vpop.f32.mrf.mxu0
      %v5437 = vadd.f32 0.0, %v5436
      %v5438 = vpop.f32.mrf.mxu0
      %v5439 = vadd.f32 0.0, %v5438
      %5440 = vmatmul.bf16.gmra.mxu0 %v5328
      %v5441 = vpop.f32.mrf.mxu0
      %v5442 = vadd.f32 0.0, %v5441
      %v5443 = vpop.f32.mrf.mxu0
      %v5444 = vadd.f32 0.0, %v5443
      %5445 = vmatmul.bf16.gmra.mxu0 %v5330
      %v5446 = vpop.f32.mrf.mxu0
      %v5447 = vadd.f32 0.0, %v5446
      %v5448 = vpop.f32.mrf.mxu0
      %v5449 = vadd.f32 0.0, %v5448
      %5450 = vmatmul.bf16.gmra.mxu0 %v5332
      %v5451 = vpop.f32.mrf.mxu0
      %v5452 = vadd.f32 0.0, %v5451
      %v5453 = vpop.f32.mrf.mxu0
      %v5454 = vadd.f32 0.0, %v5453
      %5455 = vmatmul.bf16.gmra.mxu0 %v5334
      %v5456 = vpop.f32.mrf.mxu0
      %v5457 = vadd.f32 0.0, %v5456
      %v5458 = vpop.f32.mrf.mxu0
      %v5459 = vadd.f32 0.0, %v5458
      %5460 = vmatmul.bf16.gmra.mxu0 %v5336
      %v5461 = vpop.f32.mrf.mxu0
      %v5462 = vadd.f32 0.0, %v5461
      %v5463 = vpop.f32.mrf.mxu0
      %v5464 = vadd.f32 0.0, %v5463
      %5465 = vmatmul.bf16.gmra.mxu0 %v5338
      %v5466 = vpop.f32.mrf.mxu0
      %v5467 = vadd.f32 0.0, %v5466
      %v5468 = vpop.f32.mrf.mxu0
      %v5469 = vadd.f32 0.0, %v5468
      %5470 = vmatmul.bf16.gmra.mxu0 %v5340
      %v5471 = vpop.f32.mrf.mxu0
      %v5472 = vadd.f32 0.0, %v5471
      %v5473 = vpop.f32.mrf.mxu0
      %v5474 = vadd.f32 0.0, %v5473
      %5475 = vmatmul.bf16.gmra.mxu0 %v5342
      %v5476 = vpop.f32.mrf.mxu0
      %v5477 = vadd.f32 0.0, %v5476
      %v5478 = vpop.f32.mrf.mxu0
      %v5479 = vadd.f32 0.0, %v5478
      %5480 = vmatmul.bf16.gmra.mxu0 %v5344
      %v5481 = vpop.f32.mrf.mxu0
      %v5482 = vadd.f32 0.0, %v5481
      %v5483 = vpop.f32.mrf.mxu0
      %v5484 = vadd.f32 0.0, %v5483
      %5485 = vmatmul.bf16.gmra.mxu0 %v5346
      %v5486 = vpop.f32.mrf.mxu0
      %v5487 = vadd.f32 0.0, %v5486
      %v5488 = vpop.f32.mrf.mxu0
      %v5489 = vadd.f32 0.0, %v5488
      %5490 = vmatmul.bf16.gmra.mxu0 %v5348
      %v5491 = vpop.f32.mrf.mxu0
      %v5492 = vadd.f32 0.0, %v5491
      %v5493 = vpop.f32.mrf.mxu0
      %v5494 = vadd.f32 0.0, %v5493
      %5495 = vmatmul.bf16.gmra.mxu0 %v5350
      %v5496 = vpop.f32.mrf.mxu0
      %v5497 = vadd.f32 0.0, %v5496
      %v5498 = vpop.f32.mrf.mxu0
      %v5499 = vadd.f32 0.0, %v5498
      %5500 = vmatmul.bf16.gmra.mxu0 %v5352
      %v5501 = vpop.f32.mrf.mxu0
      %v5502 = vadd.f32 0.0, %v5501
      %v5503 = vpop.f32.mrf.mxu0
      %v5504 = vadd.f32 0.0, %v5503
      %5505 = vmatmul.bf16.gmra.mxu0 %v5354
      %v5506 = vpop.f32.mrf.mxu0
      %v5507 = vadd.f32 0.0, %v5506
      %v5508 = vpop.f32.mrf.mxu0
      %v5509 = vadd.f32 0.0, %v5508
      %5510 = vmatmul.bf16.gmra.mxu0 %v5356
      %v5511 = vpop.f32.mrf.mxu0
      %v5512 = vadd.f32 0.0, %v5511
      %v5513 = vpop.f32.mrf.mxu0
      %v5514 = vadd.f32 0.0, %v5513
      %5515 = vmatmul.bf16.gmra.mxu0 %v5358
      %v5516 = vpop.f32.mrf.mxu0
      %v5517 = vadd.f32 0.0, %v5516
      %v5518 = vpop.f32.mrf.mxu0
      %v5519 = vadd.f32 0.0, %v5518
      %5520 = vmatmul.bf16.gmra.mxu0 %v5360
      %v5521 = vpop.f32.mrf.mxu0
      %v5522 = vadd.f32 0.0, %v5521
      %v5523 = vpop.f32.mrf.mxu0
      %v5524 = vadd.f32 0.0, %v5523
      %5525 = vdwg.mxu0
      %v5527 = vunpack.c.l.b16 %v5160
      %v5528 = vpack.c.b16 %v5269, %v5527
      %v5530 = vshrl.u32 %v5528, 16
      %v5532 = vrot.slane %v5530, 2
      %v5533 = vshll.u32 %v5528, 16
      %v5535 = vrot.slane %v5533, 3
      %v5536 = vor.u32 %v5532, %v5535
      %v5538 = vshrl.u32 %v5306, 16
      %v5540 = vrot.slane %v5538, 2
      %v5541 = vshll.u32 %v5306, 16
      %v5543 = vrot.slane %v5541, 3
      %v5544 = vor.u32 %v5540, %v5543
      %v5545 = vsel %vm1695, %v5536, %v5544
      %v5547 = vshrl.u32 %v5307, 16
      %v5549 = vrot.slane %v5547, 2
      %v5550 = vshll.u32 %v5307, 16
      %v5552 = vrot.slane %v5550, 3
      %v5553 = vor.u32 %v5549, %v5552
      %v5554 = vsel %vm1695, %v5544, %v5553
      %v5556 = vshrl.u32 %v5308, 16
      %v5558 = vrot.slane %v5556, 2
      %v5559 = vshll.u32 %v5308, 16
      %v5561 = vrot.slane %v5559, 3
      %v5562 = vor.u32 %v5558, %v5561
      %v5563 = vsel %vm1695, %v5553, %v5562
      %v5565 = vshrl.u32 %v5309, 16
      %v5567 = vrot.slane %v5565, 2
      %v5568 = vshll.u32 %v5309, 16
      %v5570 = vrot.slane %v5568, 3
      %v5571 = vor.u32 %v5567, %v5570
      %v5572 = vsel %vm1695, %v5562, %v5571
      %v5574 = vshrl.u32 %v5310, 16
      %v5576 = vrot.slane %v5574, 2
      %v5577 = vshll.u32 %v5310, 16
      %v5579 = vrot.slane %v5577, 3
      %v5580 = vor.u32 %v5576, %v5579
      %v5581 = vsel %vm1695, %v5571, %v5580
      %v5583 = vshrl.u32 %v5311, 16
      %v5585 = vrot.slane %v5583, 2
      %v5586 = vshll.u32 %v5311, 16
      %v5588 = vrot.slane %v5586, 3
      %v5589 = vor.u32 %v5585, %v5588
      %v5590 = vsel %vm1695, %v5580, %v5589
      %v5592 = vshrl.u32 %v5312, 16
      %v5594 = vrot.slane %v5592, 2
      %v5595 = vshll.u32 %v5312, 16
      %v5597 = vrot.slane %v5595, 3
      %v5598 = vor.u32 %v5594, %v5597
      %v5599 = vsel %vm1695, %v5589, %v5598
      %v5601 = vshrl.u32 %v5313, 16
      %v5603 = vrot.slane %v5601, 2
      %v5604 = vshll.u32 %v5313, 16
      %v5606 = vrot.slane %v5604, 3
      %v5607 = vor.u32 %v5603, %v5606
      %v5608 = vsel %vm1695, %v5598, %v5607
      %v5610 = vshrl.u32 %v5314, 16
      %v5612 = vrot.slane %v5610, 2
      %v5613 = vshll.u32 %v5314, 16
      %v5615 = vrot.slane %v5613, 3
      %v5616 = vor.u32 %v5612, %v5615
      %v5617 = vsel %vm1695, %v5607, %v5616
      %v5619 = vshrl.u32 %v5315, 16
      %v5621 = vrot.slane %v5619, 2
      %v5622 = vshll.u32 %v5315, 16
      %v5624 = vrot.slane %v5622, 3
      %v5625 = vor.u32 %v5621, %v5624
      %v5626 = vsel %vm1695, %v5616, %v5625
      %v5628 = vshrl.u32 %v5316, 16
      %v5630 = vrot.slane %v5628, 2
      %v5631 = vshll.u32 %v5316, 16
      %v5633 = vrot.slane %v5631, 3
      %v5634 = vor.u32 %v5630, %v5633
      %v5635 = vsel %vm1695, %v5625, %v5634
      %v5637 = vshrl.u32 %v5317, 16
      %v5639 = vrot.slane %v5637, 2
      %v5640 = vshll.u32 %v5317, 16
      %v5642 = vrot.slane %v5640, 3
      %v5643 = vor.u32 %v5639, %v5642
      %v5644 = vsel %vm1695, %v5634, %v5643
      %v5646 = vshrl.u32 %v5318, 16
      %v5648 = vrot.slane %v5646, 2
      %v5649 = vshll.u32 %v5318, 16
      %v5651 = vrot.slane %v5649, 3
      %v5652 = vor.u32 %v5648, %v5651
      %v5653 = vsel %vm1695, %v5643, %v5652
      %v5655 = vshrl.u32 %v5319, 16
      %v5657 = vrot.slane %v5655, 2
      %v5658 = vshll.u32 %v5319, 16
      %v5660 = vrot.slane %v5658, 3
      %v5661 = vor.u32 %v5657, %v5660
      %v5662 = vsel %vm1695, %v5652, %v5661
      %v5664 = vshrl.u32 %v5320, 16
      %v5666 = vrot.slane %v5664, 2
      %v5667 = vshll.u32 %v5320, 16
      %v5669 = vrot.slane %v5667, 3
      %v5670 = vor.u32 %v5666, %v5669
      %v5671 = vsel %vm1695, %v5661, %v5670
      %v5673 = vshrl.u32 %v5321, 16
      %v5675 = vrot.slane %v5673, 2
      %v5676 = vshll.u32 %v5321, 16
      %v5678 = vrot.slane %v5676, 3
      %v5679 = vor.u32 %v5675, %v5678
      %v5680 = vsel %vm1695, %v5670, %v5679
      %v5682 = vshrl.u32 %v5322, 16
      %v5684 = vrot.slane %v5682, 2
      %v5685 = vshll.u32 %v5322, 16
      %v5687 = vrot.slane %v5685, 3
      %v5688 = vor.u32 %v5684, %v5687
      %v5689 = vsel %vm1695, %v5679, %v5688
      %v5691 = vshrl.u32 %v5323, 16
      %v5693 = vrot.slane %v5691, 2
      %v5694 = vshll.u32 %v5323, 16
      %v5696 = vrot.slane %v5694, 3
      %v5697 = vor.u32 %v5693, %v5696
      %v5698 = vsel %vm1695, %v5688, %v5697
      %v5733 = vunpack.c.l.b16 %v5197
      %v5734 = vunpack.c.l.b16 %v5198
      %v5735 = vunpack.c.l.b16 %v5199
      %v5736 = vunpack.c.l.b16 %v5200
      %v5737 = vunpack.c.l.b16 %v5201
      %v5738 = vunpack.c.l.b16 %v5202
      %v5739 = vunpack.c.l.b16 %v5203
      %v5740 = vunpack.c.l.b16 %v5204
      %v5741 = vunpack.c.l.b16 %v5205
      %v5742 = vunpack.c.l.b16 %v5206
      %v5743 = vunpack.c.l.b16 %v5207
      %v5744 = vunpack.c.l.b16 %v5208
      %v5745 = vunpack.c.l.b16 %v5209
      %v5746 = vunpack.c.l.b16 %v5210
      %v5747 = vunpack.c.l.b16 %v5211
      %v5748 = vunpack.c.l.b16 %v5212
      %v5749 = vpack.c.b16 %v5734, %v5733
      %v5750 = vpack.c.b16 %v5736, %v5735
      %v5751 = vpack.c.b16 %v5738, %v5737
      %v5752 = vpack.c.b16 %v5740, %v5739
      %v5753 = vpack.c.b16 %v5742, %v5741
      %v5754 = vpack.c.b16 %v5744, %v5743
      %v5755 = vpack.c.b16 %v5746, %v5745
      %v5756 = vpack.c.b16 %v5748, %v5747
      %5765 = vmatpush.bf16.msra.mxu0 %v5756
      %5766 = vmatpush.bf16.msra.mxu0 %v5755
      %5767 = vmatpush.bf16.msra.mxu0 %v5754
      %5768 = vmatpush.bf16.msra.mxu0 %v5753
      %5769 = vmatpush.bf16.msra.mxu0 %v5752
      %5770 = vmatpush.bf16.msra.mxu0 %v5751
      %5771 = vmatpush.bf16.msra.mxu0 %v5750
      %5772 = vmatpush.bf16.msra.mxu0 %v5749
      %5773 = vmatmul.bf16.gmra.mxu0 %v5545
      %v5774 = vpop.f32.mrf.mxu0
      %v5775 = vadd.f32 %v5437, %v5774
      %v5776 = vpop.f32.mrf.mxu0
      %v5777 = vadd.f32 %v5439, %v5776
      %5778 = vmatmul.bf16.gmra.mxu0 %v5554
      %v5779 = vpop.f32.mrf.mxu0
      %v5780 = vadd.f32 %v5442, %v5779
      %v5781 = vpop.f32.mrf.mxu0
      %v5782 = vadd.f32 %v5444, %v5781
      %5783 = vmatmul.bf16.gmra.mxu0 %v5563
      %v5784 = vpop.f32.mrf.mxu0
      %v5785 = vadd.f32 %v5447, %v5784
      %v5786 = vpop.f32.mrf.mxu0
      %v5787 = vadd.f32 %v5449, %v5786
      %5788 = vmatmul.bf16.gmra.mxu0 %v5572
      %v5789 = vpop.f32.mrf.mxu0
      %v5790 = vadd.f32 %v5452, %v5789
      %v5791 = vpop.f32.mrf.mxu0
      %v5792 = vadd.f32 %v5454, %v5791
      %5793 = vmatmul.bf16.gmra.mxu0 %v5581
      %v5794 = vpop.f32.mrf.mxu0
      %v5795 = vadd.f32 %v5457, %v5794
      %v5796 = vpop.f32.mrf.mxu0
      %v5797 = vadd.f32 %v5459, %v5796
      %5798 = vmatmul.bf16.gmra.mxu0 %v5590
      %v5799 = vpop.f32.mrf.mxu0
      %v5800 = vadd.f32 %v5462, %v5799
      %v5801 = vpop.f32.mrf.mxu0
      %v5802 = vadd.f32 %v5464, %v5801
      %5803 = vmatmul.bf16.gmra.mxu0 %v5599
      %v5804 = vpop.f32.mrf.mxu0
      %v5805 = vadd.f32 %v5467, %v5804
      %v5806 = vpop.f32.mrf.mxu0
      %v5807 = vadd.f32 %v5469, %v5806
      %5808 = vmatmul.bf16.gmra.mxu0 %v5608
      %v5809 = vpop.f32.mrf.mxu0
      %v5810 = vadd.f32 %v5472, %v5809
      %v5811 = vpop.f32.mrf.mxu0
      %v5812 = vadd.f32 %v5474, %v5811
      %5813 = vmatmul.bf16.gmra.mxu0 %v5617
      %v5814 = vpop.f32.mrf.mxu0
      %v5815 = vadd.f32 %v5477, %v5814
      %v5816 = vpop.f32.mrf.mxu0
      %v5817 = vadd.f32 %v5479, %v5816
      %5818 = vmatmul.bf16.gmra.mxu0 %v5626
      %v5819 = vpop.f32.mrf.mxu0
      %v5820 = vadd.f32 %v5482, %v5819
      %v5821 = vpop.f32.mrf.mxu0
      %v5822 = vadd.f32 %v5484, %v5821
      %5823 = vmatmul.bf16.gmra.mxu0 %v5635
      %v5824 = vpop.f32.mrf.mxu0
      %v5825 = vadd.f32 %v5487, %v5824
      %v5826 = vpop.f32.mrf.mxu0
      %v5827 = vadd.f32 %v5489, %v5826
      %5828 = vmatmul.bf16.gmra.mxu0 %v5644
      %v5829 = vpop.f32.mrf.mxu0
      %v5830 = vadd.f32 %v5492, %v5829
      %v5831 = vpop.f32.mrf.mxu0
      %v5832 = vadd.f32 %v5494, %v5831
      %5833 = vmatmul.bf16.gmra.mxu0 %v5653
      %v5834 = vpop.f32.mrf.mxu0
      %v5835 = vadd.f32 %v5497, %v5834
      %v5836 = vpop.f32.mrf.mxu0
      %v5837 = vadd.f32 %v5499, %v5836
      %5838 = vmatmul.bf16.gmra.mxu0 %v5662
      %v5839 = vpop.f32.mrf.mxu0
      %v5840 = vadd.f32 %v5502, %v5839
      %v5841 = vpop.f32.mrf.mxu0
      %v5842 = vadd.f32 %v5504, %v5841
      %5843 = vmatmul.bf16.gmra.mxu0 %v5671
      %v5844 = vpop.f32.mrf.mxu0
      %v5845 = vadd.f32 %v5507, %v5844
      %v5846 = vpop.f32.mrf.mxu0
      %v5847 = vadd.f32 %v5509, %v5846
      %5848 = vmatmul.bf16.gmra.mxu0 %v5680
      %v5849 = vpop.f32.mrf.mxu0
      %v5850 = vadd.f32 %v5512, %v5849
      %v5851 = vpop.f32.mrf.mxu0
      %v5852 = vadd.f32 %v5514, %v5851
      %5853 = vmatmul.bf16.gmra.mxu0 %v5689
      %v5854 = vpop.f32.mrf.mxu0
      %v5855 = vadd.f32 %v5517, %v5854
      %v5856 = vpop.f32.mrf.mxu0
      %v5857 = vadd.f32 %v5519, %v5856
      %5858 = vmatmul.bf16.gmra.mxu0 %v5698
      %v5859 = vpop.f32.mrf.mxu0
      %v5860 = vadd.f32 %v5522, %v5859
      %v5861 = vpop.f32.mrf.mxu0
      %v5862 = vadd.f32 %v5524, %v5861
      %5863 = vdwg.mxu0
      %v5864 = vld [vmem:[#allocation3 + $0x94] sm:$0xf]
      %s5865 = scalar_lea.vmem %s6, 128
      %v5866 = vld [vmem:[%s5865] sm:$0xf]
      %v5867 = vld [vmem:[%s5865 + $0x4] sm:$0xf]
      %v5868 = vld [vmem:[%s5865 + $0x8] sm:$0xf]
      %v5869 = vld [vmem:[%s5865 + $0xc] sm:$0xf]
      %v5870 = vld [vmem:[%s5865 + $0x10] sm:$0xf]
      %v5871 = vld [vmem:[%s5865 + $0x14] sm:$0xf]
      %v5872 = vld [vmem:[%s5865 + $0x18] sm:$0xf]
      %v5873 = vld [vmem:[%s5865 + $0x1c] sm:$0xf]
      %v5874 = vld [vmem:[%s5865 + $0x20] sm:$0xf]
      %v5875 = vld [vmem:[%s5865 + $0x24] sm:$0xf]
      %v5876 = vld [vmem:[%s5865 + $0x28] sm:$0xf]
      %v5877 = vld [vmem:[%s5865 + $0x2c] sm:$0xf]
      %v5878 = vld [vmem:[%s5865 + $0x30] sm:$0xf]
      %v5879 = vld [vmem:[%s5865 + $0x34] sm:$0xf]
      %v5880 = vld [vmem:[%s5865 + $0x38] sm:$0xf]
      %v5881 = vld [vmem:[%s5865 + $0x3c] sm:$0xf]
      %v5883 = vunpack.c.l.b16 %v5864
      %v5884 = vpack.c.b16 %v5883, %v5883
      %v5886 = vshrl.u32 %v5305, 16
      %v5888 = vrot.slane %v5886, 3
      %v5889 = vshll.u32 %v5305, 16
      %v5891 = vrot.slane %v5889, 4
      %v5892 = vor.u32 %v5888, %v5891
      %v5893 = vrot.slane %v5538, 3
      %v5894 = vrot.slane %v5541, 4
      %v5895 = vor.u32 %v5893, %v5894
      %v5896 = vsel %vm2052, %v5892, %v5895
      %v5897 = vrot.slane %v5547, 3
      %v5898 = vrot.slane %v5550, 4
      %v5899 = vor.u32 %v5897, %v5898
      %v5900 = vsel %vm2052, %v5895, %v5899
      %v5901 = vrot.slane %v5556, 3
      %v5902 = vrot.slane %v5559, 4
      %v5903 = vor.u32 %v5901, %v5902
      %v5904 = vsel %vm2052, %v5899, %v5903
      %v5905 = vrot.slane %v5565, 3
      %v5906 = vrot.slane %v5568, 4
      %v5907 = vor.u32 %v5905, %v5906
      %v5908 = vsel %vm2052, %v5903, %v5907
      %v5909 = vrot.slane %v5574, 3
      %v5910 = vrot.slane %v5577, 4
      %v5911 = vor.u32 %v5909, %v5910
      %v5912 = vsel %vm2052, %v5907, %v5911
      %v5913 = vrot.slane %v5583, 3
      %v5914 = vrot.slane %v5586, 4
      %v5915 = vor.u32 %v5913, %v5914
      %v5916 = vsel %vm2052, %v5911, %v5915
      %v5917 = vrot.slane %v5592, 3
      %v5918 = vrot.slane %v5595, 4
      %v5919 = vor.u32 %v5917, %v5918
      %v5920 = vsel %vm2052, %v5915, %v5919
      %v5921 = vrot.slane %v5601, 3
      %v5922 = vrot.slane %v5604, 4
      %v5923 = vor.u32 %v5921, %v5922
      %v5924 = vsel %vm2052, %v5919, %v5923
      %v5925 = vrot.slane %v5610, 3
      %v5926 = vrot.slane %v5613, 4
      %v5927 = vor.u32 %v5925, %v5926
      %v5928 = vsel %vm2052, %v5923, %v5927
      %v5929 = vrot.slane %v5619, 3
      %v5930 = vrot.slane %v5622, 4
      %v5931 = vor.u32 %v5929, %v5930
      %v5932 = vsel %vm2052, %v5927, %v5931
      %v5933 = vrot.slane %v5628, 3
      %v5934 = vrot.slane %v5631, 4
      %v5935 = vor.u32 %v5933, %v5934
      %v5936 = vsel %vm2052, %v5931, %v5935
      %v5937 = vrot.slane %v5637, 3
      %v5938 = vrot.slane %v5640, 4
      %v5939 = vor.u32 %v5937, %v5938
      %v5940 = vsel %vm2052, %v5935, %v5939
      %v5941 = vrot.slane %v5646, 3
      %v5942 = vrot.slane %v5649, 4
      %v5943 = vor.u32 %v5941, %v5942
      %v5944 = vsel %vm2052, %v5939, %v5943
      %v5945 = vrot.slane %v5655, 3
      %v5946 = vrot.slane %v5658, 4
      %v5947 = vor.u32 %v5945, %v5946
      %v5948 = vsel %vm2052, %v5943, %v5947
      %v5949 = vrot.slane %v5664, 3
      %v5950 = vrot.slane %v5667, 4
      %v5951 = vor.u32 %v5949, %v5950
      %v5952 = vsel %vm2052, %v5947, %v5951
      %v5953 = vrot.slane %v5673, 3
      %v5954 = vrot.slane %v5676, 4
      %v5955 = vor.u32 %v5953, %v5954
      %v5956 = vsel %vm2052, %v5951, %v5955
      %v5957 = vrot.slane %v5682, 3
      %v5958 = vrot.slane %v5685, 4
      %v5959 = vor.u32 %v5957, %v5958
      %v5960 = vsel %vm2052, %v5955, %v5959
      %v5962 = vshrl.u32 %v5884, 16
      %v5964 = vrot.slane %v5962, 3
      %v5965 = vshll.u32 %v5884, 16
      %v5967 = vrot.slane %v5965, 4
      %v5968 = vor.u32 %v5964, %v5967
      %v5969 = vsel %vm2052, %v5959, %v5968
      %v6004 = vunpack.c.l.b16 %v5866
      %v6005 = vunpack.c.l.b16 %v5867
      %v6006 = vunpack.c.l.b16 %v5868
      %v6007 = vunpack.c.l.b16 %v5869
      %v6008 = vunpack.c.l.b16 %v5870
      %v6009 = vunpack.c.l.b16 %v5871
      %v6010 = vunpack.c.l.b16 %v5872
      %v6011 = vunpack.c.l.b16 %v5873
      %v6012 = vunpack.c.l.b16 %v5874
      %v6013 = vunpack.c.l.b16 %v5875
      %v6014 = vunpack.c.l.b16 %v5876
      %v6015 = vunpack.c.l.b16 %v5877
      %v6016 = vunpack.c.l.b16 %v5878
      %v6017 = vunpack.c.l.b16 %v5879
      %v6018 = vunpack.c.l.b16 %v5880
      %v6019 = vunpack.c.l.b16 %v5881
      %v6020 = vpack.c.b16 %v6005, %v6004
      %v6021 = vpack.c.b16 %v6007, %v6006
      %v6022 = vpack.c.b16 %v6009, %v6008
      %v6023 = vpack.c.b16 %v6011, %v6010
      %v6024 = vpack.c.b16 %v6013, %v6012
      %v6025 = vpack.c.b16 %v6015, %v6014
      %v6026 = vpack.c.b16 %v6017, %v6016
      %v6027 = vpack.c.b16 %v6019, %v6018
      %6036 = vmatpush.bf16.msra.mxu0 %v6027
      %6037 = vmatpush.bf16.msra.mxu0 %v6026
      %6038 = vmatpush.bf16.msra.mxu0 %v6025
      %6039 = vmatpush.bf16.msra.mxu0 %v6024
      %6040 = vmatpush.bf16.msra.mxu0 %v6023
      %6041 = vmatpush.bf16.msra.mxu0 %v6022
      %6042 = vmatpush.bf16.msra.mxu0 %v6021
      %6043 = vmatpush.bf16.msra.mxu0 %v6020
      %6044 = vmatmul.bf16.gmra.mxu0 %v5896
      %v6045 = vpop.f32.mrf.mxu0
      %v6046 = vadd.f32 0.0, %v6045
      %v6047 = vpop.f32.mrf.mxu0
      %v6048 = vadd.f32 0.0, %v6047
      %6049 = vmatmul.bf16.gmra.mxu0 %v5900
      %v6050 = vpop.f32.mrf.mxu0
      %v6051 = vadd.f32 0.0, %v6050
      %v6052 = vpop.f32.mrf.mxu0
      %v6053 = vadd.f32 0.0, %v6052
      %6054 = vmatmul.bf16.gmra.mxu0 %v5904
      %v6055 = vpop.f32.mrf.mxu0
      %v6056 = vadd.f32 0.0, %v6055
      %v6057 = vpop.f32.mrf.mxu0
      %v6058 = vadd.f32 0.0, %v6057
      %6059 = vmatmul.bf16.gmra.mxu0 %v5908
      %v6060 = vpop.f32.mrf.mxu0
      %v6061 = vadd.f32 0.0, %v6060
      %v6062 = vpop.f32.mrf.mxu0
      %v6063 = vadd.f32 0.0, %v6062
      %6064 = vmatmul.bf16.gmra.mxu0 %v5912
      %v6065 = vpop.f32.mrf.mxu0
      %v6066 = vadd.f32 0.0, %v6065
      %v6067 = vpop.f32.mrf.mxu0
      %v6068 = vadd.f32 0.0, %v6067
      %6069 = vmatmul.bf16.gmra.mxu0 %v5916
      %v6070 = vpop.f32.mrf.mxu0
      %v6071 = vadd.f32 0.0, %v6070
      %v6072 = vpop.f32.mrf.mxu0
      %v6073 = vadd.f32 0.0, %v6072
      %6074 = vmatmul.bf16.gmra.mxu0 %v5920
      %v6075 = vpop.f32.mrf.mxu0
      %v6076 = vadd.f32 0.0, %v6075
      %v6077 = vpop.f32.mrf.mxu0
      %v6078 = vadd.f32 0.0, %v6077
      %6079 = vmatmul.bf16.gmra.mxu0 %v5924
      %v6080 = vpop.f32.mrf.mxu0
      %v6081 = vadd.f32 0.0, %v6080
      %v6082 = vpop.f32.mrf.mxu0
      %v6083 = vadd.f32 0.0, %v6082
      %6084 = vmatmul.bf16.gmra.mxu0 %v5928
      %v6085 = vpop.f32.mrf.mxu0
      %v6086 = vadd.f32 0.0, %v6085
      %v6087 = vpop.f32.mrf.mxu0
      %v6088 = vadd.f32 0.0, %v6087
      %6089 = vmatmul.bf16.gmra.mxu0 %v5932
      %v6090 = vpop.f32.mrf.mxu0
      %v6091 = vadd.f32 0.0, %v6090
      %v6092 = vpop.f32.mrf.mxu0
      %v6093 = vadd.f32 0.0, %v6092
      %6094 = vmatmul.bf16.gmra.mxu0 %v5936
      %v6095 = vpop.f32.mrf.mxu0
      %v6096 = vadd.f32 0.0, %v6095
      %v6097 = vpop.f32.mrf.mxu0
      %v6098 = vadd.f32 0.0, %v6097
      %6099 = vmatmul.bf16.gmra.mxu0 %v5940
      %v6100 = vpop.f32.mrf.mxu0
      %v6101 = vadd.f32 0.0, %v6100
      %v6102 = vpop.f32.mrf.mxu0
      %v6103 = vadd.f32 0.0, %v6102
      %6104 = vmatmul.bf16.gmra.mxu0 %v5944
      %v6105 = vpop.f32.mrf.mxu0
      %v6106 = vadd.f32 0.0, %v6105
      %v6107 = vpop.f32.mrf.mxu0
      %v6108 = vadd.f32 0.0, %v6107
      %6109 = vmatmul.bf16.gmra.mxu0 %v5948
      %v6110 = vpop.f32.mrf.mxu0
      %v6111 = vadd.f32 0.0, %v6110
      %v6112 = vpop.f32.mrf.mxu0
      %v6113 = vadd.f32 0.0, %v6112
      %6114 = vmatmul.bf16.gmra.mxu0 %v5952
      %v6115 = vpop.f32.mrf.mxu0
      %v6116 = vadd.f32 0.0, %v6115
      %v6117 = vpop.f32.mrf.mxu0
      %v6118 = vadd.f32 0.0, %v6117
      %6119 = vmatmul.bf16.gmra.mxu0 %v5956
      %v6120 = vpop.f32.mrf.mxu0
      %v6121 = vadd.f32 0.0, %v6120
      %v6122 = vpop.f32.mrf.mxu0
      %v6123 = vadd.f32 0.0, %v6122
      %6124 = vmatmul.bf16.gmra.mxu0 %v5960
      %v6125 = vpop.f32.mrf.mxu0
      %v6126 = vadd.f32 0.0, %v6125
      %v6127 = vpop.f32.mrf.mxu0
      %v6128 = vadd.f32 0.0, %v6127
      %6129 = vmatmul.bf16.gmra.mxu0 %v5969
      %v6130 = vpop.f32.mrf.mxu0
      %v6131 = vadd.f32 0.0, %v6130
      %v6132 = vpop.f32.mrf.mxu0
      %v6133 = vadd.f32 0.0, %v6132
      %6134 = vdwg.mxu0
      %v6135 = vadd.f32 %v5775, %v6046
      %v6136 = vadd.f32 %v5777, %v6048
      %v6137 = vadd.f32 %v5780, %v6051
      %v6138 = vadd.f32 %v5782, %v6053
      %v6139 = vadd.f32 %v5785, %v6056
      %v6140 = vadd.f32 %v5787, %v6058
      %v6141 = vadd.f32 %v5790, %v6061
      %v6142 = vadd.f32 %v5792, %v6063
      %v6143 = vadd.f32 %v5795, %v6066
      %v6144 = vadd.f32 %v5797, %v6068
      %v6145 = vadd.f32 %v5800, %v6071
      %v6146 = vadd.f32 %v5802, %v6073
      %v6147 = vadd.f32 %v5805, %v6076
      %v6148 = vadd.f32 %v5807, %v6078
      %v6149 = vadd.f32 %v5810, %v6081
      %v6150 = vadd.f32 %v5812, %v6083
      %v6151 = vadd.f32 %v5815, %v6086
      %v6152 = vadd.f32 %v5817, %v6088
      %v6153 = vadd.f32 %v5820, %v6091
      %v6154 = vadd.f32 %v5822, %v6093
      %v6155 = vadd.f32 %v5825, %v6096
      %v6156 = vadd.f32 %v5827, %v6098
      %v6157 = vadd.f32 %v5830, %v6101
      %v6158 = vadd.f32 %v5832, %v6103
      %v6159 = vadd.f32 %v5835, %v6106
      %v6160 = vadd.f32 %v5837, %v6108
      %v6161 = vadd.f32 %v5840, %v6111
      %v6162 = vadd.f32 %v5842, %v6113
      %v6163 = vadd.f32 %v5845, %v6116
      %v6164 = vadd.f32 %v5847, %v6118
      %v6165 = vadd.f32 %v5850, %v6121
      %v6166 = vadd.f32 %v5852, %v6123
      %v6167 = vadd.f32 %v5855, %v6126
      %v6168 = vadd.f32 %v5857, %v6128
      %v6169 = vadd.f32 %v5860, %v6131
      %v6170 = vadd.f32 %v5862, %v6133
      %v6171 = vld [vmem:[#allocation3 + $0xc] sm:$0x8]
      %v6172 = vld [vmem:[#allocation3 + $0x10] sm:$0xf]
      %v6173 = vld [vmem:[#allocation3 + $0x14] sm:$0xf]
      %v6174 = vld [vmem:[#allocation3 + $0x18] sm:$0xf]
      %v6175 = vld [vmem:[#allocation3 + $0x1c] sm:$0xf]
      %v6176 = vld [vmem:[#allocation3 + $0x20] sm:$0xf]
      %v6177 = vld [vmem:[#allocation3 + $0x24] sm:$0xf]
      %v6178 = vld [vmem:[#allocation3 + $0x28] sm:$0xf]
      %v6179 = vld [vmem:[#allocation3 + $0x2c] sm:$0xf]
      %v6180 = vld [vmem:[#allocation3 + $0x30] sm:$0xf]
      %v6181 = vld [vmem:[#allocation3 + $0x34] sm:$0xf]
      %v6182 = vld [vmem:[#allocation3 + $0x38] sm:$0xf]
      %v6183 = vld [vmem:[#allocation3 + $0x3c] sm:$0xf]
      %v6184 = vld [vmem:[#allocation3 + $0x40] sm:$0xf]
      %v6185 = vld [vmem:[#allocation3 + $0x44] sm:$0xf]
      %v6186 = vld [vmem:[#allocation3 + $0x48] sm:$0xf]
      %v6187 = vld [vmem:[#allocation3 + $0x4c] sm:$0xf]
      %v6188 = vld [vmem:[#allocation3 + $0x50] sm:$0xf]
      %v6189 = vld [vmem:[#allocation3 + $0x54] sm:$0xf]
      %v6190 = vld [vmem:[#allocation3 + $0x58] sm:$0xf]
      %v6191 = vld [vmem:[#allocation3 + $0x5c] sm:$0xf]
      %v6192 = vld [vmem:[#allocation3 + $0x60] sm:$0xf]
      %v6193 = vld [vmem:[#allocation3 + $0x64] sm:$0xf]
      %v6194 = vld [vmem:[#allocation3 + $0x68] sm:$0xf]
      %v6195 = vld [vmem:[#allocation3 + $0x6c] sm:$0xf]
      %v6196 = vld [vmem:[#allocation3 + $0x70] sm:$0xf]
      %v6197 = vld [vmem:[#allocation3 + $0x74] sm:$0xf]
      %v6198 = vld [vmem:[#allocation3 + $0x78] sm:$0xf]
      %v6199 = vld [vmem:[#allocation3 + $0x7c] sm:$0xf]
      %v6200 = vld [vmem:[#allocation3 + $0x80] sm:$0xf]
      %v6201 = vld [vmem:[#allocation3 + $0x84] sm:$0xf]
      %v6202 = vld [vmem:[#allocation3 + $0x88] sm:$0xf]
      %v6203 = vld [vmem:[#allocation3 + $0x8c] sm:$0xf]
      %v6204 = vld [vmem:[#allocation3 + $0x90] sm:$0xf]
      %v6205 = vld [vmem:[#allocation3 + $0x94] sm:$0xf]
      %v6206 = vld [vmem:[#allocation3 + $0x98] sm:$0xf]
      %v6207 = vld [vmem:[#allocation3 + $0x9c] sm:$0xf]
      %s6208 = scalar_lea.vmem %s6, 192
      %v6209 = vld [vmem:[%s6208] sm:$0xf]
      %v6210 = vld [vmem:[%s6208 + $0x4] sm:$0xf]
      %v6211 = vld [vmem:[%s6208 + $0x8] sm:$0xf]
      %v6212 = vld [vmem:[%s6208 + $0xc] sm:$0xf]
      %v6213 = vld [vmem:[%s6208 + $0x10] sm:$0xf]
      %v6214 = vld [vmem:[%s6208 + $0x14] sm:$0xf]
      %v6215 = vld [vmem:[%s6208 + $0x18] sm:$0xf]
      %v6216 = vld [vmem:[%s6208 + $0x1c] sm:$0xf]
      %v6217 = vld [vmem:[%s6208 + $0x20] sm:$0xf]
      %v6218 = vld [vmem:[%s6208 + $0x24] sm:$0xf]
      %v6219 = vld [vmem:[%s6208 + $0x28] sm:$0xf]
      %v6220 = vld [vmem:[%s6208 + $0x2c] sm:$0xf]
      %v6221 = vld [vmem:[%s6208 + $0x30] sm:$0xf]
      %v6222 = vld [vmem:[%s6208 + $0x34] sm:$0xf]
      %v6223 = vld [vmem:[%s6208 + $0x38] sm:$0xf]
      %v6224 = vld [vmem:[%s6208 + $0x3c] sm:$0xf]
      %v6262 = vunpack.c.l.b16 %v6171
      %v6263 = vunpack.c.l.b16 %v6172
      %v6264 = vunpack.c.l.b16 %v6173
      %v6265 = vunpack.c.l.b16 %v6174
      %v6266 = vunpack.c.l.b16 %v6175
      %v6267 = vunpack.c.l.b16 %v6176
      %v6268 = vunpack.c.l.b16 %v6177
      %v6269 = vunpack.c.l.b16 %v6178
      %v6270 = vunpack.c.l.b16 %v6179
      %v6271 = vunpack.c.l.b16 %v6180
      %v6272 = vunpack.c.l.b16 %v6181
      %v6273 = vunpack.c.l.b16 %v6182
      %v6274 = vunpack.c.l.b16 %v6183
      %v6275 = vunpack.c.l.b16 %v6184
      %v6276 = vunpack.c.l.b16 %v6185
      %v6277 = vunpack.c.l.b16 %v6186
      %v6278 = vunpack.c.l.b16 %v6187
      %v6279 = vunpack.c.l.b16 %v6188
      %v6280 = vunpack.c.l.b16 %v6189
      %v6281 = vunpack.c.l.b16 %v6190
      %v6282 = vunpack.c.l.b16 %v6191
      %v6283 = vunpack.c.l.b16 %v6192
      %v6284 = vunpack.c.l.b16 %v6193
      %v6285 = vunpack.c.l.b16 %v6194
      %v6286 = vunpack.c.l.b16 %v6195
      %v6287 = vunpack.c.l.b16 %v6196
      %v6288 = vunpack.c.l.b16 %v6197
      %v6289 = vunpack.c.l.b16 %v6198
      %v6290 = vunpack.c.l.b16 %v6199
      %v6291 = vunpack.c.l.b16 %v6200
      %v6292 = vunpack.c.l.b16 %v6201
      %v6293 = vunpack.c.l.b16 %v6202
      %v6294 = vunpack.c.l.b16 %v6203
      %v6295 = vunpack.c.l.b16 %v6204
      %v6296 = vunpack.c.l.b16 %v6205
      %v6297 = vunpack.c.l.b16 %v6206
      %v6298 = vunpack.c.l.b16 %v6207
      %v6299 = vpack.c.b16 %v6263, %v6262
      %v6300 = vpack.c.b16 %v6265, %v6264
      %v6301 = vpack.c.b16 %v6267, %v6266
      %v6302 = vpack.c.b16 %v6269, %v6268
      %v6303 = vpack.c.b16 %v6271, %v6270
      %v6304 = vpack.c.b16 %v6273, %v6272
      %v6305 = vpack.c.b16 %v6275, %v6274
      %v6306 = vpack.c.b16 %v6277, %v6276
      %v6307 = vpack.c.b16 %v6279, %v6278
      %v6308 = vpack.c.b16 %v6281, %v6280
      %v6309 = vpack.c.b16 %v6283, %v6282
      %v6310 = vpack.c.b16 %v6285, %v6284
      %v6311 = vpack.c.b16 %v6287, %v6286
      %v6312 = vpack.c.b16 %v6289, %v6288
      %v6313 = vpack.c.b16 %v6291, %v6290
      %v6314 = vpack.c.b16 %v6293, %v6292
      %v6315 = vpack.c.b16 %v6295, %v6294
      %v6316 = vpack.c.b16 %v6297, %v6296
      %v6317 = vpack.c.b16 %v6298, %v6298
      %v6319 = vshrl.u32 %v6299, 16
      %v6321 = vrot.slane %v6319, 3
      %v6322 = vshll.u32 %v6299, 16
      %v6324 = vrot.slane %v6322, 4
      %v6325 = vor.u32 %v6321, %v6324
      %v6327 = vshrl.u32 %v6300, 16
      %v6329 = vrot.slane %v6327, 3
      %v6330 = vshll.u32 %v6300, 16
      %v6332 = vrot.slane %v6330, 4
      %v6333 = vor.u32 %v6329, %v6332
      %v6334 = vsel %vm2052, %v6325, %v6333
      %v6336 = vshrl.u32 %v6301, 16
      %v6338 = vrot.slane %v6336, 3
      %v6339 = vshll.u32 %v6301, 16
      %v6341 = vrot.slane %v6339, 4
      %v6342 = vor.u32 %v6338, %v6341
      %v6343 = vsel %vm2052, %v6333, %v6342
      %v6345 = vshrl.u32 %v6302, 16
      %v6347 = vrot.slane %v6345, 3
      %v6348 = vshll.u32 %v6302, 16
      %v6350 = vrot.slane %v6348, 4
      %v6351 = vor.u32 %v6347, %v6350
      %v6352 = vsel %vm2052, %v6342, %v6351
      %v6354 = vshrl.u32 %v6303, 16
      %v6356 = vrot.slane %v6354, 3
      %v6357 = vshll.u32 %v6303, 16
      %v6359 = vrot.slane %v6357, 4
      %v6360 = vor.u32 %v6356, %v6359
      %v6361 = vsel %vm2052, %v6351, %v6360
      %v6363 = vshrl.u32 %v6304, 16
      %v6365 = vrot.slane %v6363, 3
      %v6366 = vshll.u32 %v6304, 16
      %v6368 = vrot.slane %v6366, 4
      %v6369 = vor.u32 %v6365, %v6368
      %v6370 = vsel %vm2052, %v6360, %v6369
      %v6372 = vshrl.u32 %v6305, 16
      %v6374 = vrot.slane %v6372, 3
      %v6375 = vshll.u32 %v6305, 16
      %v6377 = vrot.slane %v6375, 4
      %v6378 = vor.u32 %v6374, %v6377
      %v6379 = vsel %vm2052, %v6369, %v6378
      %v6381 = vshrl.u32 %v6306, 16
      %v6383 = vrot.slane %v6381, 3
      %v6384 = vshll.u32 %v6306, 16
      %v6386 = vrot.slane %v6384, 4
      %v6387 = vor.u32 %v6383, %v6386
      %v6388 = vsel %vm2052, %v6378, %v6387
      %v6390 = vshrl.u32 %v6307, 16
      %v6392 = vrot.slane %v6390, 3
      %v6393 = vshll.u32 %v6307, 16
      %v6395 = vrot.slane %v6393, 4
      %v6396 = vor.u32 %v6392, %v6395
      %v6397 = vsel %vm2052, %v6387, %v6396
      %v6399 = vshrl.u32 %v6308, 16
      %v6401 = vrot.slane %v6399, 3
      %v6402 = vshll.u32 %v6308, 16
      %v6404 = vrot.slane %v6402, 4
      %v6405 = vor.u32 %v6401, %v6404
      %v6406 = vsel %vm2052, %v6396, %v6405
      %v6408 = vshrl.u32 %v6309, 16
      %v6410 = vrot.slane %v6408, 3
      %v6411 = vshll.u32 %v6309, 16
      %v6413 = vrot.slane %v6411, 4
      %v6414 = vor.u32 %v6410, %v6413
      %v6415 = vsel %vm2052, %v6405, %v6414
      %v6417 = vshrl.u32 %v6310, 16
      %v6419 = vrot.slane %v6417, 3
      %v6420 = vshll.u32 %v6310, 16
      %v6422 = vrot.slane %v6420, 4
      %v6423 = vor.u32 %v6419, %v6422
      %v6424 = vsel %vm2052, %v6414, %v6423
      %v6426 = vshrl.u32 %v6311, 16
      %v6428 = vrot.slane %v6426, 3
      %v6429 = vshll.u32 %v6311, 16
      %v6431 = vrot.slane %v6429, 4
      %v6432 = vor.u32 %v6428, %v6431
      %v6433 = vsel %vm2052, %v6423, %v6432
      %v6435 = vshrl.u32 %v6312, 16
      %v6437 = vrot.slane %v6435, 3
      %v6438 = vshll.u32 %v6312, 16
      %v6440 = vrot.slane %v6438, 4
      %v6441 = vor.u32 %v6437, %v6440
      %v6442 = vsel %vm2052, %v6432, %v6441
      %v6444 = vshrl.u32 %v6313, 16
      %v6446 = vrot.slane %v6444, 3
      %v6447 = vshll.u32 %v6313, 16
      %v6449 = vrot.slane %v6447, 4
      %v6450 = vor.u32 %v6446, %v6449
      %v6451 = vsel %vm2052, %v6441, %v6450
      %v6453 = vshrl.u32 %v6314, 16
      %v6455 = vrot.slane %v6453, 3
      %v6456 = vshll.u32 %v6314, 16
      %v6458 = vrot.slane %v6456, 4
      %v6459 = vor.u32 %v6455, %v6458
      %v6460 = vsel %vm2052, %v6450, %v6459
      %v6462 = vshrl.u32 %v6315, 16
      %v6464 = vrot.slane %v6462, 3
      %v6465 = vshll.u32 %v6315, 16
      %v6467 = vrot.slane %v6465, 4
      %v6468 = vor.u32 %v6464, %v6467
      %v6469 = vsel %vm2052, %v6459, %v6468
      %v6471 = vshrl.u32 %v6316, 16
      %v6473 = vrot.slane %v6471, 3
      %v6474 = vshll.u32 %v6316, 16
      %v6476 = vrot.slane %v6474, 4
      %v6477 = vor.u32 %v6473, %v6476
      %v6478 = vsel %vm2052, %v6468, %v6477
      %v6480 = vshrl.u32 %v6317, 16
      %v6482 = vrot.slane %v6480, 3
      %v6483 = vshll.u32 %v6317, 16
      %v6485 = vrot.slane %v6483, 4
      %v6486 = vor.u32 %v6482, %v6485
      %v6487 = vsel %vm2052, %v6477, %v6486
      %v6522 = vunpack.c.l.b16 %v6209
      %v6523 = vunpack.c.l.b16 %v6210
      %v6524 = vunpack.c.l.b16 %v6211
      %v6525 = vunpack.c.l.b16 %v6212
      %v6526 = vunpack.c.l.b16 %v6213
      %v6527 = vunpack.c.l.b16 %v6214
      %v6528 = vunpack.c.l.b16 %v6215
      %v6529 = vunpack.c.l.b16 %v6216
      %v6530 = vunpack.c.l.b16 %v6217
      %v6531 = vunpack.c.l.b16 %v6218
      %v6532 = vunpack.c.l.b16 %v6219
      %v6533 = vunpack.c.l.b16 %v6220
      %v6534 = vunpack.c.l.b16 %v6221
      %v6535 = vunpack.c.l.b16 %v6222
      %v6536 = vunpack.c.l.b16 %v6223
      %v6537 = vunpack.c.l.b16 %v6224
      %v6538 = vpack.c.b16 %v6523, %v6522
      %v6539 = vpack.c.b16 %v6525, %v6524
      %v6540 = vpack.c.b16 %v6527, %v6526
      %v6541 = vpack.c.b16 %v6529, %v6528
      %v6542 = vpack.c.b16 %v6531, %v6530
      %v6543 = vpack.c.b16 %v6533, %v6532
      %v6544 = vpack.c.b16 %v6535, %v6534
      %v6545 = vpack.c.b16 %v6537, %v6536
      %6554 = vmatpush.bf16.msra.mxu0 %v6545
      %6555 = vmatpush.bf16.msra.mxu0 %v6544
      %6556 = vmatpush.bf16.msra.mxu0 %v6543
      %6557 = vmatpush.bf16.msra.mxu0 %v6542
      %6558 = vmatpush.bf16.msra.mxu0 %v6541
      %6559 = vmatpush.bf16.msra.mxu0 %v6540
      %6560 = vmatpush.bf16.msra.mxu0 %v6539
      %6561 = vmatpush.bf16.msra.mxu0 %v6538
      %6562 = vmatmul.bf16.gmra.mxu0 %v6334
      %v6563 = vpop.f32.mrf.mxu0
      %v6564 = vadd.f32 0.0, %v6563
      %v6565 = vpop.f32.mrf.mxu0
      %v6566 = vadd.f32 0.0, %v6565
      %6567 = vmatmul.bf16.gmra.mxu0 %v6343
      %v6568 = vpop.f32.mrf.mxu0
      %v6569 = vadd.f32 0.0, %v6568
      %v6570 = vpop.f32.mrf.mxu0
      %v6571 = vadd.f32 0.0, %v6570
      %6572 = vmatmul.bf16.gmra.mxu0 %v6352
      %v6573 = vpop.f32.mrf.mxu0
      %v6574 = vadd.f32 0.0, %v6573
      %v6575 = vpop.f32.mrf.mxu0
      %v6576 = vadd.f32 0.0, %v6575
      %6577 = vmatmul.bf16.gmra.mxu0 %v6361
      %v6578 = vpop.f32.mrf.mxu0
      %v6579 = vadd.f32 0.0, %v6578
      %v6580 = vpop.f32.mrf.mxu0
      %v6581 = vadd.f32 0.0, %v6580
      %6582 = vmatmul.bf16.gmra.mxu0 %v6370
      %v6583 = vpop.f32.mrf.mxu0
      %v6584 = vadd.f32 0.0, %v6583
      %v6585 = vpop.f32.mrf.mxu0
      %v6586 = vadd.f32 0.0, %v6585
      %6587 = vmatmul.bf16.gmra.mxu0 %v6379
      %v6588 = vpop.f32.mrf.mxu0
      %v6589 = vadd.f32 0.0, %v6588
      %v6590 = vpop.f32.mrf.mxu0
      %v6591 = vadd.f32 0.0, %v6590
      %6592 = vmatmul.bf16.gmra.mxu0 %v6388
      %v6593 = vpop.f32.mrf.mxu0
      %v6594 = vadd.f32 0.0, %v6593
      %v6595 = vpop.f32.mrf.mxu0
      %v6596 = vadd.f32 0.0, %v6595
      %6597 = vmatmul.bf16.gmra.mxu0 %v6397
      %v6598 = vpop.f32.mrf.mxu0
      %v6599 = vadd.f32 0.0, %v6598
      %v6600 = vpop.f32.mrf.mxu0
      %v6601 = vadd.f32 0.0, %v6600
      %6602 = vmatmul.bf16.gmra.mxu0 %v6406
      %v6603 = vpop.f32.mrf.mxu0
      %v6604 = vadd.f32 0.0, %v6603
      %v6605 = vpop.f32.mrf.mxu0
      %v6606 = vadd.f32 0.0, %v6605
      %6607 = vmatmul.bf16.gmra.mxu0 %v6415
      %v6608 = vpop.f32.mrf.mxu0
      %v6609 = vadd.f32 0.0, %v6608
      %v6610 = vpop.f32.mrf.mxu0
      %v6611 = vadd.f32 0.0, %v6610
      %6612 = vmatmul.bf16.gmra.mxu0 %v6424
      %v6613 = vpop.f32.mrf.mxu0
      %v6614 = vadd.f32 0.0, %v6613
      %v6615 = vpop.f32.mrf.mxu0
      %v6616 = vadd.f32 0.0, %v6615
      %6617 = vmatmul.bf16.gmra.mxu0 %v6433
      %v6618 = vpop.f32.mrf.mxu0
      %v6619 = vadd.f32 0.0, %v6618
      %v6620 = vpop.f32.mrf.mxu0
      %v6621 = vadd.f32 0.0, %v6620
      %6622 = vmatmul.bf16.gmra.mxu0 %v6442
      %v6623 = vpop.f32.mrf.mxu0
      %v6624 = vadd.f32 0.0, %v6623
      %v6625 = vpop.f32.mrf.mxu0
      %v6626 = vadd.f32 0.0, %v6625
      %6627 = vmatmul.bf16.gmra.mxu0 %v6451
      %v6628 = vpop.f32.mrf.mxu0
      %v6629 = vadd.f32 0.0, %v6628
      %v6630 = vpop.f32.mrf.mxu0
      %v6631 = vadd.f32 0.0, %v6630
      %6632 = vmatmul.bf16.gmra.mxu0 %v6460
      %v6633 = vpop.f32.mrf.mxu0
      %v6634 = vadd.f32 0.0, %v6633
      %v6635 = vpop.f32.mrf.mxu0
      %v6636 = vadd.f32 0.0, %v6635
      %6637 = vmatmul.bf16.gmra.mxu0 %v6469
      %v6638 = vpop.f32.mrf.mxu0
      %v6639 = vadd.f32 0.0, %v6638
      %v6640 = vpop.f32.mrf.mxu0
      %v6641 = vadd.f32 0.0, %v6640
      %6642 = vmatmul.bf16.gmra.mxu0 %v6478
      %v6643 = vpop.f32.mrf.mxu0
      %v6644 = vadd.f32 0.0, %v6643
      %v6645 = vpop.f32.mrf.mxu0
      %v6646 = vadd.f32 0.0, %v6645
      %6647 = vmatmul.bf16.gmra.mxu0 %v6487
      %v6648 = vpop.f32.mrf.mxu0
      %v6649 = vadd.f32 0.0, %v6648
      %v6650 = vpop.f32.mrf.mxu0
      %v6651 = vadd.f32 0.0, %v6650
      %6652 = vdwg.mxu0
      %v6653 = vadd.f32 %v6135, %v6564
      %v6654 = vadd.f32 %v6136, %v6566
      %v6655 = vadd.f32 %v6137, %v6569
      %v6656 = vadd.f32 %v6138, %v6571
      %v6657 = vadd.f32 %v6139, %v6574
      %v6658 = vadd.f32 %v6140, %v6576
      %v6659 = vadd.f32 %v6141, %v6579
      %v6660 = vadd.f32 %v6142, %v6581
      %v6661 = vadd.f32 %v6143, %v6584
      %v6662 = vadd.f32 %v6144, %v6586
      %v6663 = vadd.f32 %v6145, %v6589
      %v6664 = vadd.f32 %v6146, %v6591
      %v6665 = vadd.f32 %v6147, %v6594
      %v6666 = vadd.f32 %v6148, %v6596
      %v6667 = vadd.f32 %v6149, %v6599
      %v6668 = vadd.f32 %v6150, %v6601
      %v6669 = vadd.f32 %v6151, %v6604
      %v6670 = vadd.f32 %v6152, %v6606
      %v6671 = vadd.f32 %v6153, %v6609
      %v6672 = vadd.f32 %v6154, %v6611
      %v6673 = vadd.f32 %v6155, %v6614
      %v6674 = vadd.f32 %v6156, %v6616
      %v6675 = vadd.f32 %v6157, %v6619
      %v6676 = vadd.f32 %v6158, %v6621
      %v6677 = vadd.f32 %v6159, %v6624
      %v6678 = vadd.f32 %v6160, %v6626
      %v6679 = vadd.f32 %v6161, %v6629
      %v6680 = vadd.f32 %v6162, %v6631
      %v6681 = vadd.f32 %v6163, %v6634
      %v6682 = vadd.f32 %v6164, %v6636
      %v6683 = vadd.f32 %v6165, %v6639
      %v6684 = vadd.f32 %v6166, %v6641
      %v6685 = vadd.f32 %v6167, %v6644
      %v6686 = vadd.f32 %v6168, %v6646
      %v6687 = vadd.f32 %v6169, %v6649
      %v6688 = vadd.f32 %v6170, %v6651
      %s6689 = scalar_lea.vmem %s6, 256
      %v6690 = vld [vmem:[%s6689] sm:$0xf]
      %v6691 = vld [vmem:[%s6689 + $0x4] sm:$0xf]
      %v6692 = vld [vmem:[%s6689 + $0x8] sm:$0xf]
      %v6693 = vld [vmem:[%s6689 + $0xc] sm:$0xf]
      %v6694 = vld [vmem:[%s6689 + $0x10] sm:$0xf]
      %v6695 = vld [vmem:[%s6689 + $0x14] sm:$0xf]
      %v6696 = vld [vmem:[%s6689 + $0x18] sm:$0xf]
      %v6697 = vld [vmem:[%s6689 + $0x1c] sm:$0xf]
      %v6698 = vld [vmem:[%s6689 + $0x20] sm:$0xf]
      %v6699 = vld [vmem:[%s6689 + $0x24] sm:$0xf]
      %v6700 = vld [vmem:[%s6689 + $0x28] sm:$0xf]
      %v6701 = vld [vmem:[%s6689 + $0x2c] sm:$0xf]
      %v6702 = vld [vmem:[%s6689 + $0x30] sm:$0xf]
      %v6703 = vld [vmem:[%s6689 + $0x34] sm:$0xf]
      %v6704 = vld [vmem:[%s6689 + $0x38] sm:$0xf]
      %v6705 = vld [vmem:[%s6689 + $0x3c] sm:$0xf]
      %v6706 = vpack.c.b16 %v6264, %v6263
      %v6707 = vpack.c.b16 %v6266, %v6265
      %v6708 = vpack.c.b16 %v6268, %v6267
      %v6709 = vpack.c.b16 %v6270, %v6269
      %v6710 = vpack.c.b16 %v6272, %v6271
      %v6711 = vpack.c.b16 %v6274, %v6273
      %v6712 = vpack.c.b16 %v6276, %v6275
      %v6713 = vpack.c.b16 %v6278, %v6277
      %v6714 = vpack.c.b16 %v6280, %v6279
      %v6715 = vpack.c.b16 %v6282, %v6281
      %v6716 = vpack.c.b16 %v6284, %v6283
      %v6717 = vpack.c.b16 %v6286, %v6285
      %v6718 = vpack.c.b16 %v6288, %v6287
      %v6719 = vpack.c.b16 %v6290, %v6289
      %v6720 = vpack.c.b16 %v6292, %v6291
      %v6721 = vpack.c.b16 %v6294, %v6293
      %v6722 = vpack.c.b16 %v6296, %v6295
      %v6723 = vpack.c.b16 %v6298, %v6297
      %v6758 = vunpack.c.l.b16 %v6690
      %v6759 = vunpack.c.l.b16 %v6691
      %v6760 = vunpack.c.l.b16 %v6692
      %v6761 = vunpack.c.l.b16 %v6693
      %v6762 = vunpack.c.l.b16 %v6694
      %v6763 = vunpack.c.l.b16 %v6695
      %v6764 = vunpack.c.l.b16 %v6696
      %v6765 = vunpack.c.l.b16 %v6697
      %v6766 = vunpack.c.l.b16 %v6698
      %v6767 = vunpack.c.l.b16 %v6699
      %v6768 = vunpack.c.l.b16 %v6700
      %v6769 = vunpack.c.l.b16 %v6701
      %v6770 = vunpack.c.l.b16 %v6702
      %v6771 = vunpack.c.l.b16 %v6703
      %v6772 = vunpack.c.l.b16 %v6704
      %v6773 = vunpack.c.l.b16 %v6705
      %v6774 = vpack.c.b16 %v6759, %v6758
      %v6775 = vpack.c.b16 %v6761, %v6760
      %v6776 = vpack.c.b16 %v6763, %v6762
      %v6777 = vpack.c.b16 %v6765, %v6764
      %v6778 = vpack.c.b16 %v6767, %v6766
      %v6779 = vpack.c.b16 %v6769, %v6768
      %v6780 = vpack.c.b16 %v6771, %v6770
      %v6781 = vpack.c.b16 %v6773, %v6772
      %6790 = vmatpush.bf16.msra.mxu0 %v6781
      %6791 = vmatpush.bf16.msra.mxu0 %v6780
      %6792 = vmatpush.bf16.msra.mxu0 %v6779
      %6793 = vmatpush.bf16.msra.mxu0 %v6778
      %6794 = vmatpush.bf16.msra.mxu0 %v6777
      %6795 = vmatpush.bf16.msra.mxu0 %v6776
      %6796 = vmatpush.bf16.msra.mxu0 %v6775
      %6797 = vmatpush.bf16.msra.mxu0 %v6774
      %6798 = vmatmul.bf16.gmra.mxu0 %v6706
      %v6799 = vpop.f32.mrf.mxu0
      %v6800 = vadd.f32 0.0, %v6799
      %v6801 = vpop.f32.mrf.mxu0
      %v6802 = vadd.f32 0.0, %v6801
      %6803 = vmatmul.bf16.gmra.mxu0 %v6707
      %v6804 = vpop.f32.mrf.mxu0
      %v6805 = vadd.f32 0.0, %v6804
      %v6806 = vpop.f32.mrf.mxu0
      %v6807 = vadd.f32 0.0, %v6806
      %6808 = vmatmul.bf16.gmra.mxu0 %v6708
      %v6809 = vpop.f32.mrf.mxu0
      %v6810 = vadd.f32 0.0, %v6809
      %v6811 = vpop.f32.mrf.mxu0
      %v6812 = vadd.f32 0.0, %v6811
      %6813 = vmatmul.bf16.gmra.mxu0 %v6709
      %v6814 = vpop.f32.mrf.mxu0
      %v6815 = vadd.f32 0.0, %v6814
      %v6816 = vpop.f32.mrf.mxu0
      %v6817 = vadd.f32 0.0, %v6816
      %6818 = vmatmul.bf16.gmra.mxu0 %v6710
      %v6819 = vpop.f32.mrf.mxu0
      %v6820 = vadd.f32 0.0, %v6819
      %v6821 = vpop.f32.mrf.mxu0
      %v6822 = vadd.f32 0.0, %v6821
      %6823 = vmatmul.bf16.gmra.mxu0 %v6711
      %v6824 = vpop.f32.mrf.mxu0
      %v6825 = vadd.f32 0.0, %v6824
      %v6826 = vpop.f32.mrf.mxu0
      %v6827 = vadd.f32 0.0, %v6826
      %6828 = vmatmul.bf16.gmra.mxu0 %v6712
      %v6829 = vpop.f32.mrf.mxu0
      %v6830 = vadd.f32 0.0, %v6829
      %v6831 = vpop.f32.mrf.mxu0
      %v6832 = vadd.f32 0.0, %v6831
      %6833 = vmatmul.bf16.gmra.mxu0 %v6713
      %v6834 = vpop.f32.mrf.mxu0
      %v6835 = vadd.f32 0.0, %v6834
      %v6836 = vpop.f32.mrf.mxu0
      %v6837 = vadd.f32 0.0, %v6836
      %6838 = vmatmul.bf16.gmra.mxu0 %v6714
      %v6839 = vpop.f32.mrf.mxu0
      %v6840 = vadd.f32 0.0, %v6839
      %v6841 = vpop.f32.mrf.mxu0
      %v6842 = vadd.f32 0.0, %v6841
      %6843 = vmatmul.bf16.gmra.mxu0 %v6715
      %v6844 = vpop.f32.mrf.mxu0
      %v6845 = vadd.f32 0.0, %v6844
      %v6846 = vpop.f32.mrf.mxu0
      %v6847 = vadd.f32 0.0, %v6846
      %6848 = vmatmul.bf16.gmra.mxu0 %v6716
      %v6849 = vpop.f32.mrf.mxu0
      %v6850 = vadd.f32 0.0, %v6849
      %v6851 = vpop.f32.mrf.mxu0
      %v6852 = vadd.f32 0.0, %v6851
      %6853 = vmatmul.bf16.gmra.mxu0 %v6717
      %v6854 = vpop.f32.mrf.mxu0
      %v6855 = vadd.f32 0.0, %v6854
      %v6856 = vpop.f32.mrf.mxu0
      %v6857 = vadd.f32 0.0, %v6856
      %6858 = vmatmul.bf16.gmra.mxu0 %v6718
      %v6859 = vpop.f32.mrf.mxu0
      %v6860 = vadd.f32 0.0, %v6859
      %v6861 = vpop.f32.mrf.mxu0
      %v6862 = vadd.f32 0.0, %v6861
      %6863 = vmatmul.bf16.gmra.mxu0 %v6719
      %v6864 = vpop.f32.mrf.mxu0
      %v6865 = vadd.f32 0.0, %v6864
      %v6866 = vpop.f32.mrf.mxu0
      %v6867 = vadd.f32 0.0, %v6866
      %6868 = vmatmul.bf16.gmra.mxu0 %v6720
      %v6869 = vpop.f32.mrf.mxu0
      %v6870 = vadd.f32 0.0, %v6869
      %v6871 = vpop.f32.mrf.mxu0
      %v6872 = vadd.f32 0.0, %v6871
      %6873 = vmatmul.bf16.gmra.mxu0 %v6721
      %v6874 = vpop.f32.mrf.mxu0
      %v6875 = vadd.f32 0.0, %v6874
      %v6876 = vpop.f32.mrf.mxu0
      %v6877 = vadd.f32 0.0, %v6876
      %6878 = vmatmul.bf16.gmra.mxu0 %v6722
      %v6879 = vpop.f32.mrf.mxu0
      %v6880 = vadd.f32 0.0, %v6879
      %v6881 = vpop.f32.mrf.mxu0
      %v6882 = vadd.f32 0.0, %v6881
      %6883 = vmatmul.bf16.gmra.mxu0 %v6723
      %v6884 = vpop.f32.mrf.mxu0
      %v6885 = vadd.f32 0.0, %v6884
      %v6886 = vpop.f32.mrf.mxu0
      %v6887 = vadd.f32 0.0, %v6886
      %6888 = vdwg.mxu0
      %v6889 = vadd.f32 %v6653, %v6800
      %v6890 = vadd.f32 %v6654, %v6802
      %v6891 = vadd.f32 %v6655, %v6805
      %v6892 = vadd.f32 %v6656, %v6807
      %v6893 = vadd.f32 %v6657, %v6810
      %v6894 = vadd.f32 %v6658, %v6812
      %v6895 = vadd.f32 %v6659, %v6815
      %v6896 = vadd.f32 %v6660, %v6817
      %v6897 = vadd.f32 %v6661, %v6820
      %v6898 = vadd.f32 %v6662, %v6822
      %v6899 = vadd.f32 %v6663, %v6825
      %v6900 = vadd.f32 %v6664, %v6827
      %v6901 = vadd.f32 %v6665, %v6830
      %v6902 = vadd.f32 %v6666, %v6832
      %v6903 = vadd.f32 %v6667, %v6835
      %v6904 = vadd.f32 %v6668, %v6837
      %v6905 = vadd.f32 %v6669, %v6840
      %v6906 = vadd.f32 %v6670, %v6842
      %v6907 = vadd.f32 %v6671, %v6845
      %v6908 = vadd.f32 %v6672, %v6847
      %v6909 = vadd.f32 %v6673, %v6850
      %v6910 = vadd.f32 %v6674, %v6852
      %v6911 = vadd.f32 %v6675, %v6855
      %v6912 = vadd.f32 %v6676, %v6857
      %v6913 = vadd.f32 %v6677, %v6860
      %v6914 = vadd.f32 %v6678, %v6862
      %v6915 = vadd.f32 %v6679, %v6865
      %v6916 = vadd.f32 %v6680, %v6867
      %v6917 = vadd.f32 %v6681, %v6870
      %v6918 = vadd.f32 %v6682, %v6872
      %v6919 = vadd.f32 %v6683, %v6875
      %v6920 = vadd.f32 %v6684, %v6877
      %v6921 = vadd.f32 %v6685, %v6880
      %v6922 = vadd.f32 %v6686, %v6882
      %v6923 = vadd.f32 %v6687, %v6885
      %v6924 = vadd.f32 %v6688, %v6887
      %v6925 = vld [vmem:[#allocation3 + $0x10] sm:$0xf]
      %v6926 = vld [vmem:[#allocation3 + $0x14] sm:$0xf]
      %v6927 = vld [vmem:[#allocation3 + $0x18] sm:$0xf]
      %v6928 = vld [vmem:[#allocation3 + $0x1c] sm:$0xf]
      %v6929 = vld [vmem:[#allocation3 + $0x20] sm:$0xf]
      %v6930 = vld [vmem:[#allocation3 + $0x24] sm:$0xf]
      %v6931 = vld [vmem:[#allocation3 + $0x28] sm:$0xf]
      %v6932 = vld [vmem:[#allocation3 + $0x2c] sm:$0xf]
      %v6933 = vld [vmem:[#allocation3 + $0x30] sm:$0xf]
      %v6934 = vld [vmem:[#allocation3 + $0x34] sm:$0xf]
      %v6935 = vld [vmem:[#allocation3 + $0x38] sm:$0xf]
      %v6936 = vld [vmem:[#allocation3 + $0x3c] sm:$0xf]
      %v6937 = vld [vmem:[#allocation3 + $0x40] sm:$0xf]
      %v6938 = vld [vmem:[#allocation3 + $0x44] sm:$0xf]
      %v6939 = vld [vmem:[#allocation3 + $0x48] sm:$0xf]
      %v6940 = vld [vmem:[#allocation3 + $0x4c] sm:$0xf]
      %v6941 = vld [vmem:[#allocation3 + $0x50] sm:$0xf]
      %v6942 = vld [vmem:[#allocation3 + $0x54] sm:$0xf]
      %v6943 = vld [vmem:[#allocation3 + $0x58] sm:$0xf]
      %v6944 = vld [vmem:[#allocation3 + $0x5c] sm:$0xf]
      %v6945 = vld [vmem:[#allocation3 + $0x60] sm:$0xf]
      %v6946 = vld [vmem:[#allocation3 + $0x64] sm:$0xf]
      %v6947 = vld [vmem:[#allocation3 + $0x68] sm:$0xf]
      %v6948 = vld [vmem:[#allocation3 + $0x6c] sm:$0xf]
      %v6949 = vld [vmem:[#allocation3 + $0x70] sm:$0xf]
      %v6950 = vld [vmem:[#allocation3 + $0x74] sm:$0xf]
      %v6951 = vld [vmem:[#allocation3 + $0x78] sm:$0xf]
      %v6952 = vld [vmem:[#allocation3 + $0x7c] sm:$0xf]
      %v6953 = vld [vmem:[#allocation3 + $0x80] sm:$0xf]
      %v6954 = vld [vmem:[#allocation3 + $0x84] sm:$0xf]
      %v6955 = vld [vmem:[#allocation3 + $0x88] sm:$0xf]
      %v6956 = vld [vmem:[#allocation3 + $0x8c] sm:$0xf]
      %v6957 = vld [vmem:[#allocation3 + $0x90] sm:$0xf]
      %v6958 = vld [vmem:[#allocation3 + $0x94] sm:$0xf]
      %v6959 = vld [vmem:[#allocation3 + $0x98] sm:$0xf]
      %v6960 = vld [vmem:[#allocation3 + $0x9c] sm:$0xf]
      %v6961 = vld [vmem:[#allocation3 + $0xa0] sm:$0x1]
      %s6962 = scalar_lea.vmem %s6, 320
      %v6963 = vld [vmem:[%s6962] sm:$0xf]
      %v6964 = vld [vmem:[%s6962 + $0x4] sm:$0xf]
      %v6965 = vld [vmem:[%s6962 + $0x8] sm:$0xf]
      %v6966 = vld [vmem:[%s6962 + $0xc] sm:$0xf]
      %v6967 = vld [vmem:[%s6962 + $0x10] sm:$0xf]
      %v6968 = vld [vmem:[%s6962 + $0x14] sm:$0xf]
      %v6969 = vld [vmem:[%s6962 + $0x18] sm:$0xf]
      %v6970 = vld [vmem:[%s6962 + $0x1c] sm:$0xf]
      %v6971 = vld [vmem:[%s6962 + $0x20] sm:$0xf]
      %v6972 = vld [vmem:[%s6962 + $0x24] sm:$0xf]
      %v6973 = vld [vmem:[%s6962 + $0x28] sm:$0xf]
      %v6974 = vld [vmem:[%s6962 + $0x2c] sm:$0xf]
      %v6975 = vld [vmem:[%s6962 + $0x30] sm:$0xf]
      %v6976 = vld [vmem:[%s6962 + $0x34] sm:$0xf]
      %v6977 = vld [vmem:[%s6962 + $0x38] sm:$0xf]
      %v6978 = vld [vmem:[%s6962 + $0x3c] sm:$0xf]
      %v7016 = vunpack.c.l.b16 %v6925
      %v7017 = vunpack.c.l.b16 %v6926
      %v7018 = vunpack.c.l.b16 %v6927
      %v7019 = vunpack.c.l.b16 %v6928
      %v7020 = vunpack.c.l.b16 %v6929
      %v7021 = vunpack.c.l.b16 %v6930
      %v7022 = vunpack.c.l.b16 %v6931
      %v7023 = vunpack.c.l.b16 %v6932
      %v7024 = vunpack.c.l.b16 %v6933
      %v7025 = vunpack.c.l.b16 %v6934
      %v7026 = vunpack.c.l.b16 %v6935
      %v7027 = vunpack.c.l.b16 %v6936
      %v7028 = vunpack.c.l.b16 %v6937
      %v7029 = vunpack.c.l.b16 %v6938
      %v7030 = vunpack.c.l.b16 %v6939
      %v7031 = vunpack.c.l.b16 %v6940
      %v7032 = vunpack.c.l.b16 %v6941
      %v7033 = vunpack.c.l.b16 %v6942
      %v7034 = vunpack.c.l.b16 %v6943
      %v7035 = vunpack.c.l.b16 %v6944
      %v7036 = vunpack.c.l.b16 %v6945
      %v7037 = vunpack.c.l.b16 %v6946
      %v7038 = vunpack.c.l.b16 %v6947
      %v7039 = vunpack.c.l.b16 %v6948
      %v7040 = vunpack.c.l.b16 %v6949
      %v7041 = vunpack.c.l.b16 %v6950
      %v7042 = vunpack.c.l.b16 %v6951
      %v7043 = vunpack.c.l.b16 %v6952
      %v7044 = vunpack.c.l.b16 %v6953
      %v7045 = vunpack.c.l.b16 %v6954
      %v7046 = vunpack.c.l.b16 %v6955
      %v7047 = vunpack.c.l.b16 %v6956
      %v7048 = vunpack.c.l.b16 %v6957
      %v7049 = vunpack.c.l.b16 %v6958
      %v7050 = vunpack.c.l.b16 %v6959
      %v7051 = vunpack.c.l.b16 %v6960
      %v7052 = vunpack.c.l.b16 %v6961
      %v7053 = vpack.c.b16 %v7017, %v7016
      %v7054 = vpack.c.b16 %v7019, %v7018
      %v7055 = vpack.c.b16 %v7021, %v7020
      %v7056 = vpack.c.b16 %v7023, %v7022
      %v7057 = vpack.c.b16 %v7025, %v7024
      %v7058 = vpack.c.b16 %v7027, %v7026
      %v7059 = vpack.c.b16 %v7029, %v7028
      %v7060 = vpack.c.b16 %v7031, %v7030
      %v7061 = vpack.c.b16 %v7033, %v7032
      %v7062 = vpack.c.b16 %v7035, %v7034
      %v7063 = vpack.c.b16 %v7037, %v7036
      %v7064 = vpack.c.b16 %v7039, %v7038
      %v7065 = vpack.c.b16 %v7041, %v7040
      %v7066 = vpack.c.b16 %v7043, %v7042
      %v7067 = vpack.c.b16 %v7045, %v7044
      %v7068 = vpack.c.b16 %v7047, %v7046
      %v7069 = vpack.c.b16 %v7049, %v7048
      %v7070 = vpack.c.b16 %v7051, %v7050
      %v7071 = vpack.c.b16 %v7052, %v7052
      %v7073 = vshrl.u32 %v7053, 16
      %v7075 = vshll.u32 %v7053, 16
      %v7077 = vrot.slane %v7075, 1
      %v7078 = vor.u32 %v7073, %v7077
      %v7080 = vshll.u32 %v7054, 16
      %v7082 = vrot.slane %v7080, 1
      %v7083 = vsel %vm3240, %v7078, %v7082
      %v7084 = vshrl.u32 %v7054, 16
      %v7086 = vor.u32 %v7084, %v7082
      %v7088 = vshll.u32 %v7055, 16
      %v7090 = vrot.slane %v7088, 1
      %v7091 = vsel %vm3240, %v7086, %v7090
      %v7092 = vshrl.u32 %v7055, 16
      %v7094 = vor.u32 %v7092, %v7090
      %v7096 = vshll.u32 %v7056, 16
      %v7098 = vrot.slane %v7096, 1
      %v7099 = vsel %vm3240, %v7094, %v7098
      %v7100 = vshrl.u32 %v7056, 16
      %v7102 = vor.u32 %v7100, %v7098
      %v7104 = vshll.u32 %v7057, 16
      %v7106 = vrot.slane %v7104, 1
      %v7107 = vsel %vm3240, %v7102, %v7106
      %v7108 = vshrl.u32 %v7057, 16
      %v7110 = vor.u32 %v7108, %v7106
      %v7112 = vshll.u32 %v7058, 16
      %v7114 = vrot.slane %v7112, 1
      %v7115 = vsel %vm3240, %v7110, %v7114
      %v7116 = vshrl.u32 %v7058, 16
      %v7118 = vor.u32 %v7116, %v7114
      %v7120 = vshll.u32 %v7059, 16
      %v7122 = vrot.slane %v7120, 1
      %v7123 = vsel %vm3240, %v7118, %v7122
      %v7124 = vshrl.u32 %v7059, 16
      %v7126 = vor.u32 %v7124, %v7122
      %v7128 = vshll.u32 %v7060, 16
      %v7130 = vrot.slane %v7128, 1
      %v7131 = vsel %vm3240, %v7126, %v7130
      %v7132 = vshrl.u32 %v7060, 16
      %v7134 = vor.u32 %v7132, %v7130
      %v7136 = vshll.u32 %v7061, 16
      %v7138 = vrot.slane %v7136, 1
      %v7139 = vsel %vm3240, %v7134, %v7138
      %v7140 = vshrl.u32 %v7061, 16
      %v7142 = vor.u32 %v7140, %v7138
      %v7144 = vshll.u32 %v7062, 16
      %v7146 = vrot.slane %v7144, 1
      %v7147 = vsel %vm3240, %v7142, %v7146
      %v7148 = vshrl.u32 %v7062, 16
      %v7150 = vor.u32 %v7148, %v7146
      %v7152 = vshll.u32 %v7063, 16
      %v7154 = vrot.slane %v7152, 1
      %v7155 = vsel %vm3240, %v7150, %v7154
      %v7156 = vshrl.u32 %v7063, 16
      %v7158 = vor.u32 %v7156, %v7154
      %v7160 = vshll.u32 %v7064, 16
      %v7162 = vrot.slane %v7160, 1
      %v7163 = vsel %vm3240, %v7158, %v7162
      %v7164 = vshrl.u32 %v7064, 16
      %v7166 = vor.u32 %v7164, %v7162
      %v7168 = vshll.u32 %v7065, 16
      %v7170 = vrot.slane %v7168, 1
      %v7171 = vsel %vm3240, %v7166, %v7170
      %v7172 = vshrl.u32 %v7065, 16
      %v7174 = vor.u32 %v7172, %v7170
      %v7176 = vshll.u32 %v7066, 16
      %v7178 = vrot.slane %v7176, 1
      %v7179 = vsel %vm3240, %v7174, %v7178
      %v7180 = vshrl.u32 %v7066, 16
      %v7182 = vor.u32 %v7180, %v7178
      %v7184 = vshll.u32 %v7067, 16
      %v7186 = vrot.slane %v7184, 1
      %v7187 = vsel %vm3240, %v7182, %v7186
      %v7188 = vshrl.u32 %v7067, 16
      %v7190 = vor.u32 %v7188, %v7186
      %v7192 = vshll.u32 %v7068, 16
      %v7194 = vrot.slane %v7192, 1
      %v7195 = vsel %vm3240, %v7190, %v7194
      %v7196 = vshrl.u32 %v7068, 16
      %v7198 = vor.u32 %v7196, %v7194
      %v7200 = vshll.u32 %v7069, 16
      %v7202 = vrot.slane %v7200, 1
      %v7203 = vsel %vm3240, %v7198, %v7202
      %v7204 = vshrl.u32 %v7069, 16
      %v7206 = vor.u32 %v7204, %v7202
      %v7208 = vshll.u32 %v7070, 16
      %v7210 = vrot.slane %v7208, 1
      %v7211 = vsel %vm3240, %v7206, %v7210
      %v7212 = vshrl.u32 %v7070, 16
      %v7214 = vor.u32 %v7212, %v7210
      %v7216 = vshll.u32 %v7071, 16
      %v7218 = vrot.slane %v7216, 1
      %v7219 = vsel %vm3240, %v7214, %v7218
      %v7254 = vunpack.c.l.b16 %v6963
      %v7255 = vunpack.c.l.b16 %v6964
      %v7256 = vunpack.c.l.b16 %v6965
      %v7257 = vunpack.c.l.b16 %v6966
      %v7258 = vunpack.c.l.b16 %v6967
      %v7259 = vunpack.c.l.b16 %v6968
      %v7260 = vunpack.c.l.b16 %v6969
      %v7261 = vunpack.c.l.b16 %v6970
      %v7262 = vunpack.c.l.b16 %v6971
      %v7263 = vunpack.c.l.b16 %v6972
      %v7264 = vunpack.c.l.b16 %v6973
      %v7265 = vunpack.c.l.b16 %v6974
      %v7266 = vunpack.c.l.b16 %v6975
      %v7267 = vunpack.c.l.b16 %v6976
      %v7268 = vunpack.c.l.b16 %v6977
      %v7269 = vunpack.c.l.b16 %v6978
      %v7270 = vpack.c.b16 %v7255, %v7254
      %v7271 = vpack.c.b16 %v7257, %v7256
      %v7272 = vpack.c.b16 %v7259, %v7258
      %v7273 = vpack.c.b16 %v7261, %v7260
      %v7274 = vpack.c.b16 %v7263, %v7262
      %v7275 = vpack.c.b16 %v7265, %v7264
      %v7276 = vpack.c.b16 %v7267, %v7266
      %v7277 = vpack.c.b16 %v7269, %v7268
      %7286 = vmatpush.bf16.msra.mxu0 %v7277
      %7287 = vmatpush.bf16.msra.mxu0 %v7276
      %7288 = vmatpush.bf16.msra.mxu0 %v7275
      %7289 = vmatpush.bf16.msra.mxu0 %v7274
      %7290 = vmatpush.bf16.msra.mxu0 %v7273
      %7291 = vmatpush.bf16.msra.mxu0 %v7272
      %7292 = vmatpush.bf16.msra.mxu0 %v7271
      %7293 = vmatpush.bf16.msra.mxu0 %v7270
      %7294 = vmatmul.bf16.gmra.mxu0 %v7083
      %v7295 = vpop.f32.mrf.mxu0
      %v7296 = vadd.f32 0.0, %v7295
      %v7297 = vpop.f32.mrf.mxu0
      %v7298 = vadd.f32 0.0, %v7297
      %7299 = vmatmul.bf16.gmra.mxu0 %v7091
      %v7300 = vpop.f32.mrf.mxu0
      %v7301 = vadd.f32 0.0, %v7300
      %v7302 = vpop.f32.mrf.mxu0
      %v7303 = vadd.f32 0.0, %v7302
      %7304 = vmatmul.bf16.gmra.mxu0 %v7099
      %v7305 = vpop.f32.mrf.mxu0
      %v7306 = vadd.f32 0.0, %v7305
      %v7307 = vpop.f32.mrf.mxu0
      %v7308 = vadd.f32 0.0, %v7307
      %7309 = vmatmul.bf16.gmra.mxu0 %v7107
      %v7310 = vpop.f32.mrf.mxu0
      %v7311 = vadd.f32 0.0, %v7310
      %v7312 = vpop.f32.mrf.mxu0
      %v7313 = vadd.f32 0.0, %v7312
      %7314 = vmatmul.bf16.gmra.mxu0 %v7115
      %v7315 = vpop.f32.mrf.mxu0
      %v7316 = vadd.f32 0.0, %v7315
      %v7317 = vpop.f32.mrf.mxu0
      %v7318 = vadd.f32 0.0, %v7317
      %7319 = vmatmul.bf16.gmra.mxu0 %v7123
      %v7320 = vpop.f32.mrf.mxu0
      %v7321 = vadd.f32 0.0, %v7320
      %v7322 = vpop.f32.mrf.mxu0
      %v7323 = vadd.f32 0.0, %v7322
      %7324 = vmatmul.bf16.gmra.mxu0 %v7131
      %v7325 = vpop.f32.mrf.mxu0
      %v7326 = vadd.f32 0.0, %v7325
      %v7327 = vpop.f32.mrf.mxu0
      %v7328 = vadd.f32 0.0, %v7327
      %7329 = vmatmul.bf16.gmra.mxu0 %v7139
      %v7330 = vpop.f32.mrf.mxu0
      %v7331 = vadd.f32 0.0, %v7330
      %v7332 = vpop.f32.mrf.mxu0
      %v7333 = vadd.f32 0.0, %v7332
      %7334 = vmatmul.bf16.gmra.mxu0 %v7147
      %v7335 = vpop.f32.mrf.mxu0
      %v7336 = vadd.f32 0.0, %v7335
      %v7337 = vpop.f32.mrf.mxu0
      %v7338 = vadd.f32 0.0, %v7337
      %7339 = vmatmul.bf16.gmra.mxu0 %v7155
      %v7340 = vpop.f32.mrf.mxu0
      %v7341 = vadd.f32 0.0, %v7340
      %v7342 = vpop.f32.mrf.mxu0
      %v7343 = vadd.f32 0.0, %v7342
      %7344 = vmatmul.bf16.gmra.mxu0 %v7163
      %v7345 = vpop.f32.mrf.mxu0
      %v7346 = vadd.f32 0.0, %v7345
      %v7347 = vpop.f32.mrf.mxu0
      %v7348 = vadd.f32 0.0, %v7347
      %7349 = vmatmul.bf16.gmra.mxu0 %v7171
      %v7350 = vpop.f32.mrf.mxu0
      %v7351 = vadd.f32 0.0, %v7350
      %v7352 = vpop.f32.mrf.mxu0
      %v7353 = vadd.f32 0.0, %v7352
      %7354 = vmatmul.bf16.gmra.mxu0 %v7179
      %v7355 = vpop.f32.mrf.mxu0
      %v7356 = vadd.f32 0.0, %v7355
      %v7357 = vpop.f32.mrf.mxu0
      %v7358 = vadd.f32 0.0, %v7357
      %7359 = vmatmul.bf16.gmra.mxu0 %v7187
      %v7360 = vpop.f32.mrf.mxu0
      %v7361 = vadd.f32 0.0, %v7360
      %v7362 = vpop.f32.mrf.mxu0
      %v7363 = vadd.f32 0.0, %v7362
      %7364 = vmatmul.bf16.gmra.mxu0 %v7195
      %v7365 = vpop.f32.mrf.mxu0
      %v7366 = vadd.f32 0.0, %v7365
      %v7367 = vpop.f32.mrf.mxu0
      %v7368 = vadd.f32 0.0, %v7367
      %7369 = vmatmul.bf16.gmra.mxu0 %v7203
      %v7370 = vpop.f32.mrf.mxu0
      %v7371 = vadd.f32 0.0, %v7370
      %v7372 = vpop.f32.mrf.mxu0
      %v7373 = vadd.f32 0.0, %v7372
      %7374 = vmatmul.bf16.gmra.mxu0 %v7211
      %v7375 = vpop.f32.mrf.mxu0
      %v7376 = vadd.f32 0.0, %v7375
      %v7377 = vpop.f32.mrf.mxu0
      %v7378 = vadd.f32 0.0, %v7377
      %7379 = vmatmul.bf16.gmra.mxu0 %v7219
      %v7380 = vpop.f32.mrf.mxu0
      %v7381 = vadd.f32 0.0, %v7380
      %v7382 = vpop.f32.mrf.mxu0
      %v7383 = vadd.f32 0.0, %v7382
      %7384 = vdwg.mxu0
      %v7385 = vadd.f32 %v6889, %v7296
      %v7386 = vadd.f32 %v6890, %v7298
      %v7387 = vadd.f32 %v6891, %v7301
      %v7388 = vadd.f32 %v6892, %v7303
      %v7389 = vadd.f32 %v6893, %v7306
      %v7390 = vadd.f32 %v6894, %v7308
      %v7391 = vadd.f32 %v6895, %v7311
      %v7392 = vadd.f32 %v6896, %v7313
      %v7393 = vadd.f32 %v6897, %v7316
      %v7394 = vadd.f32 %v6898, %v7318
      %v7395 = vadd.f32 %v6899, %v7321
      %v7396 = vadd.f32 %v6900, %v7323
      %v7397 = vadd.f32 %v6901, %v7326
      %v7398 = vadd.f32 %v6902, %v7328
      %v7399 = vadd.f32 %v6903, %v7331
      %v7400 = vadd.f32 %v6904, %v7333
      %v7401 = vadd.f32 %v6905, %v7336
      %v7402 = vadd.f32 %v6906, %v7338
      %v7403 = vadd.f32 %v6907, %v7341
      %v7404 = vadd.f32 %v6908, %v7343
      %v7405 = vadd.f32 %v6909, %v7346
      %v7406 = vadd.f32 %v6910, %v7348
      %v7407 = vadd.f32 %v6911, %v7351
      %v7408 = vadd.f32 %v6912, %v7353
      %v7409 = vadd.f32 %v6913, %v7356
      %v7410 = vadd.f32 %v6914, %v7358
      %v7411 = vadd.f32 %v6915, %v7361
      %v7412 = vadd.f32 %v6916, %v7363
      %v7413 = vadd.f32 %v6917, %v7366
      %v7414 = vadd.f32 %v6918, %v7368
      %v7415 = vadd.f32 %v6919, %v7371
      %v7416 = vadd.f32 %v6920, %v7373
      %v7417 = vadd.f32 %v6921, %v7376
      %v7418 = vadd.f32 %v6922, %v7378
      %v7419 = vadd.f32 %v6923, %v7381
      %v7420 = vadd.f32 %v6924, %v7383
      %v7421 = vld [vmem:[#allocation3 + $0x18] sm:$0xf]
      %v7422 = vld [vmem:[#allocation3 + $0x1c] sm:$0xf]
      %v7423 = vld [vmem:[#allocation3 + $0x20] sm:$0xf]
      %v7424 = vld [vmem:[#allocation3 + $0x24] sm:$0xf]
      %v7425 = vld [vmem:[#allocation3 + $0x28] sm:$0xf]
      %v7426 = vld [vmem:[#allocation3 + $0x2c] sm:$0xf]
      %v7427 = vld [vmem:[#allocation3 + $0x30] sm:$0xf]
      %v7428 = vld [vmem:[#allocation3 + $0x34] sm:$0xf]
      %v7429 = vld [vmem:[#allocation3 + $0x38] sm:$0xf]
      %v7430 = vld [vmem:[#allocation3 + $0x3c] sm:$0xf]
      %v7431 = vld [vmem:[#allocation3 + $0x40] sm:$0xf]
      %v7432 = vld [vmem:[#allocation3 + $0x44] sm:$0xf]
      %v7433 = vld [vmem:[#allocation3 + $0x48] sm:$0xf]
      %v7434 = vld [vmem:[#allocation3 + $0x4c] sm:$0xf]
      %v7435 = vld [vmem:[#allocation3 + $0x50] sm:$0xf]
      %v7436 = vld [vmem:[#allocation3 + $0x54] sm:$0xf]
      %v7437 = vld [vmem:[#allocation3 + $0x58] sm:$0xf]
      %v7438 = vld [vmem:[#allocation3 + $0x5c] sm:$0xf]
      %v7439 = vld [vmem:[#allocation3 + $0x60] sm:$0xf]
      %v7440 = vld [vmem:[#allocation3 + $0x64] sm:$0xf]
      %v7441 = vld [vmem:[#allocation3 + $0x68] sm:$0xf]
      %v7442 = vld [vmem:[#allocation3 + $0x6c] sm:$0xf]
      %v7443 = vld [vmem:[#allocation3 + $0x70] sm:$0xf]
      %v7444 = vld [vmem:[#allocation3 + $0x74] sm:$0xf]
      %v7445 = vld [vmem:[#allocation3 + $0x78] sm:$0xf]
      %v7446 = vld [vmem:[#allocation3 + $0x7c] sm:$0xf]
      %v7447 = vld [vmem:[#allocation3 + $0x80] sm:$0xf]
      %v7448 = vld [vmem:[#allocation3 + $0x84] sm:$0xf]
      %v7449 = vld [vmem:[#allocation3 + $0x88] sm:$0xf]
      %v7450 = vld [vmem:[#allocation3 + $0x8c] sm:$0xf]
      %v7451 = vld [vmem:[#allocation3 + $0x90] sm:$0xf]
      %v7452 = vld [vmem:[#allocation3 + $0x94] sm:$0xf]
      %v7453 = vld [vmem:[#allocation3 + $0x98] sm:$0xf]
      %v7454 = vld [vmem:[#allocation3 + $0x9c] sm:$0xf]
      %v7455 = vld [vmem:[#allocation3 + $0xa0] sm:$0xf]
      %v7456 = vld [vmem:[#allocation3 + $0xa4] sm:$0xf]
      %v7457 = vld [vmem:[#allocation3 + $0xa8] sm:$0x1]
      %s7458 = scalar_lea.vmem %s6, 384
      %v7459 = vld [vmem:[%s7458] sm:$0xf]
      %v7460 = vld [vmem:[%s7458 + $0x4] sm:$0xf]
      %v7461 = vld [vmem:[%s7458 + $0x8] sm:$0xf]
      %v7462 = vld [vmem:[%s7458 + $0xc] sm:$0xf]
      %v7463 = vld [vmem:[%s7458 + $0x10] sm:$0xf]
      %v7464 = vld [vmem:[%s7458 + $0x14] sm:$0xf]
      %v7465 = vld [vmem:[%s7458 + $0x18] sm:$0xf]
      %v7466 = vld [vmem:[%s7458 + $0x1c] sm:$0xf]
      %v7467 = vld [vmem:[%s7458 + $0x20] sm:$0xf]
      %v7468 = vld [vmem:[%s7458 + $0x24] sm:$0xf]
      %v7469 = vld [vmem:[%s7458 + $0x28] sm:$0xf]
      %v7470 = vld [vmem:[%s7458 + $0x2c] sm:$0xf]
      %v7471 = vld [vmem:[%s7458 + $0x30] sm:$0xf]
      %v7472 = vld [vmem:[%s7458 + $0x34] sm:$0xf]
      %v7473 = vld [vmem:[%s7458 + $0x38] sm:$0xf]
      %v7474 = vld [vmem:[%s7458 + $0x3c] sm:$0xf]
      %v7512 = vunpack.c.l.b16 %v7421
      %v7513 = vunpack.c.l.b16 %v7422
      %v7514 = vunpack.c.l.b16 %v7423
      %v7515 = vunpack.c.l.b16 %v7424
      %v7516 = vunpack.c.l.b16 %v7425
      %v7517 = vunpack.c.l.b16 %v7426
      %v7518 = vunpack.c.l.b16 %v7427
      %v7519 = vunpack.c.l.b16 %v7428
      %v7520 = vunpack.c.l.b16 %v7429
      %v7521 = vunpack.c.l.b16 %v7430
      %v7522 = vunpack.c.l.b16 %v7431
      %v7523 = vunpack.c.l.b16 %v7432
      %v7524 = vunpack.c.l.b16 %v7433
      %v7525 = vunpack.c.l.b16 %v7434
      %v7526 = vunpack.c.l.b16 %v7435
      %v7527 = vunpack.c.l.b16 %v7436
      %v7528 = vunpack.c.l.b16 %v7437
      %v7529 = vunpack.c.l.b16 %v7438
      %v7530 = vunpack.c.l.b16 %v7439
      %v7531 = vunpack.c.l.b16 %v7440
      %v7532 = vunpack.c.l.b16 %v7441
      %v7533 = vunpack.c.l.b16 %v7442
      %v7534 = vunpack.c.l.b16 %v7443
      %v7535 = vunpack.c.l.b16 %v7444
      %v7536 = vunpack.c.l.b16 %v7445
      %v7537 = vunpack.c.l.b16 %v7446
      %v7538 = vunpack.c.l.b16 %v7447
      %v7539 = vunpack.c.l.b16 %v7448
      %v7540 = vunpack.c.l.b16 %v7449
      %v7541 = vunpack.c.l.b16 %v7450
      %v7542 = vunpack.c.l.b16 %v7451
      %v7543 = vunpack.c.l.b16 %v7452
      %v7544 = vunpack.c.l.b16 %v7453
      %v7545 = vunpack.c.l.b16 %v7454
      %v7546 = vunpack.c.l.b16 %v7455
      %v7547 = vunpack.c.l.b16 %v7456
      %v7548 = vunpack.c.l.b16 %v7457
      %v7549 = vpack.c.b16 %v7513, %v7512
      %v7550 = vpack.c.b16 %v7515, %v7514
      %v7551 = vpack.c.b16 %v7517, %v7516
      %v7552 = vpack.c.b16 %v7519, %v7518
      %v7553 = vpack.c.b16 %v7521, %v7520
      %v7554 = vpack.c.b16 %v7523, %v7522
      %v7555 = vpack.c.b16 %v7525, %v7524
      %v7556 = vpack.c.b16 %v7527, %v7526
      %v7557 = vpack.c.b16 %v7529, %v7528
      %v7558 = vpack.c.b16 %v7531, %v7530
      %v7559 = vpack.c.b16 %v7533, %v7532
      %v7560 = vpack.c.b16 %v7535, %v7534
      %v7561 = vpack.c.b16 %v7537, %v7536
      %v7562 = vpack.c.b16 %v7539, %v7538
      %v7563 = vpack.c.b16 %v7541, %v7540
      %v7564 = vpack.c.b16 %v7543, %v7542
      %v7565 = vpack.c.b16 %v7545, %v7544
      %v7566 = vpack.c.b16 %v7547, %v7546
      %v7567 = vpack.c.b16 %v7548, %v7548
      %v7569 = vshrl.u32 %v7549, 16
      %v7571 = vshll.u32 %v7549, 16
      %v7573 = vrot.slane %v7571, 1
      %v7574 = vor.u32 %v7569, %v7573
      %v7576 = vshll.u32 %v7550, 16
      %v7578 = vrot.slane %v7576, 1
      %v7579 = vsel %vm3240, %v7574, %v7578
      %v7580 = vshrl.u32 %v7550, 16
      %v7582 = vor.u32 %v7580, %v7578
      %v7584 = vshll.u32 %v7551, 16
      %v7586 = vrot.slane %v7584, 1
      %v7587 = vsel %vm3240, %v7582, %v7586
      %v7588 = vshrl.u32 %v7551, 16
      %v7590 = vor.u32 %v7588, %v7586
      %v7592 = vshll.u32 %v7552, 16
      %v7594 = vrot.slane %v7592, 1
      %v7595 = vsel %vm3240, %v7590, %v7594
      %v7596 = vshrl.u32 %v7552, 16
      %v7598 = vor.u32 %v7596, %v7594
      %v7600 = vshll.u32 %v7553, 16
      %v7602 = vrot.slane %v7600, 1
      %v7603 = vsel %vm3240, %v7598, %v7602
      %v7604 = vshrl.u32 %v7553, 16
      %v7606 = vor.u32 %v7604, %v7602
      %v7608 = vshll.u32 %v7554, 16
      %v7610 = vrot.slane %v7608, 1
      %v7611 = vsel %vm3240, %v7606, %v7610
      %v7612 = vshrl.u32 %v7554, 16
      %v7614 = vor.u32 %v7612, %v7610
      %v7616 = vshll.u32 %v7555, 16
      %v7618 = vrot.slane %v7616, 1
      %v7619 = vsel %vm3240, %v7614, %v7618
      %v7620 = vshrl.u32 %v7555, 16
      %v7622 = vor.u32 %v7620, %v7618
      %v7624 = vshll.u32 %v7556, 16
      %v7626 = vrot.slane %v7624, 1
      %v7627 = vsel %vm3240, %v7622, %v7626
      %v7628 = vshrl.u32 %v7556, 16
      %v7630 = vor.u32 %v7628, %v7626
      %v7632 = vshll.u32 %v7557, 16
      %v7634 = vrot.slane %v7632, 1
      %v7635 = vsel %vm3240, %v7630, %v7634
      %v7636 = vshrl.u32 %v7557, 16
      %v7638 = vor.u32 %v7636, %v7634
      %v7640 = vshll.u32 %v7558, 16
      %v7642 = vrot.slane %v7640, 1
      %v7643 = vsel %vm3240, %v7638, %v7642
      %v7644 = vshrl.u32 %v7558, 16
      %v7646 = vor.u32 %v7644, %v7642
      %v7648 = vshll.u32 %v7559, 16
      %v7650 = vrot.slane %v7648, 1
      %v7651 = vsel %vm3240, %v7646, %v7650
      %v7652 = vshrl.u32 %v7559, 16
      %v7654 = vor.u32 %v7652, %v7650
      %v7656 = vshll.u32 %v7560, 16
      %v7658 = vrot.slane %v7656, 1
      %v7659 = vsel %vm3240, %v7654, %v7658
      %v7660 = vshrl.u32 %v7560, 16
      %v7662 = vor.u32 %v7660, %v7658
      %v7664 = vshll.u32 %v7561, 16
      %v7666 = vrot.slane %v7664, 1
      %v7667 = vsel %vm3240, %v7662, %v7666
      %v7668 = vshrl.u32 %v7561, 16
      %v7670 = vor.u32 %v7668, %v7666
      %v7672 = vshll.u32 %v7562, 16
      %v7674 = vrot.slane %v7672, 1
      %v7675 = vsel %vm3240, %v7670, %v7674
      %v7676 = vshrl.u32 %v7562, 16
      %v7678 = vor.u32 %v7676, %v7674
      %v7680 = vshll.u32 %v7563, 16
      %v7682 = vrot.slane %v7680, 1
      %v7683 = vsel %vm3240, %v7678, %v7682
      %v7684 = vshrl.u32 %v7563, 16
      %v7686 = vor.u32 %v7684, %v7682
      %v7688 = vshll.u32 %v7564, 16
      %v7690 = vrot.slane %v7688, 1
      %v7691 = vsel %vm3240, %v7686, %v7690
      %v7692 = vshrl.u32 %v7564, 16
      %v7694 = vor.u32 %v7692, %v7690
      %v7696 = vshll.u32 %v7565, 16
      %v7698 = vrot.slane %v7696, 1
      %v7699 = vsel %vm3240, %v7694, %v7698
      %v7700 = vshrl.u32 %v7565, 16
      %v7702 = vor.u32 %v7700, %v7698
      %v7704 = vshll.u32 %v7566, 16
      %v7706 = vrot.slane %v7704, 1
      %v7707 = vsel %vm3240, %v7702, %v7706
      %v7708 = vshrl.u32 %v7566, 16
      %v7710 = vor.u32 %v7708, %v7706
      %v7712 = vshll.u32 %v7567, 16
      %v7714 = vrot.slane %v7712, 1
      %v7715 = vsel %vm3240, %v7710, %v7714
      %v7750 = vunpack.c.l.b16 %v7459
      %v7751 = vunpack.c.l.b16 %v7460
      %v7752 = vunpack.c.l.b16 %v7461
      %v7753 = vunpack.c.l.b16 %v7462
      %v7754 = vunpack.c.l.b16 %v7463
      %v7755 = vunpack.c.l.b16 %v7464
      %v7756 = vunpack.c.l.b16 %v7465
      %v7757 = vunpack.c.l.b16 %v7466
      %v7758 = vunpack.c.l.b16 %v7467
      %v7759 = vunpack.c.l.b16 %v7468
      %v7760 = vunpack.c.l.b16 %v7469
      %v7761 = vunpack.c.l.b16 %v7470
      %v7762 = vunpack.c.l.b16 %v7471
      %v7763 = vunpack.c.l.b16 %v7472
      %v7764 = vunpack.c.l.b16 %v7473
      %v7765 = vunpack.c.l.b16 %v7474
      %v7766 = vpack.c.b16 %v7751, %v7750
      %v7767 = vpack.c.b16 %v7753, %v7752
      %v7768 = vpack.c.b16 %v7755, %v7754
      %v7769 = vpack.c.b16 %v7757, %v7756
      %v7770 = vpack.c.b16 %v7759, %v7758
      %v7771 = vpack.c.b16 %v7761, %v7760
      %v7772 = vpack.c.b16 %v7763, %v7762
      %v7773 = vpack.c.b16 %v7765, %v7764
      %7782 = vmatpush.bf16.msra.mxu0 %v7773
      %7783 = vmatpush.bf16.msra.mxu0 %v7772
      %7784 = vmatpush.bf16.msra.mxu0 %v7771
      %7785 = vmatpush.bf16.msra.mxu0 %v7770
      %7786 = vmatpush.bf16.msra.mxu0 %v7769
      %7787 = vmatpush.bf16.msra.mxu0 %v7768
      %7788 = vmatpush.bf16.msra.mxu0 %v7767
      %7789 = vmatpush.bf16.msra.mxu0 %v7766
      %7790 = vmatmul.bf16.gmra.mxu0 %v7579
      %v7791 = vpop.f32.mrf.mxu0
      %v7792 = vadd.f32 0.0, %v7791
      %v7793 = vpop.f32.mrf.mxu0
      %v7794 = vadd.f32 0.0, %v7793
      %7795 = vmatmul.bf16.gmra.mxu0 %v7587
      %v7796 = vpop.f32.mrf.mxu0
      %v7797 = vadd.f32 0.0, %v7796
      %v7798 = vpop.f32.mrf.mxu0
      %v7799 = vadd.f32 0.0, %v7798
      %7800 = vmatmul.bf16.gmra.mxu0 %v7595
      %v7801 = vpop.f32.mrf.mxu0
      %v7802 = vadd.f32 0.0, %v7801
      %v7803 = vpop.f32.mrf.mxu0
      %v7804 = vadd.f32 0.0, %v7803
      %7805 = vmatmul.bf16.gmra.mxu0 %v7603
      %v7806 = vpop.f32.mrf.mxu0
      %v7807 = vadd.f32 0.0, %v7806
      %v7808 = vpop.f32.mrf.mxu0
      %v7809 = vadd.f32 0.0, %v7808
      %7810 = vmatmul.bf16.gmra.mxu0 %v7611
      %v7811 = vpop.f32.mrf.mxu0
      %v7812 = vadd.f32 0.0, %v7811
      %v7813 = vpop.f32.mrf.mxu0
      %v7814 = vadd.f32 0.0, %v7813
      %7815 = vmatmul.bf16.gmra.mxu0 %v7619
      %v7816 = vpop.f32.mrf.mxu0
      %v7817 = vadd.f32 0.0, %v7816
      %v7818 = vpop.f32.mrf.mxu0
      %v7819 = vadd.f32 0.0, %v7818
      %7820 = vmatmul.bf16.gmra.mxu0 %v7627
      %v7821 = vpop.f32.mrf.mxu0
      %v7822 = vadd.f32 0.0, %v7821
      %v7823 = vpop.f32.mrf.mxu0
      %v7824 = vadd.f32 0.0, %v7823
      %7825 = vmatmul.bf16.gmra.mxu0 %v7635
      %v7826 = vpop.f32.mrf.mxu0
      %v7827 = vadd.f32 0.0, %v7826
      %v7828 = vpop.f32.mrf.mxu0
      %v7829 = vadd.f32 0.0, %v7828
      %7830 = vmatmul.bf16.gmra.mxu0 %v7643
      %v7831 = vpop.f32.mrf.mxu0
      %v7832 = vadd.f32 0.0, %v7831
      %v7833 = vpop.f32.mrf.mxu0
      %v7834 = vadd.f32 0.0, %v7833
      %7835 = vmatmul.bf16.gmra.mxu0 %v7651
      %v7836 = vpop.f32.mrf.mxu0
      %v7837 = vadd.f32 0.0, %v7836
      %v7838 = vpop.f32.mrf.mxu0
      %v7839 = vadd.f32 0.0, %v7838
      %7840 = vmatmul.bf16.gmra.mxu0 %v7659
      %v7841 = vpop.f32.mrf.mxu0
      %v7842 = vadd.f32 0.0, %v7841
      %v7843 = vpop.f32.mrf.mxu0
      %v7844 = vadd.f32 0.0, %v7843
      %7845 = vmatmul.bf16.gmra.mxu0 %v7667
      %v7846 = vpop.f32.mrf.mxu0
      %v7847 = vadd.f32 0.0, %v7846
      %v7848 = vpop.f32.mrf.mxu0
      %v7849 = vadd.f32 0.0, %v7848
      %7850 = vmatmul.bf16.gmra.mxu0 %v7675
      %v7851 = vpop.f32.mrf.mxu0
      %v7852 = vadd.f32 0.0, %v7851
      %v7853 = vpop.f32.mrf.mxu0
      %v7854 = vadd.f32 0.0, %v7853
      %7855 = vmatmul.bf16.gmra.mxu0 %v7683
      %v7856 = vpop.f32.mrf.mxu0
      %v7857 = vadd.f32 0.0, %v7856
      %v7858 = vpop.f32.mrf.mxu0
      %v7859 = vadd.f32 0.0, %v7858
      %7860 = vmatmul.bf16.gmra.mxu0 %v7691
      %v7861 = vpop.f32.mrf.mxu0
      %v7862 = vadd.f32 0.0, %v7861
      %v7863 = vpop.f32.mrf.mxu0
      %v7864 = vadd.f32 0.0, %v7863
      %7865 = vmatmul.bf16.gmra.mxu0 %v7699
      %v7866 = vpop.f32.mrf.mxu0
      %v7867 = vadd.f32 0.0, %v7866
      %v7868 = vpop.f32.mrf.mxu0
      %v7869 = vadd.f32 0.0, %v7868
      %7870 = vmatmul.bf16.gmra.mxu0 %v7707
      %v7871 = vpop.f32.mrf.mxu0
      %v7872 = vadd.f32 0.0, %v7871
      %v7873 = vpop.f32.mrf.mxu0
      %v7874 = vadd.f32 0.0, %v7873
      %7875 = vmatmul.bf16.gmra.mxu0 %v7715
      %v7876 = vpop.f32.mrf.mxu0
      %v7877 = vadd.f32 0.0, %v7876
      %v7878 = vpop.f32.mrf.mxu0
      %v7879 = vadd.f32 0.0, %v7878
      %7880 = vdwg.mxu0
      %v7881 = vadd.f32 %v7385, %v7792
      %v7882 = vadd.f32 %v7386, %v7794
      %v7883 = vadd.f32 %v7387, %v7797
      %v7884 = vadd.f32 %v7388, %v7799
      %v7885 = vadd.f32 %v7389, %v7802
      %v7886 = vadd.f32 %v7390, %v7804
      %v7887 = vadd.f32 %v7391, %v7807
      %v7888 = vadd.f32 %v7392, %v7809
      %v7889 = vadd.f32 %v7393, %v7812
      %v7890 = vadd.f32 %v7394, %v7814
      %v7891 = vadd.f32 %v7395, %v7817
      %v7892 = vadd.f32 %v7396, %v7819
      %v7893 = vadd.f32 %v7397, %v7822
      %v7894 = vadd.f32 %v7398, %v7824
      %v7895 = vadd.f32 %v7399, %v7827
      %v7896 = vadd.f32 %v7400, %v7829
      %v7897 = vadd.f32 %v7401, %v7832
      %v7898 = vadd.f32 %v7402, %v7834
      %v7899 = vadd.f32 %v7403, %v7837
      %v7900 = vadd.f32 %v7404, %v7839
      %v7901 = vadd.f32 %v7405, %v7842
      %v7902 = vadd.f32 %v7406, %v7844
      %v7903 = vadd.f32 %v7407, %v7847
      %v7904 = vadd.f32 %v7408, %v7849
      %v7905 = vadd.f32 %v7409, %v7852
      %v7906 = vadd.f32 %v7410, %v7854
      %v7907 = vadd.f32 %v7411, %v7857
      %v7908 = vadd.f32 %v7412, %v7859
      %v7909 = vadd.f32 %v7413, %v7862
      %v7910 = vadd.f32 %v7414, %v7864
      %v7911 = vadd.f32 %v7415, %v7867
      %v7912 = vadd.f32 %v7416, %v7869
      %v7913 = vadd.f32 %v7417, %v7872
      %v7914 = vadd.f32 %v7418, %v7874
      %v7915 = vadd.f32 %v7419, %v7877
      %v7916 = vadd.f32 %v7420, %v7879
      %v7917 = vld [vmem:[#allocation3 + $0x18] sm:$0xe]
      %s7918 = scalar_lea.vmem %s6, 448
      %v7919 = vld [vmem:[%s7918] sm:$0xf]
      %v7920 = vld [vmem:[%s7918 + $0x4] sm:$0xf]
      %v7921 = vld [vmem:[%s7918 + $0x8] sm:$0xf]
      %v7922 = vld [vmem:[%s7918 + $0xc] sm:$0xf]
      %v7923 = vld [vmem:[%s7918 + $0x10] sm:$0xf]
      %v7924 = vld [vmem:[%s7918 + $0x14] sm:$0xf]
      %v7925 = vld [vmem:[%s7918 + $0x18] sm:$0xf]
      %v7926 = vld [vmem:[%s7918 + $0x1c] sm:$0xf]
      %v7927 = vld [vmem:[%s7918 + $0x20] sm:$0xf]
      %v7928 = vld [vmem:[%s7918 + $0x24] sm:$0xf]
      %v7929 = vld [vmem:[%s7918 + $0x28] sm:$0xf]
      %v7930 = vld [vmem:[%s7918 + $0x2c] sm:$0xf]
      %v7931 = vld [vmem:[%s7918 + $0x30] sm:$0xf]
      %v7932 = vld [vmem:[%s7918 + $0x34] sm:$0xf]
      %v7933 = vld [vmem:[%s7918 + $0x38] sm:$0xf]
      %v7934 = vld [vmem:[%s7918 + $0x3c] sm:$0xf]
      %v7936 = vunpack.c.l.b16 %v7917
      %v7937 = vpack.c.b16 %v7513, %v7936
      %v7938 = vrot.slane %v7937, 1
      %v7939 = vrot.slane %v7550, 1
      %v7940 = vsel %vm4107, %v7938, %v7939
      %v7941 = vrot.slane %v7551, 1
      %v7942 = vsel %vm4107, %v7939, %v7941
      %v7943 = vrot.slane %v7552, 1
      %v7944 = vsel %vm4107, %v7941, %v7943
      %v7945 = vrot.slane %v7553, 1
      %v7946 = vsel %vm4107, %v7943, %v7945
      %v7947 = vrot.slane %v7554, 1
      %v7948 = vsel %vm4107, %v7945, %v7947
      %v7949 = vrot.slane %v7555, 1
      %v7950 = vsel %vm4107, %v7947, %v7949
      %v7951 = vrot.slane %v7556, 1
      %v7952 = vsel %vm4107, %v7949, %v7951
      %v7953 = vrot.slane %v7557, 1
      %v7954 = vsel %vm4107, %v7951, %v7953
      %v7955 = vrot.slane %v7558, 1
      %v7956 = vsel %vm4107, %v7953, %v7955
      %v7957 = vrot.slane %v7559, 1
      %v7958 = vsel %vm4107, %v7955, %v7957
      %v7959 = vrot.slane %v7560, 1
      %v7960 = vsel %vm4107, %v7957, %v7959
      %v7961 = vrot.slane %v7561, 1
      %v7962 = vsel %vm4107, %v7959, %v7961
      %v7963 = vrot.slane %v7562, 1
      %v7964 = vsel %vm4107, %v7961, %v7963
      %v7965 = vrot.slane %v7563, 1
      %v7966 = vsel %vm4107, %v7963, %v7965
      %v7967 = vrot.slane %v7564, 1
      %v7968 = vsel %vm4107, %v7965, %v7967
      %v7969 = vrot.slane %v7565, 1
      %v7970 = vsel %vm4107, %v7967, %v7969
      %v7971 = vrot.slane %v7566, 1
      %v7972 = vsel %vm4107, %v7969, %v7971
      %v7973 = vrot.slane %v7567, 1
      %v7974 = vsel %vm4107, %v7971, %v7973
      %v8009 = vunpack.c.l.b16 %v7919
      %v8010 = vunpack.c.l.b16 %v7920
      %v8011 = vunpack.c.l.b16 %v7921
      %v8012 = vunpack.c.l.b16 %v7922
      %v8013 = vunpack.c.l.b16 %v7923
      %v8014 = vunpack.c.l.b16 %v7924
      %v8015 = vunpack.c.l.b16 %v7925
      %v8016 = vunpack.c.l.b16 %v7926
      %v8017 = vunpack.c.l.b16 %v7927
      %v8018 = vunpack.c.l.b16 %v7928
      %v8019 = vunpack.c.l.b16 %v7929
      %v8020 = vunpack.c.l.b16 %v7930
      %v8021 = vunpack.c.l.b16 %v7931
      %v8022 = vunpack.c.l.b16 %v7932
      %v8023 = vunpack.c.l.b16 %v7933
      %v8024 = vunpack.c.l.b16 %v7934
      %v8025 = vpack.c.b16 %v8010, %v8009
      %v8026 = vpack.c.b16 %v8012, %v8011
      %v8027 = vpack.c.b16 %v8014, %v8013
      %v8028 = vpack.c.b16 %v8016, %v8015
      %v8029 = vpack.c.b16 %v8018, %v8017
      %v8030 = vpack.c.b16 %v8020, %v8019
      %v8031 = vpack.c.b16 %v8022, %v8021
      %v8032 = vpack.c.b16 %v8024, %v8023
      %8041 = vmatpush.bf16.msra.mxu0 %v8032
      %8042 = vmatpush.bf16.msra.mxu0 %v8031
      %8043 = vmatpush.bf16.msra.mxu0 %v8030
      %8044 = vmatpush.bf16.msra.mxu0 %v8029
      %8045 = vmatpush.bf16.msra.mxu0 %v8028
      %8046 = vmatpush.bf16.msra.mxu0 %v8027
      %8047 = vmatpush.bf16.msra.mxu0 %v8026
      %8048 = vmatpush.bf16.msra.mxu0 %v8025
      %8049 = vmatmul.bf16.gmra.mxu0 %v7940
      %v8050 = vpop.f32.mrf.mxu0
      %v8051 = vadd.f32 0.0, %v8050
      %v8052 = vpop.f32.mrf.mxu0
      %v8053 = vadd.f32 0.0, %v8052
      %8054 = vmatmul.bf16.gmra.mxu0 %v7942
      %v8055 = vpop.f32.mrf.mxu0
      %v8056 = vadd.f32 0.0, %v8055
      %v8057 = vpop.f32.mrf.mxu0
      %v8058 = vadd.f32 0.0, %v8057
      %8059 = vmatmul.bf16.gmra.mxu0 %v7944
      %v8060 = vpop.f32.mrf.mxu0
      %v8061 = vadd.f32 0.0, %v8060
      %v8062 = vpop.f32.mrf.mxu0
      %v8063 = vadd.f32 0.0, %v8062
      %8064 = vmatmul.bf16.gmra.mxu0 %v7946
      %v8065 = vpop.f32.mrf.mxu0
      %v8066 = vadd.f32 0.0, %v8065
      %v8067 = vpop.f32.mrf.mxu0
      %v8068 = vadd.f32 0.0, %v8067
      %8069 = vmatmul.bf16.gmra.mxu0 %v7948
      %v8070 = vpop.f32.mrf.mxu0
      %v8071 = vadd.f32 0.0, %v8070
      %v8072 = vpop.f32.mrf.mxu0
      %v8073 = vadd.f32 0.0, %v8072
      %8074 = vmatmul.bf16.gmra.mxu0 %v7950
      %v8075 = vpop.f32.mrf.mxu0
      %v8076 = vadd.f32 0.0, %v8075
      %v8077 = vpop.f32.mrf.mxu0
      %v8078 = vadd.f32 0.0, %v8077
      %8079 = vmatmul.bf16.gmra.mxu0 %v7952
      %v8080 = vpop.f32.mrf.mxu0
      %v8081 = vadd.f32 0.0, %v8080
      %v8082 = vpop.f32.mrf.mxu0
      %v8083 = vadd.f32 0.0, %v8082
      %8084 = vmatmul.bf16.gmra.mxu0 %v7954
      %v8085 = vpop.f32.mrf.mxu0
      %v8086 = vadd.f32 0.0, %v8085
      %v8087 = vpop.f32.mrf.mxu0
      %v8088 = vadd.f32 0.0, %v8087
      %8089 = vmatmul.bf16.gmra.mxu0 %v7956
      %v8090 = vpop.f32.mrf.mxu0
      %v8091 = vadd.f32 0.0, %v8090
      %v8092 = vpop.f32.mrf.mxu0
      %v8093 = vadd.f32 0.0, %v8092
      %8094 = vmatmul.bf16.gmra.mxu0 %v7958
      %v8095 = vpop.f32.mrf.mxu0
      %v8096 = vadd.f32 0.0, %v8095
      %v8097 = vpop.f32.mrf.mxu0
      %v8098 = vadd.f32 0.0, %v8097
      %8099 = vmatmul.bf16.gmra.mxu0 %v7960
      %v8100 = vpop.f32.mrf.mxu0
      %v8101 = vadd.f32 0.0, %v8100
      %v8102 = vpop.f32.mrf.mxu0
      %v8103 = vadd.f32 0.0, %v8102
      %8104 = vmatmul.bf16.gmra.mxu0 %v7962
      %v8105 = vpop.f32.mrf.mxu0
      %v8106 = vadd.f32 0.0, %v8105
      %v8107 = vpop.f32.mrf.mxu0
      %v8108 = vadd.f32 0.0, %v8107
      %8109 = vmatmul.bf16.gmra.mxu0 %v7964
      %v8110 = vpop.f32.mrf.mxu0
      %v8111 = vadd.f32 0.0, %v8110
      %v8112 = vpop.f32.mrf.mxu0
      %v8113 = vadd.f32 0.0, %v8112
      %8114 = vmatmul.bf16.gmra.mxu0 %v7966
      %v8115 = vpop.f32.mrf.mxu0
      %v8116 = vadd.f32 0.0, %v8115
      %v8117 = vpop.f32.mrf.mxu0
      %v8118 = vadd.f32 0.0, %v8117
      %8119 = vmatmul.bf16.gmra.mxu0 %v7968
      %v8120 = vpop.f32.mrf.mxu0
      %v8121 = vadd.f32 0.0, %v8120
      %v8122 = vpop.f32.mrf.mxu0
      %v8123 = vadd.f32 0.0, %v8122
      %8124 = vmatmul.bf16.gmra.mxu0 %v7970
      %v8125 = vpop.f32.mrf.mxu0
      %v8126 = vadd.f32 0.0, %v8125
      %v8127 = vpop.f32.mrf.mxu0
      %v8128 = vadd.f32 0.0, %v8127
      %8129 = vmatmul.bf16.gmra.mxu0 %v7972
      %v8130 = vpop.f32.mrf.mxu0
      %v8131 = vadd.f32 0.0, %v8130
      %v8132 = vpop.f32.mrf.mxu0
      %v8133 = vadd.f32 0.0, %v8132
      %8134 = vmatmul.bf16.gmra.mxu0 %v7974
      %v8135 = vpop.f32.mrf.mxu0
      %v8136 = vadd.f32 0.0, %v8135
      %v8137 = vpop.f32.mrf.mxu0
      %v8138 = vadd.f32 0.0, %v8137
      %8139 = vdwg.mxu0
      %v8140 = vadd.f32 %v7881, %v8051
      %v8141 = vadd.f32 %v7882, %v8053
      %v8142 = vadd.f32 %v7883, %v8056
      %v8143 = vadd.f32 %v7884, %v8058
      %v8144 = vadd.f32 %v7885, %v8061
      %v8145 = vadd.f32 %v7886, %v8063
      %v8146 = vadd.f32 %v7887, %v8066
      %v8147 = vadd.f32 %v7888, %v8068
      %v8148 = vadd.f32 %v7889, %v8071
      %v8149 = vadd.f32 %v7890, %v8073
      %v8150 = vadd.f32 %v7891, %v8076
      %v8151 = vadd.f32 %v7892, %v8078
      %v8152 = vadd.f32 %v7893, %v8081
      %v8153 = vadd.f32 %v7894, %v8083
      %v8154 = vadd.f32 %v7895, %v8086
      %v8155 = vadd.f32 %v7896, %v8088
      %v8156 = vadd.f32 %v7897, %v8091
      %v8157 = vadd.f32 %v7898, %v8093
      %v8158 = vadd.f32 %v7899, %v8096
      %v8159 = vadd.f32 %v7900, %v8098
      %v8160 = vadd.f32 %v7901, %v8101
      %v8161 = vadd.f32 %v7902, %v8103
      %v8162 = vadd.f32 %v7903, %v8106
      %v8163 = vadd.f32 %v7904, %v8108
      %v8164 = vadd.f32 %v7905, %v8111
      %v8165 = vadd.f32 %v7906, %v8113
      %v8166 = vadd.f32 %v7907, %v8116
      %v8167 = vadd.f32 %v7908, %v8118
      %v8168 = vadd.f32 %v7909, %v8121
      %v8169 = vadd.f32 %v7910, %v8123
      %v8170 = vadd.f32 %v7911, %v8126
      %v8171 = vadd.f32 %v7912, %v8128
      %v8172 = vadd.f32 %v7913, %v8131
      %v8173 = vadd.f32 %v7914, %v8133
      %v8174 = vadd.f32 %v7915, %v8136
      %v8175 = vadd.f32 %v7916, %v8138
      %v8176 = vld [vmem:[#allocation3 + $0xa8] sm:$0x3]
      %s8177 = scalar_lea.vmem %s6, 512
      %v8178 = vld [vmem:[%s8177] sm:$0xf]
      %v8179 = vld [vmem:[%s8177 + $0x4] sm:$0xf]
      %v8180 = vld [vmem:[%s8177 + $0x8] sm:$0xf]
      %v8181 = vld [vmem:[%s8177 + $0xc] sm:$0xf]
      %v8182 = vld [vmem:[%s8177 + $0x10] sm:$0xf]
      %v8183 = vld [vmem:[%s8177 + $0x14] sm:$0xf]
      %v8184 = vld [vmem:[%s8177 + $0x18] sm:$0xf]
      %v8185 = vld [vmem:[%s8177 + $0x1c] sm:$0xf]
      %v8186 = vld [vmem:[%s8177 + $0x20] sm:$0xf]
      %v8187 = vld [vmem:[%s8177 + $0x24] sm:$0xf]
      %v8188 = vld [vmem:[%s8177 + $0x28] sm:$0xf]
      %v8189 = vld [vmem:[%s8177 + $0x2c] sm:$0xf]
      %v8190 = vld [vmem:[%s8177 + $0x30] sm:$0xf]
      %v8191 = vld [vmem:[%s8177 + $0x34] sm:$0xf]
      %v8192 = vld [vmem:[%s8177 + $0x38] sm:$0xf]
      %v8193 = vld [vmem:[%s8177 + $0x3c] sm:$0xf]
      %v8195 = vunpack.c.l.b16 %v8176
      %v8196 = vpack.c.b16 %v8195, %v8195
      %v8198 = vshrl.u32 %v7937, 16
      %v8200 = vrot.slane %v8198, 1
      %v8201 = vshll.u32 %v7937, 16
      %v8203 = vrot.slane %v8201, 2
      %v8204 = vor.u32 %v8200, %v8203
      %v8205 = vrot.slane %v7580, 1
      %v8206 = vrot.slane %v7576, 2
      %v8207 = vor.u32 %v8205, %v8206
      %v8208 = vsel %vm4367, %v8204, %v8207
      %v8209 = vrot.slane %v7588, 1
      %v8210 = vrot.slane %v7584, 2
      %v8211 = vor.u32 %v8209, %v8210
      %v8212 = vsel %vm4367, %v8207, %v8211
      %v8213 = vrot.slane %v7596, 1
      %v8214 = vrot.slane %v7592, 2
      %v8215 = vor.u32 %v8213, %v8214
      %v8216 = vsel %vm4367, %v8211, %v8215
      %v8217 = vrot.slane %v7604, 1
      %v8218 = vrot.slane %v7600, 2
      %v8219 = vor.u32 %v8217, %v8218
      %v8220 = vsel %vm4367, %v8215, %v8219
      %v8221 = vrot.slane %v7612, 1
      %v8222 = vrot.slane %v7608, 2
      %v8223 = vor.u32 %v8221, %v8222
      %v8224 = vsel %vm4367, %v8219, %v8223
      %v8225 = vrot.slane %v7620, 1
      %v8226 = vrot.slane %v7616, 2
      %v8227 = vor.u32 %v8225, %v8226
      %v8228 = vsel %vm4367, %v8223, %v8227
      %v8229 = vrot.slane %v7628, 1
      %v8230 = vrot.slane %v7624, 2
      %v8231 = vor.u32 %v8229, %v8230
      %v8232 = vsel %vm4367, %v8227, %v8231
      %v8233 = vrot.slane %v7636, 1
      %v8234 = vrot.slane %v7632, 2
      %v8235 = vor.u32 %v8233, %v8234
      %v8236 = vsel %vm4367, %v8231, %v8235
      %v8237 = vrot.slane %v7644, 1
      %v8238 = vrot.slane %v7640, 2
      %v8239 = vor.u32 %v8237, %v8238
      %v8240 = vsel %vm4367, %v8235, %v8239
      %v8241 = vrot.slane %v7652, 1
      %v8242 = vrot.slane %v7648, 2
      %v8243 = vor.u32 %v8241, %v8242
      %v8244 = vsel %vm4367, %v8239, %v8243
      %v8245 = vrot.slane %v7660, 1
      %v8246 = vrot.slane %v7656, 2
      %v8247 = vor.u32 %v8245, %v8246
      %v8248 = vsel %vm4367, %v8243, %v8247
      %v8249 = vrot.slane %v7668, 1
      %v8250 = vrot.slane %v7664, 2
      %v8251 = vor.u32 %v8249, %v8250
      %v8252 = vsel %vm4367, %v8247, %v8251
      %v8253 = vrot.slane %v7676, 1
      %v8254 = vrot.slane %v7672, 2
      %v8255 = vor.u32 %v8253, %v8254
      %v8256 = vsel %vm4367, %v8251, %v8255
      %v8257 = vrot.slane %v7684, 1
      %v8258 = vrot.slane %v7680, 2
      %v8259 = vor.u32 %v8257, %v8258
      %v8260 = vsel %vm4367, %v8255, %v8259
      %v8261 = vrot.slane %v7692, 1
      %v8262 = vrot.slane %v7688, 2
      %v8263 = vor.u32 %v8261, %v8262
      %v8264 = vsel %vm4367, %v8259, %v8263
      %v8265 = vrot.slane %v7700, 1
      %v8266 = vrot.slane %v7696, 2
      %v8267 = vor.u32 %v8265, %v8266
      %v8268 = vsel %vm4367, %v8263, %v8267
      %v8269 = vrot.slane %v7708, 1
      %v8270 = vrot.slane %v7704, 2
      %v8271 = vor.u32 %v8269, %v8270
      %v8272 = vsel %vm4367, %v8267, %v8271
      %v8274 = vshrl.u32 %v8196, 16
      %v8276 = vrot.slane %v8274, 1
      %v8277 = vshll.u32 %v8196, 16
      %v8279 = vrot.slane %v8277, 2
      %v8280 = vor.u32 %v8276, %v8279
      %v8281 = vsel %vm4367, %v8271, %v8280
      %v8316 = vunpack.c.l.b16 %v8178
      %v8317 = vunpack.c.l.b16 %v8179
      %v8318 = vunpack.c.l.b16 %v8180
      %v8319 = vunpack.c.l.b16 %v8181
      %v8320 = vunpack.c.l.b16 %v8182
      %v8321 = vunpack.c.l.b16 %v8183
      %v8322 = vunpack.c.l.b16 %v8184
      %v8323 = vunpack.c.l.b16 %v8185
      %v8324 = vunpack.c.l.b16 %v8186
      %v8325 = vunpack.c.l.b16 %v8187
      %v8326 = vunpack.c.l.b16 %v8188
      %v8327 = vunpack.c.l.b16 %v8189
      %v8328 = vunpack.c.l.b16 %v8190
      %v8329 = vunpack.c.l.b16 %v8191
      %v8330 = vunpack.c.l.b16 %v8192
      %v8331 = vunpack.c.l.b16 %v8193
      %v8332 = vpack.c.b16 %v8317, %v8316
      %v8333 = vpack.c.b16 %v8319, %v8318
      %v8334 = vpack.c.b16 %v8321, %v8320
      %v8335 = vpack.c.b16 %v8323, %v8322
      %v8336 = vpack.c.b16 %v8325, %v8324
      %v8337 = vpack.c.b16 %v8327, %v8326
      %v8338 = vpack.c.b16 %v8329, %v8328
      %v8339 = vpack.c.b16 %v8331, %v8330
      %8348 = vmatpush.bf16.msra.mxu0 %v8339
      %8349 = vmatpush.bf16.msra.mxu0 %v8338
      %8350 = vmatpush.bf16.msra.mxu0 %v8337
      %8351 = vmatpush.bf16.msra.mxu0 %v8336
      %8352 = vmatpush.bf16.msra.mxu0 %v8335
      %8353 = vmatpush.bf16.msra.mxu0 %v8334
      %8354 = vmatpush.bf16.msra.mxu0 %v8333
      %8355 = vmatpush.bf16.msra.mxu0 %v8332
      %8356 = vmatmul.bf16.gmra.mxu0 %v8208
      %v8357 = vpop.f32.mrf.mxu0
      %v8358 = vadd.f32 0.0, %v8357
      %v8359 = vpop.f32.mrf.mxu0
      %v8360 = vadd.f32 0.0, %v8359
      %8361 = vmatmul.bf16.gmra.mxu0 %v8212
      %v8362 = vpop.f32.mrf.mxu0
      %v8363 = vadd.f32 0.0, %v8362
      %v8364 = vpop.f32.mrf.mxu0
      %v8365 = vadd.f32 0.0, %v8364
      %8366 = vmatmul.bf16.gmra.mxu0 %v8216
      %v8367 = vpop.f32.mrf.mxu0
      %v8368 = vadd.f32 0.0, %v8367
      %v8369 = vpop.f32.mrf.mxu0
      %v8370 = vadd.f32 0.0, %v8369
      %8371 = vmatmul.bf16.gmra.mxu0 %v8220
      %v8372 = vpop.f32.mrf.mxu0
      %v8373 = vadd.f32 0.0, %v8372
      %v8374 = vpop.f32.mrf.mxu0
      %v8375 = vadd.f32 0.0, %v8374
      %8376 = vmatmul.bf16.gmra.mxu0 %v8224
      %v8377 = vpop.f32.mrf.mxu0
      %v8378 = vadd.f32 0.0, %v8377
      %v8379 = vpop.f32.mrf.mxu0
      %v8380 = vadd.f32 0.0, %v8379
      %8381 = vmatmul.bf16.gmra.mxu0 %v8228
      %v8382 = vpop.f32.mrf.mxu0
      %v8383 = vadd.f32 0.0, %v8382
      %v8384 = vpop.f32.mrf.mxu0
      %v8385 = vadd.f32 0.0, %v8384
      %8386 = vmatmul.bf16.gmra.mxu0 %v8232
      %v8387 = vpop.f32.mrf.mxu0
      %v8388 = vadd.f32 0.0, %v8387
      %v8389 = vpop.f32.mrf.mxu0
      %v8390 = vadd.f32 0.0, %v8389
      %8391 = vmatmul.bf16.gmra.mxu0 %v8236
      %v8392 = vpop.f32.mrf.mxu0
      %v8393 = vadd.f32 0.0, %v8392
      %v8394 = vpop.f32.mrf.mxu0
      %v8395 = vadd.f32 0.0, %v8394
      %8396 = vmatmul.bf16.gmra.mxu0 %v8240
      %v8397 = vpop.f32.mrf.mxu0
      %v8398 = vadd.f32 0.0, %v8397
      %v8399 = vpop.f32.mrf.mxu0
      %v8400 = vadd.f32 0.0, %v8399
      %8401 = vmatmul.bf16.gmra.mxu0 %v8244
      %v8402 = vpop.f32.mrf.mxu0
      %v8403 = vadd.f32 0.0, %v8402
      %v8404 = vpop.f32.mrf.mxu0
      %v8405 = vadd.f32 0.0, %v8404
      %8406 = vmatmul.bf16.gmra.mxu0 %v8248
      %v8407 = vpop.f32.mrf.mxu0
      %v8408 = vadd.f32 0.0, %v8407
      %v8409 = vpop.f32.mrf.mxu0
      %v8410 = vadd.f32 0.0, %v8409
      %8411 = vmatmul.bf16.gmra.mxu0 %v8252
      %v8412 = vpop.f32.mrf.mxu0
      %v8413 = vadd.f32 0.0, %v8412
      %v8414 = vpop.f32.mrf.mxu0
      %v8415 = vadd.f32 0.0, %v8414
      %8416 = vmatmul.bf16.gmra.mxu0 %v8256
      %v8417 = vpop.f32.mrf.mxu0
      %v8418 = vadd.f32 0.0, %v8417
      %v8419 = vpop.f32.mrf.mxu0
      %v8420 = vadd.f32 0.0, %v8419
      %8421 = vmatmul.bf16.gmra.mxu0 %v8260
      %v8422 = vpop.f32.mrf.mxu0
      %v8423 = vadd.f32 0.0, %v8422
      %v8424 = vpop.f32.mrf.mxu0
      %v8425 = vadd.f32 0.0, %v8424
      %8426 = vmatmul.bf16.gmra.mxu0 %v8264
      %v8427 = vpop.f32.mrf.mxu0
      %v8428 = vadd.f32 0.0, %v8427
      %v8429 = vpop.f32.mrf.mxu0
      %v8430 = vadd.f32 0.0, %v8429
      %8431 = vmatmul.bf16.gmra.mxu0 %v8268
      %v8432 = vpop.f32.mrf.mxu0
      %v8433 = vadd.f32 0.0, %v8432
      %v8434 = vpop.f32.mrf.mxu0
      %v8435 = vadd.f32 0.0, %v8434
      %8436 = vmatmul.bf16.gmra.mxu0 %v8272
      %v8437 = vpop.f32.mrf.mxu0
      %v8438 = vadd.f32 0.0, %v8437
      %v8439 = vpop.f32.mrf.mxu0
      %v8440 = vadd.f32 0.0, %v8439
      %8441 = vmatmul.bf16.gmra.mxu0 %v8281
      %v8442 = vpop.f32.mrf.mxu0
      %v8443 = vadd.f32 0.0, %v8442
      %v8444 = vpop.f32.mrf.mxu0
      %v8445 = vadd.f32 0.0, %v8444
      %8446 = vdwg.mxu0
      %v8447 = vadd.f32 %v8140, %v8358
      %v8448 = vadd.f32 %v8141, %v8360
      %v8449 = vadd.f32 %v8142, %v8363
      %v8450 = vadd.f32 %v8143, %v8365
      %v8451 = vadd.f32 %v8144, %v8368
      %v8452 = vadd.f32 %v8145, %v8370
      %v8453 = vadd.f32 %v8146, %v8373
      %v8454 = vadd.f32 %v8147, %v8375
      %v8455 = vadd.f32 %v8148, %v8378
      %v8456 = vadd.f32 %v8149, %v8380
      %v8457 = vadd.f32 %v8150, %v8383
      %v8458 = vadd.f32 %v8151, %v8385
      %v8459 = vadd.f32 %v8152, %v8388
      %v8460 = vadd.f32 %v8153, %v8390
      %v8461 = vadd.f32 %v8154, %v8393
      %v8462 = vadd.f32 %v8155, %v8395
      %v8463 = vadd.f32 %v8156, %v8398
      %v8464 = vadd.f32 %v8157, %v8400
      %v8465 = vadd.f32 %v8158, %v8403
      %v8466 = vadd.f32 %v8159, %v8405
      %v8467 = vadd.f32 %v8160, %v8408
      %v8468 = vadd.f32 %v8161, %v8410
      %v8469 = vadd.f32 %v8162, %v8413
      %v8470 = vadd.f32 %v8163, %v8415
      %v8471 = vadd.f32 %v8164, %v8418
      %v8472 = vadd.f32 %v8165, %v8420
      %v8473 = vadd.f32 %v8166, %v8423
      %v8474 = vadd.f32 %v8167, %v8425
      %v8475 = vadd.f32 %v8168, %v8428
      %v8476 = vadd.f32 %v8169, %v8430
      %v8477 = vadd.f32 %v8170, %v8433
      %v8478 = vadd.f32 %v8171, %v8435
      %v8479 = vadd.f32 %v8172, %v8438
      %v8480 = vadd.f32 %v8173, %v8440
      %v8481 = vadd.f32 %v8174, %v8443
      %v8482 = vadd.f32 %v8175, %v8445
      %v8483 = vld [vmem:[%s7] sm:$0x1]
      %v8485 = vperm.slane %v8483, 0
      %v8487 = vadd.f32 %v8447, %v8485
      %v8488 = vadd.f32 %v8448, %v8485
      %v8489 = vadd.f32 %v8449, %v8485
      %v8490 = vadd.f32 %v8450, %v8485
      %v8491 = vadd.f32 %v8451, %v8485
      %v8492 = vadd.f32 %v8452, %v8485
      %v8493 = vadd.f32 %v8453, %v8485
      %v8494 = vadd.f32 %v8454, %v8485
      %v8495 = vadd.f32 %v8455, %v8485
      %v8496 = vadd.f32 %v8456, %v8485
      %v8497 = vadd.f32 %v8457, %v8485
      %v8498 = vadd.f32 %v8458, %v8485
      %v8499 = vadd.f32 %v8459, %v8485
      %v8500 = vadd.f32 %v8460, %v8485
      %v8501 = vadd.f32 %v8461, %v8485
      %v8502 = vadd.f32 %v8462, %v8485
      %v8503 = vadd.f32 %v8463, %v8485
      %v8504 = vadd.f32 %v8464, %v8485
      %v8505 = vadd.f32 %v8465, %v8485
      %v8506 = vadd.f32 %v8466, %v8485
      %v8507 = vadd.f32 %v8467, %v8485
      %v8508 = vadd.f32 %v8468, %v8485
      %v8509 = vadd.f32 %v8469, %v8485
      %v8510 = vadd.f32 %v8470, %v8485
      %v8511 = vadd.f32 %v8471, %v8485
      %v8512 = vadd.f32 %v8472, %v8485
      %v8513 = vadd.f32 %v8473, %v8485
      %v8514 = vadd.f32 %v8474, %v8485
      %v8515 = vadd.f32 %v8475, %v8485
      %v8516 = vadd.f32 %v8476, %v8485
      %v8517 = vadd.f32 %v8477, %v8485
      %v8518 = vadd.f32 %v8478, %v8485
      %v8519 = vadd.f32 %v8479, %v8485
      %v8520 = vadd.f32 %v8480, %v8485
      %v8521 = vadd.f32 %v8481, %v8485
      %v8522 = vadd.f32 %v8482, %v8485
      %8523 = vxpose.xlu0.b32.start [1/16] %v8487, 128
      %8524 = vxpose.xlu0.b32.cont [2/16] %v8488, 128
      %8525 = vxpose.xlu0.b32.cont [3/16] %v8489, 128
      %8526 = vxpose.xlu0.b32.cont [4/16] %v8490, 128
      %8527 = vxpose.xlu0.b32.cont [5/16] %v8491, 128
      %8528 = vxpose.xlu0.b32.cont [6/16] %v8492, 128
      %8529 = vxpose.xlu0.b32.cont [7/16] %v8493, 128
      %8530 = vxpose.xlu0.b32.cont [8/16] %v8494, 128
      %8531 = vxpose.xlu0.b32.cont [9/16] %v8495, 128
      %8532 = vxpose.xlu0.b32.cont [10/16] %v8496, 128
      %8533 = vxpose.xlu0.b32.cont [11/16] %v8497, 128
      %8534 = vxpose.xlu0.b32.cont [12/16] %v8498, 128
      %8535 = vxpose.xlu0.b32.cont [13/16] %v8499, 128
      %8536 = vxpose.xlu0.b32.cont [14/16] %v8500, 128
      %8537 = vxpose.xlu0.b32.cont [15/16] %v8501, 128
      %8538 = vxpose.xlu0.b32.end [16/16] %v8502, 128
      %v8539 = vpop.trf.xlu0
      %v8540 = vpop.trf.xlu0
      %v8541 = vpop.trf.xlu0
      %v8542 = vpop.trf.xlu0
      %v8543 = vpop.trf.xlu0
      %v8544 = vpop.trf.xlu0
      %v8545 = vpop.trf.xlu0
      %v8546 = vpop.trf.xlu0
      %v8547 = vpop.trf.xlu0
      %v8548 = vpop.trf.xlu0
      %v8549 = vpop.trf.xlu0
      %v8550 = vpop.trf.xlu0
      %v8551 = vpop.trf.xlu0
      %v8552 = vpop.trf.xlu0
      %v8553 = vpop.trf.xlu0
      %v8554 = vpop.trf.xlu0
      %8555 = vxpose.xlu0.b32.start [1/16] %v8503, 128
      %8556 = vxpose.xlu0.b32.cont [2/16] %v8504, 128
      %8557 = vxpose.xlu0.b32.cont [3/16] %v8505, 128
      %8558 = vxpose.xlu0.b32.cont [4/16] %v8506, 128
      %8559 = vxpose.xlu0.b32.cont [5/16] %v8507, 128
      %8560 = vxpose.xlu0.b32.cont [6/16] %v8508, 128
      %8561 = vxpose.xlu0.b32.cont [7/16] %v8509, 128
      %8562 = vxpose.xlu0.b32.cont [8/16] %v8510, 128
      %8563 = vxpose.xlu0.b32.cont [9/16] %v8511, 128
      %8564 = vxpose.xlu0.b32.cont [10/16] %v8512, 128
      %8565 = vxpose.xlu0.b32.cont [11/16] %v8513, 128
      %8566 = vxpose.xlu0.b32.cont [12/16] %v8514, 128
      %8567 = vxpose.xlu0.b32.cont [13/16] %v8515, 128
      %8568 = vxpose.xlu0.b32.cont [14/16] %v8516, 128
      %8569 = vxpose.xlu0.b32.cont [15/16] %v8517, 128
      %8570 = vxpose.xlu0.b32.end [16/16] %v8518, 128
      %v8571 = vpop.trf.xlu0
      %v8572 = vpop.trf.xlu0
      %v8573 = vpop.trf.xlu0
      %v8574 = vpop.trf.xlu0
      %v8575 = vpop.trf.xlu0
      %v8576 = vpop.trf.xlu0
      %v8577 = vpop.trf.xlu0
      %v8578 = vpop.trf.xlu0
      %v8579 = vpop.trf.xlu0
      %v8580 = vpop.trf.xlu0
      %v8581 = vpop.trf.xlu0
      %v8582 = vpop.trf.xlu0
      %v8583 = vpop.trf.xlu0
      %v8584 = vpop.trf.xlu0
      %v8585 = vpop.trf.xlu0
      %v8586 = vpop.trf.xlu0
      %8587 = vxpose.xlu0.b32.start [1/16] %v8519, 128
      %8588 = vxpose.xlu0.b32.cont [2/16] %v8520, 128
      %8589 = vxpose.xlu0.b32.cont [3/16] %v8521, 128
      %8590 = vxpose.xlu0.b32.cont [4/16] %v8522, 128
      %8591 = vxpose.xlu0.b32.cont [5/16] 0.0, 128
      %8592 = vxpose.xlu0.b32.cont [6/16] 0.0, 128
      %8593 = vxpose.xlu0.b32.cont [7/16] 0.0, 128
      %8594 = vxpose.xlu0.b32.cont [8/16] 0.0, 128
      %8595 = vxpose.xlu0.b32.cont [9/16] 0.0, 128
      %8596 = vxpose.xlu0.b32.cont [10/16] 0.0, 128
      %8597 = vxpose.xlu0.b32.cont [11/16] 0.0, 128
      %8598 = vxpose.xlu0.b32.cont [12/16] 0.0, 128
      %8599 = vxpose.xlu0.b32.cont [13/16] 0.0, 128
      %8600 = vxpose.xlu0.b32.cont [14/16] 0.0, 128
      %8601 = vxpose.xlu0.b32.cont [15/16] 0.0, 128
      %8602 = vxpose.xlu0.b32.end [16/16] 0.0, 128
      %v8603 = vpop.trf.xlu0
      %v8604 = vpop.trf.xlu0
      %v8605 = vpop.trf.xlu0
      %v8606 = vpop.trf.xlu0
      %v8607 = vpop.trf.xlu0
      %v8608 = vpop.trf.xlu0
      %v8609 = vpop.trf.xlu0
      %v8610 = vpop.trf.xlu0
      %v8611 = vpop.trf.xlu0
      %v8612 = vpop.trf.xlu0
      %v8613 = vpop.trf.xlu0
      %v8614 = vpop.trf.xlu0
      %v8615 = vpop.trf.xlu0
      %v8616 = vpop.trf.xlu0
      %v8617 = vpop.trf.xlu0
      %v8618 = vpop.trf.xlu0
      %v8619 = vxor.u32 %v8539, 2147483648
      %v8620 = vxor.u32 %v8571, 2147483648
      %v8621 = vxor.u32 %v8603, 2147483648
      %v8622 = vmul.f32 %v8619, 1.442695
      %v8623 = vpow.pop %v8622
      %v8624 = vmul.f32 %v8620, 1.442695
      %v8625 = vpow.pop %v8624
      %v8626 = vmul.f32 %v8621, 1.442695
      %v8627 = vpow.pop %v8626
      %v8628 = vadd.f32 %v8623, 1.0
      %v8629 = vadd.f32 %v8625, 1.0
      %v8630 = vadd.f32 %v8627, 1.0
      %v8631 = vrcp.pop %v8628
      %v8632 = vmul.f32 %v8628, %v8631
      %v8633 = vsub.f32 1.0, %v8632
      %v8634 = vmul.f32 %v8631, %v8633
      %v8635 = vadd.f32 %v8631, %v8634
      %vm8636 = vweird.f32 %v8628
      %vm8637 = vweird.f32 %v8631
      %vm8638 = vmor %vm8636, %vm8637
      %v8639 = vsel %vm8638, %v8631, %v8635
      %v8640 = vand.u32 2147483647, %v8628
      %vm8641 = vcmp.eq.f32.partialorder %v8640, 8.507059e+37
      %v8642 = vand.u32 %v8628, 2147483648
      %v8643 = vor.u32 1.1754944e-38, %v8642
      %v8644 = vsel %vm8641, %v8643, %v8639
      %v8645 = vmul.f32 1.0, %v8644
      %v8646 = vrcp.pop %v8629
      %v8647 = vmul.f32 %v8629, %v8646
      %v8648 = vsub.f32 1.0, %v8647
      %v8649 = vmul.f32 %v8646, %v8648
      %v8650 = vadd.f32 %v8646, %v8649
      %vm8651 = vweird.f32 %v8629
      %vm8652 = vweird.f32 %v8646
      %vm8653 = vmor %vm8651, %vm8652
      %v8654 = vsel %vm8653, %v8646, %v8650
      %v8655 = vand.u32 2147483647, %v8629
      %vm8656 = vcmp.eq.f32.partialorder %v8655, 8.507059e+37
      %v8657 = vand.u32 %v8629, 2147483648
      %v8658 = vor.u32 1.1754944e-38, %v8657
      %v8659 = vsel %vm8656, %v8658, %v8654
      %v8660 = vmul.f32 1.0, %v8659
      %v8661 = vrcp.pop %v8630
      %v8662 = vmul.f32 %v8630, %v8661
      %v8663 = vsub.f32 1.0, %v8662
      %v8664 = vmul.f32 %v8661, %v8663
      %v8665 = vadd.f32 %v8661, %v8664
      %vm8666 = vweird.f32 %v8630
      %vm8667 = vweird.f32 %v8661
      %vm8668 = vmor %vm8666, %vm8667
      %v8669 = vsel %vm8668, %v8661, %v8665
      %v8670 = vand.u32 2147483647, %v8630
      %vm8671 = vcmp.eq.f32.partialorder %v8670, 8.507059e+37
      %v8672 = vand.u32 %v8630, 2147483648
      %v8673 = vor.u32 1.1754944e-38, %v8672
      %v8674 = vsel %vm8671, %v8673, %v8669
      %v8675 = vmul.f32 1.0, %v8674
      %8676 = vst [vmem:[%s305] sm:$0xff] %v8645
      %8677 = vst [vmem:[%s305 + $0x8] sm:$0xff] %v8660
      %8678 = vst.msk [vmem:[%s305 + $0x10] sm:$0xff] %vm525, %v8675
      %p8679 = scmp.lt.s32.totalorder %s19, 1
      %s8680 = scalar_select %p8679, %s19, 1
      %s8681 = smul.addr %s8680, 3
      %s8682 = smul.addr %s8681, 8
      %s8683 = scalar_lea.vmem %s8, %s8682
      // Predicated region
      $region53: #{dec_img_forward.1} parent=51 // pred_check
        %p8684 = pneg %p210
      $region54: #{dec_img_forward.1} parent=51 // pred_check_branch
        %8686 = sbr.rel (%p8684) target = $region56
      $region55: #{dec_img_forward.1} parent=51 // pred_region
        _
      $region56: #{dec_img_forward.1} parent=51 // pred_fallthru
        _
    $region52: #{dec_img_forward.1} parent=5 // pred_fallthru
      _
    %p8687 = scmp.le.s32.totalorder 2, %s14
    // Predicated region
    $region57: #{dec_img_forward.1} parent=5 // pred_check
      %p8688 = pneg %p8687
    $region58: #{dec_img_forward.1} parent=5 // pred_check_branch
      %8690 = sbr.rel (%p8688) target = $region60
    $region59: #{dec_img_forward.1} parent=5 // pred_region
      %s8691 = ssub.s32 %s14, 2
      // Predicated region
      $region61: #{dec_img_forward.1} parent=59 // pred_check
        %p8692 = pneg %p216
      $region62: #{dec_img_forward.1} parent=59 // pred_check_branch
        %8694 = sbr.rel (%p8692) target = $region64
      $region63: #{dec_img_forward.1} parent=59 // pred_region
        %p8695 = scmp.lt.s32.totalorder %s20, 1
        %s8696 = scalar_select %p8695, %s20, 1
        %s8697 = smul.addr %s8696, 3
        %s8698 = smul.addr %s8697, 8
        %s8699 = scalar_lea.vmem %s8, %s8698
      $region64: #{dec_img_forward.1} parent=59 // pred_fallthru
        _
    $region60: #{dec_img_forward.1} parent=5 // pred_fallthru
      _
  $region6: #{dec_img_forward.1} parent=0 // loop_footer
    %s18 = sadd.s32 1, %s14
  $region7: #{dec_img_forward.1} parent=0 // loop_footer_branch
    %13 = sbr.rel target = $region3
  $region8: #{dec_img_forward.1} parent=0 // loop_exit
    _

</llo_original>
